<compile_context>
chip_gen: v7x
topology: tpu7x:2x2x1
jax: 0.10.0
libtpu: 0.0.40
codegen_flags: <defaults>
</compile_context>

<pallas_src>
import jax
import jax.numpy as jnp
from jax import lax
from jax.experimental import pallas as pl
from jax.experimental.pallas import tpu as pltpu

NEG_SLOPE = 0.2
Z_DIM = 36          # flattened latent size (z.view(B, 36))
EMB_N = 6           # number of labels
EMB_D = 6           # embedding dim
H1, H2, H3, OUT = 256, 512, 1024, 3072
OUT_TILE = 1024     # lane-dense (multiple of 128) tile of the 3072-wide output


def _leaky_relu(x):
    # slope 0.2 < 1  =>  max(x, 0.2*x) is exactly LeakyReLU(0.2)
    return jnp.maximum(x, NEG_SLOPE * x)


# ------------------------------ Pallas kernel ------------------------------ #

def generator_kernel(z_ref, lab_ref, w1z_ref, w1e_ref, w2_ref, b2_ref,
                     w3_ref, b3_ref, w4_ref, b4_ref, o_ref, h3_ref):
    """Fused Generator forward for one (batch tile, output tile) grid point.

    z_ref:   (TB, 36)        f32 latent rows
    lab_ref: (TB, 1)         int32 labels in [0, 6)
    w1z_ref: (36, 256)       bf16  W1 rows acting on z
    w1e_ref: (6, 256)        bf16  E @ W1[36:] + b1  (embedding + bias folded)
    w2_ref:  (256, 512)      bf16
    w3_ref:  (512, 1024)     bf16
    w4_ref:  (1024, 1024)    bf16  one OUT tile of W4 (streamed over grid axis 1)
    b*_ref:  (1, Hk)/(1,1024) f32  biases
    o_ref:   (TB, 1024)      one lane-dense output tile
    h3_ref:  (TB, 1024)      bf16 VMEM scratch holding layer-3 activations
    """
    n = pl.program_id(1)

    # Layers 1..3 only on the first OUT tile of each batch tile; result is kept
    # in VMEM scratch for the remaining OUT tiles.
    @pl.when(n == 0)
    def _():
        z = z_ref[...]                                    # (TB, 36) f32
        lab = lab_ref[...]                                # (TB, 1)  int32
        tb = z.shape[0]

        # one_hot(labels, 6) via iota compare (exact; 0/1 are exact in bf16).
        onehot = (lab == lax.broadcasted_iota(jnp.int32, (tb, EMB_N), 1)
                  ).astype(jnp.bfloat16)                  # (TB, 6)

        h = jnp.dot(z.astype(jnp.bfloat16), w1z_ref[...],
                    preferred_element_type=jnp.float32)
        h = h + jnp.dot(onehot, w1e_ref[...],
                        preferred_element_type=jnp.float32)
        h = _leaky_relu(h)                                # b1 folded into w1e

        h = _leaky_relu(
            jnp.dot(h.astype(jnp.bfloat16), w2_ref[...],
                    preferred_element_type=jnp.float32) + b2_ref[...])
        h = _leaky_relu(
            jnp.dot(h.astype(jnp.bfloat16), w3_ref[...],
                    preferred_element_type=jnp.float32) + b3_ref[...])
        h3_ref[...] = h.astype(jnp.bfloat16)              # (TB, 1024)

    # Layer 4, one 1024-wide OUT tile per grid step (w4 streams under compute).
    o_ref[...] = (jnp.dot(h3_ref[...], w4_ref[...],
                          preferred_element_type=jnp.float32)
                  + b4_ref[...]).astype(o_ref.dtype)


# -------------------------------- wrapper ---------------------------------- #

def _pick_batch_tile(B, batch_tile):
    """Batch tile: cap at `batch_tile`; otherwise split into >=2 sublane-aligned
    grid steps so the 'parallel' axis can shard across v7x's two TensorCores."""
    if B > batch_tile:
        return batch_tile
    half = -(-B // 2)                 # cdiv(B, 2)
    tb = ((half + 7) // 8) * 8        # round up to a sublane multiple
    if tb >= B:
        return B                      # too small to split without padding waste
    return tb


def generator_forward(z, labels, p, *, batch_tile=512, out_dtype=jnp.float32):
    """z: (B, 36) (or any (B, ...) with 36 elements/row), labels: (B,) int.

    Returns (B, 3, 32, 32), matching the PyTorch module.
    Pass out_dtype=jnp.bfloat16 to halve HBM output writeback (v6e/v5e).
    """
    B = z.shape[0]
    z2d = z.reshape(B, Z_DIM).astype(jnp.float32)
    lab2d = labels.reshape(B, 1).astype(jnp.int32)

    hp = jax.lax.Precision.HIGHEST
    w1 = p["w1"]
    w1z = w1[:Z_DIM].astype(jnp.bfloat16)                          # (36, 256)
    # Embedding AND b1 folded into the one-hot weight (each one-hot row sums to 1).
    w1e = (jnp.dot(p["emb"], w1[Z_DIM:], precision=hp)
           + p["b1"][None, :]).astype(jnp.bfloat16)                # (6, 256)
    w2 = p["w2"].astype(jnp.bfloat16)
    w3 = p["w3"].astype(jnp.bfloat16)
    w4 = p["w4"].astype(jnp.bfloat16)
    b2 = p["b2"].reshape(1, H2).astype(jnp.float32)
    b3 = p["b3"].reshape(1, H3).astype(jnp.float32)
    b4 = p["b4"].reshape(1, OUT).astype(jnp.float32)

    tb = _pick_batch_tile(B, batch_tile)
    n_out_tiles = OUT // OUT_TILE                                   # 3
    grid = (pl.cdiv(B, tb), n_out_tiles)

    batch_map = lambda i, n: (i, 0)   # tiles over batch rows (constant in n)
    const_map = lambda i, n: (0, 0)   # constant blocks: DMA'd once
    w4_map = lambda i, n: (0, n)      # last-layer weight streamed over OUT
    out_map = lambda i, n: (i, n)

    single = pl.Buffered(1)           # constant index => second buffer is waste

    out = pl.pallas_call(
        generator_kernel,
        out_shape=jax.ShapeDtypeStruct((B, OUT), out_dtype),
        grid=grid,
        in_specs=[
            pl.BlockSpec((tb, Z_DIM), batch_map),
            pl.BlockSpec((tb, 1), batch_map),
            pl.BlockSpec((Z_DIM, H1), const_map, pipeline_mode=single),
            pl.BlockSpec((EMB_N, H1), const_map, pipeline_mode=single),
            pl.BlockSpec((H1, H2), const_map, pipeline_mode=single),
            pl.BlockSpec((1, H2), const_map, pipeline_mode=single),
            pl.BlockSpec((H2, H3), const_map, pipeline_mode=single),
            pl.BlockSpec((1, H3), const_map, pipeline_mode=single),
            pl.BlockSpec((H3, OUT_TILE), w4_map),   # streamed (double-buffered)
            pl.BlockSpec((1, OUT_TILE), w4_map),
        ],
        out_specs=pl.BlockSpec((tb, OUT_TILE), out_map),
        scratch_shapes=[pltpu.VMEM((tb, H3), jnp.bfloat16)],
        compiler_params=pltpu.CompilerParams(
            dimension_semantics=("parallel", "arbitrary"),
        ),
    )(z2d, lab2d, w1z, w1e, w2, b2, w3, b3, w4, b4)

    return out.reshape(B, 3, 32, 32)


# ----------------------------- parameter setup ----------------------------- #

def make_params(key):
    ks = jax.random.split(key, 9)

    def init(k, shape, scale):
        return scale * jax.random.normal(k, shape, jnp.float32)

    p = {}
    p["emb"] = jax.random.normal(ks[0], (EMB_N, EMB_D), jnp.float32)
    p["w1"] = init(ks[1], (Z_DIM + EMB_D, H1), 0.05)   # (in, out) layout
    p["b1"] = init(ks[2], (H1,), 0.01)
    p["w2"] = init(ks[3], (H1, H2), 0.05)
    p["b2"] = init(ks[4], (H2,), 0.01)
    p["w3"] = init(ks[5], (H2, H3), 0.05)
    p["b3"] = init(ks[6], (H3,), 0.01)
    p["w4"] = init(ks[7], (H3, OUT), 0.05)
    p["b4"] = init(ks[8], (OUT,), 0.01)
    return p


# -------------------------------- reference -------------------------------- #

def generator_reference(z, labels, p):
    """Pure-JAX f32 HIGHEST-precision reference of the PyTorch forward."""
    B = z.shape[0]
    hp = jax.lax.Precision.HIGHEST
    z2d = z.reshape(B, Z_DIM).astype(jnp.float32)
    c = p["emb"][labels]                                       # embedding gather
    x = jnp.concatenate([z2d, c], axis=1)                      # (B, 42)
    h = _leaky_relu(jnp.dot(x, p["w1"], precision=hp) + p["b1"])
    h = _leaky_relu(jnp.dot(h, p["w2"], precision=hp) + p["b2"])
    h = _leaky_relu(jnp.dot(h, p["w3"], precision=hp) + p["b3"])
    out = jnp.dot(h, p["w4"], precision=hp) + p["b4"]
    return out.reshape(B, 3, 32, 32)


# ---------------------------------- main ----------------------------------- #

if __name__ == "__main__":
    key = jax.random.PRNGKey(0)
    kz, kl, kp = jax.random.split(key, 3)

    B = 2
    z = jax.random.normal(kz, (B, Z_DIM), jnp.float32)
    labels = jax.random.randint(kl, (B,), 0, EMB_N, dtype=jnp.int32)
    params = make_params(kp)

    fwd = jax.jit(generator_forward)
    out = jax.block_until_ready(fwd(z, labels, params))
    assert out.shape == (B, 3, 32, 32), out.shape

    ref = jax.block_until_ready(generator_reference(z, labels, params))
    err = float(jnp.max(jnp.abs(out - ref)))
    scale = float(jnp.max(jnp.abs(ref)))
    # Kernel matmul operands are bf16 (matching the default MXU precision);
    # compare against the f32 HIGHEST reference with a relative tolerance.
    assert err <= 1e-3 + 3e-2 * scale, f"max abs err {err} (ref scale {scale})"

    print("KERNEL_OK")
</pallas_src>

<mosaic_0001>
module attributes {stable_mosaic.version = 11 : i64} {
  func.func @generator_kernel(%arg0: i32, %arg1: i32, %arg2: memref<2x36xf32, #tpu.memory_space<vmem>>, %arg3: memref<2x1xi32, #tpu.memory_space<vmem>>, %arg4: memref<36x256xbf16, #tpu.memory_space<vmem>>, %arg5: memref<6x256xbf16, #tpu.memory_space<vmem>>, %arg6: memref<256x512xbf16, #tpu.memory_space<vmem>>, %arg7: memref<1x512xf32, #tpu.memory_space<vmem>>, %arg8: memref<512x1024xbf16, #tpu.memory_space<vmem>>, %arg9: memref<1x1024xf32, #tpu.memory_space<vmem>>, %arg10: memref<1024x1024xbf16, #tpu.memory_space<vmem>>, %arg11: memref<1x1024xf32, #tpu.memory_space<vmem>>, %arg12: memref<2x1024xf32, #tpu.memory_space<vmem>>, %arg13: memref<2x1024xbf16, #tpu.memory_space<vmem>>) attributes {dimension_semantics = [#tpu.dimension_semantics<parallel>, #tpu.dimension_semantics<arbitrary>], iteration_bounds = array<i64: 1, 3>, scalar_prefetch = 0 : i64, scratch_operands = 1 : i64, tpu.core_type = #tpu.core_type<tc>, window_params = [{transform_indices = @transform_0, window_bounds = array<i64: 2, 36>}, {transform_indices = @transform_1, window_bounds = array<i64: 2, 1>}, {pipeline_mode = #tpu.pipeline_mode<synchronous>, transform_indices = @transform_2, window_bounds = array<i64: 36, 256>}, {pipeline_mode = #tpu.pipeline_mode<synchronous>, transform_indices = @transform_3, window_bounds = array<i64: 6, 256>}, {pipeline_mode = #tpu.pipeline_mode<synchronous>, transform_indices = @transform_4, window_bounds = array<i64: 256, 512>}, {pipeline_mode = #tpu.pipeline_mode<synchronous>, transform_indices = @transform_5, window_bounds = array<i64: 1, 512>}, {pipeline_mode = #tpu.pipeline_mode<synchronous>, transform_indices = @transform_6, window_bounds = array<i64: 512, 1024>}, {pipeline_mode = #tpu.pipeline_mode<synchronous>, transform_indices = @transform_7, window_bounds = array<i64: 1, 1024>}, {transform_indices = @transform_8, window_bounds = array<i64: 1024, 1024>}, {transform_indices = @transform_9, window_bounds = array<i64: 1, 1024>}, {transform_indices = @transform_10, window_bounds = array<i64: 2, 1024>}]} {
    %c0_i32 = arith.constant 0 : i32
    %0 = arith.cmpi eq, %arg1, %c0_i32 : i32
    %1 = arith.extui %0 : i1 to i32
    %c0_i32_0 = arith.constant 0 : i32
    %2 = arith.cmpi ne, %1, %c0_i32_0 : i32
    scf.if %2 {
      %c0_8 = arith.constant 0 : index
      %c0_9 = arith.constant 0 : index
      %10 = vector.load %arg2[%c0_8, %c0_9] : memref<2x36xf32, #tpu.memory_space<vmem>>, vector<2x36xf32>
      %c0_10 = arith.constant 0 : index
      %c0_11 = arith.constant 0 : index
      %11 = vector.load %arg3[%c0_10, %c0_11] : memref<2x1xi32, #tpu.memory_space<vmem>>, vector<2x1xi32>
      %12 = tpu.iota {dimensions = array<i32: 1>} : vector<2x6xi32>
      %13 = vector.broadcast %11 : vector<2x1xi32> to vector<2x6xi32>
      %14 = arith.cmpi eq, %13, %12 : vector<2x6xi32>
      %15 = arith.extui %14 : vector<2x6xi1> to vector<2x6xi32>
      %16 = arith.sitofp %15 : vector<2x6xi32> to vector<2x6xf32>
      %17 = arith.truncf %16 : vector<2x6xf32> to vector<2x6xbf16>
      %18 = arith.truncf %10 : vector<2x36xf32> to vector<2x36xbf16>
      %c0_12 = arith.constant 0 : index
      %c0_13 = arith.constant 0 : index
      %19 = vector.load %arg4[%c0_12, %c0_13] : memref<36x256xbf16, #tpu.memory_space<vmem>>, vector<36x256xbf16>
      %cst_14 = arith.constant dense<0.000000e+00> : vector<2x256xf32>
      %20 = tpu.matmul %18, %19, %cst_14 {dimension_numbers = #tpu.dot_dimension_numbers<[1], [0], [0], [1], [0, 0, 1, 1], [], []>} : vector<2x36xbf16>, vector<36x256xbf16>, vector<2x256xf32> -> vector<2x256xf32>
      %c0_15 = arith.constant 0 : index
      %c0_16 = arith.constant 0 : index
      %21 = vector.load %arg5[%c0_15, %c0_16] : memref<6x256xbf16, #tpu.memory_space<vmem>>, vector<6x256xbf16>
      %cst_17 = arith.constant dense<0.000000e+00> : vector<2x256xf32>
      %22 = tpu.matmul %17, %21, %cst_17 {dimension_numbers = #tpu.dot_dimension_numbers<[1], [0], [0], [1], [0, 0, 1, 1], [], []>} : vector<2x6xbf16>, vector<6x256xbf16>, vector<2x256xf32> -> vector<2x256xf32>
      %23 = arith.addf %20, %22 : vector<2x256xf32>
      %cst_18 = arith.constant 2.000000e-01 : f32
      %24 = vector.broadcast %cst_18 : f32 to vector<2x256xf32>
      %25 = arith.mulf %24, %23 : vector<2x256xf32>
      %26 = arith.maximumf %23, %25 : vector<2x256xf32>
      %27 = arith.truncf %26 : vector<2x256xf32> to vector<2x256xbf16>
      %c0_19 = arith.constant 0 : index
      %c0_20 = arith.constant 0 : index
      %28 = vector.load %arg6[%c0_19, %c0_20] : memref<256x512xbf16, #tpu.memory_space<vmem>>, vector<256x512xbf16>
      %cst_21 = arith.constant dense<0.000000e+00> : vector<2x512xf32>
      %29 = tpu.matmul %27, %28, %cst_21 {dimension_numbers = #tpu.dot_dimension_numbers<[1], [0], [0], [1], [0, 0, 1, 1], [], []>} : vector<2x256xbf16>, vector<256x512xbf16>, vector<2x512xf32> -> vector<2x512xf32>
      %c0_22 = arith.constant 0 : index
      %c0_23 = arith.constant 0 : index
      %30 = vector.load %arg7[%c0_22, %c0_23] : memref<1x512xf32, #tpu.memory_space<vmem>>, vector<1x512xf32>
      %31 = vector.broadcast %30 : vector<1x512xf32> to vector<2x512xf32>
      %32 = arith.addf %29, %31 : vector<2x512xf32>
      %cst_24 = arith.constant 2.000000e-01 : f32
      %33 = vector.broadcast %cst_24 : f32 to vector<2x512xf32>
      %34 = arith.mulf %33, %32 : vector<2x512xf32>
      %35 = arith.maximumf %32, %34 : vector<2x512xf32>
      %36 = arith.truncf %35 : vector<2x512xf32> to vector<2x512xbf16>
      %c0_25 = arith.constant 0 : index
      %c0_26 = arith.constant 0 : index
      %37 = vector.load %arg8[%c0_25, %c0_26] : memref<512x1024xbf16, #tpu.memory_space<vmem>>, vector<512x1024xbf16>
      %cst_27 = arith.constant dense<0.000000e+00> : vector<2x1024xf32>
      %38 = tpu.matmul %36, %37, %cst_27 {dimension_numbers = #tpu.dot_dimension_numbers<[1], [0], [0], [1], [0, 0, 1, 1], [], []>} : vector<2x512xbf16>, vector<512x1024xbf16>, vector<2x1024xf32> -> vector<2x1024xf32>
      %c0_28 = arith.constant 0 : index
      %c0_29 = arith.constant 0 : index
      %39 = vector.load %arg9[%c0_28, %c0_29] : memref<1x1024xf32, #tpu.memory_space<vmem>>, vector<1x1024xf32>
      %40 = vector.broadcast %39 : vector<1x1024xf32> to vector<2x1024xf32>
      %41 = arith.addf %38, %40 : vector<2x1024xf32>
      %cst_30 = arith.constant 2.000000e-01 : f32
      %42 = vector.broadcast %cst_30 : f32 to vector<2x1024xf32>
      %43 = arith.mulf %42, %41 : vector<2x1024xf32>
      %44 = arith.maximumf %41, %43 : vector<2x1024xf32>
      %45 = arith.truncf %44 : vector<2x1024xf32> to vector<2x1024xbf16>
      %c0_31 = arith.constant 0 : index
      %c0_32 = arith.constant 0 : index
      %46 = vector.load %arg13[%c0_31, %c0_32] : memref<2x1024xbf16, #tpu.memory_space<vmem>>, vector<2x1024xbf16>
      tpu.vector_store %arg13[%c0_31, %c0_32], %45 {strides = array<i32>} : memref<2x1024xbf16, #tpu.memory_space<vmem>>, vector<2x1024xbf16>,
    } else {
    }
    %c0 = arith.constant 0 : index
    %c0_1 = arith.constant 0 : index
    %3 = vector.load %arg13[%c0, %c0_1] : memref<2x1024xbf16, #tpu.memory_space<vmem>>, vector<2x1024xbf16>
    %c0_2 = arith.constant 0 : index
    %c0_3 = arith.constant 0 : index
    %4 = vector.load %arg10[%c0_2, %c0_3] : memref<1024x1024xbf16, #tpu.memory_space<vmem>>, vector<1024x1024xbf16>
    %cst = arith.constant dense<0.000000e+00> : vector<2x1024xf32>
    %5 = tpu.matmul %3, %4, %cst {dimension_numbers = #tpu.dot_dimension_numbers<[1], [0], [0], [1], [0, 0, 1, 1], [], []>} : vector<2x1024xbf16>, vector<1024x1024xbf16>, vector<2x1024xf32> -> vector<2x1024xf32>
    %c0_4 = arith.constant 0 : index
    %c0_5 = arith.constant 0 : index
    %6 = vector.load %arg11[%c0_4, %c0_5] : memref<1x1024xf32, #tpu.memory_space<vmem>>, vector<1x1024xf32>
    %7 = vector.broadcast %6 : vector<1x1024xf32> to vector<2x1024xf32>
    %8 = arith.addf %5, %7 : vector<2x1024xf32>
    %c0_6 = arith.constant 0 : index
    %c0_7 = arith.constant 0 : index
    %9 = vector.load %arg12[%c0_6, %c0_7] : memref<2x1024xf32, #tpu.memory_space<vmem>>, vector<2x1024xf32>
    tpu.vector_store %arg12[%c0_6, %c0_7], %8 {strides = array<i32>} : memref<2x1024xf32, #tpu.memory_space<vmem>>, vector<2x1024xf32>,
    return
  }
  func.func @transform_0(%arg0: i32, %arg1: i32) -> (i32, i32) {
    %c0_i32 = arith.constant 0 : i32
    %c0_i32_0 = arith.constant 0 : i32
    return %arg0, %c0_i32 : i32, i32
  }
  func.func @transform_1(%arg0: i32, %arg1: i32) -> (i32, i32) {
    %c0_i32 = arith.constant 0 : i32
    %c0_i32_0 = arith.constant 0 : i32
    return %arg0, %c0_i32 : i32, i32
  }
  func.func @transform_2(%arg0: i32, %arg1: i32) -> (i32, i32) {
    %c0_i32 = arith.constant 0 : i32
    %c0_i32_0 = arith.constant 0 : i32
    %c0_i32_1 = arith.constant 0 : i32
    return %c0_i32, %c0_i32_0 : i32, i32
  }
  func.func @transform_3(%arg0: i32, %arg1: i32) -> (i32, i32) {
    %c0_i32 = arith.constant 0 : i32
    %c0_i32_0 = arith.constant 0 : i32
    %c0_i32_1 = arith.constant 0 : i32
    return %c0_i32, %c0_i32_0 : i32, i32
  }
  func.func @transform_4(%arg0: i32, %arg1: i32) -> (i32, i32) {
    %c0_i32 = arith.constant 0 : i32
    %c0_i32_0 = arith.constant 0 : i32
    %c0_i32_1 = arith.constant 0 : i32
    return %c0_i32, %c0_i32_0 : i32, i32
  }
  func.func @transform_5(%arg0: i32, %arg1: i32) -> (i32, i32) {
    %c0_i32 = arith.constant 0 : i32
    %c0_i32_0 = arith.constant 0 : i32
    %c0_i32_1 = arith.constant 0 : i32
    return %c0_i32, %c0_i32_0 : i32, i32
  }
  func.func @transform_6(%arg0: i32, %arg1: i32) -> (i32, i32) {
    %c0_i32 = arith.constant 0 : i32
    %c0_i32_0 = arith.constant 0 : i32
    %c0_i32_1 = arith.constant 0 : i32
    return %c0_i32, %c0_i32_0 : i32, i32
  }
  func.func @transform_7(%arg0: i32, %arg1: i32) -> (i32, i32) {
    %c0_i32 = arith.constant 0 : i32
    %c0_i32_0 = arith.constant 0 : i32
    %c0_i32_1 = arith.constant 0 : i32
    return %c0_i32, %c0_i32_0 : i32, i32
  }
  func.func @transform_8(%arg0: i32, %arg1: i32) -> (i32, i32) {
    %c0_i32 = arith.constant 0 : i32
    %c0_i32_0 = arith.constant 0 : i32
    return %c0_i32, %arg1 : i32, i32
  }
  func.func @transform_9(%arg0: i32, %arg1: i32) -> (i32, i32) {
    %c0_i32 = arith.constant 0 : i32
    %c0_i32_0 = arith.constant 0 : i32
    return %c0_i32, %arg1 : i32, i32
  }
  func.func @transform_10(%arg0: i32, %arg1: i32) -> (i32, i32) {
    %c0_i32 = arith.constant 0 : i32
    return %arg0, %arg1 : i32, i32
  }
}

</mosaic_0001>

<llo_original>
// kernel: generator_forward.1
$region0: #{generator_forward.1}
  #allocation0 [shape = 'u32[]', space=smem, size = 0x4, offset = 0x4, fixed_abs, tag = 'smem constant byte address 0x4 - core index']
  #allocation1 [shape = 'u32[144,128]{1,0:T(1,128)}', space=vmem, size = 0x12000, scoped, tag = 'internal scratch']
  #allocation2 [shape = 'bf16[2,1024]{1,0:T(2,128)(2,1)}', space=vmem, size = 0x1000, scoped, tag = 'scratch operand']
  %s0 = inlined_call_operand.vmem [shape: f32[2,36], index: 0, kind: input, shape index: {}]
  %s1 = inlined_call_operand.vmem [shape: s32[2,1], index: 1, kind: input, shape index: {}]
  %s2 = inlined_call_operand.vmem [shape: bf16[36,256], index: 2, kind: input, shape index: {}]
  %s3 = inlined_call_operand.vmem [shape: bf16[6,256], index: 3, kind: input, shape index: {}]
  %s4 = inlined_call_operand.vmem [shape: bf16[256,512], index: 4, kind: input, shape index: {}]
  %s5 = inlined_call_operand.vmem [shape: f32[1,512], index: 5, kind: input, shape index: {}]
  %s6 = inlined_call_operand.vmem [shape: bf16[512,1024], index: 6, kind: input, shape index: {}]
  %s7 = inlined_call_operand.vmem [shape: f32[1,1024], index: 7, kind: input, shape index: {}]
  %s8 = inlined_call_operand.vmem [shape: bf16[1024,3072], index: 8, kind: input, shape index: {}]
  %s9 = inlined_call_operand.vmem [shape: f32[1,3072], index: 9, kind: input, shape index: {}]
  %s10 = inlined_call_operand.vmem [shape: f32[2,3072], index: 10, kind: output, shape index: {}]
  %s11 = sld [smem:[#allocation0]]
  $region100: #{generator_forward.1} parent=0
    _
  %s13 = ssub.s32 1, %s11
  %s14 = scalar_select 0, %s13, %s11
  $region1: #{generator_forward.1} parent=0
    #allocation3 [shape = 'u8[4194304]{0}', space=vmem, size = 0x400000, scoped, tag = 'input window, operand 8']
    loop: start=0, step=1, limit=5
    $region2: #{generator_forward.1} parent=1 // loop_pre_header
      _
    $region3: #{generator_forward.1} parent=1 // loop_header
      %s16 = sphi 0, %s20
      %p17 = scmp.ge.s32.totalorder %s16, 5
      %s23 = sphi 0, %s35
      %s24 = sphi 0, %s31
      %s25 = sphi 0, %s23
      %s26 = sphi 0, %s24
      %s27 = sphi 0, %s25
      %s28 = sphi 0, %s26
      %s38 = sphi 0, %s40
      %s41 = sphi 0, %s38
      %s42 = sphi 0, %s41
      %s58 = sphi 0, %s42
      %s64 = sphi 0, %s66
      %s67 = sphi 0, %s64
      %s68 = sphi 0, %s67
      %s84 = sphi 0, %s68
      %s88 = sphi 0, %s88
      %s90 = sphi 0, %s88
      %s91 = sphi 0, %s90
      %s105 = sphi 0, %s91
      %s109 = sphi 0, %s109
      %s111 = sphi 0, %s109
      %s112 = sphi 0, %s111
      %s126 = sphi 0, %s112
      %s130 = sphi 0, %s130
      %s132 = sphi 0, %s130
      %s133 = sphi 0, %s132
      %s147 = sphi 0, %s133
      %s151 = sphi 0, %s151
      %s153 = sphi 0, %s151
      %s154 = sphi 0, %s153
      %s168 = sphi 0, %s154
      %s172 = sphi 0, %s172
      %s174 = sphi 0, %s172
      %s175 = sphi 0, %s174
      %s189 = sphi 0, %s175
      %s193 = sphi 0, %s193
      %s195 = sphi 0, %s193
      %s196 = sphi 0, %s195
      %s210 = sphi 0, %s196
      %s216 = sphi 0, %s218
      %s219 = sphi 0, %s216
      %s220 = sphi 0, %s219
      %s236 = sphi 0, %s220
      %s242 = sphi 0, %s244
      %s245 = sphi 0, %s242
      %s246 = sphi 0, %s245
      %s262 = sphi 0, %s246
      %s270 = sphi 0, %s272
      %s273 = sphi 0, %s270
      %s274 = sphi 0, %s273
      %s290 = sphi 0, %s274
    $region4: #{generator_forward.1} parent=1 // loop_header_branch
      %19 = sbr.rel (%p17) target = $region8
    $region5: #{generator_forward.1} parent=1 // loop_body
      %s21 = ssub.s32 %s16, 1
      %s22 = ssub.s32 %s16, 2
      %s29 = sadd.s32 1, %s24
      %p30 = scmp.ge.s32.totalorder %s29, 3
      %s31 = scalar_select %p30, 0, %s29
      %s32 = sadd.s32 1, %s23
      %s33 = scalar_select %p30, %s32, %s23
      %p34 = scmp.ge.s32.totalorder %s33, 1
      %s35 = scalar_select %p34, 0, %s33
      %s36 = ssub.s32 %s23, %s35
      %p37 = scmp.eq.s32.totalorder %s36, 0
      %s39 = sadd.s32 %s38, 1
      %s40 = scalar_select %p37, %s38, %s39
      %p43 = pneg %p37
      %p44 = scmp.eq.s32.totalorder %s16, 2
      %p45 = por %p43, %p44
      %p46 = scmp.ne.s32.totalorder %s38, %s41
      %p47 = scmp.eq.s32.totalorder %s16, 0
      %p48 = por %p46, %p47
      %p49 = scmp.ne.s32.totalorder %s38, %s41
      %p50 = scmp.eq.s32.totalorder %s21, 2
      %p51 = por %p49, %p50
      %p52 = scmp.ne.s32.totalorder %s41, %s42
      %p53 = scmp.eq.s32.totalorder %s21, 0
      %p54 = por %p52, %p53
      %p55 = scmp.ne.s32.totalorder %s41, %s42
      %p56 = scmp.eq.s32.totalorder %s22, 2
      %p57 = por %p55, %p56
      %p59 = scmp.ne.s32.totalorder %s42, %s58
      %p60 = scmp.eq.s32.totalorder %s22, 0
      %p61 = por %p59, %p60
      %s62 = ssub.s32 %s23, %s35
      %p63 = scmp.eq.s32.totalorder %s62, 0
      %s65 = sadd.s32 %s64, 1
      %s66 = scalar_select %p63, %s64, %s65
      %p69 = pneg %p63
      %p70 = scmp.eq.s32.totalorder %s16, 2
      %p71 = por %p69, %p70
      %p72 = scmp.ne.s32.totalorder %s64, %s67
      %p73 = scmp.eq.s32.totalorder %s16, 0
      %p74 = por %p72, %p73
      %p75 = scmp.ne.s32.totalorder %s64, %s67
      %p76 = scmp.eq.s32.totalorder %s21, 2
      %p77 = por %p75, %p76
      %p78 = scmp.ne.s32.totalorder %s67, %s68
      %p79 = scmp.eq.s32.totalorder %s21, 0
      %p80 = por %p78, %p79
      %p81 = scmp.ne.s32.totalorder %s67, %s68
      %p82 = scmp.eq.s32.totalorder %s22, 2
      %p83 = por %p81, %p82
      %p85 = scmp.ne.s32.totalorder %s68, %s84
      %p86 = scmp.eq.s32.totalorder %s22, 0
      %p87 = por %p85, %p86
      %s89 = sadd.s32 %s88, 1
      %p92 = scmp.eq.s32.totalorder %s16, 2
      %p93 = scmp.ne.s32.totalorder %s88, %s90
      %p94 = scmp.eq.s32.totalorder %s16, 0
      %p95 = por %p93, %p94
      %p96 = scmp.ne.s32.totalorder %s88, %s90
      %p97 = scmp.eq.s32.totalorder %s21, 2
      %p98 = por %p96, %p97
      %p99 = scmp.ne.s32.totalorder %s90, %s91
      %p100 = scmp.eq.s32.totalorder %s21, 0
      %p101 = por %p99, %p100
      %p102 = scmp.ne.s32.totalorder %s90, %s91
      %p103 = scmp.eq.s32.totalorder %s22, 2
      %p104 = por %p102, %p103
      %p106 = scmp.ne.s32.totalorder %s91, %s105
      %p107 = scmp.eq.s32.totalorder %s22, 0
      %p108 = por %p106, %p107
      %s110 = sadd.s32 %s109, 1
      %p113 = scmp.eq.s32.totalorder %s16, 2
      %p114 = scmp.ne.s32.totalorder %s109, %s111
      %p115 = scmp.eq.s32.totalorder %s16, 0
      %p116 = por %p114, %p115
      %p117 = scmp.ne.s32.totalorder %s109, %s111
      %p118 = scmp.eq.s32.totalorder %s21, 2
      %p119 = por %p117, %p118
      %p120 = scmp.ne.s32.totalorder %s111, %s112
      %p121 = scmp.eq.s32.totalorder %s21, 0
      %p122 = por %p120, %p121
      %p123 = scmp.ne.s32.totalorder %s111, %s112
      %p124 = scmp.eq.s32.totalorder %s22, 2
      %p125 = por %p123, %p124
      %p127 = scmp.ne.s32.totalorder %s112, %s126
      %p128 = scmp.eq.s32.totalorder %s22, 0
      %p129 = por %p127, %p128
      %s131 = sadd.s32 %s130, 1
      %p134 = scmp.eq.s32.totalorder %s16, 2
      %p135 = scmp.ne.s32.totalorder %s130, %s132
      %p136 = scmp.eq.s32.totalorder %s16, 0
      %p137 = por %p135, %p136
      %p138 = scmp.ne.s32.totalorder %s130, %s132
      %p139 = scmp.eq.s32.totalorder %s21, 2
      %p140 = por %p138, %p139
      %p141 = scmp.ne.s32.totalorder %s132, %s133
      %p142 = scmp.eq.s32.totalorder %s21, 0
      %p143 = por %p141, %p142
      %p144 = scmp.ne.s32.totalorder %s132, %s133
      %p145 = scmp.eq.s32.totalorder %s22, 2
      %p146 = por %p144, %p145
      %p148 = scmp.ne.s32.totalorder %s133, %s147
      %p149 = scmp.eq.s32.totalorder %s22, 0
      %p150 = por %p148, %p149
      %s152 = sadd.s32 %s151, 1
      %p155 = scmp.eq.s32.totalorder %s16, 2
      %p156 = scmp.ne.s32.totalorder %s151, %s153
      %p157 = scmp.eq.s32.totalorder %s16, 0
      %p158 = por %p156, %p157
      %p159 = scmp.ne.s32.totalorder %s151, %s153
      %p160 = scmp.eq.s32.totalorder %s21, 2
      %p161 = por %p159, %p160
      %p162 = scmp.ne.s32.totalorder %s153, %s154
      %p163 = scmp.eq.s32.totalorder %s21, 0
      %p164 = por %p162, %p163
      %p165 = scmp.ne.s32.totalorder %s153, %s154
      %p166 = scmp.eq.s32.totalorder %s22, 2
      %p167 = por %p165, %p166
      %p169 = scmp.ne.s32.totalorder %s154, %s168
      %p170 = scmp.eq.s32.totalorder %s22, 0
      %p171 = por %p169, %p170
      %s173 = sadd.s32 %s172, 1
      %p176 = scmp.eq.s32.totalorder %s16, 2
      %p177 = scmp.ne.s32.totalorder %s172, %s174
      %p178 = scmp.eq.s32.totalorder %s16, 0
      %p179 = por %p177, %p178
      %p180 = scmp.ne.s32.totalorder %s172, %s174
      %p181 = scmp.eq.s32.totalorder %s21, 2
      %p182 = por %p180, %p181
      %p183 = scmp.ne.s32.totalorder %s174, %s175
      %p184 = scmp.eq.s32.totalorder %s21, 0
      %p185 = por %p183, %p184
      %p186 = scmp.ne.s32.totalorder %s174, %s175
      %p187 = scmp.eq.s32.totalorder %s22, 2
      %p188 = por %p186, %p187
      %p190 = scmp.ne.s32.totalorder %s175, %s189
      %p191 = scmp.eq.s32.totalorder %s22, 0
      %p192 = por %p190, %p191
      %s194 = sadd.s32 %s193, 1
      %p197 = scmp.eq.s32.totalorder %s16, 2
      %p198 = scmp.ne.s32.totalorder %s193, %s195
      %p199 = scmp.eq.s32.totalorder %s16, 0
      %p200 = por %p198, %p199
      %p201 = scmp.ne.s32.totalorder %s193, %s195
      %p202 = scmp.eq.s32.totalorder %s21, 2
      %p203 = por %p201, %p202
      %p204 = scmp.ne.s32.totalorder %s195, %s196
      %p205 = scmp.eq.s32.totalorder %s21, 0
      %p206 = por %p204, %p205
      %p207 = scmp.ne.s32.totalorder %s195, %s196
      %p208 = scmp.eq.s32.totalorder %s22, 2
      %p209 = por %p207, %p208
      %p211 = scmp.ne.s32.totalorder %s196, %s210
      %p212 = scmp.eq.s32.totalorder %s22, 0
      %p213 = por %p211, %p212
      %s214 = ssub.s32 %s24, %s31
      %p215 = scmp.eq.s32.totalorder %s214, 0
      %s217 = sadd.s32 %s216, 1
      %s218 = scalar_select %p215, %s216, %s217
      %p221 = pneg %p215
      %p222 = scmp.eq.s32.totalorder %s16, 2
      %p223 = por %p221, %p222
      %p224 = scmp.ne.s32.totalorder %s216, %s219
      %p225 = scmp.eq.s32.totalorder %s16, 0
      %p226 = por %p224, %p225
      %p227 = scmp.ne.s32.totalorder %s216, %s219
      %p228 = scmp.eq.s32.totalorder %s21, 2
      %p229 = por %p227, %p228
      %p230 = scmp.ne.s32.totalorder %s219, %s220
      %p231 = scmp.eq.s32.totalorder %s21, 0
      %p232 = por %p230, %p231
      %p233 = scmp.ne.s32.totalorder %s219, %s220
      %p234 = scmp.eq.s32.totalorder %s22, 2
      %p235 = por %p233, %p234
      %p237 = scmp.ne.s32.totalorder %s220, %s236
      %p238 = scmp.eq.s32.totalorder %s22, 0
      %p239 = por %p237, %p238
      %s240 = ssub.s32 %s24, %s31
      %p241 = scmp.eq.s32.totalorder %s240, 0
      %s243 = sadd.s32 %s242, 1
      %s244 = scalar_select %p241, %s242, %s243
      %p247 = pneg %p241
      %p248 = scmp.eq.s32.totalorder %s16, 2
      %p249 = por %p247, %p248
      %p250 = scmp.ne.s32.totalorder %s242, %s245
      %p251 = scmp.eq.s32.totalorder %s16, 0
      %p252 = por %p250, %p251
      %p253 = scmp.ne.s32.totalorder %s242, %s245
      %p254 = scmp.eq.s32.totalorder %s21, 2
      %p255 = por %p253, %p254
      %p256 = scmp.ne.s32.totalorder %s245, %s246
      %p257 = scmp.eq.s32.totalorder %s21, 0
      %p258 = por %p256, %p257
      %p259 = scmp.ne.s32.totalorder %s245, %s246
      %p260 = scmp.eq.s32.totalorder %s22, 2
      %p261 = por %p259, %p260
      %p263 = scmp.ne.s32.totalorder %s246, %s262
      %p264 = scmp.eq.s32.totalorder %s22, 0
      %p265 = por %p263, %p264
      %s266 = ssub.s32 %s23, %s35
      %s267 = ssub.s32 %s24, %s31
      %s268 = sor.u32 %s266, %s267
      %p269 = scmp.eq.s32.totalorder %s268, 0
      %s271 = sadd.s32 %s270, 1
      %s272 = scalar_select %p269, %s270, %s271
      %p275 = pneg %p269
      %p276 = scmp.eq.s32.totalorder %s16, 2
      %p277 = por %p275, %p276
      %p278 = scmp.ne.s32.totalorder %s270, %s273
      %p279 = scmp.eq.s32.totalorder %s16, 0
      %p280 = por %p278, %p279
      %p281 = scmp.ne.s32.totalorder %s270, %s273
      %p282 = scmp.eq.s32.totalorder %s21, 2
      %p283 = por %p281, %p282
      %p284 = scmp.ne.s32.totalorder %s273, %s274
      %p285 = scmp.eq.s32.totalorder %s21, 0
      %p286 = por %p284, %p285
      %p287 = scmp.ne.s32.totalorder %s273, %s274
      %p288 = scmp.eq.s32.totalorder %s22, 2
      %p289 = por %p287, %p288
      %p291 = scmp.ne.s32.totalorder %s274, %s290
      %p292 = scmp.eq.s32.totalorder %s22, 0
      %p293 = por %p291, %p292
      %p294 = scmp.le.s32.totalorder 1, %s16
      %p295 = scmp.lt.s32.totalorder %s16, 4
      %p296 = pnand %p294, %p295
      %p297 = pneg %p296
      // Predicated region
      $region9: #{generator_forward.1} parent=5 // pred_check
        _
      $region10: #{generator_forward.1} parent=5 // pred_check_branch
        %299 = sbr.rel (%p296) target = $region12
      $region11: #{generator_forward.1} parent=5 // pred_region
        %s300 = ssub.s32 %s16, 1
        // Predicated region
        $region13: #{generator_forward.1} parent=11 // pred_check
          %p301 = pneg %p54
        $region14: #{generator_forward.1} parent=11 // pred_check_branch
          %303 = sbr.rel (%p301) target = $region16
        $region15: #{generator_forward.1} parent=11 // pred_region
          %p304 = scmp.lt.s32.totalorder %s25, 0
          %s305 = scalar_select %p304, %s25, 0
          %s306 = smul.addr %s305, 2
          %s307 = scalar_lea.vmem %s0, %s306
        $region16: #{generator_forward.1} parent=11 // pred_fallthru
          _
        // Predicated region
        $region17: #{generator_forward.1} parent=11 // pred_check
          %p308 = pneg %p80
        $region18: #{generator_forward.1} parent=11 // pred_check_branch
          %310 = sbr.rel (%p308) target = $region20
        $region19: #{generator_forward.1} parent=11 // pred_region
          %p311 = scmp.lt.s32.totalorder %s25, 0
          %s312 = scalar_select %p311, %s25, 0
          %s313 = smul.addr %s312, 2
          %s314 = scalar_lea.vmem %s1, %s313
        $region20: #{generator_forward.1} parent=11 // pred_fallthru
          _
        // Predicated region
        $region21: #{generator_forward.1} parent=11 // pred_check
          %p315 = pneg %p101
        $region22: #{generator_forward.1} parent=11 // pred_check_branch
          %317 = sbr.rel (%p315) target = $region24
        $region23: #{generator_forward.1} parent=11 // pred_region
          _
        $region24: #{generator_forward.1} parent=11 // pred_fallthru
          _
        // Predicated region
        $region25: #{generator_forward.1} parent=11 // pred_check
          %p318 = pneg %p122
        $region26: #{generator_forward.1} parent=11 // pred_check_branch
          %320 = sbr.rel (%p318) target = $region28
        $region27: #{generator_forward.1} parent=11 // pred_region
          _
        $region28: #{generator_forward.1} parent=11 // pred_fallthru
          _
        // Predicated region
        $region29: #{generator_forward.1} parent=11 // pred_check
          %p321 = pneg %p143
        $region30: #{generator_forward.1} parent=11 // pred_check_branch
          %323 = sbr.rel (%p321) target = $region32
        $region31: #{generator_forward.1} parent=11 // pred_region
          _
        $region32: #{generator_forward.1} parent=11 // pred_fallthru
          _
        // Predicated region
        $region33: #{generator_forward.1} parent=11 // pred_check
          %p324 = pneg %p164
        $region34: #{generator_forward.1} parent=11 // pred_check_branch
          %326 = sbr.rel (%p324) target = $region36
        $region35: #{generator_forward.1} parent=11 // pred_region
          _
        $region36: #{generator_forward.1} parent=11 // pred_fallthru
          _
        // Predicated region
        $region37: #{generator_forward.1} parent=11 // pred_check
          %p327 = pneg %p185
        $region38: #{generator_forward.1} parent=11 // pred_check_branch
          %329 = sbr.rel (%p327) target = $region40
        $region39: #{generator_forward.1} parent=11 // pred_region
          _
        $region40: #{generator_forward.1} parent=11 // pred_fallthru
          _
        // Predicated region
        $region41: #{generator_forward.1} parent=11 // pred_check
          %p330 = pneg %p206
        $region42: #{generator_forward.1} parent=11 // pred_check_branch
          %332 = sbr.rel (%p330) target = $region44
        $region43: #{generator_forward.1} parent=11 // pred_region
          _
        $region44: #{generator_forward.1} parent=11 // pred_fallthru
          _
      $region12: #{generator_forward.1} parent=5 // pred_fallthru
        _
      %p333 = scmp.lt.s32.totalorder %s16, 3
      // Predicated region
      $region45: #{generator_forward.1} parent=5 // pred_check
        %p334 = pneg %p333
      $region46: #{generator_forward.1} parent=5 // pred_check_branch
        %336 = sbr.rel (%p334) target = $region48
      $region47: #{generator_forward.1} parent=5 // pred_region
        // Predicated region
        $region49: #{generator_forward.1} parent=47 // pred_check
          %p337 = pneg %p226
        $region50: #{generator_forward.1} parent=47 // pred_check_branch
          %339 = sbr.rel (%p337) target = $region52
        $region51: #{generator_forward.1} parent=47 // pred_region
          %s340 = sand.u32 %s216, 1
          %s341 = sand.u32 %s216, 1
          %s342 = smul.addr %s341, 4096
          %s343 = scalar_lea.vmem [#allocation3], %s342
          %s344 = smul.u32 8, %s24
          %s345 = smul.addr %s344, 4
          %s346 = scalar_lea.vmem %s8, %s345
          // Predicated region
          $region53: #{generator_forward.1} parent=51 // pred_check
            _
          $region54: #{generator_forward.1} parent=51 // pred_check_branch
            %348 = sbr.rel (0) target = $region56
          $region55: #{generator_forward.1} parent=51 // pred_region
            // Predicated region
            $region57: #{generator_forward.1} parent=55 // pred_check
              _
            $region58: #{generator_forward.1} parent=55 // pred_check_branch
              %350 = sbr.rel (0) target = $region60
            $region59: #{generator_forward.1} parent=55 // pred_region
              loop: start=0, step=1, limit=1
              $region61: #{generator_forward.1} parent=59 // loop_pre_header
                _
              $region62: #{generator_forward.1} parent=59 // loop_header
                %s352 = sphi 0, %s356
                %p353 = scmp.ge.s32.totalorder %s352, 1
                %s357 = sphi %s346, %s346
                %s358 = sphi %s343, %s343
              $region63: #{generator_forward.1} parent=59 // loop_header_branch
                %355 = sbr.rel (%p353) target = $region67
              $region64: #{generator_forward.1} parent=59 // loop_body
                %v359 = vld [vmem:[%s357] sm:$0xff]
                %360 = vst [vmem:[%s358] sm:$0xff] %v359
                %v361 = vld [vmem:[%s357 + $0x8] sm:$0xff]
                %362 = vst [vmem:[%s358 + $0x8] sm:$0xff] %v361
                %v363 = vld [vmem:[%s357 + $0x10] sm:$0xff]
                %364 = vst [vmem:[%s358 + $0x10] sm:$0xff] %v363
                %v365 = vld [vmem:[%s357 + $0x18] sm:$0xff]
                %366 = vst [vmem:[%s358 + $0x18] sm:$0xff] %v365
                %v367 = vld [vmem:[%s357 + $0x60] sm:$0xff]
                %368 = vst [vmem:[%s358 + $0x20] sm:$0xff] %v367
                %v369 = vld [vmem:[%s357 + $0x68] sm:$0xff]
                %370 = vst [vmem:[%s358 + $0x28] sm:$0xff] %v369
                %v371 = vld [vmem:[%s357 + $0x70] sm:$0xff]
                %372 = vst [vmem:[%s358 + $0x30] sm:$0xff] %v371
                %v373 = vld [vmem:[%s357 + $0x78] sm:$0xff]
                %374 = vst [vmem:[%s358 + $0x38] sm:$0xff] %v373
                %v375 = vld [vmem:[%s357 + $0xc0] sm:$0xff]
                %376 = vst [vmem:[%s358 + $0x40] sm:$0xff] %v375
                %v377 = vld [vmem:[%s357 + $0xc8] sm:$0xff]
                %378 = vst [vmem:[%s358 + $0x48] sm:$0xff] %v377
                %v379 = vld [vmem:[%s357 + $0xd0] sm:$0xff]
                %380 = vst [vmem:[%s358 + $0x50] sm:$0xff] %v379
                %v381 = vld [vmem:[%s357 + $0xd8] sm:$0xff]
                %382 = vst [vmem:[%s358 + $0x58] sm:$0xff] %v381
                %v383 = vld [vmem:[%s357 + $0x120] sm:$0xff]
                %384 = vst [vmem:[%s358 + $0x60] sm:$0xff] %v383
                %v385 = vld [vmem:[%s357 + $0x128] sm:$0xff]
                %386 = vst [vmem:[%s358 + $0x68] sm:$0xff] %v385
                %v387 = vld [vmem:[%s357 + $0x130] sm:$0xff]
                %388 = vst [vmem:[%s358 + $0x70] sm:$0xff] %v387
                %v389 = vld [vmem:[%s357 + $0x138] sm:$0xff]
                %390 = vst [vmem:[%s358 + $0x78] sm:$0xff] %v389
                %v391 = vld [vmem:[%s357 + $0x180] sm:$0xff]
                %392 = vst [vmem:[%s358 + $0x80] sm:$0xff] %v391
                %v393 = vld [vmem:[%s357 + $0x188] sm:$0xff]
                %394 = vst [vmem:[%s358 + $0x88] sm:$0xff] %v393
                %v395 = vld [vmem:[%s357 + $0x190] sm:$0xff]
                %396 = vst [vmem:[%s358 + $0x90] sm:$0xff] %v395
                %v397 = vld [vmem:[%s357 + $0x198] sm:$0xff]
                %398 = vst [vmem:[%s358 + $0x98] sm:$0xff] %v397
                %v399 = vld [vmem:[%s357 + $0x1e0] sm:$0xff]
                %400 = vst [vmem:[%s358 + $0xa0] sm:$0xff] %v399
                %v401 = vld [vmem:[%s357 + $0x1e8] sm:$0xff]
                %402 = vst [vmem:[%s358 + $0xa8] sm:$0xff] %v401
                %v403 = vld [vmem:[%s357 + $0x1f0] sm:$0xff]
                %404 = vst [vmem:[%s358 + $0xb0] sm:$0xff] %v403
                %v405 = vld [vmem:[%s357 + $0x1f8] sm:$0xff]
                %406 = vst [vmem:[%s358 + $0xb8] sm:$0xff] %v405
                %v407 = vld [vmem:[%s357 + $0x240] sm:$0xff]
                %408 = vst [vmem:[%s358 + $0xc0] sm:$0xff] %v407
                %v409 = vld [vmem:[%s357 + $0x248] sm:$0xff]
                %410 = vst [vmem:[%s358 + $0xc8] sm:$0xff] %v409
                %v411 = vld [vmem:[%s357 + $0x250] sm:$0xff]
                %412 = vst [vmem:[%s358 + $0xd0] sm:$0xff] %v411
                %v413 = vld [vmem:[%s357 + $0x258] sm:$0xff]
                %414 = vst [vmem:[%s358 + $0xd8] sm:$0xff] %v413
                %v415 = vld [vmem:[%s357 + $0x2a0] sm:$0xff]
                %416 = vst [vmem:[%s358 + $0xe0] sm:$0xff] %v415
                %v417 = vld [vmem:[%s357 + $0x2a8] sm:$0xff]
                %418 = vst [vmem:[%s358 + $0xe8] sm:$0xff] %v417
                %v419 = vld [vmem:[%s357 + $0x2b0] sm:$0xff]
                %420 = vst [vmem:[%s358 + $0xf0] sm:$0xff] %v419
                %v421 = vld [vmem:[%s357 + $0x2b8] sm:$0xff]
                %422 = vst [vmem:[%s358 + $0xf8] sm:$0xff] %v421
                %v423 = vld [vmem:[%s357 + $0x300] sm:$0xff]
                %424 = vst [vmem:[%s358 + $0x100] sm:$0xff] %v423
                %v425 = vld [vmem:[%s357 + $0x308] sm:$0xff]
                %426 = vst [vmem:[%s358 + $0x108] sm:$0xff] %v425
                %v427 = vld [vmem:[%s357 + $0x310] sm:$0xff]
                %428 = vst [vmem:[%s358 + $0x110] sm:$0xff] %v427
                %v429 = vld [vmem:[%s357 + $0x318] sm:$0xff]
                %430 = vst [vmem:[%s358 + $0x118] sm:$0xff] %v429
                %v431 = vld [vmem:[%s357 + $0x360] sm:$0xff]
                %432 = vst [vmem:[%s358 + $0x120] sm:$0xff] %v431
                %v433 = vld [vmem:[%s357 + $0x368] sm:$0xff]
                %434 = vst [vmem:[%s358 + $0x128] sm:$0xff] %v433
                %v435 = vld [vmem:[%s357 + $0x370] sm:$0xff]
                %436 = vst [vmem:[%s358 + $0x130] sm:$0xff] %v435
                %v437 = vld [vmem:[%s357 + $0x378] sm:$0xff]
                %438 = vst [vmem:[%s358 + $0x138] sm:$0xff] %v437
                %v439 = vld [vmem:[%s357 + $0x3c0] sm:$0xff]
                %440 = vst [vmem:[%s358 + $0x140] sm:$0xff] %v439
                %v441 = vld [vmem:[%s357 + $0x3c8] sm:$0xff]
                %442 = vst [vmem:[%s358 + $0x148] sm:$0xff] %v441
                %v443 = vld [vmem:[%s357 + $0x3d0] sm:$0xff]
                %444 = vst [vmem:[%s358 + $0x150] sm:$0xff] %v443
                %v445 = vld [vmem:[%s357 + $0x3d8] sm:$0xff]
                %446 = vst [vmem:[%s358 + $0x158] sm:$0xff] %v445
                %v447 = vld [vmem:[%s357 + $0x420] sm:$0xff]
                %448 = vst [vmem:[%s358 + $0x160] sm:$0xff] %v447
                %v449 = vld [vmem:[%s357 + $0x428] sm:$0xff]
                %450 = vst [vmem:[%s358 + $0x168] sm:$0xff] %v449
                %v451 = vld [vmem:[%s357 + $0x430] sm:$0xff]
                %452 = vst [vmem:[%s358 + $0x170] sm:$0xff] %v451
                %v453 = vld [vmem:[%s357 + $0x438] sm:$0xff]
                %454 = vst [vmem:[%s358 + $0x178] sm:$0xff] %v453
                %v455 = vld [vmem:[%s357 + $0x480] sm:$0xff]
                %456 = vst [vmem:[%s358 + $0x180] sm:$0xff] %v455
                %v457 = vld [vmem:[%s357 + $0x488] sm:$0xff]
                %458 = vst [vmem:[%s358 + $0x188] sm:$0xff] %v457
                %v459 = vld [vmem:[%s357 + $0x490] sm:$0xff]
                %460 = vst [vmem:[%s358 + $0x190] sm:$0xff] %v459
                %v461 = vld [vmem:[%s357 + $0x498] sm:$0xff]
                %462 = vst [vmem:[%s358 + $0x198] sm:$0xff] %v461
                %v463 = vld [vmem:[%s357 + $0x4e0] sm:$0xff]
                %464 = vst [vmem:[%s358 + $0x1a0] sm:$0xff] %v463
                %v465 = vld [vmem:[%s357 + $0x4e8] sm:$0xff]
                %466 = vst [vmem:[%s358 + $0x1a8] sm:$0xff] %v465
                %v467 = vld [vmem:[%s357 + $0x4f0] sm:$0xff]
                %468 = vst [vmem:[%s358 + $0x1b0] sm:$0xff] %v467
                %v469 = vld [vmem:[%s357 + $0x4f8] sm:$0xff]
                %470 = vst [vmem:[%s358 + $0x1b8] sm:$0xff] %v469
                %v471 = vld [vmem:[%s357 + $0x540] sm:$0xff]
                %472 = vst [vmem:[%s358 + $0x1c0] sm:$0xff] %v471
                %v473 = vld [vmem:[%s357 + $0x548] sm:$0xff]
                %474 = vst [vmem:[%s358 + $0x1c8] sm:$0xff] %v473
                %v475 = vld [vmem:[%s357 + $0x550] sm:$0xff]
                %476 = vst [vmem:[%s358 + $0x1d0] sm:$0xff] %v475
                %v477 = vld [vmem:[%s357 + $0x558] sm:$0xff]
                %478 = vst [vmem:[%s358 + $0x1d8] sm:$0xff] %v477
                %v479 = vld [vmem:[%s357 + $0x5a0] sm:$0xff]
                %480 = vst [vmem:[%s358 + $0x1e0] sm:$0xff] %v479
                %v481 = vld [vmem:[%s357 + $0x5a8] sm:$0xff]
                %482 = vst [vmem:[%s358 + $0x1e8] sm:$0xff] %v481
                %v483 = vld [vmem:[%s357 + $0x5b0] sm:$0xff]
                %484 = vst [vmem:[%s358 + $0x1f0] sm:$0xff] %v483
                %v485 = vld [vmem:[%s357 + $0x5b8] sm:$0xff]
                %486 = vst [vmem:[%s358 + $0x1f8] sm:$0xff] %v485
                %v487 = vld [vmem:[%s357 + $0x600] sm:$0xff]
                %488 = vst [vmem:[%s358 + $0x200] sm:$0xff] %v487
                %v489 = vld [vmem:[%s357 + $0x608] sm:$0xff]
                %490 = vst [vmem:[%s358 + $0x208] sm:$0xff] %v489
                %v491 = vld [vmem:[%s357 + $0x610] sm:$0xff]
                %492 = vst [vmem:[%s358 + $0x210] sm:$0xff] %v491
                %v493 = vld [vmem:[%s357 + $0x618] sm:$0xff]
                %494 = vst [vmem:[%s358 + $0x218] sm:$0xff] %v493
                %v495 = vld [vmem:[%s357 + $0x660] sm:$0xff]
                %496 = vst [vmem:[%s358 + $0x220] sm:$0xff] %v495
                %v497 = vld [vmem:[%s357 + $0x668] sm:$0xff]
                %498 = vst [vmem:[%s358 + $0x228] sm:$0xff] %v497
                %v499 = vld [vmem:[%s357 + $0x670] sm:$0xff]
                %500 = vst [vmem:[%s358 + $0x230] sm:$0xff] %v499
                %v501 = vld [vmem:[%s357 + $0x678] sm:$0xff]
                %502 = vst [vmem:[%s358 + $0x238] sm:$0xff] %v501
                %v503 = vld [vmem:[%s357 + $0x6c0] sm:$0xff]
                %504 = vst [vmem:[%s358 + $0x240] sm:$0xff] %v503
                %v505 = vld [vmem:[%s357 + $0x6c8] sm:$0xff]
                %506 = vst [vmem:[%s358 + $0x248] sm:$0xff] %v505
                %v507 = vld [vmem:[%s357 + $0x6d0] sm:$0xff]
                %508 = vst [vmem:[%s358 + $0x250] sm:$0xff] %v507
                %v509 = vld [vmem:[%s357 + $0x6d8] sm:$0xff]
                %510 = vst [vmem:[%s358 + $0x258] sm:$0xff] %v509
                %v511 = vld [vmem:[%s357 + $0x720] sm:$0xff]
                %512 = vst [vmem:[%s358 + $0x260] sm:$0xff] %v511
                %v513 = vld [vmem:[%s357 + $0x728] sm:$0xff]
                %514 = vst [vmem:[%s358 + $0x268] sm:$0xff] %v513
                %v515 = vld [vmem:[%s357 + $0x730] sm:$0xff]
                %516 = vst [vmem:[%s358 + $0x270] sm:$0xff] %v515
                %v517 = vld [vmem:[%s357 + $0x738] sm:$0xff]
                %518 = vst [vmem:[%s358 + $0x278] sm:$0xff] %v517
                %v519 = vld [vmem:[%s357 + $0x780] sm:$0xff]
                %520 = vst [vmem:[%s358 + $0x280] sm:$0xff] %v519
                %v521 = vld [vmem:[%s357 + $0x788] sm:$0xff]
                %522 = vst [vmem:[%s358 + $0x288] sm:$0xff] %v521
                %v523 = vld [vmem:[%s357 + $0x790] sm:$0xff]
                %524 = vst [vmem:[%s358 + $0x290] sm:$0xff] %v523
                %v525 = vld [vmem:[%s357 + $0x798] sm:$0xff]
                %526 = vst [vmem:[%s358 + $0x298] sm:$0xff] %v525
                %v527 = vld [vmem:[%s357 + $0x7e0] sm:$0xff]
                %528 = vst [vmem:[%s358 + $0x2a0] sm:$0xff] %v527
                %v529 = vld [vmem:[%s357 + $0x7e8] sm:$0xff]
                %530 = vst [vmem:[%s358 + $0x2a8] sm:$0xff] %v529
                %v531 = vld [vmem:[%s357 + $0x7f0] sm:$0xff]
                %532 = vst [vmem:[%s358 + $0x2b0] sm:$0xff] %v531
                %v533 = vld [vmem:[%s357 + $0x7f8] sm:$0xff]
                %534 = vst [vmem:[%s358 + $0x2b8] sm:$0xff] %v533
                %v535 = vld [vmem:[%s357 + $0x840] sm:$0xff]
                %536 = vst [vmem:[%s358 + $0x2c0] sm:$0xff] %v535
                %v537 = vld [vmem:[%s357 + $0x848] sm:$0xff]
                %538 = vst [vmem:[%s358 + $0x2c8] sm:$0xff] %v537
                %v539 = vld [vmem:[%s357 + $0x850] sm:$0xff]
                %540 = vst [vmem:[%s358 + $0x2d0] sm:$0xff] %v539
                %v541 = vld [vmem:[%s357 + $0x858] sm:$0xff]
                %542 = vst [vmem:[%s358 + $0x2d8] sm:$0xff] %v541
                %v543 = vld [vmem:[%s357 + $0x8a0] sm:$0xff]
                %544 = vst [vmem:[%s358 + $0x2e0] sm:$0xff] %v543
                %v545 = vld [vmem:[%s357 + $0x8a8] sm:$0xff]
                %546 = vst [vmem:[%s358 + $0x2e8] sm:$0xff] %v545
                %v547 = vld [vmem:[%s357 + $0x8b0] sm:$0xff]
                %548 = vst [vmem:[%s358 + $0x2f0] sm:$0xff] %v547
                %v549 = vld [vmem:[%s357 + $0x8b8] sm:$0xff]
                %550 = vst [vmem:[%s358 + $0x2f8] sm:$0xff] %v549
                %v551 = vld [vmem:[%s357 + $0x900] sm:$0xff]
                %552 = vst [vmem:[%s358 + $0x300] sm:$0xff] %v551
                %v553 = vld [vmem:[%s357 + $0x908] sm:$0xff]
                %554 = vst [vmem:[%s358 + $0x308] sm:$0xff] %v553
                %v555 = vld [vmem:[%s357 + $0x910] sm:$0xff]
                %556 = vst [vmem:[%s358 + $0x310] sm:$0xff] %v555
                %v557 = vld [vmem:[%s357 + $0x918] sm:$0xff]
                %558 = vst [vmem:[%s358 + $0x318] sm:$0xff] %v557
                %v559 = vld [vmem:[%s357 + $0x960] sm:$0xff]
                %560 = vst [vmem:[%s358 + $0x320] sm:$0xff] %v559
                %v561 = vld [vmem:[%s357 + $0x968] sm:$0xff]
                %562 = vst [vmem:[%s358 + $0x328] sm:$0xff] %v561
                %v563 = vld [vmem:[%s357 + $0x970] sm:$0xff]
                %564 = vst [vmem:[%s358 + $0x330] sm:$0xff] %v563
                %v565 = vld [vmem:[%s357 + $0x978] sm:$0xff]
                %566 = vst [vmem:[%s358 + $0x338] sm:$0xff] %v565
                %v567 = vld [vmem:[%s357 + $0x9c0] sm:$0xff]
                %568 = vst [vmem:[%s358 + $0x340] sm:$0xff] %v567
                %v569 = vld [vmem:[%s357 + $0x9c8] sm:$0xff]
                %570 = vst [vmem:[%s358 + $0x348] sm:$0xff] %v569
                %v571 = vld [vmem:[%s357 + $0x9d0] sm:$0xff]
                %572 = vst [vmem:[%s358 + $0x350] sm:$0xff] %v571
                %v573 = vld [vmem:[%s357 + $0x9d8] sm:$0xff]
                %574 = vst [vmem:[%s358 + $0x358] sm:$0xff] %v573
                %v575 = vld [vmem:[%s357 + $0xa20] sm:$0xff]
                %576 = vst [vmem:[%s358 + $0x360] sm:$0xff] %v575
                %v577 = vld [vmem:[%s357 + $0xa28] sm:$0xff]
                %578 = vst [vmem:[%s358 + $0x368] sm:$0xff] %v577
                %v579 = vld [vmem:[%s357 + $0xa30] sm:$0xff]
                %580 = vst [vmem:[%s358 + $0x370] sm:$0xff] %v579
                %v581 = vld [vmem:[%s357 + $0xa38] sm:$0xff]
                %582 = vst [vmem:[%s358 + $0x378] sm:$0xff] %v581
                %v583 = vld [vmem:[%s357 + $0xa80] sm:$0xff]
                %584 = vst [vmem:[%s358 + $0x380] sm:$0xff] %v583
                %v585 = vld [vmem:[%s357 + $0xa88] sm:$0xff]
                %586 = vst [vmem:[%s358 + $0x388] sm:$0xff] %v585
                %v587 = vld [vmem:[%s357 + $0xa90] sm:$0xff]
                %588 = vst [vmem:[%s358 + $0x390] sm:$0xff] %v587
                %v589 = vld [vmem:[%s357 + $0xa98] sm:$0xff]
                %590 = vst [vmem:[%s358 + $0x398] sm:$0xff] %v589
                %v591 = vld [vmem:[%s357 + $0xae0] sm:$0xff]
                %592 = vst [vmem:[%s358 + $0x3a0] sm:$0xff] %v591
                %v593 = vld [vmem:[%s357 + $0xae8] sm:$0xff]
                %594 = vst [vmem:[%s358 + $0x3a8] sm:$0xff] %v593
                %v595 = vld [vmem:[%s357 + $0xaf0] sm:$0xff]
                %596 = vst [vmem:[%s358 + $0x3b0] sm:$0xff] %v595
                %v597 = vld [vmem:[%s357 + $0xaf8] sm:$0xff]
                %598 = vst [vmem:[%s358 + $0x3b8] sm:$0xff] %v597
                %v599 = vld [vmem:[%s357 + $0xb40] sm:$0xff]
                %600 = vst [vmem:[%s358 + $0x3c0] sm:$0xff] %v599
                %v601 = vld [vmem:[%s357 + $0xb48] sm:$0xff]
                %602 = vst [vmem:[%s358 + $0x3c8] sm:$0xff] %v601
                %v603 = vld [vmem:[%s357 + $0xb50] sm:$0xff]
                %604 = vst [vmem:[%s358 + $0x3d0] sm:$0xff] %v603
                %v605 = vld [vmem:[%s357 + $0xb58] sm:$0xff]
                %606 = vst [vmem:[%s358 + $0x3d8] sm:$0xff] %v605
                %v607 = vld [vmem:[%s357 + $0xba0] sm:$0xff]
                %608 = vst [vmem:[%s358 + $0x3e0] sm:$0xff] %v607
                %v609 = vld [vmem:[%s357 + $0xba8] sm:$0xff]
                %610 = vst [vmem:[%s358 + $0x3e8] sm:$0xff] %v609
                %v611 = vld [vmem:[%s357 + $0xbb0] sm:$0xff]
                %612 = vst [vmem:[%s358 + $0x3f0] sm:$0xff] %v611
                %v613 = vld [vmem:[%s357 + $0xbb8] sm:$0xff]
                %614 = vst [vmem:[%s358 + $0x3f8] sm:$0xff] %v613
                %v615 = vld [vmem:[%s357 + $0xc00] sm:$0xff]
                %616 = vst [vmem:[%s358 + $0x400] sm:$0xff] %v615
                %v617 = vld [vmem:[%s357 + $0xc08] sm:$0xff]
                %618 = vst [vmem:[%s358 + $0x408] sm:$0xff] %v617
                %v619 = vld [vmem:[%s357 + $0xc10] sm:$0xff]
                %620 = vst [vmem:[%s358 + $0x410] sm:$0xff] %v619
                %v621 = vld [vmem:[%s357 + $0xc18] sm:$0xff]
                %622 = vst [vmem:[%s358 + $0x418] sm:$0xff] %v621
                %v623 = vld [vmem:[%s357 + $0xc60] sm:$0xff]
                %624 = vst [vmem:[%s358 + $0x420] sm:$0xff] %v623
                %v625 = vld [vmem:[%s357 + $0xc68] sm:$0xff]
                %626 = vst [vmem:[%s358 + $0x428] sm:$0xff] %v625
                %v627 = vld [vmem:[%s357 + $0xc70] sm:$0xff]
                %628 = vst [vmem:[%s358 + $0x430] sm:$0xff] %v627
                %v629 = vld [vmem:[%s357 + $0xc78] sm:$0xff]
                %630 = vst [vmem:[%s358 + $0x438] sm:$0xff] %v629
                %v631 = vld [vmem:[%s357 + $0xcc0] sm:$0xff]
                %632 = vst [vmem:[%s358 + $0x440] sm:$0xff] %v631
                %v633 = vld [vmem:[%s357 + $0xcc8] sm:$0xff]
                %634 = vst [vmem:[%s358 + $0x448] sm:$0xff] %v633
                %v635 = vld [vmem:[%s357 + $0xcd0] sm:$0xff]
                %636 = vst [vmem:[%s358 + $0x450] sm:$0xff] %v635
                %v637 = vld [vmem:[%s357 + $0xcd8] sm:$0xff]
                %638 = vst [vmem:[%s358 + $0x458] sm:$0xff] %v637
                %v639 = vld [vmem:[%s357 + $0xd20] sm:$0xff]
                %640 = vst [vmem:[%s358 + $0x460] sm:$0xff] %v639
                %v641 = vld [vmem:[%s357 + $0xd28] sm:$0xff]
                %642 = vst [vmem:[%s358 + $0x468] sm:$0xff] %v641
                %v643 = vld [vmem:[%s357 + $0xd30] sm:$0xff]
                %644 = vst [vmem:[%s358 + $0x470] sm:$0xff] %v643
                %v645 = vld [vmem:[%s357 + $0xd38] sm:$0xff]
                %646 = vst [vmem:[%s358 + $0x478] sm:$0xff] %v645
                %v647 = vld [vmem:[%s357 + $0xd80] sm:$0xff]
                %648 = vst [vmem:[%s358 + $0x480] sm:$0xff] %v647
                %v649 = vld [vmem:[%s357 + $0xd88] sm:$0xff]
                %650 = vst [vmem:[%s358 + $0x488] sm:$0xff] %v649
                %v651 = vld [vmem:[%s357 + $0xd90] sm:$0xff]
                %652 = vst [vmem:[%s358 + $0x490] sm:$0xff] %v651
                %v653 = vld [vmem:[%s357 + $0xd98] sm:$0xff]
                %654 = vst [vmem:[%s358 + $0x498] sm:$0xff] %v653
                %v655 = vld [vmem:[%s357 + $0xde0] sm:$0xff]
                %656 = vst [vmem:[%s358 + $0x4a0] sm:$0xff] %v655
                %v657 = vld [vmem:[%s357 + $0xde8] sm:$0xff]
                %658 = vst [vmem:[%s358 + $0x4a8] sm:$0xff] %v657
                %v659 = vld [vmem:[%s357 + $0xdf0] sm:$0xff]
                %660 = vst [vmem:[%s358 + $0x4b0] sm:$0xff] %v659
                %v661 = vld [vmem:[%s357 + $0xdf8] sm:$0xff]
                %662 = vst [vmem:[%s358 + $0x4b8] sm:$0xff] %v661
                %v663 = vld [vmem:[%s357 + $0xe40] sm:$0xff]
                %664 = vst [vmem:[%s358 + $0x4c0] sm:$0xff] %v663
                %v665 = vld [vmem:[%s357 + $0xe48] sm:$0xff]
                %666 = vst [vmem:[%s358 + $0x4c8] sm:$0xff] %v665
                %v667 = vld [vmem:[%s357 + $0xe50] sm:$0xff]
                %668 = vst [vmem:[%s358 + $0x4d0] sm:$0xff] %v667
                %v669 = vld [vmem:[%s357 + $0xe58] sm:$0xff]
                %670 = vst [vmem:[%s358 + $0x4d8] sm:$0xff] %v669
                %v671 = vld [vmem:[%s357 + $0xea0] sm:$0xff]
                %672 = vst [vmem:[%s358 + $0x4e0] sm:$0xff] %v671
                %v673 = vld [vmem:[%s357 + $0xea8] sm:$0xff]
                %674 = vst [vmem:[%s358 + $0x4e8] sm:$0xff] %v673
                %v675 = vld [vmem:[%s357 + $0xeb0] sm:$0xff]
                %676 = vst [vmem:[%s358 + $0x4f0] sm:$0xff] %v675
                %v677 = vld [vmem:[%s357 + $0xeb8] sm:$0xff]
                %678 = vst [vmem:[%s358 + $0x4f8] sm:$0xff] %v677
                %v679 = vld [vmem:[%s357 + $0xf00] sm:$0xff]
                %680 = vst [vmem:[%s358 + $0x500] sm:$0xff] %v679
                %v681 = vld [vmem:[%s357 + $0xf08] sm:$0xff]
                %682 = vst [vmem:[%s358 + $0x508] sm:$0xff] %v681
                %v683 = vld [vmem:[%s357 + $0xf10] sm:$0xff]
                %684 = vst [vmem:[%s358 + $0x510] sm:$0xff] %v683
                %v685 = vld [vmem:[%s357 + $0xf18] sm:$0xff]
                %686 = vst [vmem:[%s358 + $0x518] sm:$0xff] %v685
                %v687 = vld [vmem:[%s357 + $0xf60] sm:$0xff]
                %688 = vst [vmem:[%s358 + $0x520] sm:$0xff] %v687
                %v689 = vld [vmem:[%s357 + $0xf68] sm:$0xff]
                %690 = vst [vmem:[%s358 + $0x528] sm:$0xff] %v689
                %v691 = vld [vmem:[%s357 + $0xf70] sm:$0xff]
                %692 = vst [vmem:[%s358 + $0x530] sm:$0xff] %v691
                %v693 = vld [vmem:[%s357 + $0xf78] sm:$0xff]
                %694 = vst [vmem:[%s358 + $0x538] sm:$0xff] %v693
                %v695 = vld [vmem:[%s357 + $0xfc0] sm:$0xff]
                %696 = vst [vmem:[%s358 + $0x540] sm:$0xff] %v695
                %v697 = vld [vmem:[%s357 + $0xfc8] sm:$0xff]
                %698 = vst [vmem:[%s358 + $0x548] sm:$0xff] %v697
                %v699 = vld [vmem:[%s357 + $0xfd0] sm:$0xff]
                %700 = vst [vmem:[%s358 + $0x550] sm:$0xff] %v699
                %v701 = vld [vmem:[%s357 + $0xfd8] sm:$0xff]
                %702 = vst [vmem:[%s358 + $0x558] sm:$0xff] %v701
                %v703 = vld [vmem:[%s357 + $0x1020] sm:$0xff]
                %704 = vst [vmem:[%s358 + $0x560] sm:$0xff] %v703
                %v705 = vld [vmem:[%s357 + $0x1028] sm:$0xff]
                %706 = vst [vmem:[%s358 + $0x568] sm:$0xff] %v705
                %v707 = vld [vmem:[%s357 + $0x1030] sm:$0xff]
                %708 = vst [vmem:[%s358 + $0x570] sm:$0xff] %v707
                %v709 = vld [vmem:[%s357 + $0x1038] sm:$0xff]
                %710 = vst [vmem:[%s358 + $0x578] sm:$0xff] %v709
                %v711 = vld [vmem:[%s357 + $0x1080] sm:$0xff]
                %712 = vst [vmem:[%s358 + $0x580] sm:$0xff] %v711
                %v713 = vld [vmem:[%s357 + $0x1088] sm:$0xff]
                %714 = vst [vmem:[%s358 + $0x588] sm:$0xff] %v713
                %v715 = vld [vmem:[%s357 + $0x1090] sm:$0xff]
                %716 = vst [vmem:[%s358 + $0x590] sm:$0xff] %v715
                %v717 = vld [vmem:[%s357 + $0x1098] sm:$0xff]
                %718 = vst [vmem:[%s358 + $0x598] sm:$0xff] %v717
                %v719 = vld [vmem:[%s357 + $0x10e0] sm:$0xff]
                %720 = vst [vmem:[%s358 + $0x5a0] sm:$0xff] %v719
                %v721 = vld [vmem:[%s357 + $0x10e8] sm:$0xff]
                %722 = vst [vmem:[%s358 + $0x5a8] sm:$0xff] %v721
                %v723 = vld [vmem:[%s357 + $0x10f0] sm:$0xff]
                %724 = vst [vmem:[%s358 + $0x5b0] sm:$0xff] %v723
                %v725 = vld [vmem:[%s357 + $0x10f8] sm:$0xff]
                %726 = vst [vmem:[%s358 + $0x5b8] sm:$0xff] %v725
                %v727 = vld [vmem:[%s357 + $0x1140] sm:$0xff]
                %728 = vst [vmem:[%s358 + $0x5c0] sm:$0xff] %v727
                %v729 = vld [vmem:[%s357 + $0x1148] sm:$0xff]
                %730 = vst [vmem:[%s358 + $0x5c8] sm:$0xff] %v729
                %v731 = vld [vmem:[%s357 + $0x1150] sm:$0xff]
                %732 = vst [vmem:[%s358 + $0x5d0] sm:$0xff] %v731
                %v733 = vld [vmem:[%s357 + $0x1158] sm:$0xff]
                %734 = vst [vmem:[%s358 + $0x5d8] sm:$0xff] %v733
                %v735 = vld [vmem:[%s357 + $0x11a0] sm:$0xff]
                %736 = vst [vmem:[%s358 + $0x5e0] sm:$0xff] %v735
                %v737 = vld [vmem:[%s357 + $0x11a8] sm:$0xff]
                %738 = vst [vmem:[%s358 + $0x5e8] sm:$0xff] %v737
                %v739 = vld [vmem:[%s357 + $0x11b0] sm:$0xff]
                %740 = vst [vmem:[%s358 + $0x5f0] sm:$0xff] %v739
                %v741 = vld [vmem:[%s357 + $0x11b8] sm:$0xff]
                %742 = vst [vmem:[%s358 + $0x5f8] sm:$0xff] %v741
                %v743 = vld [vmem:[%s357 + $0x1200] sm:$0xff]
                %744 = vst [vmem:[%s358 + $0x600] sm:$0xff] %v743
                %v745 = vld [vmem:[%s357 + $0x1208] sm:$0xff]
                %746 = vst [vmem:[%s358 + $0x608] sm:$0xff] %v745
                %v747 = vld [vmem:[%s357 + $0x1210] sm:$0xff]
                %748 = vst [vmem:[%s358 + $0x610] sm:$0xff] %v747
                %v749 = vld [vmem:[%s357 + $0x1218] sm:$0xff]
                %750 = vst [vmem:[%s358 + $0x618] sm:$0xff] %v749
                %v751 = vld [vmem:[%s357 + $0x1260] sm:$0xff]
                %752 = vst [vmem:[%s358 + $0x620] sm:$0xff] %v751
                %v753 = vld [vmem:[%s357 + $0x1268] sm:$0xff]
                %754 = vst [vmem:[%s358 + $0x628] sm:$0xff] %v753
                %v755 = vld [vmem:[%s357 + $0x1270] sm:$0xff]
                %756 = vst [vmem:[%s358 + $0x630] sm:$0xff] %v755
                %v757 = vld [vmem:[%s357 + $0x1278] sm:$0xff]
                %758 = vst [vmem:[%s358 + $0x638] sm:$0xff] %v757
                %v759 = vld [vmem:[%s357 + $0x12c0] sm:$0xff]
                %760 = vst [vmem:[%s358 + $0x640] sm:$0xff] %v759
                %v761 = vld [vmem:[%s357 + $0x12c8] sm:$0xff]
                %762 = vst [vmem:[%s358 + $0x648] sm:$0xff] %v761
                %v763 = vld [vmem:[%s357 + $0x12d0] sm:$0xff]
                %764 = vst [vmem:[%s358 + $0x650] sm:$0xff] %v763
                %v765 = vld [vmem:[%s357 + $0x12d8] sm:$0xff]
                %766 = vst [vmem:[%s358 + $0x658] sm:$0xff] %v765
                %v767 = vld [vmem:[%s357 + $0x1320] sm:$0xff]
                %768 = vst [vmem:[%s358 + $0x660] sm:$0xff] %v767
                %v769 = vld [vmem:[%s357 + $0x1328] sm:$0xff]
                %770 = vst [vmem:[%s358 + $0x668] sm:$0xff] %v769
                %v771 = vld [vmem:[%s357 + $0x1330] sm:$0xff]
                %772 = vst [vmem:[%s358 + $0x670] sm:$0xff] %v771
                %v773 = vld [vmem:[%s357 + $0x1338] sm:$0xff]
                %774 = vst [vmem:[%s358 + $0x678] sm:$0xff] %v773
                %v775 = vld [vmem:[%s357 + $0x1380] sm:$0xff]
                %776 = vst [vmem:[%s358 + $0x680] sm:$0xff] %v775
                %v777 = vld [vmem:[%s357 + $0x1388] sm:$0xff]
                %778 = vst [vmem:[%s358 + $0x688] sm:$0xff] %v777
                %v779 = vld [vmem:[%s357 + $0x1390] sm:$0xff]
                %780 = vst [vmem:[%s358 + $0x690] sm:$0xff] %v779
                %v781 = vld [vmem:[%s357 + $0x1398] sm:$0xff]
                %782 = vst [vmem:[%s358 + $0x698] sm:$0xff] %v781
                %v783 = vld [vmem:[%s357 + $0x13e0] sm:$0xff]
                %784 = vst [vmem:[%s358 + $0x6a0] sm:$0xff] %v783
                %v785 = vld [vmem:[%s357 + $0x13e8] sm:$0xff]
                %786 = vst [vmem:[%s358 + $0x6a8] sm:$0xff] %v785
                %v787 = vld [vmem:[%s357 + $0x13f0] sm:$0xff]
                %788 = vst [vmem:[%s358 + $0x6b0] sm:$0xff] %v787
                %v789 = vld [vmem:[%s357 + $0x13f8] sm:$0xff]
                %790 = vst [vmem:[%s358 + $0x6b8] sm:$0xff] %v789
                %v791 = vld [vmem:[%s357 + $0x1440] sm:$0xff]
                %792 = vst [vmem:[%s358 + $0x6c0] sm:$0xff] %v791
                %v793 = vld [vmem:[%s357 + $0x1448] sm:$0xff]
                %794 = vst [vmem:[%s358 + $0x6c8] sm:$0xff] %v793
                %v795 = vld [vmem:[%s357 + $0x1450] sm:$0xff]
                %796 = vst [vmem:[%s358 + $0x6d0] sm:$0xff] %v795
                %v797 = vld [vmem:[%s357 + $0x1458] sm:$0xff]
                %798 = vst [vmem:[%s358 + $0x6d8] sm:$0xff] %v797
                %v799 = vld [vmem:[%s357 + $0x14a0] sm:$0xff]
                %800 = vst [vmem:[%s358 + $0x6e0] sm:$0xff] %v799
                %v801 = vld [vmem:[%s357 + $0x14a8] sm:$0xff]
                %802 = vst [vmem:[%s358 + $0x6e8] sm:$0xff] %v801
                %v803 = vld [vmem:[%s357 + $0x14b0] sm:$0xff]
                %804 = vst [vmem:[%s358 + $0x6f0] sm:$0xff] %v803
                %v805 = vld [vmem:[%s357 + $0x14b8] sm:$0xff]
                %806 = vst [vmem:[%s358 + $0x6f8] sm:$0xff] %v805
                %v807 = vld [vmem:[%s357 + $0x1500] sm:$0xff]
                %808 = vst [vmem:[%s358 + $0x700] sm:$0xff] %v807
                %v809 = vld [vmem:[%s357 + $0x1508] sm:$0xff]
                %810 = vst [vmem:[%s358 + $0x708] sm:$0xff] %v809
                %v811 = vld [vmem:[%s357 + $0x1510] sm:$0xff]
                %812 = vst [vmem:[%s358 + $0x710] sm:$0xff] %v811
                %v813 = vld [vmem:[%s357 + $0x1518] sm:$0xff]
                %814 = vst [vmem:[%s358 + $0x718] sm:$0xff] %v813
                %v815 = vld [vmem:[%s357 + $0x1560] sm:$0xff]
                %816 = vst [vmem:[%s358 + $0x720] sm:$0xff] %v815
                %v817 = vld [vmem:[%s357 + $0x1568] sm:$0xff]
                %818 = vst [vmem:[%s358 + $0x728] sm:$0xff] %v817
                %v819 = vld [vmem:[%s357 + $0x1570] sm:$0xff]
                %820 = vst [vmem:[%s358 + $0x730] sm:$0xff] %v819
                %v821 = vld [vmem:[%s357 + $0x1578] sm:$0xff]
                %822 = vst [vmem:[%s358 + $0x738] sm:$0xff] %v821
                %v823 = vld [vmem:[%s357 + $0x15c0] sm:$0xff]
                %824 = vst [vmem:[%s358 + $0x740] sm:$0xff] %v823
                %v825 = vld [vmem:[%s357 + $0x15c8] sm:$0xff]
                %826 = vst [vmem:[%s358 + $0x748] sm:$0xff] %v825
                %v827 = vld [vmem:[%s357 + $0x15d0] sm:$0xff]
                %828 = vst [vmem:[%s358 + $0x750] sm:$0xff] %v827
                %v829 = vld [vmem:[%s357 + $0x15d8] sm:$0xff]
                %830 = vst [vmem:[%s358 + $0x758] sm:$0xff] %v829
                %v831 = vld [vmem:[%s357 + $0x1620] sm:$0xff]
                %832 = vst [vmem:[%s358 + $0x760] sm:$0xff] %v831
                %v833 = vld [vmem:[%s357 + $0x1628] sm:$0xff]
                %834 = vst [vmem:[%s358 + $0x768] sm:$0xff] %v833
                %v835 = vld [vmem:[%s357 + $0x1630] sm:$0xff]
                %836 = vst [vmem:[%s358 + $0x770] sm:$0xff] %v835
                %v837 = vld [vmem:[%s357 + $0x1638] sm:$0xff]
                %838 = vst [vmem:[%s358 + $0x778] sm:$0xff] %v837
                %v839 = vld [vmem:[%s357 + $0x1680] sm:$0xff]
                %840 = vst [vmem:[%s358 + $0x780] sm:$0xff] %v839
                %v841 = vld [vmem:[%s357 + $0x1688] sm:$0xff]
                %842 = vst [vmem:[%s358 + $0x788] sm:$0xff] %v841
                %v843 = vld [vmem:[%s357 + $0x1690] sm:$0xff]
                %844 = vst [vmem:[%s358 + $0x790] sm:$0xff] %v843
                %v845 = vld [vmem:[%s357 + $0x1698] sm:$0xff]
                %846 = vst [vmem:[%s358 + $0x798] sm:$0xff] %v845
                %v847 = vld [vmem:[%s357 + $0x16e0] sm:$0xff]
                %848 = vst [vmem:[%s358 + $0x7a0] sm:$0xff] %v847
                %v849 = vld [vmem:[%s357 + $0x16e8] sm:$0xff]
                %850 = vst [vmem:[%s358 + $0x7a8] sm:$0xff] %v849
                %v851 = vld [vmem:[%s357 + $0x16f0] sm:$0xff]
                %852 = vst [vmem:[%s358 + $0x7b0] sm:$0xff] %v851
                %v853 = vld [vmem:[%s357 + $0x16f8] sm:$0xff]
                %854 = vst [vmem:[%s358 + $0x7b8] sm:$0xff] %v853
                %v855 = vld [vmem:[%s357 + $0x1740] sm:$0xff]
                %856 = vst [vmem:[%s358 + $0x7c0] sm:$0xff] %v855
                %v857 = vld [vmem:[%s357 + $0x1748] sm:$0xff]
                %858 = vst [vmem:[%s358 + $0x7c8] sm:$0xff] %v857
                %v859 = vld [vmem:[%s357 + $0x1750] sm:$0xff]
                %860 = vst [vmem:[%s358 + $0x7d0] sm:$0xff] %v859
                %v861 = vld [vmem:[%s357 + $0x1758] sm:$0xff]
                %862 = vst [vmem:[%s358 + $0x7d8] sm:$0xff] %v861
                %v863 = vld [vmem:[%s357 + $0x17a0] sm:$0xff]
                %864 = vst [vmem:[%s358 + $0x7e0] sm:$0xff] %v863
                %v865 = vld [vmem:[%s357 + $0x17a8] sm:$0xff]
                %866 = vst [vmem:[%s358 + $0x7e8] sm:$0xff] %v865
                %v867 = vld [vmem:[%s357 + $0x17b0] sm:$0xff]
                %868 = vst [vmem:[%s358 + $0x7f0] sm:$0xff] %v867
                %v869 = vld [vmem:[%s357 + $0x17b8] sm:$0xff]
                %870 = vst [vmem:[%s358 + $0x7f8] sm:$0xff] %v869
                %v871 = vld [vmem:[%s357 + $0x1800] sm:$0xff]
                %872 = vst [vmem:[%s358 + $0x800] sm:$0xff] %v871
                %v873 = vld [vmem:[%s357 + $0x1808] sm:$0xff]
                %874 = vst [vmem:[%s358 + $0x808] sm:$0xff] %v873
                %v875 = vld [vmem:[%s357 + $0x1810] sm:$0xff]
                %876 = vst [vmem:[%s358 + $0x810] sm:$0xff] %v875
                %v877 = vld [vmem:[%s357 + $0x1818] sm:$0xff]
                %878 = vst [vmem:[%s358 + $0x818] sm:$0xff] %v877
                %v879 = vld [vmem:[%s357 + $0x1860] sm:$0xff]
                %880 = vst [vmem:[%s358 + $0x820] sm:$0xff] %v879
                %v881 = vld [vmem:[%s357 + $0x1868] sm:$0xff]
                %882 = vst [vmem:[%s358 + $0x828] sm:$0xff] %v881
                %v883 = vld [vmem:[%s357 + $0x1870] sm:$0xff]
                %884 = vst [vmem:[%s358 + $0x830] sm:$0xff] %v883
                %v885 = vld [vmem:[%s357 + $0x1878] sm:$0xff]
                %886 = vst [vmem:[%s358 + $0x838] sm:$0xff] %v885
                %v887 = vld [vmem:[%s357 + $0x18c0] sm:$0xff]
                %888 = vst [vmem:[%s358 + $0x840] sm:$0xff] %v887
                %v889 = vld [vmem:[%s357 + $0x18c8] sm:$0xff]
                %890 = vst [vmem:[%s358 + $0x848] sm:$0xff] %v889
                %v891 = vld [vmem:[%s357 + $0x18d0] sm:$0xff]
                %892 = vst [vmem:[%s358 + $0x850] sm:$0xff] %v891
                %v893 = vld [vmem:[%s357 + $0x18d8] sm:$0xff]
                %894 = vst [vmem:[%s358 + $0x858] sm:$0xff] %v893
                %v895 = vld [vmem:[%s357 + $0x1920] sm:$0xff]
                %896 = vst [vmem:[%s358 + $0x860] sm:$0xff] %v895
                %v897 = vld [vmem:[%s357 + $0x1928] sm:$0xff]
                %898 = vst [vmem:[%s358 + $0x868] sm:$0xff] %v897
                %v899 = vld [vmem:[%s357 + $0x1930] sm:$0xff]
                %900 = vst [vmem:[%s358 + $0x870] sm:$0xff] %v899
                %v901 = vld [vmem:[%s357 + $0x1938] sm:$0xff]
                %902 = vst [vmem:[%s358 + $0x878] sm:$0xff] %v901
                %v903 = vld [vmem:[%s357 + $0x1980] sm:$0xff]
                %904 = vst [vmem:[%s358 + $0x880] sm:$0xff] %v903
                %v905 = vld [vmem:[%s357 + $0x1988] sm:$0xff]
                %906 = vst [vmem:[%s358 + $0x888] sm:$0xff] %v905
                %v907 = vld [vmem:[%s357 + $0x1990] sm:$0xff]
                %908 = vst [vmem:[%s358 + $0x890] sm:$0xff] %v907
                %v909 = vld [vmem:[%s357 + $0x1998] sm:$0xff]
                %910 = vst [vmem:[%s358 + $0x898] sm:$0xff] %v909
                %v911 = vld [vmem:[%s357 + $0x19e0] sm:$0xff]
                %912 = vst [vmem:[%s358 + $0x8a0] sm:$0xff] %v911
                %v913 = vld [vmem:[%s357 + $0x19e8] sm:$0xff]
                %914 = vst [vmem:[%s358 + $0x8a8] sm:$0xff] %v913
                %v915 = vld [vmem:[%s357 + $0x19f0] sm:$0xff]
                %916 = vst [vmem:[%s358 + $0x8b0] sm:$0xff] %v915
                %v917 = vld [vmem:[%s357 + $0x19f8] sm:$0xff]
                %918 = vst [vmem:[%s358 + $0x8b8] sm:$0xff] %v917
                %v919 = vld [vmem:[%s357 + $0x1a40] sm:$0xff]
                %920 = vst [vmem:[%s358 + $0x8c0] sm:$0xff] %v919
                %v921 = vld [vmem:[%s357 + $0x1a48] sm:$0xff]
                %922 = vst [vmem:[%s358 + $0x8c8] sm:$0xff] %v921
                %v923 = vld [vmem:[%s357 + $0x1a50] sm:$0xff]
                %924 = vst [vmem:[%s358 + $0x8d0] sm:$0xff] %v923
                %v925 = vld [vmem:[%s357 + $0x1a58] sm:$0xff]
                %926 = vst [vmem:[%s358 + $0x8d8] sm:$0xff] %v925
                %v927 = vld [vmem:[%s357 + $0x1aa0] sm:$0xff]
                %928 = vst [vmem:[%s358 + $0x8e0] sm:$0xff] %v927
                %v929 = vld [vmem:[%s357 + $0x1aa8] sm:$0xff]
                %930 = vst [vmem:[%s358 + $0x8e8] sm:$0xff] %v929
                %v931 = vld [vmem:[%s357 + $0x1ab0] sm:$0xff]
                %932 = vst [vmem:[%s358 + $0x8f0] sm:$0xff] %v931
                %v933 = vld [vmem:[%s357 + $0x1ab8] sm:$0xff]
                %934 = vst [vmem:[%s358 + $0x8f8] sm:$0xff] %v933
                %v935 = vld [vmem:[%s357 + $0x1b00] sm:$0xff]
                %936 = vst [vmem:[%s358 + $0x900] sm:$0xff] %v935
                %v937 = vld [vmem:[%s357 + $0x1b08] sm:$0xff]
                %938 = vst [vmem:[%s358 + $0x908] sm:$0xff] %v937
                %v939 = vld [vmem:[%s357 + $0x1b10] sm:$0xff]
                %940 = vst [vmem:[%s358 + $0x910] sm:$0xff] %v939
                %v941 = vld [vmem:[%s357 + $0x1b18] sm:$0xff]
                %942 = vst [vmem:[%s358 + $0x918] sm:$0xff] %v941
                %v943 = vld [vmem:[%s357 + $0x1b60] sm:$0xff]
                %944 = vst [vmem:[%s358 + $0x920] sm:$0xff] %v943
                %v945 = vld [vmem:[%s357 + $0x1b68] sm:$0xff]
                %946 = vst [vmem:[%s358 + $0x928] sm:$0xff] %v945
                %v947 = vld [vmem:[%s357 + $0x1b70] sm:$0xff]
                %948 = vst [vmem:[%s358 + $0x930] sm:$0xff] %v947
                %v949 = vld [vmem:[%s357 + $0x1b78] sm:$0xff]
                %950 = vst [vmem:[%s358 + $0x938] sm:$0xff] %v949
                %v951 = vld [vmem:[%s357 + $0x1bc0] sm:$0xff]
                %952 = vst [vmem:[%s358 + $0x940] sm:$0xff] %v951
                %v953 = vld [vmem:[%s357 + $0x1bc8] sm:$0xff]
                %954 = vst [vmem:[%s358 + $0x948] sm:$0xff] %v953
                %v955 = vld [vmem:[%s357 + $0x1bd0] sm:$0xff]
                %956 = vst [vmem:[%s358 + $0x950] sm:$0xff] %v955
                %v957 = vld [vmem:[%s357 + $0x1bd8] sm:$0xff]
                %958 = vst [vmem:[%s358 + $0x958] sm:$0xff] %v957
                %v959 = vld [vmem:[%s357 + $0x1c20] sm:$0xff]
                %960 = vst [vmem:[%s358 + $0x960] sm:$0xff] %v959
                %v961 = vld [vmem:[%s357 + $0x1c28] sm:$0xff]
                %962 = vst [vmem:[%s358 + $0x968] sm:$0xff] %v961
                %v963 = vld [vmem:[%s357 + $0x1c30] sm:$0xff]
                %964 = vst [vmem:[%s358 + $0x970] sm:$0xff] %v963
                %v965 = vld [vmem:[%s357 + $0x1c38] sm:$0xff]
                %966 = vst [vmem:[%s358 + $0x978] sm:$0xff] %v965
                %v967 = vld [vmem:[%s357 + $0x1c80] sm:$0xff]
                %968 = vst [vmem:[%s358 + $0x980] sm:$0xff] %v967
                %v969 = vld [vmem:[%s357 + $0x1c88] sm:$0xff]
                %970 = vst [vmem:[%s358 + $0x988] sm:$0xff] %v969
                %v971 = vld [vmem:[%s357 + $0x1c90] sm:$0xff]
                %972 = vst [vmem:[%s358 + $0x990] sm:$0xff] %v971
                %v973 = vld [vmem:[%s357 + $0x1c98] sm:$0xff]
                %974 = vst [vmem:[%s358 + $0x998] sm:$0xff] %v973
                %v975 = vld [vmem:[%s357 + $0x1ce0] sm:$0xff]
                %976 = vst [vmem:[%s358 + $0x9a0] sm:$0xff] %v975
                %v977 = vld [vmem:[%s357 + $0x1ce8] sm:$0xff]
                %978 = vst [vmem:[%s358 + $0x9a8] sm:$0xff] %v977
                %v979 = vld [vmem:[%s357 + $0x1cf0] sm:$0xff]
                %980 = vst [vmem:[%s358 + $0x9b0] sm:$0xff] %v979
                %v981 = vld [vmem:[%s357 + $0x1cf8] sm:$0xff]
                %982 = vst [vmem:[%s358 + $0x9b8] sm:$0xff] %v981
                %v983 = vld [vmem:[%s357 + $0x1d40] sm:$0xff]
                %984 = vst [vmem:[%s358 + $0x9c0] sm:$0xff] %v983
                %v985 = vld [vmem:[%s357 + $0x1d48] sm:$0xff]
                %986 = vst [vmem:[%s358 + $0x9c8] sm:$0xff] %v985
                %v987 = vld [vmem:[%s357 + $0x1d50] sm:$0xff]
                %988 = vst [vmem:[%s358 + $0x9d0] sm:$0xff] %v987
                %v989 = vld [vmem:[%s357 + $0x1d58] sm:$0xff]
                %990 = vst [vmem:[%s358 + $0x9d8] sm:$0xff] %v989
                %v991 = vld [vmem:[%s357 + $0x1da0] sm:$0xff]
                %992 = vst [vmem:[%s358 + $0x9e0] sm:$0xff] %v991
                %v993 = vld [vmem:[%s357 + $0x1da8] sm:$0xff]
                %994 = vst [vmem:[%s358 + $0x9e8] sm:$0xff] %v993
                %v995 = vld [vmem:[%s357 + $0x1db0] sm:$0xff]
                %996 = vst [vmem:[%s358 + $0x9f0] sm:$0xff] %v995
                %v997 = vld [vmem:[%s357 + $0x1db8] sm:$0xff]
                %998 = vst [vmem:[%s358 + $0x9f8] sm:$0xff] %v997
                %v999 = vld [vmem:[%s357 + $0x1e00] sm:$0xff]
                %1000 = vst [vmem:[%s358 + $0xa00] sm:$0xff] %v999
                %v1001 = vld [vmem:[%s357 + $0x1e08] sm:$0xff]
                %1002 = vst [vmem:[%s358 + $0xa08] sm:$0xff] %v1001
                %v1003 = vld [vmem:[%s357 + $0x1e10] sm:$0xff]
                %1004 = vst [vmem:[%s358 + $0xa10] sm:$0xff] %v1003
                %v1005 = vld [vmem:[%s357 + $0x1e18] sm:$0xff]
                %1006 = vst [vmem:[%s358 + $0xa18] sm:$0xff] %v1005
                %v1007 = vld [vmem:[%s357 + $0x1e60] sm:$0xff]
                %1008 = vst [vmem:[%s358 + $0xa20] sm:$0xff] %v1007
                %v1009 = vld [vmem:[%s357 + $0x1e68] sm:$0xff]
                %1010 = vst [vmem:[%s358 + $0xa28] sm:$0xff] %v1009
                %v1011 = vld [vmem:[%s357 + $0x1e70] sm:$0xff]
                %1012 = vst [vmem:[%s358 + $0xa30] sm:$0xff] %v1011
                %v1013 = vld [vmem:[%s357 + $0x1e78] sm:$0xff]
                %1014 = vst [vmem:[%s358 + $0xa38] sm:$0xff] %v1013
                %v1015 = vld [vmem:[%s357 + $0x1ec0] sm:$0xff]
                %1016 = vst [vmem:[%s358 + $0xa40] sm:$0xff] %v1015
                %v1017 = vld [vmem:[%s357 + $0x1ec8] sm:$0xff]
                %1018 = vst [vmem:[%s358 + $0xa48] sm:$0xff] %v1017
                %v1019 = vld [vmem:[%s357 + $0x1ed0] sm:$0xff]
                %1020 = vst [vmem:[%s358 + $0xa50] sm:$0xff] %v1019
                %v1021 = vld [vmem:[%s357 + $0x1ed8] sm:$0xff]
                %1022 = vst [vmem:[%s358 + $0xa58] sm:$0xff] %v1021
                %v1023 = vld [vmem:[%s357 + $0x1f20] sm:$0xff]
                %1024 = vst [vmem:[%s358 + $0xa60] sm:$0xff] %v1023
                %v1025 = vld [vmem:[%s357 + $0x1f28] sm:$0xff]
                %1026 = vst [vmem:[%s358 + $0xa68] sm:$0xff] %v1025
                %v1027 = vld [vmem:[%s357 + $0x1f30] sm:$0xff]
                %1028 = vst [vmem:[%s358 + $0xa70] sm:$0xff] %v1027
                %v1029 = vld [vmem:[%s357 + $0x1f38] sm:$0xff]
                %1030 = vst [vmem:[%s358 + $0xa78] sm:$0xff] %v1029
                %v1031 = vld [vmem:[%s357 + $0x1f80] sm:$0xff]
                %1032 = vst [vmem:[%s358 + $0xa80] sm:$0xff] %v1031
                %v1033 = vld [vmem:[%s357 + $0x1f88] sm:$0xff]
                %1034 = vst [vmem:[%s358 + $0xa88] sm:$0xff] %v1033
                %v1035 = vld [vmem:[%s357 + $0x1f90] sm:$0xff]
                %1036 = vst [vmem:[%s358 + $0xa90] sm:$0xff] %v1035
                %v1037 = vld [vmem:[%s357 + $0x1f98] sm:$0xff]
                %1038 = vst [vmem:[%s358 + $0xa98] sm:$0xff] %v1037
                %v1039 = vld [vmem:[%s357 + $0x1fe0] sm:$0xff]
                %1040 = vst [vmem:[%s358 + $0xaa0] sm:$0xff] %v1039
                %v1041 = vld [vmem:[%s357 + $0x1fe8] sm:$0xff]
                %1042 = vst [vmem:[%s358 + $0xaa8] sm:$0xff] %v1041
                %v1043 = vld [vmem:[%s357 + $0x1ff0] sm:$0xff]
                %1044 = vst [vmem:[%s358 + $0xab0] sm:$0xff] %v1043
                %v1045 = vld [vmem:[%s357 + $0x1ff8] sm:$0xff]
                %1046 = vst [vmem:[%s358 + $0xab8] sm:$0xff] %v1045
                %v1047 = vld [vmem:[%s357 + $0x2040] sm:$0xff]
                %1048 = vst [vmem:[%s358 + $0xac0] sm:$0xff] %v1047
                %v1049 = vld [vmem:[%s357 + $0x2048] sm:$0xff]
                %1050 = vst [vmem:[%s358 + $0xac8] sm:$0xff] %v1049
                %v1051 = vld [vmem:[%s357 + $0x2050] sm:$0xff]
                %1052 = vst [vmem:[%s358 + $0xad0] sm:$0xff] %v1051
                %v1053 = vld [vmem:[%s357 + $0x2058] sm:$0xff]
                %1054 = vst [vmem:[%s358 + $0xad8] sm:$0xff] %v1053
                %v1055 = vld [vmem:[%s357 + $0x20a0] sm:$0xff]
                %1056 = vst [vmem:[%s358 + $0xae0] sm:$0xff] %v1055
                %v1057 = vld [vmem:[%s357 + $0x20a8] sm:$0xff]
                %1058 = vst [vmem:[%s358 + $0xae8] sm:$0xff] %v1057
                %v1059 = vld [vmem:[%s357 + $0x20b0] sm:$0xff]
                %1060 = vst [vmem:[%s358 + $0xaf0] sm:$0xff] %v1059
                %v1061 = vld [vmem:[%s357 + $0x20b8] sm:$0xff]
                %1062 = vst [vmem:[%s358 + $0xaf8] sm:$0xff] %v1061
                %v1063 = vld [vmem:[%s357 + $0x2100] sm:$0xff]
                %1064 = vst [vmem:[%s358 + $0xb00] sm:$0xff] %v1063
                %v1065 = vld [vmem:[%s357 + $0x2108] sm:$0xff]
                %1066 = vst [vmem:[%s358 + $0xb08] sm:$0xff] %v1065
                %v1067 = vld [vmem:[%s357 + $0x2110] sm:$0xff]
                %1068 = vst [vmem:[%s358 + $0xb10] sm:$0xff] %v1067
                %v1069 = vld [vmem:[%s357 + $0x2118] sm:$0xff]
                %1070 = vst [vmem:[%s358 + $0xb18] sm:$0xff] %v1069
                %v1071 = vld [vmem:[%s357 + $0x2160] sm:$0xff]
                %1072 = vst [vmem:[%s358 + $0xb20] sm:$0xff] %v1071
                %v1073 = vld [vmem:[%s357 + $0x2168] sm:$0xff]
                %1074 = vst [vmem:[%s358 + $0xb28] sm:$0xff] %v1073
                %v1075 = vld [vmem:[%s357 + $0x2170] sm:$0xff]
                %1076 = vst [vmem:[%s358 + $0xb30] sm:$0xff] %v1075
                %v1077 = vld [vmem:[%s357 + $0x2178] sm:$0xff]
                %1078 = vst [vmem:[%s358 + $0xb38] sm:$0xff] %v1077
                %v1079 = vld [vmem:[%s357 + $0x21c0] sm:$0xff]
                %1080 = vst [vmem:[%s358 + $0xb40] sm:$0xff] %v1079
                %v1081 = vld [vmem:[%s357 + $0x21c8] sm:$0xff]
                %1082 = vst [vmem:[%s358 + $0xb48] sm:$0xff] %v1081
                %v1083 = vld [vmem:[%s357 + $0x21d0] sm:$0xff]
                %1084 = vst [vmem:[%s358 + $0xb50] sm:$0xff] %v1083
                %v1085 = vld [vmem:[%s357 + $0x21d8] sm:$0xff]
                %1086 = vst [vmem:[%s358 + $0xb58] sm:$0xff] %v1085
                %v1087 = vld [vmem:[%s357 + $0x2220] sm:$0xff]
                %1088 = vst [vmem:[%s358 + $0xb60] sm:$0xff] %v1087
                %v1089 = vld [vmem:[%s357 + $0x2228] sm:$0xff]
                %1090 = vst [vmem:[%s358 + $0xb68] sm:$0xff] %v1089
                %v1091 = vld [vmem:[%s357 + $0x2230] sm:$0xff]
                %1092 = vst [vmem:[%s358 + $0xb70] sm:$0xff] %v1091
                %v1093 = vld [vmem:[%s357 + $0x2238] sm:$0xff]
                %1094 = vst [vmem:[%s358 + $0xb78] sm:$0xff] %v1093
                %v1095 = vld [vmem:[%s357 + $0x2280] sm:$0xff]
                %1096 = vst [vmem:[%s358 + $0xb80] sm:$0xff] %v1095
                %v1097 = vld [vmem:[%s357 + $0x2288] sm:$0xff]
                %1098 = vst [vmem:[%s358 + $0xb88] sm:$0xff] %v1097
                %v1099 = vld [vmem:[%s357 + $0x2290] sm:$0xff]
                %1100 = vst [vmem:[%s358 + $0xb90] sm:$0xff] %v1099
                %v1101 = vld [vmem:[%s357 + $0x2298] sm:$0xff]
                %1102 = vst [vmem:[%s358 + $0xb98] sm:$0xff] %v1101
                %v1103 = vld [vmem:[%s357 + $0x22e0] sm:$0xff]
                %1104 = vst [vmem:[%s358 + $0xba0] sm:$0xff] %v1103
                %v1105 = vld [vmem:[%s357 + $0x22e8] sm:$0xff]
                %1106 = vst [vmem:[%s358 + $0xba8] sm:$0xff] %v1105
                %v1107 = vld [vmem:[%s357 + $0x22f0] sm:$0xff]
                %1108 = vst [vmem:[%s358 + $0xbb0] sm:$0xff] %v1107
                %v1109 = vld [vmem:[%s357 + $0x22f8] sm:$0xff]
                %1110 = vst [vmem:[%s358 + $0xbb8] sm:$0xff] %v1109
                %v1111 = vld [vmem:[%s357 + $0x2340] sm:$0xff]
                %1112 = vst [vmem:[%s358 + $0xbc0] sm:$0xff] %v1111
                %v1113 = vld [vmem:[%s357 + $0x2348] sm:$0xff]
                %1114 = vst [vmem:[%s358 + $0xbc8] sm:$0xff] %v1113
                %v1115 = vld [vmem:[%s357 + $0x2350] sm:$0xff]
                %1116 = vst [vmem:[%s358 + $0xbd0] sm:$0xff] %v1115
                %v1117 = vld [vmem:[%s357 + $0x2358] sm:$0xff]
                %1118 = vst [vmem:[%s358 + $0xbd8] sm:$0xff] %v1117
                %v1119 = vld [vmem:[%s357 + $0x23a0] sm:$0xff]
                %1120 = vst [vmem:[%s358 + $0xbe0] sm:$0xff] %v1119
                %v1121 = vld [vmem:[%s357 + $0x23a8] sm:$0xff]
                %1122 = vst [vmem:[%s358 + $0xbe8] sm:$0xff] %v1121
                %v1123 = vld [vmem:[%s357 + $0x23b0] sm:$0xff]
                %1124 = vst [vmem:[%s358 + $0xbf0] sm:$0xff] %v1123
                %v1125 = vld [vmem:[%s357 + $0x23b8] sm:$0xff]
                %1126 = vst [vmem:[%s358 + $0xbf8] sm:$0xff] %v1125
                %v1127 = vld [vmem:[%s357 + $0x2400] sm:$0xff]
                %1128 = vst [vmem:[%s358 + $0xc00] sm:$0xff] %v1127
                %v1129 = vld [vmem:[%s357 + $0x2408] sm:$0xff]
                %1130 = vst [vmem:[%s358 + $0xc08] sm:$0xff] %v1129
                %v1131 = vld [vmem:[%s357 + $0x2410] sm:$0xff]
                %1132 = vst [vmem:[%s358 + $0xc10] sm:$0xff] %v1131
                %v1133 = vld [vmem:[%s357 + $0x2418] sm:$0xff]
                %1134 = vst [vmem:[%s358 + $0xc18] sm:$0xff] %v1133
                %v1135 = vld [vmem:[%s357 + $0x2460] sm:$0xff]
                %1136 = vst [vmem:[%s358 + $0xc20] sm:$0xff] %v1135
                %v1137 = vld [vmem:[%s357 + $0x2468] sm:$0xff]
                %1138 = vst [vmem:[%s358 + $0xc28] sm:$0xff] %v1137
                %v1139 = vld [vmem:[%s357 + $0x2470] sm:$0xff]
                %1140 = vst [vmem:[%s358 + $0xc30] sm:$0xff] %v1139
                %v1141 = vld [vmem:[%s357 + $0x2478] sm:$0xff]
                %1142 = vst [vmem:[%s358 + $0xc38] sm:$0xff] %v1141
                %v1143 = vld [vmem:[%s357 + $0x24c0] sm:$0xff]
                %1144 = vst [vmem:[%s358 + $0xc40] sm:$0xff] %v1143
                %v1145 = vld [vmem:[%s357 + $0x24c8] sm:$0xff]
                %1146 = vst [vmem:[%s358 + $0xc48] sm:$0xff] %v1145
                %v1147 = vld [vmem:[%s357 + $0x24d0] sm:$0xff]
                %1148 = vst [vmem:[%s358 + $0xc50] sm:$0xff] %v1147
                %v1149 = vld [vmem:[%s357 + $0x24d8] sm:$0xff]
                %1150 = vst [vmem:[%s358 + $0xc58] sm:$0xff] %v1149
                %v1151 = vld [vmem:[%s357 + $0x2520] sm:$0xff]
                %1152 = vst [vmem:[%s358 + $0xc60] sm:$0xff] %v1151
                %v1153 = vld [vmem:[%s357 + $0x2528] sm:$0xff]
                %1154 = vst [vmem:[%s358 + $0xc68] sm:$0xff] %v1153
                %v1155 = vld [vmem:[%s357 + $0x2530] sm:$0xff]
                %1156 = vst [vmem:[%s358 + $0xc70] sm:$0xff] %v1155
                %v1157 = vld [vmem:[%s357 + $0x2538] sm:$0xff]
                %1158 = vst [vmem:[%s358 + $0xc78] sm:$0xff] %v1157
                %v1159 = vld [vmem:[%s357 + $0x2580] sm:$0xff]
                %1160 = vst [vmem:[%s358 + $0xc80] sm:$0xff] %v1159
                %v1161 = vld [vmem:[%s357 + $0x2588] sm:$0xff]
                %1162 = vst [vmem:[%s358 + $0xc88] sm:$0xff] %v1161
                %v1163 = vld [vmem:[%s357 + $0x2590] sm:$0xff]
                %1164 = vst [vmem:[%s358 + $0xc90] sm:$0xff] %v1163
                %v1165 = vld [vmem:[%s357 + $0x2598] sm:$0xff]
                %1166 = vst [vmem:[%s358 + $0xc98] sm:$0xff] %v1165
                %v1167 = vld [vmem:[%s357 + $0x25e0] sm:$0xff]
                %1168 = vst [vmem:[%s358 + $0xca0] sm:$0xff] %v1167
                %v1169 = vld [vmem:[%s357 + $0x25e8] sm:$0xff]
                %1170 = vst [vmem:[%s358 + $0xca8] sm:$0xff] %v1169
                %v1171 = vld [vmem:[%s357 + $0x25f0] sm:$0xff]
                %1172 = vst [vmem:[%s358 + $0xcb0] sm:$0xff] %v1171
                %v1173 = vld [vmem:[%s357 + $0x25f8] sm:$0xff]
                %1174 = vst [vmem:[%s358 + $0xcb8] sm:$0xff] %v1173
                %v1175 = vld [vmem:[%s357 + $0x2640] sm:$0xff]
                %1176 = vst [vmem:[%s358 + $0xcc0] sm:$0xff] %v1175
                %v1177 = vld [vmem:[%s357 + $0x2648] sm:$0xff]
                %1178 = vst [vmem:[%s358 + $0xcc8] sm:$0xff] %v1177
                %v1179 = vld [vmem:[%s357 + $0x2650] sm:$0xff]
                %1180 = vst [vmem:[%s358 + $0xcd0] sm:$0xff] %v1179
                %v1181 = vld [vmem:[%s357 + $0x2658] sm:$0xff]
                %1182 = vst [vmem:[%s358 + $0xcd8] sm:$0xff] %v1181
                %v1183 = vld [vmem:[%s357 + $0x26a0] sm:$0xff]
                %1184 = vst [vmem:[%s358 + $0xce0] sm:$0xff] %v1183
                %v1185 = vld [vmem:[%s357 + $0x26a8] sm:$0xff]
                %1186 = vst [vmem:[%s358 + $0xce8] sm:$0xff] %v1185
                %v1187 = vld [vmem:[%s357 + $0x26b0] sm:$0xff]
                %1188 = vst [vmem:[%s358 + $0xcf0] sm:$0xff] %v1187
                %v1189 = vld [vmem:[%s357 + $0x26b8] sm:$0xff]
                %1190 = vst [vmem:[%s358 + $0xcf8] sm:$0xff] %v1189
                %v1191 = vld [vmem:[%s357 + $0x2700] sm:$0xff]
                %1192 = vst [vmem:[%s358 + $0xd00] sm:$0xff] %v1191
                %v1193 = vld [vmem:[%s357 + $0x2708] sm:$0xff]
                %1194 = vst [vmem:[%s358 + $0xd08] sm:$0xff] %v1193
                %v1195 = vld [vmem:[%s357 + $0x2710] sm:$0xff]
                %1196 = vst [vmem:[%s358 + $0xd10] sm:$0xff] %v1195
                %v1197 = vld [vmem:[%s357 + $0x2718] sm:$0xff]
                %1198 = vst [vmem:[%s358 + $0xd18] sm:$0xff] %v1197
                %v1199 = vld [vmem:[%s357 + $0x2760] sm:$0xff]
                %1200 = vst [vmem:[%s358 + $0xd20] sm:$0xff] %v1199
                %v1201 = vld [vmem:[%s357 + $0x2768] sm:$0xff]
                %1202 = vst [vmem:[%s358 + $0xd28] sm:$0xff] %v1201
                %v1203 = vld [vmem:[%s357 + $0x2770] sm:$0xff]
                %1204 = vst [vmem:[%s358 + $0xd30] sm:$0xff] %v1203
                %v1205 = vld [vmem:[%s357 + $0x2778] sm:$0xff]
                %1206 = vst [vmem:[%s358 + $0xd38] sm:$0xff] %v1205
                %v1207 = vld [vmem:[%s357 + $0x27c0] sm:$0xff]
                %1208 = vst [vmem:[%s358 + $0xd40] sm:$0xff] %v1207
                %v1209 = vld [vmem:[%s357 + $0x27c8] sm:$0xff]
                %1210 = vst [vmem:[%s358 + $0xd48] sm:$0xff] %v1209
                %v1211 = vld [vmem:[%s357 + $0x27d0] sm:$0xff]
                %1212 = vst [vmem:[%s358 + $0xd50] sm:$0xff] %v1211
                %v1213 = vld [vmem:[%s357 + $0x27d8] sm:$0xff]
                %1214 = vst [vmem:[%s358 + $0xd58] sm:$0xff] %v1213
                %v1215 = vld [vmem:[%s357 + $0x2820] sm:$0xff]
                %1216 = vst [vmem:[%s358 + $0xd60] sm:$0xff] %v1215
                %v1217 = vld [vmem:[%s357 + $0x2828] sm:$0xff]
                %1218 = vst [vmem:[%s358 + $0xd68] sm:$0xff] %v1217
                %v1219 = vld [vmem:[%s357 + $0x2830] sm:$0xff]
                %1220 = vst [vmem:[%s358 + $0xd70] sm:$0xff] %v1219
                %v1221 = vld [vmem:[%s357 + $0x2838] sm:$0xff]
                %1222 = vst [vmem:[%s358 + $0xd78] sm:$0xff] %v1221
                %v1223 = vld [vmem:[%s357 + $0x2880] sm:$0xff]
                %1224 = vst [vmem:[%s358 + $0xd80] sm:$0xff] %v1223
                %v1225 = vld [vmem:[%s357 + $0x2888] sm:$0xff]
                %1226 = vst [vmem:[%s358 + $0xd88] sm:$0xff] %v1225
                %v1227 = vld [vmem:[%s357 + $0x2890] sm:$0xff]
                %1228 = vst [vmem:[%s358 + $0xd90] sm:$0xff] %v1227
                %v1229 = vld [vmem:[%s357 + $0x2898] sm:$0xff]
                %1230 = vst [vmem:[%s358 + $0xd98] sm:$0xff] %v1229
                %v1231 = vld [vmem:[%s357 + $0x28e0] sm:$0xff]
                %1232 = vst [vmem:[%s358 + $0xda0] sm:$0xff] %v1231
                %v1233 = vld [vmem:[%s357 + $0x28e8] sm:$0xff]
                %1234 = vst [vmem:[%s358 + $0xda8] sm:$0xff] %v1233
                %v1235 = vld [vmem:[%s357 + $0x28f0] sm:$0xff]
                %1236 = vst [vmem:[%s358 + $0xdb0] sm:$0xff] %v1235
                %v1237 = vld [vmem:[%s357 + $0x28f8] sm:$0xff]
                %1238 = vst [vmem:[%s358 + $0xdb8] sm:$0xff] %v1237
                %v1239 = vld [vmem:[%s357 + $0x2940] sm:$0xff]
                %1240 = vst [vmem:[%s358 + $0xdc0] sm:$0xff] %v1239
                %v1241 = vld [vmem:[%s357 + $0x2948] sm:$0xff]
                %1242 = vst [vmem:[%s358 + $0xdc8] sm:$0xff] %v1241
                %v1243 = vld [vmem:[%s357 + $0x2950] sm:$0xff]
                %1244 = vst [vmem:[%s358 + $0xdd0] sm:$0xff] %v1243
                %v1245 = vld [vmem:[%s357 + $0x2958] sm:$0xff]
                %1246 = vst [vmem:[%s358 + $0xdd8] sm:$0xff] %v1245
                %v1247 = vld [vmem:[%s357 + $0x29a0] sm:$0xff]
                %1248 = vst [vmem:[%s358 + $0xde0] sm:$0xff] %v1247
                %v1249 = vld [vmem:[%s357 + $0x29a8] sm:$0xff]
                %1250 = vst [vmem:[%s358 + $0xde8] sm:$0xff] %v1249
                %v1251 = vld [vmem:[%s357 + $0x29b0] sm:$0xff]
                %1252 = vst [vmem:[%s358 + $0xdf0] sm:$0xff] %v1251
                %v1253 = vld [vmem:[%s357 + $0x29b8] sm:$0xff]
                %1254 = vst [vmem:[%s358 + $0xdf8] sm:$0xff] %v1253
                %v1255 = vld [vmem:[%s357 + $0x2a00] sm:$0xff]
                %1256 = vst [vmem:[%s358 + $0xe00] sm:$0xff] %v1255
                %v1257 = vld [vmem:[%s357 + $0x2a08] sm:$0xff]
                %1258 = vst [vmem:[%s358 + $0xe08] sm:$0xff] %v1257
                %v1259 = vld [vmem:[%s357 + $0x2a10] sm:$0xff]
                %1260 = vst [vmem:[%s358 + $0xe10] sm:$0xff] %v1259
                %v1261 = vld [vmem:[%s357 + $0x2a18] sm:$0xff]
                %1262 = vst [vmem:[%s358 + $0xe18] sm:$0xff] %v1261
                %v1263 = vld [vmem:[%s357 + $0x2a60] sm:$0xff]
                %1264 = vst [vmem:[%s358 + $0xe20] sm:$0xff] %v1263
                %v1265 = vld [vmem:[%s357 + $0x2a68] sm:$0xff]
                %1266 = vst [vmem:[%s358 + $0xe28] sm:$0xff] %v1265
                %v1267 = vld [vmem:[%s357 + $0x2a70] sm:$0xff]
                %1268 = vst [vmem:[%s358 + $0xe30] sm:$0xff] %v1267
                %v1269 = vld [vmem:[%s357 + $0x2a78] sm:$0xff]
                %1270 = vst [vmem:[%s358 + $0xe38] sm:$0xff] %v1269
                %v1271 = vld [vmem:[%s357 + $0x2ac0] sm:$0xff]
                %1272 = vst [vmem:[%s358 + $0xe40] sm:$0xff] %v1271
                %v1273 = vld [vmem:[%s357 + $0x2ac8] sm:$0xff]
                %1274 = vst [vmem:[%s358 + $0xe48] sm:$0xff] %v1273
                %v1275 = vld [vmem:[%s357 + $0x2ad0] sm:$0xff]
                %1276 = vst [vmem:[%s358 + $0xe50] sm:$0xff] %v1275
                %v1277 = vld [vmem:[%s357 + $0x2ad8] sm:$0xff]
                %1278 = vst [vmem:[%s358 + $0xe58] sm:$0xff] %v1277
                %v1279 = vld [vmem:[%s357 + $0x2b20] sm:$0xff]
                %1280 = vst [vmem:[%s358 + $0xe60] sm:$0xff] %v1279
                %v1281 = vld [vmem:[%s357 + $0x2b28] sm:$0xff]
                %1282 = vst [vmem:[%s358 + $0xe68] sm:$0xff] %v1281
                %v1283 = vld [vmem:[%s357 + $0x2b30] sm:$0xff]
                %1284 = vst [vmem:[%s358 + $0xe70] sm:$0xff] %v1283
                %v1285 = vld [vmem:[%s357 + $0x2b38] sm:$0xff]
                %1286 = vst [vmem:[%s358 + $0xe78] sm:$0xff] %v1285
                %v1287 = vld [vmem:[%s357 + $0x2b80] sm:$0xff]
                %1288 = vst [vmem:[%s358 + $0xe80] sm:$0xff] %v1287
                %v1289 = vld [vmem:[%s357 + $0x2b88] sm:$0xff]
                %1290 = vst [vmem:[%s358 + $0xe88] sm:$0xff] %v1289
                %v1291 = vld [vmem:[%s357 + $0x2b90] sm:$0xff]
                %1292 = vst [vmem:[%s358 + $0xe90] sm:$0xff] %v1291
                %v1293 = vld [vmem:[%s357 + $0x2b98] sm:$0xff]
                %1294 = vst [vmem:[%s358 + $0xe98] sm:$0xff] %v1293
                %v1295 = vld [vmem:[%s357 + $0x2be0] sm:$0xff]
                %1296 = vst [vmem:[%s358 + $0xea0] sm:$0xff] %v1295
                %v1297 = vld [vmem:[%s357 + $0x2be8] sm:$0xff]
                %1298 = vst [vmem:[%s358 + $0xea8] sm:$0xff] %v1297
                %v1299 = vld [vmem:[%s357 + $0x2bf0] sm:$0xff]
                %1300 = vst [vmem:[%s358 + $0xeb0] sm:$0xff] %v1299
                %v1301 = vld [vmem:[%s357 + $0x2bf8] sm:$0xff]
                %1302 = vst [vmem:[%s358 + $0xeb8] sm:$0xff] %v1301
                %v1303 = vld [vmem:[%s357 + $0x2c40] sm:$0xff]
                %1304 = vst [vmem:[%s358 + $0xec0] sm:$0xff] %v1303
                %v1305 = vld [vmem:[%s357 + $0x2c48] sm:$0xff]
                %1306 = vst [vmem:[%s358 + $0xec8] sm:$0xff] %v1305
                %v1307 = vld [vmem:[%s357 + $0x2c50] sm:$0xff]
                %1308 = vst [vmem:[%s358 + $0xed0] sm:$0xff] %v1307
                %v1309 = vld [vmem:[%s357 + $0x2c58] sm:$0xff]
                %1310 = vst [vmem:[%s358 + $0xed8] sm:$0xff] %v1309
                %v1311 = vld [vmem:[%s357 + $0x2ca0] sm:$0xff]
                %1312 = vst [vmem:[%s358 + $0xee0] sm:$0xff] %v1311
                %v1313 = vld [vmem:[%s357 + $0x2ca8] sm:$0xff]
                %1314 = vst [vmem:[%s358 + $0xee8] sm:$0xff] %v1313
                %v1315 = vld [vmem:[%s357 + $0x2cb0] sm:$0xff]
                %1316 = vst [vmem:[%s358 + $0xef0] sm:$0xff] %v1315
                %v1317 = vld [vmem:[%s357 + $0x2cb8] sm:$0xff]
                %1318 = vst [vmem:[%s358 + $0xef8] sm:$0xff] %v1317
                %v1319 = vld [vmem:[%s357 + $0x2d00] sm:$0xff]
                %1320 = vst [vmem:[%s358 + $0xf00] sm:$0xff] %v1319
                %v1321 = vld [vmem:[%s357 + $0x2d08] sm:$0xff]
                %1322 = vst [vmem:[%s358 + $0xf08] sm:$0xff] %v1321
                %v1323 = vld [vmem:[%s357 + $0x2d10] sm:$0xff]
                %1324 = vst [vmem:[%s358 + $0xf10] sm:$0xff] %v1323
                %v1325 = vld [vmem:[%s357 + $0x2d18] sm:$0xff]
                %1326 = vst [vmem:[%s358 + $0xf18] sm:$0xff] %v1325
                %v1327 = vld [vmem:[%s357 + $0x2d60] sm:$0xff]
                %1328 = vst [vmem:[%s358 + $0xf20] sm:$0xff] %v1327
                %v1329 = vld [vmem:[%s357 + $0x2d68] sm:$0xff]
                %1330 = vst [vmem:[%s358 + $0xf28] sm:$0xff] %v1329
                %v1331 = vld [vmem:[%s357 + $0x2d70] sm:$0xff]
                %1332 = vst [vmem:[%s358 + $0xf30] sm:$0xff] %v1331
                %v1333 = vld [vmem:[%s357 + $0x2d78] sm:$0xff]
                %1334 = vst [vmem:[%s358 + $0xf38] sm:$0xff] %v1333
                %v1335 = vld [vmem:[%s357 + $0x2dc0] sm:$0xff]
                %1336 = vst [vmem:[%s358 + $0xf40] sm:$0xff] %v1335
                %v1337 = vld [vmem:[%s357 + $0x2dc8] sm:$0xff]
                %1338 = vst [vmem:[%s358 + $0xf48] sm:$0xff] %v1337
                %v1339 = vld [vmem:[%s357 + $0x2dd0] sm:$0xff]
                %1340 = vst [vmem:[%s358 + $0xf50] sm:$0xff] %v1339
                %v1341 = vld [vmem:[%s357 + $0x2dd8] sm:$0xff]
                %1342 = vst [vmem:[%s358 + $0xf58] sm:$0xff] %v1341
                %v1343 = vld [vmem:[%s357 + $0x2e20] sm:$0xff]
                %1344 = vst [vmem:[%s358 + $0xf60] sm:$0xff] %v1343
                %v1345 = vld [vmem:[%s357 + $0x2e28] sm:$0xff]
                %1346 = vst [vmem:[%s358 + $0xf68] sm:$0xff] %v1345
                %v1347 = vld [vmem:[%s357 + $0x2e30] sm:$0xff]
                %1348 = vst [vmem:[%s358 + $0xf70] sm:$0xff] %v1347
                %v1349 = vld [vmem:[%s357 + $0x2e38] sm:$0xff]
                %1350 = vst [vmem:[%s358 + $0xf78] sm:$0xff] %v1349
                %v1351 = vld [vmem:[%s357 + $0x2e80] sm:$0xff]
                %1352 = vst [vmem:[%s358 + $0xf80] sm:$0xff] %v1351
                %v1353 = vld [vmem:[%s357 + $0x2e88] sm:$0xff]
                %1354 = vst [vmem:[%s358 + $0xf88] sm:$0xff] %v1353
                %v1355 = vld [vmem:[%s357 + $0x2e90] sm:$0xff]
                %1356 = vst [vmem:[%s358 + $0xf90] sm:$0xff] %v1355
                %v1357 = vld [vmem:[%s357 + $0x2e98] sm:$0xff]
                %1358 = vst [vmem:[%s358 + $0xf98] sm:$0xff] %v1357
                %v1359 = vld [vmem:[%s357 + $0x2ee0] sm:$0xff]
                %1360 = vst [vmem:[%s358 + $0xfa0] sm:$0xff] %v1359
                %v1361 = vld [vmem:[%s357 + $0x2ee8] sm:$0xff]
                %1362 = vst [vmem:[%s358 + $0xfa8] sm:$0xff] %v1361
                %v1363 = vld [vmem:[%s357 + $0x2ef0] sm:$0xff]
                %1364 = vst [vmem:[%s358 + $0xfb0] sm:$0xff] %v1363
                %v1365 = vld [vmem:[%s357 + $0x2ef8] sm:$0xff]
                %1366 = vst [vmem:[%s358 + $0xfb8] sm:$0xff] %v1365
                %v1367 = vld [vmem:[%s357 + $0x2f40] sm:$0xff]
                %1368 = vst [vmem:[%s358 + $0xfc0] sm:$0xff] %v1367
                %v1369 = vld [vmem:[%s357 + $0x2f48] sm:$0xff]
                %1370 = vst [vmem:[%s358 + $0xfc8] sm:$0xff] %v1369
                %v1371 = vld [vmem:[%s357 + $0x2f50] sm:$0xff]
                %1372 = vst [vmem:[%s358 + $0xfd0] sm:$0xff] %v1371
                %v1373 = vld [vmem:[%s357 + $0x2f58] sm:$0xff]
                %1374 = vst [vmem:[%s358 + $0xfd8] sm:$0xff] %v1373
                %v1375 = vld [vmem:[%s357 + $0x2fa0] sm:$0xff]
                %1376 = vst [vmem:[%s358 + $0xfe0] sm:$0xff] %v1375
                %v1377 = vld [vmem:[%s357 + $0x2fa8] sm:$0xff]
                %1378 = vst [vmem:[%s358 + $0xfe8] sm:$0xff] %v1377
                %v1379 = vld [vmem:[%s357 + $0x2fb0] sm:$0xff]
                %1380 = vst [vmem:[%s358 + $0xff0] sm:$0xff] %v1379
                %v1381 = vld [vmem:[%s357 + $0x2fb8] sm:$0xff]
                %1382 = vst [vmem:[%s358 + $0xff8] sm:$0xff] %v1381
              $region65: #{generator_forward.1} parent=59 // loop_footer
                %s356 = sadd.s32 1, %s352
              $region66: #{generator_forward.1} parent=59 // loop_footer_branch
                %351 = sbr.rel target = $region62
              $region67: #{generator_forward.1} parent=59 // loop_exit
                _
            $region60: #{generator_forward.1} parent=55 // pred_fallthru
              _
            // Predicated region
            $region68: #{generator_forward.1} parent=55 // pred_check
              _
            $region69: #{generator_forward.1} parent=55 // pred_check_branch
              %1384 = sbr.rel target = $region71
            $region70: #{generator_forward.1} parent=55 // pred_region
              _
            $region71: #{generator_forward.1} parent=55 // pred_fallthru
              _
          $region56: #{generator_forward.1} parent=51 // pred_fallthru
            _
          %1385 = vnop
        $region52: #{generator_forward.1} parent=47 // pred_fallthru
          _
        // Predicated region
        $region72: #{generator_forward.1} parent=47 // pred_check
          %p1386 = pneg %p252
        $region73: #{generator_forward.1} parent=47 // pred_check_branch
          %1388 = sbr.rel (%p1386) target = $region75
        $region74: #{generator_forward.1} parent=47 // pred_region
          %s1389 = smul.u32 8, %s24
          %p1390 = scmp.lt.s32.totalorder %s1389, 23
          %s1391 = scalar_select %p1390, %s1389, 23
          %s1392 = scalar_lea.vmem %s9, %s1391
          %s1393 = smul.u32 8, %s24
        $region75: #{generator_forward.1} parent=47 // pred_fallthru
          _
      $region48: #{generator_forward.1} parent=5 // pred_fallthru
        _
      %p1394 = scmp.le.s32.totalorder 1, %s16
      %p1395 = scmp.lt.s32.totalorder %s16, 4
      %p1396 = pnand %p1394, %p1395
      %p1397 = pneg %p1396
      // Predicated region
      $region76: #{generator_forward.1} parent=5 // pred_check
        _
      $region77: #{generator_forward.1} parent=5 // pred_check_branch
        %1399 = sbr.rel (%p1396) target = $region79
      $region78: #{generator_forward.1} parent=5 // pred_region
        %s1400 = ssub.s32 %s16, 1
        %s1401 = sand.u32 %s219, 1
        %s1402 = sand.u32 %s219, 1
        %s1403 = smul.addr %s1402, 4096
        %s1404 = scalar_lea.vmem [#allocation3], %s1403
        // Predicated region
        $region80: #{generator_forward.1} parent=78 // pred_check
          %p1405 = pneg %p232
        $region81: #{generator_forward.1} parent=78 // pred_check_branch
          %1407 = sbr.rel (%p1405) target = $region83
        $region82: #{generator_forward.1} parent=78 // pred_region
          _
        $region83: #{generator_forward.1} parent=78 // pred_fallthru
          _
        %p1408 = scmp.lt.s32.totalorder %s25, 0
        %s1409 = scalar_select %p1408, %s25, 0
        %s1410 = smul.addr %s1409, 2
        %s1411 = scalar_lea.vmem %s0, %s1410
        %p1412 = pneg %p54
        %p1413 = pneg %p51
        %p1414 = scmp.lt.s32.totalorder %s25, 0
        %s1415 = scalar_select %p1414, %s25, 0
        %s1416 = smul.addr %s1415, 2
        %s1417 = scalar_lea.vmem %s1, %s1416
        %p1418 = pneg %p80
        %p1419 = pneg %p77
        %p1420 = pneg %p101
        %p1421 = pneg %p98
        %p1422 = pneg %p122
        %p1423 = pneg %p119
        %p1424 = pneg %p143
        %p1425 = pneg %p140
        %p1426 = pneg %p164
        %p1427 = pneg %p161
        %p1428 = pneg %p185
        %p1429 = pneg %p182
        %p1430 = pneg %p206
        %p1431 = pneg %p203
        %s1432 = sand.u32 %s219, 1
        %s1433 = sand.u32 %s219, 1
        %s1434 = smul.addr %s1433, 4096
        %s1435 = scalar_lea.vmem [#allocation3], %s1434
        %p1436 = pneg %p232
        %p1437 = pneg %p229
        %s1438 = smul.u32 8, %s26
        %p1439 = scmp.lt.s32.totalorder %s1438, 23
        %s1440 = scalar_select %p1439, %s1438, 23
        %s1441 = scalar_lea.vmem %s9, %s1440
        %p1442 = pneg %p258
        %p1443 = pneg %p255
        %p1444 = pneg %p286
        %p1445 = pneg %p283
        %s1446 = smul.u32 8, %s26
        %p1447 = scmp.lt.s32.totalorder %s25, 0
        %s1448 = scalar_select %p1447, %s25, 0
        %p1449 = scmp.lt.s32.totalorder %s1446, 23
        %s1450 = scalar_select %p1449, %s1446, 23
        %s1451 = smul.addr %s1448, 24
        %s1452 = sadd.s32 %s1450, %s1451
        %s1453 = smul.addr %s1452, 2
        %s1454 = scalar_lea.vmem %s10, %s1453
        %p1455 = scmp.lt.s32.totalorder %s25, 0
        %s1456 = scalar_select %p1455, %s25, 0
        %s1457 = smul.addr %s1456, 2
        %s1458 = scalar_lea.vmem %s0, %s1457
        %p1459 = scmp.lt.s32.totalorder %s25, 0
        %s1460 = scalar_select %p1459, %s25, 0
        %s1461 = smul.addr %s1460, 2
        %s1462 = scalar_lea.vmem %s1, %s1461
        %s1463 = smul.u32 8, %s26
        %s1464 = smul.u32 8, %s26
        %p1465 = scmp.lt.s32.totalorder %s1464, 23
        %s1466 = scalar_select %p1465, %s1464, 23
        %s1467 = scalar_lea.vmem %s9, %s1466
        %s1468 = smul.u32 8, %s26
        %s1469 = smul.u32 8, %s26
        %p1470 = scmp.lt.s32.totalorder %s25, 0
        %s1471 = scalar_select %p1470, %s25, 0
        %p1472 = scmp.lt.s32.totalorder %s1469, 23
        %s1473 = scalar_select %p1472, %s1469, 23
        %s1474 = smul.addr %s1471, 24
        %s1475 = sadd.s32 %s1473, %s1474
        %s1476 = smul.addr %s1475, 2
        %s1477 = scalar_lea.vmem %s10, %s1476
        %s1478 = smul.u32 8, %s26
        %p1480 = scmp.eq.s32.totalorder %s26, 0
        // Predicated region
        $region84: #{generator_forward.1} parent=78 // pred_check
          %p1481 = pneg %p1480
        $region85: #{generator_forward.1} parent=78 // pred_check_branch
          %1483 = sbr.rel (%p1481) target = $region87
        $region86: #{generator_forward.1} parent=78 // pred_region
          %v1484 = vld [vmem:[%s1458] sm:$0x3]
          %v1485 = vld [vmem:[%s1462] sm:$0x3]
          %v1486 = vlaneseq
          %v1487 = vand.u32 %v1486, 127
          %1488 = vset.pattern.permute.xlu0 0
          %1489 = vperm.xlu0 %1488, %v1485
          %v1490 = vpop.permute.xlu0 %1489
          %vm1491 = vcmp.eq.s32.totalorder %v1490, %v1487
          %v1492 = vsel %vm1491, 1, 0
          %v1493 = vcvt.s32.f32 %v1492
          %v1494 = vpack.c.bf16 %v1493, %v1493
          %v1495 = vpack.c.bf16 %v1484, %v1484
          %v1496 = vld [vmem:[%s2] sm:$0xff]
          %v1497 = vld [vmem:[%s2 + $0x8] sm:$0xff]
          %v1498 = vld [vmem:[%s2 + $0x10] sm:$0xff]
          %v1499 = vld [vmem:[%s2 + $0x18] sm:$0xff]
          %v1500 = vld [vmem:[%s2 + $0x20] sm:$0x33]
          %v1501 = vld [vmem:[%s3] sm:$0x77]
          %v1503 = vunpack.c.l.b16 %v1501
          %v1504 = vunpack.c.h.b16 %v1501
          %v1505 = vpack.c.b16 %v1503, %v1503
          %v1506 = vpack.c.b16 %v1504, %v1504
          %vm1507 = vcmask 48128
          %v1509 = vsel %vm1507, %v1494, 0
          %vm1511 = vcmask 1042432
          %v1513 = vsel %vm1511, %v1505, 0
          %v1516 = vsel %vm1511, %v1506, 0
          %1518 = vmatprep.subr.bf16.mxu0 %v1516
          %1519 = vmatpush1.bf16.msra.mxu0 %v1513
          %1520 = vmatprep.subr.bf16.mxu0 0
          %1521 = vmatpush1.bf16.msra.mxu0 0
          %1522 = vmatprep.subr.bf16.mxu0 0
          %1523 = vmatpush1.bf16.msra.mxu0 0
          %1524 = vmatprep.subr.bf16.mxu0 0
          %1525 = vmatpush1.bf16.msra.mxu0 0
          %1526 = vmatprep.subr.bf16.mxu0 0
          %1527 = vmatpush1.bf16.msra.mxu0 0
          %1528 = vmatprep.subr.bf16.mxu0 0
          %1529 = vmatpush1.bf16.msra.mxu0 0
          %1530 = vmatprep.subr.bf16.mxu0 0
          %1531 = vmatpush1.bf16.msra.mxu0 0
          %1532 = vmatprep.subr.bf16.mxu0 0
          %1533 = vmatpush1.bf16.msra.mxu0 0
          %1534 = vmatprep.subr.bf16.mxu0 0
          %1535 = vmatpush1.bf16.msra.mxu0 0
          %1536 = vmatprep.subr.bf16.mxu0 0
          %1537 = vmatpush1.bf16.msra.mxu0 0
          %1538 = vmatprep.subr.bf16.mxu0 0
          %1539 = vmatpush1.bf16.msra.mxu0 0
          %1540 = vmatprep.subr.bf16.mxu0 0
          %1541 = vmatpush1.bf16.msra.mxu0 0
          %1542 = vmatprep.subr.bf16.mxu0 0
          %1543 = vmatpush1.bf16.msra.mxu0 0
          %1544 = vmatprep.subr.bf16.mxu0 0
          %1545 = vmatpush1.bf16.msra.mxu0 0
          %1546 = vmatprep.subr.bf16.mxu0 0
          %1547 = vmatpush1.bf16.msra.mxu0 0
          %1548 = vmatprep.subr.bf16.mxu0 0
          %1549 = vmatpush1.bf16.msra.mxu0 0
          %1550 = vmatprep.mubr.bf16.mxu0 0
          %1551 = vmatmul.mubr.bf16.gmra.mrb[0].mxu0 %v1509
          %v1552 = vpop.f32.mrb[0].mxu0
          %v1553 = vadd.f32 0.0, %v1552
          %v1554 = vpop.f32.mrb[0].mxu0
          %v1555 = vadd.f32 0.0, %v1554
          %v1556 = vpop.f32.mrb[0].mxu0
          %v1557 = vpop.f32.mrb[0].mxu0
          %1558 = vdwg.mxu0
          %v1564 = vunpack.c.l.b16 %v1496
          %v1565 = vunpack.c.h.b16 %v1496
          %v1566 = vunpack.c.l.b16 %v1497
          %v1567 = vunpack.c.h.b16 %v1497
          %v1568 = vunpack.c.l.b16 %v1498
          %v1569 = vunpack.c.h.b16 %v1498
          %v1570 = vunpack.c.l.b16 %v1499
          %v1571 = vunpack.c.h.b16 %v1499
          %v1572 = vunpack.c.l.b16 %v1500
          %v1573 = vunpack.c.h.b16 %v1500
          %v1574 = vpack.c.b16 %v1566, %v1564
          %v1575 = vpack.c.b16 %v1567, %v1565
          %v1576 = vpack.c.b16 %v1570, %v1568
          %v1577 = vpack.c.b16 %v1571, %v1569
          %v1578 = vpack.c.b16 %v1572, %v1572
          %v1579 = vpack.c.b16 %v1573, %v1573
          %vm1584 = vcmask 293888
          %v1586 = vsel %vm1584, %v1495, 0
          %vm1588 = vcmask 1041408
          %v1590 = vsel %vm1588, %v1578, 0
          %v1593 = vsel %vm1588, %v1579, 0
          %1595 = vmatprep.subr.bf16.mxu0 %v1575
          %1596 = vmatpush1.bf16.msra.mxu0 %v1574
          %1597 = vmatprep.subr.bf16.mxu0 %v1577
          %1598 = vmatpush1.bf16.msra.mxu0 %v1576
          %1599 = vmatprep.subr.bf16.mxu0 %v1593
          %1600 = vmatpush1.bf16.msra.mxu0 %v1590
          %1601 = vmatprep.subr.bf16.mxu0 0
          %1602 = vmatpush1.bf16.msra.mxu0 0
          %1603 = vmatprep.subr.bf16.mxu0 0
          %1604 = vmatpush1.bf16.msra.mxu0 0
          %1605 = vmatprep.subr.bf16.mxu0 0
          %1606 = vmatpush1.bf16.msra.mxu0 0
          %1607 = vmatprep.subr.bf16.mxu0 0
          %1608 = vmatpush1.bf16.msra.mxu0 0
          %1609 = vmatprep.subr.bf16.mxu0 0
          %1610 = vmatpush1.bf16.msra.mxu0 0
          %1611 = vmatprep.subr.bf16.mxu0 0
          %1612 = vmatpush1.bf16.msra.mxu0 0
          %1613 = vmatprep.subr.bf16.mxu0 0
          %1614 = vmatpush1.bf16.msra.mxu0 0
          %1615 = vmatprep.subr.bf16.mxu0 0
          %1616 = vmatpush1.bf16.msra.mxu0 0
          %1617 = vmatprep.subr.bf16.mxu0 0
          %1618 = vmatpush1.bf16.msra.mxu0 0
          %1619 = vmatprep.subr.bf16.mxu0 0
          %1620 = vmatpush1.bf16.msra.mxu0 0
          %1621 = vmatprep.subr.bf16.mxu0 0
          %1622 = vmatpush1.bf16.msra.mxu0 0
          %1623 = vmatprep.subr.bf16.mxu0 0
          %1624 = vmatpush1.bf16.msra.mxu0 0
          %1625 = vmatprep.subr.bf16.mxu0 0
          %1626 = vmatpush1.bf16.msra.mxu0 0
          %1627 = vmatprep.mubr.bf16.mxu0 0
          %1628 = vmatmul.mubr.bf16.gmra.mrb[0].mxu0 %v1586
          %v1629 = vpop.f32.mrb[0].mxu0
          %v1630 = vadd.f32 %v1553, %v1629
          %v1631 = vpop.f32.mrb[0].mxu0
          %v1632 = vadd.f32 %v1555, %v1631
          %v1633 = vpop.f32.mrb[0].mxu0
          %v1634 = vpop.f32.mrb[0].mxu0
          %1635 = vdwg.mxu0
          %v1636 = vmul.f32 %v1630, 0.2
          %v1637 = vmul.f32 %v1632, 0.2
          %v1638 = vmax.f32 %v1630, %v1636
          %v1639 = vmax.f32 %v1632, %v1637
          %v1640 = vpack.c.bf16 %v1638, %v1638
          %v1641 = vpack.c.bf16 %v1639, %v1639
          %v1642 = vld [vmem:[%s4] sm:$0xff]
          %v1643 = vld [vmem:[%s4 + $0x8] sm:$0xff]
          %v1644 = vld [vmem:[%s4 + $0x10] sm:$0xff]
          %v1645 = vld [vmem:[%s4 + $0x18] sm:$0xff]
          %v1646 = vld [vmem:[%s4 + $0x20] sm:$0xff]
          %v1647 = vld [vmem:[%s4 + $0x28] sm:$0xff]
          %v1648 = vld [vmem:[%s4 + $0x30] sm:$0xff]
          %v1649 = vld [vmem:[%s4 + $0x38] sm:$0xff]
          %v1650 = vld [vmem:[%s4 + $0x40] sm:$0xff]
          %v1651 = vld [vmem:[%s4 + $0x48] sm:$0xff]
          %v1652 = vld [vmem:[%s4 + $0x50] sm:$0xff]
          %v1653 = vld [vmem:[%s4 + $0x58] sm:$0xff]
          %v1654 = vld [vmem:[%s4 + $0x60] sm:$0xff]
          %v1655 = vld [vmem:[%s4 + $0x68] sm:$0xff]
          %v1656 = vld [vmem:[%s4 + $0x70] sm:$0xff]
          %v1657 = vld [vmem:[%s4 + $0x78] sm:$0xff]
          %v1658 = vld [vmem:[%s4 + $0x80] sm:$0xff]
          %v1659 = vld [vmem:[%s4 + $0x88] sm:$0xff]
          %v1660 = vld [vmem:[%s4 + $0x90] sm:$0xff]
          %v1661 = vld [vmem:[%s4 + $0x98] sm:$0xff]
          %v1662 = vld [vmem:[%s4 + $0xa0] sm:$0xff]
          %v1663 = vld [vmem:[%s4 + $0xa8] sm:$0xff]
          %v1664 = vld [vmem:[%s4 + $0xb0] sm:$0xff]
          %v1665 = vld [vmem:[%s4 + $0xb8] sm:$0xff]
          %v1666 = vld [vmem:[%s4 + $0xc0] sm:$0xff]
          %v1667 = vld [vmem:[%s4 + $0xc8] sm:$0xff]
          %v1668 = vld [vmem:[%s4 + $0xd0] sm:$0xff]
          %v1669 = vld [vmem:[%s4 + $0xd8] sm:$0xff]
          %v1670 = vld [vmem:[%s4 + $0xe0] sm:$0xff]
          %v1671 = vld [vmem:[%s4 + $0xe8] sm:$0xff]
          %v1672 = vld [vmem:[%s4 + $0xf0] sm:$0xff]
          %v1673 = vld [vmem:[%s4 + $0xf8] sm:$0xff]
          %v1674 = vld [vmem:[%s4 + $0x100] sm:$0xff]
          %v1675 = vld [vmem:[%s4 + $0x108] sm:$0xff]
          %v1676 = vld [vmem:[%s4 + $0x110] sm:$0xff]
          %v1677 = vld [vmem:[%s4 + $0x118] sm:$0xff]
          %v1678 = vld [vmem:[%s4 + $0x120] sm:$0xff]
          %v1679 = vld [vmem:[%s4 + $0x128] sm:$0xff]
          %v1680 = vld [vmem:[%s4 + $0x130] sm:$0xff]
          %v1681 = vld [vmem:[%s4 + $0x138] sm:$0xff]
          %v1682 = vld [vmem:[%s4 + $0x140] sm:$0xff]
          %v1683 = vld [vmem:[%s4 + $0x148] sm:$0xff]
          %v1684 = vld [vmem:[%s4 + $0x150] sm:$0xff]
          %v1685 = vld [vmem:[%s4 + $0x158] sm:$0xff]
          %v1686 = vld [vmem:[%s4 + $0x160] sm:$0xff]
          %v1687 = vld [vmem:[%s4 + $0x168] sm:$0xff]
          %v1688 = vld [vmem:[%s4 + $0x170] sm:$0xff]
          %v1689 = vld [vmem:[%s4 + $0x178] sm:$0xff]
          %v1690 = vld [vmem:[%s4 + $0x180] sm:$0xff]
          %v1691 = vld [vmem:[%s4 + $0x188] sm:$0xff]
          %v1692 = vld [vmem:[%s4 + $0x190] sm:$0xff]
          %v1693 = vld [vmem:[%s4 + $0x198] sm:$0xff]
          %v1694 = vld [vmem:[%s4 + $0x1a0] sm:$0xff]
          %v1695 = vld [vmem:[%s4 + $0x1a8] sm:$0xff]
          %v1696 = vld [vmem:[%s4 + $0x1b0] sm:$0xff]
          %v1697 = vld [vmem:[%s4 + $0x1b8] sm:$0xff]
          %v1698 = vld [vmem:[%s4 + $0x1c0] sm:$0xff]
          %v1699 = vld [vmem:[%s4 + $0x1c8] sm:$0xff]
          %v1700 = vld [vmem:[%s4 + $0x1d0] sm:$0xff]
          %v1701 = vld [vmem:[%s4 + $0x1d8] sm:$0xff]
          %v1702 = vld [vmem:[%s4 + $0x1e0] sm:$0xff]
          %v1703 = vld [vmem:[%s4 + $0x1e8] sm:$0xff]
          %v1704 = vld [vmem:[%s4 + $0x1f0] sm:$0xff]
          %v1705 = vld [vmem:[%s4 + $0x1f8] sm:$0xff]
          %v1706 = vld [vmem:[%s5] sm:$0xf]
          %v1708 = vlaneseq
          %v1709 = vshrl.u32 %v1708, 7
          %v1710 = vsub.s32 0, %v1709
          %v1711 = vrot.slane %v1706, %v1710
          %v1712 = vlaneseq
          %v1713 = vshrl.u32 %v1712, 7
          %v1714 = vsub.s32 1, %v1713
          %v1715 = vrot.slane %v1706, %v1714
          %v1716 = vlaneseq
          %v1717 = vshrl.u32 %v1716, 7
          %v1718 = vsub.s32 2, %v1717
          %v1719 = vrot.slane %v1706, %v1718
          %v1720 = vlaneseq
          %v1721 = vshrl.u32 %v1720, 7
          %v1722 = vsub.s32 3, %v1721
          %v1723 = vrot.slane %v1706, %v1722
          %v1792 = vunpack.c.l.b16 %v1642
          %v1793 = vunpack.c.h.b16 %v1642
          %v1794 = vunpack.c.l.b16 %v1643
          %v1795 = vunpack.c.h.b16 %v1643
          %v1796 = vunpack.c.l.b16 %v1644
          %v1797 = vunpack.c.h.b16 %v1644
          %v1798 = vunpack.c.l.b16 %v1645
          %v1799 = vunpack.c.h.b16 %v1645
          %v1800 = vunpack.c.l.b16 %v1646
          %v1801 = vunpack.c.h.b16 %v1646
          %v1802 = vunpack.c.l.b16 %v1647
          %v1803 = vunpack.c.h.b16 %v1647
          %v1804 = vunpack.c.l.b16 %v1648
          %v1805 = vunpack.c.h.b16 %v1648
          %v1806 = vunpack.c.l.b16 %v1649
          %v1807 = vunpack.c.h.b16 %v1649
          %v1808 = vunpack.c.l.b16 %v1650
          %v1809 = vunpack.c.h.b16 %v1650
          %v1810 = vunpack.c.l.b16 %v1651
          %v1811 = vunpack.c.h.b16 %v1651
          %v1812 = vunpack.c.l.b16 %v1652
          %v1813 = vunpack.c.h.b16 %v1652
          %v1814 = vunpack.c.l.b16 %v1653
          %v1815 = vunpack.c.h.b16 %v1653
          %v1816 = vunpack.c.l.b16 %v1654
          %v1817 = vunpack.c.h.b16 %v1654
          %v1818 = vunpack.c.l.b16 %v1655
          %v1819 = vunpack.c.h.b16 %v1655
          %v1820 = vunpack.c.l.b16 %v1656
          %v1821 = vunpack.c.h.b16 %v1656
          %v1822 = vunpack.c.l.b16 %v1657
          %v1823 = vunpack.c.h.b16 %v1657
          %v1824 = vunpack.c.l.b16 %v1658
          %v1825 = vunpack.c.h.b16 %v1658
          %v1826 = vunpack.c.l.b16 %v1659
          %v1827 = vunpack.c.h.b16 %v1659
          %v1828 = vunpack.c.l.b16 %v1660
          %v1829 = vunpack.c.h.b16 %v1660
          %v1830 = vunpack.c.l.b16 %v1661
          %v1831 = vunpack.c.h.b16 %v1661
          %v1832 = vunpack.c.l.b16 %v1662
          %v1833 = vunpack.c.h.b16 %v1662
          %v1834 = vunpack.c.l.b16 %v1663
          %v1835 = vunpack.c.h.b16 %v1663
          %v1836 = vunpack.c.l.b16 %v1664
          %v1837 = vunpack.c.h.b16 %v1664
          %v1838 = vunpack.c.l.b16 %v1665
          %v1839 = vunpack.c.h.b16 %v1665
          %v1840 = vunpack.c.l.b16 %v1666
          %v1841 = vunpack.c.h.b16 %v1666
          %v1842 = vunpack.c.l.b16 %v1667
          %v1843 = vunpack.c.h.b16 %v1667
          %v1844 = vunpack.c.l.b16 %v1668
          %v1845 = vunpack.c.h.b16 %v1668
          %v1846 = vunpack.c.l.b16 %v1669
          %v1847 = vunpack.c.h.b16 %v1669
          %v1848 = vunpack.c.l.b16 %v1670
          %v1849 = vunpack.c.h.b16 %v1670
          %v1850 = vunpack.c.l.b16 %v1671
          %v1851 = vunpack.c.h.b16 %v1671
          %v1852 = vunpack.c.l.b16 %v1672
          %v1853 = vunpack.c.h.b16 %v1672
          %v1854 = vunpack.c.l.b16 %v1673
          %v1855 = vunpack.c.h.b16 %v1673
          %v1856 = vunpack.c.l.b16 %v1674
          %v1857 = vunpack.c.h.b16 %v1674
          %v1858 = vunpack.c.l.b16 %v1675
          %v1859 = vunpack.c.h.b16 %v1675
          %v1860 = vunpack.c.l.b16 %v1676
          %v1861 = vunpack.c.h.b16 %v1676
          %v1862 = vunpack.c.l.b16 %v1677
          %v1863 = vunpack.c.h.b16 %v1677
          %v1864 = vunpack.c.l.b16 %v1678
          %v1865 = vunpack.c.h.b16 %v1678
          %v1866 = vunpack.c.l.b16 %v1679
          %v1867 = vunpack.c.h.b16 %v1679
          %v1868 = vunpack.c.l.b16 %v1680
          %v1869 = vunpack.c.h.b16 %v1680
          %v1870 = vunpack.c.l.b16 %v1681
          %v1871 = vunpack.c.h.b16 %v1681
          %v1872 = vunpack.c.l.b16 %v1682
          %v1873 = vunpack.c.h.b16 %v1682
          %v1874 = vunpack.c.l.b16 %v1683
          %v1875 = vunpack.c.h.b16 %v1683
          %v1876 = vunpack.c.l.b16 %v1684
          %v1877 = vunpack.c.h.b16 %v1684
          %v1878 = vunpack.c.l.b16 %v1685
          %v1879 = vunpack.c.h.b16 %v1685
          %v1880 = vunpack.c.l.b16 %v1686
          %v1881 = vunpack.c.h.b16 %v1686
          %v1882 = vunpack.c.l.b16 %v1687
          %v1883 = vunpack.c.h.b16 %v1687
          %v1884 = vunpack.c.l.b16 %v1688
          %v1885 = vunpack.c.h.b16 %v1688
          %v1886 = vunpack.c.l.b16 %v1689
          %v1887 = vunpack.c.h.b16 %v1689
          %v1888 = vunpack.c.l.b16 %v1690
          %v1889 = vunpack.c.h.b16 %v1690
          %v1890 = vunpack.c.l.b16 %v1691
          %v1891 = vunpack.c.h.b16 %v1691
          %v1892 = vunpack.c.l.b16 %v1692
          %v1893 = vunpack.c.h.b16 %v1692
          %v1894 = vunpack.c.l.b16 %v1693
          %v1895 = vunpack.c.h.b16 %v1693
          %v1896 = vunpack.c.l.b16 %v1694
          %v1897 = vunpack.c.h.b16 %v1694
          %v1898 = vunpack.c.l.b16 %v1695
          %v1899 = vunpack.c.h.b16 %v1695
          %v1900 = vunpack.c.l.b16 %v1696
          %v1901 = vunpack.c.h.b16 %v1696
          %v1902 = vunpack.c.l.b16 %v1697
          %v1903 = vunpack.c.h.b16 %v1697
          %v1904 = vunpack.c.l.b16 %v1698
          %v1905 = vunpack.c.h.b16 %v1698
          %v1906 = vunpack.c.l.b16 %v1699
          %v1907 = vunpack.c.h.b16 %v1699
          %v1908 = vunpack.c.l.b16 %v1700
          %v1909 = vunpack.c.h.b16 %v1700
          %v1910 = vunpack.c.l.b16 %v1701
          %v1911 = vunpack.c.h.b16 %v1701
          %v1912 = vunpack.c.l.b16 %v1702
          %v1913 = vunpack.c.h.b16 %v1702
          %v1914 = vunpack.c.l.b16 %v1703
          %v1915 = vunpack.c.h.b16 %v1703
          %v1916 = vunpack.c.l.b16 %v1704
          %v1917 = vunpack.c.h.b16 %v1704
          %v1918 = vunpack.c.l.b16 %v1705
          %v1919 = vunpack.c.h.b16 %v1705
          %v1920 = vpack.c.b16 %v1796, %v1792
          %v1921 = vpack.c.b16 %v1797, %v1793
          %v1922 = vpack.c.b16 %v1798, %v1794
          %v1923 = vpack.c.b16 %v1799, %v1795
          %v1924 = vpack.c.b16 %v1804, %v1800
          %v1925 = vpack.c.b16 %v1805, %v1801
          %v1926 = vpack.c.b16 %v1806, %v1802
          %v1927 = vpack.c.b16 %v1807, %v1803
          %v1928 = vpack.c.b16 %v1812, %v1808
          %v1929 = vpack.c.b16 %v1813, %v1809
          %v1930 = vpack.c.b16 %v1814, %v1810
          %v1931 = vpack.c.b16 %v1815, %v1811
          %v1932 = vpack.c.b16 %v1820, %v1816
          %v1933 = vpack.c.b16 %v1821, %v1817
          %v1934 = vpack.c.b16 %v1822, %v1818
          %v1935 = vpack.c.b16 %v1823, %v1819
          %v1936 = vpack.c.b16 %v1828, %v1824
          %v1937 = vpack.c.b16 %v1829, %v1825
          %v1938 = vpack.c.b16 %v1830, %v1826
          %v1939 = vpack.c.b16 %v1831, %v1827
          %v1940 = vpack.c.b16 %v1836, %v1832
          %v1941 = vpack.c.b16 %v1837, %v1833
          %v1942 = vpack.c.b16 %v1838, %v1834
          %v1943 = vpack.c.b16 %v1839, %v1835
          %v1944 = vpack.c.b16 %v1844, %v1840
          %v1945 = vpack.c.b16 %v1845, %v1841
          %v1946 = vpack.c.b16 %v1846, %v1842
          %v1947 = vpack.c.b16 %v1847, %v1843
          %v1948 = vpack.c.b16 %v1852, %v1848
          %v1949 = vpack.c.b16 %v1853, %v1849
          %v1950 = vpack.c.b16 %v1854, %v1850
          %v1951 = vpack.c.b16 %v1855, %v1851
          %v1952 = vpack.c.b16 %v1860, %v1856
          %v1953 = vpack.c.b16 %v1861, %v1857
          %v1954 = vpack.c.b16 %v1862, %v1858
          %v1955 = vpack.c.b16 %v1863, %v1859
          %v1956 = vpack.c.b16 %v1868, %v1864
          %v1957 = vpack.c.b16 %v1869, %v1865
          %v1958 = vpack.c.b16 %v1870, %v1866
          %v1959 = vpack.c.b16 %v1871, %v1867
          %v1960 = vpack.c.b16 %v1876, %v1872
          %v1961 = vpack.c.b16 %v1877, %v1873
          %v1962 = vpack.c.b16 %v1878, %v1874
          %v1963 = vpack.c.b16 %v1879, %v1875
          %v1964 = vpack.c.b16 %v1884, %v1880
          %v1965 = vpack.c.b16 %v1885, %v1881
          %v1966 = vpack.c.b16 %v1886, %v1882
          %v1967 = vpack.c.b16 %v1887, %v1883
          %v1968 = vpack.c.b16 %v1892, %v1888
          %v1969 = vpack.c.b16 %v1893, %v1889
          %v1970 = vpack.c.b16 %v1894, %v1890
          %v1971 = vpack.c.b16 %v1895, %v1891
          %v1972 = vpack.c.b16 %v1900, %v1896
          %v1973 = vpack.c.b16 %v1901, %v1897
          %v1974 = vpack.c.b16 %v1902, %v1898
          %v1975 = vpack.c.b16 %v1903, %v1899
          %v1976 = vpack.c.b16 %v1908, %v1904
          %v1977 = vpack.c.b16 %v1909, %v1905
          %v1978 = vpack.c.b16 %v1910, %v1906
          %v1979 = vpack.c.b16 %v1911, %v1907
          %v1980 = vpack.c.b16 %v1916, %v1912
          %v1981 = vpack.c.b16 %v1917, %v1913
          %v1982 = vpack.c.b16 %v1918, %v1914
          %v1983 = vpack.c.b16 %v1919, %v1915
          %2048 = vmatprep.subr.bf16.mxu0 %v1921
          %2049 = vmatpush1.bf16.msra.mxu0 %v1920
          %2050 = vmatprep.subr.bf16.mxu0 %v1925
          %2051 = vmatpush1.bf16.msra.mxu0 %v1924
          %2052 = vmatprep.subr.bf16.mxu0 %v1929
          %2053 = vmatpush1.bf16.msra.mxu0 %v1928
          %2054 = vmatprep.subr.bf16.mxu0 %v1933
          %2055 = vmatpush1.bf16.msra.mxu0 %v1932
          %2056 = vmatprep.subr.bf16.mxu0 %v1937
          %2057 = vmatpush1.bf16.msra.mxu0 %v1936
          %2058 = vmatprep.subr.bf16.mxu0 %v1941
          %2059 = vmatpush1.bf16.msra.mxu0 %v1940
          %2060 = vmatprep.subr.bf16.mxu0 %v1945
          %2061 = vmatpush1.bf16.msra.mxu0 %v1944
          %2062 = vmatprep.subr.bf16.mxu0 %v1949
          %2063 = vmatpush1.bf16.msra.mxu0 %v1948
          %2064 = vmatprep.subr.bf16.mxu0 %v1953
          %2065 = vmatpush1.bf16.msra.mxu0 %v1952
          %2066 = vmatprep.subr.bf16.mxu0 %v1957
          %2067 = vmatpush1.bf16.msra.mxu0 %v1956
          %2068 = vmatprep.subr.bf16.mxu0 %v1961
          %2069 = vmatpush1.bf16.msra.mxu0 %v1960
          %2070 = vmatprep.subr.bf16.mxu0 %v1965
          %2071 = vmatpush1.bf16.msra.mxu0 %v1964
          %2072 = vmatprep.subr.bf16.mxu0 %v1969
          %2073 = vmatpush1.bf16.msra.mxu0 %v1968
          %2074 = vmatprep.subr.bf16.mxu0 %v1973
          %2075 = vmatpush1.bf16.msra.mxu0 %v1972
          %2076 = vmatprep.subr.bf16.mxu0 %v1977
          %2077 = vmatpush1.bf16.msra.mxu0 %v1976
          %2078 = vmatprep.subr.bf16.mxu0 %v1981
          %2079 = vmatpush1.bf16.msra.mxu0 %v1980
          %2080 = vmatprep.mubr.bf16.mxu0 %v1641
          %2081 = vmatmul.mubr.bf16.gmra.mrb[0].mxu0 %v1640
          %v2082 = vpop.f32.mrb[0].mxu0
          %v2083 = vadd.f32 %v1711, %v2082
          %v2084 = vpop.f32.mrb[0].mxu0
          %v2085 = vadd.f32 %v1715, %v2084
          %v2086 = vpop.f32.mrb[0].mxu0
          %v2087 = vpop.f32.mrb[0].mxu0
          %2088 = vdwg.mxu0
          %2089 = vmatprep.subr.bf16.mxu0 %v1923
          %2090 = vmatpush1.bf16.msra.mxu0 %v1922
          %2091 = vmatprep.subr.bf16.mxu0 %v1927
          %2092 = vmatpush1.bf16.msra.mxu0 %v1926
          %2093 = vmatprep.subr.bf16.mxu0 %v1931
          %2094 = vmatpush1.bf16.msra.mxu0 %v1930
          %2095 = vmatprep.subr.bf16.mxu0 %v1935
          %2096 = vmatpush1.bf16.msra.mxu0 %v1934
          %2097 = vmatprep.subr.bf16.mxu0 %v1939
          %2098 = vmatpush1.bf16.msra.mxu0 %v1938
          %2099 = vmatprep.subr.bf16.mxu0 %v1943
          %2100 = vmatpush1.bf16.msra.mxu0 %v1942
          %2101 = vmatprep.subr.bf16.mxu0 %v1947
          %2102 = vmatpush1.bf16.msra.mxu0 %v1946
          %2103 = vmatprep.subr.bf16.mxu0 %v1951
          %2104 = vmatpush1.bf16.msra.mxu0 %v1950
          %2105 = vmatprep.subr.bf16.mxu0 %v1955
          %2106 = vmatpush1.bf16.msra.mxu0 %v1954
          %2107 = vmatprep.subr.bf16.mxu0 %v1959
          %2108 = vmatpush1.bf16.msra.mxu0 %v1958
          %2109 = vmatprep.subr.bf16.mxu0 %v1963
          %2110 = vmatpush1.bf16.msra.mxu0 %v1962
          %2111 = vmatprep.subr.bf16.mxu0 %v1967
          %2112 = vmatpush1.bf16.msra.mxu0 %v1966
          %2113 = vmatprep.subr.bf16.mxu0 %v1971
          %2114 = vmatpush1.bf16.msra.mxu0 %v1970
          %2115 = vmatprep.subr.bf16.mxu0 %v1975
          %2116 = vmatpush1.bf16.msra.mxu0 %v1974
          %2117 = vmatprep.subr.bf16.mxu0 %v1979
          %2118 = vmatpush1.bf16.msra.mxu0 %v1978
          %2119 = vmatprep.subr.bf16.mxu0 %v1983
          %2120 = vmatpush1.bf16.msra.mxu0 %v1982
          %2121 = vmatprep.mubr.bf16.mxu0 %v1641
          %2122 = vmatmul.mubr.bf16.gmra.mrb[0].mxu0 %v1640
          %v2123 = vpop.f32.mrb[0].mxu0
          %v2124 = vadd.f32 %v1719, %v2123
          %v2125 = vpop.f32.mrb[0].mxu0
          %v2126 = vadd.f32 %v1723, %v2125
          %v2127 = vpop.f32.mrb[0].mxu0
          %v2128 = vpop.f32.mrb[0].mxu0
          %2129 = vdwg.mxu0
          %v2130 = vmul.f32 %v2083, 0.2
          %v2131 = vmul.f32 %v2085, 0.2
          %v2132 = vmul.f32 %v2124, 0.2
          %v2133 = vmul.f32 %v2126, 0.2
          %v2134 = vmax.f32 %v2083, %v2130
          %v2135 = vmax.f32 %v2085, %v2131
          %v2136 = vmax.f32 %v2124, %v2132
          %v2137 = vmax.f32 %v2126, %v2133
          %v2138 = vpack.c.bf16 %v2134, %v2134
          %v2139 = vpack.c.bf16 %v2135, %v2135
          %v2140 = vpack.c.bf16 %v2136, %v2136
          %v2141 = vpack.c.bf16 %v2137, %v2137
          %v2142 = vld [vmem:[%s6] sm:$0xff]
          %v2143 = vld [vmem:[%s6 + $0x8] sm:$0xff]
          %v2144 = vld [vmem:[%s6 + $0x10] sm:$0xff]
          %v2145 = vld [vmem:[%s6 + $0x18] sm:$0xff]
          %v2146 = vld [vmem:[%s6 + $0x20] sm:$0xff]
          %v2147 = vld [vmem:[%s6 + $0x28] sm:$0xff]
          %v2148 = vld [vmem:[%s6 + $0x30] sm:$0xff]
          %v2149 = vld [vmem:[%s6 + $0x38] sm:$0xff]
          %v2150 = vld [vmem:[%s6 + $0x40] sm:$0xff]
          %v2151 = vld [vmem:[%s6 + $0x48] sm:$0xff]
          %v2152 = vld [vmem:[%s6 + $0x50] sm:$0xff]
          %v2153 = vld [vmem:[%s6 + $0x58] sm:$0xff]
          %v2154 = vld [vmem:[%s6 + $0x60] sm:$0xff]
          %v2155 = vld [vmem:[%s6 + $0x68] sm:$0xff]
          %v2156 = vld [vmem:[%s6 + $0x70] sm:$0xff]
          %v2157 = vld [vmem:[%s6 + $0x78] sm:$0xff]
          %v2158 = vld [vmem:[%s6 + $0x80] sm:$0xff]
          %v2159 = vld [vmem:[%s6 + $0x88] sm:$0xff]
          %v2160 = vld [vmem:[%s6 + $0x90] sm:$0xff]
          %v2161 = vld [vmem:[%s6 + $0x98] sm:$0xff]
          %v2162 = vld [vmem:[%s6 + $0xa0] sm:$0xff]
          %v2163 = vld [vmem:[%s6 + $0xa8] sm:$0xff]
          %v2164 = vld [vmem:[%s6 + $0xb0] sm:$0xff]
          %v2165 = vld [vmem:[%s6 + $0xb8] sm:$0xff]
          %v2166 = vld [vmem:[%s6 + $0xc0] sm:$0xff]
          %v2167 = vld [vmem:[%s6 + $0xc8] sm:$0xff]
          %v2168 = vld [vmem:[%s6 + $0xd0] sm:$0xff]
          %v2169 = vld [vmem:[%s6 + $0xd8] sm:$0xff]
          %v2170 = vld [vmem:[%s6 + $0xe0] sm:$0xff]
          %v2171 = vld [vmem:[%s6 + $0xe8] sm:$0xff]
          %v2172 = vld [vmem:[%s6 + $0xf0] sm:$0xff]
          %v2173 = vld [vmem:[%s6 + $0xf8] sm:$0xff]
          %v2174 = vld [vmem:[%s6 + $0x100] sm:$0xff]
          %v2175 = vld [vmem:[%s6 + $0x108] sm:$0xff]
          %v2176 = vld [vmem:[%s6 + $0x110] sm:$0xff]
          %v2177 = vld [vmem:[%s6 + $0x118] sm:$0xff]
          %v2178 = vld [vmem:[%s6 + $0x120] sm:$0xff]
          %v2179 = vld [vmem:[%s6 + $0x128] sm:$0xff]
          %v2180 = vld [vmem:[%s6 + $0x130] sm:$0xff]
          %v2181 = vld [vmem:[%s6 + $0x138] sm:$0xff]
          %v2182 = vld [vmem:[%s6 + $0x140] sm:$0xff]
          %v2183 = vld [vmem:[%s6 + $0x148] sm:$0xff]
          %v2184 = vld [vmem:[%s6 + $0x150] sm:$0xff]
          %v2185 = vld [vmem:[%s6 + $0x158] sm:$0xff]
          %v2186 = vld [vmem:[%s6 + $0x160] sm:$0xff]
          %v2187 = vld [vmem:[%s6 + $0x168] sm:$0xff]
          %v2188 = vld [vmem:[%s6 + $0x170] sm:$0xff]
          %v2189 = vld [vmem:[%s6 + $0x178] sm:$0xff]
          %v2190 = vld [vmem:[%s6 + $0x180] sm:$0xff]
          %v2191 = vld [vmem:[%s6 + $0x188] sm:$0xff]
          %v2192 = vld [vmem:[%s6 + $0x190] sm:$0xff]
          %v2193 = vld [vmem:[%s6 + $0x198] sm:$0xff]
          %v2194 = vld [vmem:[%s6 + $0x1a0] sm:$0xff]
          %v2195 = vld [vmem:[%s6 + $0x1a8] sm:$0xff]
          %v2196 = vld [vmem:[%s6 + $0x1b0] sm:$0xff]
          %v2197 = vld [vmem:[%s6 + $0x1b8] sm:$0xff]
          %v2198 = vld [vmem:[%s6 + $0x1c0] sm:$0xff]
          %v2199 = vld [vmem:[%s6 + $0x1c8] sm:$0xff]
          %v2200 = vld [vmem:[%s6 + $0x1d0] sm:$0xff]
          %v2201 = vld [vmem:[%s6 + $0x1d8] sm:$0xff]
          %v2202 = vld [vmem:[%s6 + $0x1e0] sm:$0xff]
          %v2203 = vld [vmem:[%s6 + $0x1e8] sm:$0xff]
          %v2204 = vld [vmem:[%s6 + $0x1f0] sm:$0xff]
          %v2205 = vld [vmem:[%s6 + $0x1f8] sm:$0xff]
          %v2206 = vld [vmem:[%s6 + $0x200] sm:$0xff]
          %v2207 = vld [vmem:[%s6 + $0x208] sm:$0xff]
          %v2208 = vld [vmem:[%s6 + $0x210] sm:$0xff]
          %v2209 = vld [vmem:[%s6 + $0x218] sm:$0xff]
          %v2210 = vld [vmem:[%s6 + $0x220] sm:$0xff]
          %v2211 = vld [vmem:[%s6 + $0x228] sm:$0xff]
          %v2212 = vld [vmem:[%s6 + $0x230] sm:$0xff]
          %v2213 = vld [vmem:[%s6 + $0x238] sm:$0xff]
          %v2214 = vld [vmem:[%s6 + $0x240] sm:$0xff]
          %v2215 = vld [vmem:[%s6 + $0x248] sm:$0xff]
          %v2216 = vld [vmem:[%s6 + $0x250] sm:$0xff]
          %v2217 = vld [vmem:[%s6 + $0x258] sm:$0xff]
          %v2218 = vld [vmem:[%s6 + $0x260] sm:$0xff]
          %v2219 = vld [vmem:[%s6 + $0x268] sm:$0xff]
          %v2220 = vld [vmem:[%s6 + $0x270] sm:$0xff]
          %v2221 = vld [vmem:[%s6 + $0x278] sm:$0xff]
          %v2222 = vld [vmem:[%s6 + $0x280] sm:$0xff]
          %v2223 = vld [vmem:[%s6 + $0x288] sm:$0xff]
          %v2224 = vld [vmem:[%s6 + $0x290] sm:$0xff]
          %v2225 = vld [vmem:[%s6 + $0x298] sm:$0xff]
          %v2226 = vld [vmem:[%s6 + $0x2a0] sm:$0xff]
          %v2227 = vld [vmem:[%s6 + $0x2a8] sm:$0xff]
          %v2228 = vld [vmem:[%s6 + $0x2b0] sm:$0xff]
          %v2229 = vld [vmem:[%s6 + $0x2b8] sm:$0xff]
          %v2230 = vld [vmem:[%s6 + $0x2c0] sm:$0xff]
          %v2231 = vld [vmem:[%s6 + $0x2c8] sm:$0xff]
          %v2232 = vld [vmem:[%s6 + $0x2d0] sm:$0xff]
          %v2233 = vld [vmem:[%s6 + $0x2d8] sm:$0xff]
          %v2234 = vld [vmem:[%s6 + $0x2e0] sm:$0xff]
          %v2235 = vld [vmem:[%s6 + $0x2e8] sm:$0xff]
          %v2236 = vld [vmem:[%s6 + $0x2f0] sm:$0xff]
          %v2237 = vld [vmem:[%s6 + $0x2f8] sm:$0xff]
          %v2238 = vld [vmem:[%s6 + $0x300] sm:$0xff]
          %v2239 = vld [vmem:[%s6 + $0x308] sm:$0xff]
          %v2240 = vld [vmem:[%s6 + $0x310] sm:$0xff]
          %v2241 = vld [vmem:[%s6 + $0x318] sm:$0xff]
          %v2242 = vld [vmem:[%s6 + $0x320] sm:$0xff]
          %v2243 = vld [vmem:[%s6 + $0x328] sm:$0xff]
          %v2244 = vld [vmem:[%s6 + $0x330] sm:$0xff]
          %v2245 = vld [vmem:[%s6 + $0x338] sm:$0xff]
          %v2246 = vld [vmem:[%s6 + $0x340] sm:$0xff]
          %v2247 = vld [vmem:[%s6 + $0x348] sm:$0xff]
          %v2248 = vld [vmem:[%s6 + $0x350] sm:$0xff]
          %v2249 = vld [vmem:[%s6 + $0x358] sm:$0xff]
          %v2250 = vld [vmem:[%s6 + $0x360] sm:$0xff]
          %v2251 = vld [vmem:[%s6 + $0x368] sm:$0xff]
          %v2252 = vld [vmem:[%s6 + $0x370] sm:$0xff]
          %v2253 = vld [vmem:[%s6 + $0x378] sm:$0xff]
          %v2254 = vld [vmem:[%s6 + $0x380] sm:$0xff]
          %v2255 = vld [vmem:[%s6 + $0x388] sm:$0xff]
          %v2256 = vld [vmem:[%s6 + $0x390] sm:$0xff]
          %v2257 = vld [vmem:[%s6 + $0x398] sm:$0xff]
          %v2258 = vld [vmem:[%s6 + $0x3a0] sm:$0xff]
          %v2259 = vld [vmem:[%s6 + $0x3a8] sm:$0xff]
          %v2260 = vld [vmem:[%s6 + $0x3b0] sm:$0xff]
          %v2261 = vld [vmem:[%s6 + $0x3b8] sm:$0xff]
          %v2262 = vld [vmem:[%s6 + $0x3c0] sm:$0xff]
          %v2263 = vld [vmem:[%s6 + $0x3c8] sm:$0xff]
          %v2264 = vld [vmem:[%s6 + $0x3d0] sm:$0xff]
          %v2265 = vld [vmem:[%s6 + $0x3d8] sm:$0xff]
          %v2266 = vld [vmem:[%s6 + $0x3e0] sm:$0xff]
          %v2267 = vld [vmem:[%s6 + $0x3e8] sm:$0xff]
          %v2268 = vld [vmem:[%s6 + $0x3f0] sm:$0xff]
          %v2269 = vld [vmem:[%s6 + $0x3f8] sm:$0xff]
          %v2270 = vld [vmem:[%s6 + $0x400] sm:$0xff]
          %v2271 = vld [vmem:[%s6 + $0x408] sm:$0xff]
          %v2272 = vld [vmem:[%s6 + $0x410] sm:$0xff]
          %v2273 = vld [vmem:[%s6 + $0x418] sm:$0xff]
          %v2274 = vld [vmem:[%s6 + $0x420] sm:$0xff]
          %v2275 = vld [vmem:[%s6 + $0x428] sm:$0xff]
          %v2276 = vld [vmem:[%s6 + $0x430] sm:$0xff]
          %v2277 = vld [vmem:[%s6 + $0x438] sm:$0xff]
          %v2278 = vld [vmem:[%s6 + $0x440] sm:$0xff]
          %v2279 = vld [vmem:[%s6 + $0x448] sm:$0xff]
          %v2280 = vld [vmem:[%s6 + $0x450] sm:$0xff]
          %v2281 = vld [vmem:[%s6 + $0x458] sm:$0xff]
          %v2282 = vld [vmem:[%s6 + $0x460] sm:$0xff]
          %v2283 = vld [vmem:[%s6 + $0x468] sm:$0xff]
          %v2284 = vld [vmem:[%s6 + $0x470] sm:$0xff]
          %v2285 = vld [vmem:[%s6 + $0x478] sm:$0xff]
          %v2286 = vld [vmem:[%s6 + $0x480] sm:$0xff]
          %v2287 = vld [vmem:[%s6 + $0x488] sm:$0xff]
          %v2288 = vld [vmem:[%s6 + $0x490] sm:$0xff]
          %v2289 = vld [vmem:[%s6 + $0x498] sm:$0xff]
          %v2290 = vld [vmem:[%s6 + $0x4a0] sm:$0xff]
          %v2291 = vld [vmem:[%s6 + $0x4a8] sm:$0xff]
          %v2292 = vld [vmem:[%s6 + $0x4b0] sm:$0xff]
          %v2293 = vld [vmem:[%s6 + $0x4b8] sm:$0xff]
          %v2294 = vld [vmem:[%s6 + $0x4c0] sm:$0xff]
          %v2295 = vld [vmem:[%s6 + $0x4c8] sm:$0xff]
          %v2296 = vld [vmem:[%s6 + $0x4d0] sm:$0xff]
          %v2297 = vld [vmem:[%s6 + $0x4d8] sm:$0xff]
          %v2298 = vld [vmem:[%s6 + $0x4e0] sm:$0xff]
          %v2299 = vld [vmem:[%s6 + $0x4e8] sm:$0xff]
          %v2300 = vld [vmem:[%s6 + $0x4f0] sm:$0xff]
          %v2301 = vld [vmem:[%s6 + $0x4f8] sm:$0xff]
          %v2302 = vld [vmem:[%s6 + $0x500] sm:$0xff]
          %v2303 = vld [vmem:[%s6 + $0x508] sm:$0xff]
          %v2304 = vld [vmem:[%s6 + $0x510] sm:$0xff]
          %v2305 = vld [vmem:[%s6 + $0x518] sm:$0xff]
          %v2306 = vld [vmem:[%s6 + $0x520] sm:$0xff]
          %v2307 = vld [vmem:[%s6 + $0x528] sm:$0xff]
          %v2308 = vld [vmem:[%s6 + $0x530] sm:$0xff]
          %v2309 = vld [vmem:[%s6 + $0x538] sm:$0xff]
          %v2310 = vld [vmem:[%s6 + $0x540] sm:$0xff]
          %v2311 = vld [vmem:[%s6 + $0x548] sm:$0xff]
          %v2312 = vld [vmem:[%s6 + $0x550] sm:$0xff]
          %v2313 = vld [vmem:[%s6 + $0x558] sm:$0xff]
          %v2314 = vld [vmem:[%s6 + $0x560] sm:$0xff]
          %v2315 = vld [vmem:[%s6 + $0x568] sm:$0xff]
          %v2316 = vld [vmem:[%s6 + $0x570] sm:$0xff]
          %v2317 = vld [vmem:[%s6 + $0x578] sm:$0xff]
          %v2318 = vld [vmem:[%s6 + $0x580] sm:$0xff]
          %v2319 = vld [vmem:[%s6 + $0x588] sm:$0xff]
          %v2320 = vld [vmem:[%s6 + $0x590] sm:$0xff]
          %v2321 = vld [vmem:[%s6 + $0x598] sm:$0xff]
          %v2322 = vld [vmem:[%s6 + $0x5a0] sm:$0xff]
          %v2323 = vld [vmem:[%s6 + $0x5a8] sm:$0xff]
          %v2324 = vld [vmem:[%s6 + $0x5b0] sm:$0xff]
          %v2325 = vld [vmem:[%s6 + $0x5b8] sm:$0xff]
          %v2326 = vld [vmem:[%s6 + $0x5c0] sm:$0xff]
          %v2327 = vld [vmem:[%s6 + $0x5c8] sm:$0xff]
          %v2328 = vld [vmem:[%s6 + $0x5d0] sm:$0xff]
          %v2329 = vld [vmem:[%s6 + $0x5d8] sm:$0xff]
          %v2330 = vld [vmem:[%s6 + $0x5e0] sm:$0xff]
          %v2331 = vld [vmem:[%s6 + $0x5e8] sm:$0xff]
          %v2332 = vld [vmem:[%s6 + $0x5f0] sm:$0xff]
          %v2333 = vld [vmem:[%s6 + $0x5f8] sm:$0xff]
          %v2334 = vld [vmem:[%s6 + $0x600] sm:$0xff]
          %v2335 = vld [vmem:[%s6 + $0x608] sm:$0xff]
          %v2336 = vld [vmem:[%s6 + $0x610] sm:$0xff]
          %v2337 = vld [vmem:[%s6 + $0x618] sm:$0xff]
          %v2338 = vld [vmem:[%s6 + $0x620] sm:$0xff]
          %v2339 = vld [vmem:[%s6 + $0x628] sm:$0xff]
          %v2340 = vld [vmem:[%s6 + $0x630] sm:$0xff]
          %v2341 = vld [vmem:[%s6 + $0x638] sm:$0xff]
          %v2342 = vld [vmem:[%s6 + $0x640] sm:$0xff]
          %v2343 = vld [vmem:[%s6 + $0x648] sm:$0xff]
          %v2344 = vld [vmem:[%s6 + $0x650] sm:$0xff]
          %v2345 = vld [vmem:[%s6 + $0x658] sm:$0xff]
          %v2346 = vld [vmem:[%s6 + $0x660] sm:$0xff]
          %v2347 = vld [vmem:[%s6 + $0x668] sm:$0xff]
          %v2348 = vld [vmem:[%s6 + $0x670] sm:$0xff]
          %v2349 = vld [vmem:[%s6 + $0x678] sm:$0xff]
          %v2350 = vld [vmem:[%s6 + $0x680] sm:$0xff]
          %v2351 = vld [vmem:[%s6 + $0x688] sm:$0xff]
          %v2352 = vld [vmem:[%s6 + $0x690] sm:$0xff]
          %v2353 = vld [vmem:[%s6 + $0x698] sm:$0xff]
          %v2354 = vld [vmem:[%s6 + $0x6a0] sm:$0xff]
          %v2355 = vld [vmem:[%s6 + $0x6a8] sm:$0xff]
          %v2356 = vld [vmem:[%s6 + $0x6b0] sm:$0xff]
          %v2357 = vld [vmem:[%s6 + $0x6b8] sm:$0xff]
          %v2358 = vld [vmem:[%s6 + $0x6c0] sm:$0xff]
          %v2359 = vld [vmem:[%s6 + $0x6c8] sm:$0xff]
          %v2360 = vld [vmem:[%s6 + $0x6d0] sm:$0xff]
          %v2361 = vld [vmem:[%s6 + $0x6d8] sm:$0xff]
          %v2362 = vld [vmem:[%s6 + $0x6e0] sm:$0xff]
          %v2363 = vld [vmem:[%s6 + $0x6e8] sm:$0xff]
          %v2364 = vld [vmem:[%s6 + $0x6f0] sm:$0xff]
          %v2365 = vld [vmem:[%s6 + $0x6f8] sm:$0xff]
          %v2366 = vld [vmem:[%s6 + $0x700] sm:$0xff]
          %v2367 = vld [vmem:[%s6 + $0x708] sm:$0xff]
          %v2368 = vld [vmem:[%s6 + $0x710] sm:$0xff]
          %v2369 = vld [vmem:[%s6 + $0x718] sm:$0xff]
          %v2370 = vld [vmem:[%s6 + $0x720] sm:$0xff]
          %v2371 = vld [vmem:[%s6 + $0x728] sm:$0xff]
          %v2372 = vld [vmem:[%s6 + $0x730] sm:$0xff]
          %v2373 = vld [vmem:[%s6 + $0x738] sm:$0xff]
          %v2374 = vld [vmem:[%s6 + $0x740] sm:$0xff]
          %v2375 = vld [vmem:[%s6 + $0x748] sm:$0xff]
          %v2376 = vld [vmem:[%s6 + $0x750] sm:$0xff]
          %v2377 = vld [vmem:[%s6 + $0x758] sm:$0xff]
          %v2378 = vld [vmem:[%s6 + $0x760] sm:$0xff]
          %v2379 = vld [vmem:[%s6 + $0x768] sm:$0xff]
          %v2380 = vld [vmem:[%s6 + $0x770] sm:$0xff]
          %v2381 = vld [vmem:[%s6 + $0x778] sm:$0xff]
          %v2382 = vld [vmem:[%s6 + $0x780] sm:$0xff]
          %v2383 = vld [vmem:[%s6 + $0x788] sm:$0xff]
          %v2384 = vld [vmem:[%s6 + $0x790] sm:$0xff]
          %v2385 = vld [vmem:[%s6 + $0x798] sm:$0xff]
          %v2386 = vld [vmem:[%s6 + $0x7a0] sm:$0xff]
          %v2387 = vld [vmem:[%s6 + $0x7a8] sm:$0xff]
          %v2388 = vld [vmem:[%s6 + $0x7b0] sm:$0xff]
          %v2389 = vld [vmem:[%s6 + $0x7b8] sm:$0xff]
          %v2390 = vld [vmem:[%s6 + $0x7c0] sm:$0xff]
          %v2391 = vld [vmem:[%s6 + $0x7c8] sm:$0xff]
          %v2392 = vld [vmem:[%s6 + $0x7d0] sm:$0xff]
          %v2393 = vld [vmem:[%s6 + $0x7d8] sm:$0xff]
          %v2394 = vld [vmem:[%s6 + $0x7e0] sm:$0xff]
          %v2395 = vld [vmem:[%s6 + $0x7e8] sm:$0xff]
          %v2396 = vld [vmem:[%s6 + $0x7f0] sm:$0xff]
          %v2397 = vld [vmem:[%s6 + $0x7f8] sm:$0xff]
          %v2398 = vld [vmem:[%s7] sm:$0xff]
          %v2400 = vlaneseq
          %v2401 = vshrl.u32 %v2400, 7
          %v2402 = vsub.s32 0, %v2401
          %v2403 = vrot.slane %v2398, %v2402
          %v2404 = vlaneseq
          %v2405 = vshrl.u32 %v2404, 7
          %v2406 = vsub.s32 1, %v2405
          %v2407 = vrot.slane %v2398, %v2406
          %v2408 = vlaneseq
          %v2409 = vshrl.u32 %v2408, 7
          %v2410 = vsub.s32 2, %v2409
          %v2411 = vrot.slane %v2398, %v2410
          %v2412 = vlaneseq
          %v2413 = vshrl.u32 %v2412, 7
          %v2414 = vsub.s32 3, %v2413
          %v2415 = vrot.slane %v2398, %v2414
          %v2416 = vlaneseq
          %v2417 = vshrl.u32 %v2416, 7
          %v2418 = vsub.s32 4, %v2417
          %v2419 = vrot.slane %v2398, %v2418
          %v2420 = vlaneseq
          %v2421 = vshrl.u32 %v2420, 7
          %v2422 = vsub.s32 5, %v2421
          %v2423 = vrot.slane %v2398, %v2422
          %v2424 = vlaneseq
          %v2425 = vshrl.u32 %v2424, 7
          %v2426 = vsub.s32 6, %v2425
          %v2427 = vrot.slane %v2398, %v2426
          %v2428 = vlaneseq
          %v2429 = vshrl.u32 %v2428, 7
          %v2430 = vsub.s32 7, %v2429
          %v2431 = vrot.slane %v2398, %v2430
          %v2696 = vunpack.c.l.b16 %v2142
          %v2697 = vunpack.c.h.b16 %v2142
          %v2698 = vunpack.c.l.b16 %v2143
          %v2699 = vunpack.c.h.b16 %v2143
          %v2700 = vunpack.c.l.b16 %v2144
          %v2701 = vunpack.c.h.b16 %v2144
          %v2702 = vunpack.c.l.b16 %v2145
          %v2703 = vunpack.c.h.b16 %v2145
          %v2704 = vunpack.c.l.b16 %v2146
          %v2705 = vunpack.c.h.b16 %v2146
          %v2706 = vunpack.c.l.b16 %v2147
          %v2707 = vunpack.c.h.b16 %v2147
          %v2708 = vunpack.c.l.b16 %v2148
          %v2709 = vunpack.c.h.b16 %v2148
          %v2710 = vunpack.c.l.b16 %v2149
          %v2711 = vunpack.c.h.b16 %v2149
          %v2712 = vunpack.c.l.b16 %v2150
          %v2713 = vunpack.c.h.b16 %v2150
          %v2714 = vunpack.c.l.b16 %v2151
          %v2715 = vunpack.c.h.b16 %v2151
          %v2716 = vunpack.c.l.b16 %v2152
          %v2717 = vunpack.c.h.b16 %v2152
          %v2718 = vunpack.c.l.b16 %v2153
          %v2719 = vunpack.c.h.b16 %v2153
          %v2720 = vunpack.c.l.b16 %v2154
          %v2721 = vunpack.c.h.b16 %v2154
          %v2722 = vunpack.c.l.b16 %v2155
          %v2723 = vunpack.c.h.b16 %v2155
          %v2724 = vunpack.c.l.b16 %v2156
          %v2725 = vunpack.c.h.b16 %v2156
          %v2726 = vunpack.c.l.b16 %v2157
          %v2727 = vunpack.c.h.b16 %v2157
          %v2728 = vunpack.c.l.b16 %v2158
          %v2729 = vunpack.c.h.b16 %v2158
          %v2730 = vunpack.c.l.b16 %v2159
          %v2731 = vunpack.c.h.b16 %v2159
          %v2732 = vunpack.c.l.b16 %v2160
          %v2733 = vunpack.c.h.b16 %v2160
          %v2734 = vunpack.c.l.b16 %v2161
          %v2735 = vunpack.c.h.b16 %v2161
          %v2736 = vunpack.c.l.b16 %v2162
          %v2737 = vunpack.c.h.b16 %v2162
          %v2738 = vunpack.c.l.b16 %v2163
          %v2739 = vunpack.c.h.b16 %v2163
          %v2740 = vunpack.c.l.b16 %v2164
          %v2741 = vunpack.c.h.b16 %v2164
          %v2742 = vunpack.c.l.b16 %v2165
          %v2743 = vunpack.c.h.b16 %v2165
          %v2744 = vunpack.c.l.b16 %v2166
          %v2745 = vunpack.c.h.b16 %v2166
          %v2746 = vunpack.c.l.b16 %v2167
          %v2747 = vunpack.c.h.b16 %v2167
          %v2748 = vunpack.c.l.b16 %v2168
          %v2749 = vunpack.c.h.b16 %v2168
          %v2750 = vunpack.c.l.b16 %v2169
          %v2751 = vunpack.c.h.b16 %v2169
          %v2752 = vunpack.c.l.b16 %v2170
          %v2753 = vunpack.c.h.b16 %v2170
          %v2754 = vunpack.c.l.b16 %v2171
          %v2755 = vunpack.c.h.b16 %v2171
          %v2756 = vunpack.c.l.b16 %v2172
          %v2757 = vunpack.c.h.b16 %v2172
          %v2758 = vunpack.c.l.b16 %v2173
          %v2759 = vunpack.c.h.b16 %v2173
          %v2760 = vunpack.c.l.b16 %v2174
          %v2761 = vunpack.c.h.b16 %v2174
          %v2762 = vunpack.c.l.b16 %v2175
          %v2763 = vunpack.c.h.b16 %v2175
          %v2764 = vunpack.c.l.b16 %v2176
          %v2765 = vunpack.c.h.b16 %v2176
          %v2766 = vunpack.c.l.b16 %v2177
          %v2767 = vunpack.c.h.b16 %v2177
          %v2768 = vunpack.c.l.b16 %v2178
          %v2769 = vunpack.c.h.b16 %v2178
          %v2770 = vunpack.c.l.b16 %v2179
          %v2771 = vunpack.c.h.b16 %v2179
          %v2772 = vunpack.c.l.b16 %v2180
          %v2773 = vunpack.c.h.b16 %v2180
          %v2774 = vunpack.c.l.b16 %v2181
          %v2775 = vunpack.c.h.b16 %v2181
          %v2776 = vunpack.c.l.b16 %v2182
          %v2777 = vunpack.c.h.b16 %v2182
          %v2778 = vunpack.c.l.b16 %v2183
          %v2779 = vunpack.c.h.b16 %v2183
          %v2780 = vunpack.c.l.b16 %v2184
          %v2781 = vunpack.c.h.b16 %v2184
          %v2782 = vunpack.c.l.b16 %v2185
          %v2783 = vunpack.c.h.b16 %v2185
          %v2784 = vunpack.c.l.b16 %v2186
          %v2785 = vunpack.c.h.b16 %v2186
          %v2786 = vunpack.c.l.b16 %v2187
          %v2787 = vunpack.c.h.b16 %v2187
          %v2788 = vunpack.c.l.b16 %v2188
          %v2789 = vunpack.c.h.b16 %v2188
          %v2790 = vunpack.c.l.b16 %v2189
          %v2791 = vunpack.c.h.b16 %v2189
          %v2792 = vunpack.c.l.b16 %v2190
          %v2793 = vunpack.c.h.b16 %v2190
          %v2794 = vunpack.c.l.b16 %v2191
          %v2795 = vunpack.c.h.b16 %v2191
          %v2796 = vunpack.c.l.b16 %v2192
          %v2797 = vunpack.c.h.b16 %v2192
          %v2798 = vunpack.c.l.b16 %v2193
          %v2799 = vunpack.c.h.b16 %v2193
          %v2800 = vunpack.c.l.b16 %v2194
          %v2801 = vunpack.c.h.b16 %v2194
          %v2802 = vunpack.c.l.b16 %v2195
          %v2803 = vunpack.c.h.b16 %v2195
          %v2804 = vunpack.c.l.b16 %v2196
          %v2805 = vunpack.c.h.b16 %v2196
          %v2806 = vunpack.c.l.b16 %v2197
          %v2807 = vunpack.c.h.b16 %v2197
          %v2808 = vunpack.c.l.b16 %v2198
          %v2809 = vunpack.c.h.b16 %v2198
          %v2810 = vunpack.c.l.b16 %v2199
          %v2811 = vunpack.c.h.b16 %v2199
          %v2812 = vunpack.c.l.b16 %v2200
          %v2813 = vunpack.c.h.b16 %v2200
          %v2814 = vunpack.c.l.b16 %v2201
          %v2815 = vunpack.c.h.b16 %v2201
          %v2816 = vunpack.c.l.b16 %v2202
          %v2817 = vunpack.c.h.b16 %v2202
          %v2818 = vunpack.c.l.b16 %v2203
          %v2819 = vunpack.c.h.b16 %v2203
          %v2820 = vunpack.c.l.b16 %v2204
          %v2821 = vunpack.c.h.b16 %v2204
          %v2822 = vunpack.c.l.b16 %v2205
          %v2823 = vunpack.c.h.b16 %v2205
          %v2824 = vunpack.c.l.b16 %v2206
          %v2825 = vunpack.c.h.b16 %v2206
          %v2826 = vunpack.c.l.b16 %v2207
          %v2827 = vunpack.c.h.b16 %v2207
          %v2828 = vunpack.c.l.b16 %v2208
          %v2829 = vunpack.c.h.b16 %v2208
          %v2830 = vunpack.c.l.b16 %v2209
          %v2831 = vunpack.c.h.b16 %v2209
          %v2832 = vunpack.c.l.b16 %v2210
          %v2833 = vunpack.c.h.b16 %v2210
          %v2834 = vunpack.c.l.b16 %v2211
          %v2835 = vunpack.c.h.b16 %v2211
          %v2836 = vunpack.c.l.b16 %v2212
          %v2837 = vunpack.c.h.b16 %v2212
          %v2838 = vunpack.c.l.b16 %v2213
          %v2839 = vunpack.c.h.b16 %v2213
          %v2840 = vunpack.c.l.b16 %v2214
          %v2841 = vunpack.c.h.b16 %v2214
          %v2842 = vunpack.c.l.b16 %v2215
          %v2843 = vunpack.c.h.b16 %v2215
          %v2844 = vunpack.c.l.b16 %v2216
          %v2845 = vunpack.c.h.b16 %v2216
          %v2846 = vunpack.c.l.b16 %v2217
          %v2847 = vunpack.c.h.b16 %v2217
          %v2848 = vunpack.c.l.b16 %v2218
          %v2849 = vunpack.c.h.b16 %v2218
          %v2850 = vunpack.c.l.b16 %v2219
          %v2851 = vunpack.c.h.b16 %v2219
          %v2852 = vunpack.c.l.b16 %v2220
          %v2853 = vunpack.c.h.b16 %v2220
          %v2854 = vunpack.c.l.b16 %v2221
          %v2855 = vunpack.c.h.b16 %v2221
          %v2856 = vunpack.c.l.b16 %v2222
          %v2857 = vunpack.c.h.b16 %v2222
          %v2858 = vunpack.c.l.b16 %v2223
          %v2859 = vunpack.c.h.b16 %v2223
          %v2860 = vunpack.c.l.b16 %v2224
          %v2861 = vunpack.c.h.b16 %v2224
          %v2862 = vunpack.c.l.b16 %v2225
          %v2863 = vunpack.c.h.b16 %v2225
          %v2864 = vunpack.c.l.b16 %v2226
          %v2865 = vunpack.c.h.b16 %v2226
          %v2866 = vunpack.c.l.b16 %v2227
          %v2867 = vunpack.c.h.b16 %v2227
          %v2868 = vunpack.c.l.b16 %v2228
          %v2869 = vunpack.c.h.b16 %v2228
          %v2870 = vunpack.c.l.b16 %v2229
          %v2871 = vunpack.c.h.b16 %v2229
          %v2872 = vunpack.c.l.b16 %v2230
          %v2873 = vunpack.c.h.b16 %v2230
          %v2874 = vunpack.c.l.b16 %v2231
          %v2875 = vunpack.c.h.b16 %v2231
          %v2876 = vunpack.c.l.b16 %v2232
          %v2877 = vunpack.c.h.b16 %v2232
          %v2878 = vunpack.c.l.b16 %v2233
          %v2879 = vunpack.c.h.b16 %v2233
          %v2880 = vunpack.c.l.b16 %v2234
          %v2881 = vunpack.c.h.b16 %v2234
          %v2882 = vunpack.c.l.b16 %v2235
          %v2883 = vunpack.c.h.b16 %v2235
          %v2884 = vunpack.c.l.b16 %v2236
          %v2885 = vunpack.c.h.b16 %v2236
          %v2886 = vunpack.c.l.b16 %v2237
          %v2887 = vunpack.c.h.b16 %v2237
          %v2888 = vunpack.c.l.b16 %v2238
          %v2889 = vunpack.c.h.b16 %v2238
          %v2890 = vunpack.c.l.b16 %v2239
          %v2891 = vunpack.c.h.b16 %v2239
          %v2892 = vunpack.c.l.b16 %v2240
          %v2893 = vunpack.c.h.b16 %v2240
          %v2894 = vunpack.c.l.b16 %v2241
          %v2895 = vunpack.c.h.b16 %v2241
          %v2896 = vunpack.c.l.b16 %v2242
          %v2897 = vunpack.c.h.b16 %v2242
          %v2898 = vunpack.c.l.b16 %v2243
          %v2899 = vunpack.c.h.b16 %v2243
          %v2900 = vunpack.c.l.b16 %v2244
          %v2901 = vunpack.c.h.b16 %v2244
          %v2902 = vunpack.c.l.b16 %v2245
          %v2903 = vunpack.c.h.b16 %v2245
          %v2904 = vunpack.c.l.b16 %v2246
          %v2905 = vunpack.c.h.b16 %v2246
          %v2906 = vunpack.c.l.b16 %v2247
          %v2907 = vunpack.c.h.b16 %v2247
          %v2908 = vunpack.c.l.b16 %v2248
          %v2909 = vunpack.c.h.b16 %v2248
          %v2910 = vunpack.c.l.b16 %v2249
          %v2911 = vunpack.c.h.b16 %v2249
          %v2912 = vunpack.c.l.b16 %v2250
          %v2913 = vunpack.c.h.b16 %v2250
          %v2914 = vunpack.c.l.b16 %v2251
          %v2915 = vunpack.c.h.b16 %v2251
          %v2916 = vunpack.c.l.b16 %v2252
          %v2917 = vunpack.c.h.b16 %v2252
          %v2918 = vunpack.c.l.b16 %v2253
          %v2919 = vunpack.c.h.b16 %v2253
          %v2920 = vunpack.c.l.b16 %v2254
          %v2921 = vunpack.c.h.b16 %v2254
          %v2922 = vunpack.c.l.b16 %v2255
          %v2923 = vunpack.c.h.b16 %v2255
          %v2924 = vunpack.c.l.b16 %v2256
          %v2925 = vunpack.c.h.b16 %v2256
          %v2926 = vunpack.c.l.b16 %v2257
          %v2927 = vunpack.c.h.b16 %v2257
          %v2928 = vunpack.c.l.b16 %v2258
          %v2929 = vunpack.c.h.b16 %v2258
          %v2930 = vunpack.c.l.b16 %v2259
          %v2931 = vunpack.c.h.b16 %v2259
          %v2932 = vunpack.c.l.b16 %v2260
          %v2933 = vunpack.c.h.b16 %v2260
          %v2934 = vunpack.c.l.b16 %v2261
          %v2935 = vunpack.c.h.b16 %v2261
          %v2936 = vunpack.c.l.b16 %v2262
          %v2937 = vunpack.c.h.b16 %v2262
          %v2938 = vunpack.c.l.b16 %v2263
          %v2939 = vunpack.c.h.b16 %v2263
          %v2940 = vunpack.c.l.b16 %v2264
          %v2941 = vunpack.c.h.b16 %v2264
          %v2942 = vunpack.c.l.b16 %v2265
          %v2943 = vunpack.c.h.b16 %v2265
          %v2944 = vunpack.c.l.b16 %v2266
          %v2945 = vunpack.c.h.b16 %v2266
          %v2946 = vunpack.c.l.b16 %v2267
          %v2947 = vunpack.c.h.b16 %v2267
          %v2948 = vunpack.c.l.b16 %v2268
          %v2949 = vunpack.c.h.b16 %v2268
          %v2950 = vunpack.c.l.b16 %v2269
          %v2951 = vunpack.c.h.b16 %v2269
          %v2952 = vunpack.c.l.b16 %v2270
          %v2953 = vunpack.c.h.b16 %v2270
          %v2954 = vunpack.c.l.b16 %v2271
          %v2955 = vunpack.c.h.b16 %v2271
          %v2956 = vunpack.c.l.b16 %v2272
          %v2957 = vunpack.c.h.b16 %v2272
          %v2958 = vunpack.c.l.b16 %v2273
          %v2959 = vunpack.c.h.b16 %v2273
          %v2960 = vunpack.c.l.b16 %v2274
          %v2961 = vunpack.c.h.b16 %v2274
          %v2962 = vunpack.c.l.b16 %v2275
          %v2963 = vunpack.c.h.b16 %v2275
          %v2964 = vunpack.c.l.b16 %v2276
          %v2965 = vunpack.c.h.b16 %v2276
          %v2966 = vunpack.c.l.b16 %v2277
          %v2967 = vunpack.c.h.b16 %v2277
          %v2968 = vunpack.c.l.b16 %v2278
          %v2969 = vunpack.c.h.b16 %v2278
          %v2970 = vunpack.c.l.b16 %v2279
          %v2971 = vunpack.c.h.b16 %v2279
          %v2972 = vunpack.c.l.b16 %v2280
          %v2973 = vunpack.c.h.b16 %v2280
          %v2974 = vunpack.c.l.b16 %v2281
          %v2975 = vunpack.c.h.b16 %v2281
          %v2976 = vunpack.c.l.b16 %v2282
          %v2977 = vunpack.c.h.b16 %v2282
          %v2978 = vunpack.c.l.b16 %v2283
          %v2979 = vunpack.c.h.b16 %v2283
          %v2980 = vunpack.c.l.b16 %v2284
          %v2981 = vunpack.c.h.b16 %v2284
          %v2982 = vunpack.c.l.b16 %v2285
          %v2983 = vunpack.c.h.b16 %v2285
          %v2984 = vunpack.c.l.b16 %v2286
          %v2985 = vunpack.c.h.b16 %v2286
          %v2986 = vunpack.c.l.b16 %v2287
          %v2987 = vunpack.c.h.b16 %v2287
          %v2988 = vunpack.c.l.b16 %v2288
          %v2989 = vunpack.c.h.b16 %v2288
          %v2990 = vunpack.c.l.b16 %v2289
          %v2991 = vunpack.c.h.b16 %v2289
          %v2992 = vunpack.c.l.b16 %v2290
          %v2993 = vunpack.c.h.b16 %v2290
          %v2994 = vunpack.c.l.b16 %v2291
          %v2995 = vunpack.c.h.b16 %v2291
          %v2996 = vunpack.c.l.b16 %v2292
          %v2997 = vunpack.c.h.b16 %v2292
          %v2998 = vunpack.c.l.b16 %v2293
          %v2999 = vunpack.c.h.b16 %v2293
          %v3000 = vunpack.c.l.b16 %v2294
          %v3001 = vunpack.c.h.b16 %v2294
          %v3002 = vunpack.c.l.b16 %v2295
          %v3003 = vunpack.c.h.b16 %v2295
          %v3004 = vunpack.c.l.b16 %v2296
          %v3005 = vunpack.c.h.b16 %v2296
          %v3006 = vunpack.c.l.b16 %v2297
          %v3007 = vunpack.c.h.b16 %v2297
          %v3008 = vunpack.c.l.b16 %v2298
          %v3009 = vunpack.c.h.b16 %v2298
          %v3010 = vunpack.c.l.b16 %v2299
          %v3011 = vunpack.c.h.b16 %v2299
          %v3012 = vunpack.c.l.b16 %v2300
          %v3013 = vunpack.c.h.b16 %v2300
          %v3014 = vunpack.c.l.b16 %v2301
          %v3015 = vunpack.c.h.b16 %v2301
          %v3016 = vunpack.c.l.b16 %v2302
          %v3017 = vunpack.c.h.b16 %v2302
          %v3018 = vunpack.c.l.b16 %v2303
          %v3019 = vunpack.c.h.b16 %v2303
          %v3020 = vunpack.c.l.b16 %v2304
          %v3021 = vunpack.c.h.b16 %v2304
          %v3022 = vunpack.c.l.b16 %v2305
          %v3023 = vunpack.c.h.b16 %v2305
          %v3024 = vunpack.c.l.b16 %v2306
          %v3025 = vunpack.c.h.b16 %v2306
          %v3026 = vunpack.c.l.b16 %v2307
          %v3027 = vunpack.c.h.b16 %v2307
          %v3028 = vunpack.c.l.b16 %v2308
          %v3029 = vunpack.c.h.b16 %v2308
          %v3030 = vunpack.c.l.b16 %v2309
          %v3031 = vunpack.c.h.b16 %v2309
          %v3032 = vunpack.c.l.b16 %v2310
          %v3033 = vunpack.c.h.b16 %v2310
          %v3034 = vunpack.c.l.b16 %v2311
          %v3035 = vunpack.c.h.b16 %v2311
          %v3036 = vunpack.c.l.b16 %v2312
          %v3037 = vunpack.c.h.b16 %v2312
          %v3038 = vunpack.c.l.b16 %v2313
          %v3039 = vunpack.c.h.b16 %v2313
          %v3040 = vunpack.c.l.b16 %v2314
          %v3041 = vunpack.c.h.b16 %v2314
          %v3042 = vunpack.c.l.b16 %v2315
          %v3043 = vunpack.c.h.b16 %v2315
          %v3044 = vunpack.c.l.b16 %v2316
          %v3045 = vunpack.c.h.b16 %v2316
          %v3046 = vunpack.c.l.b16 %v2317
          %v3047 = vunpack.c.h.b16 %v2317
          %v3048 = vunpack.c.l.b16 %v2318
          %v3049 = vunpack.c.h.b16 %v2318
          %v3050 = vunpack.c.l.b16 %v2319
          %v3051 = vunpack.c.h.b16 %v2319
          %v3052 = vunpack.c.l.b16 %v2320
          %v3053 = vunpack.c.h.b16 %v2320
          %v3054 = vunpack.c.l.b16 %v2321
          %v3055 = vunpack.c.h.b16 %v2321
          %v3056 = vunpack.c.l.b16 %v2322
          %v3057 = vunpack.c.h.b16 %v2322
          %v3058 = vunpack.c.l.b16 %v2323
          %v3059 = vunpack.c.h.b16 %v2323
          %v3060 = vunpack.c.l.b16 %v2324
          %v3061 = vunpack.c.h.b16 %v2324
          %v3062 = vunpack.c.l.b16 %v2325
          %v3063 = vunpack.c.h.b16 %v2325
          %v3064 = vunpack.c.l.b16 %v2326
          %v3065 = vunpack.c.h.b16 %v2326
          %v3066 = vunpack.c.l.b16 %v2327
          %v3067 = vunpack.c.h.b16 %v2327
          %v3068 = vunpack.c.l.b16 %v2328
          %v3069 = vunpack.c.h.b16 %v2328
          %v3070 = vunpack.c.l.b16 %v2329
          %v3071 = vunpack.c.h.b16 %v2329
          %v3072 = vunpack.c.l.b16 %v2330
          %v3073 = vunpack.c.h.b16 %v2330
          %v3074 = vunpack.c.l.b16 %v2331
          %v3075 = vunpack.c.h.b16 %v2331
          %v3076 = vunpack.c.l.b16 %v2332
          %v3077 = vunpack.c.h.b16 %v2332
          %v3078 = vunpack.c.l.b16 %v2333
          %v3079 = vunpack.c.h.b16 %v2333
          %v3080 = vunpack.c.l.b16 %v2334
          %v3081 = vunpack.c.h.b16 %v2334
          %v3082 = vunpack.c.l.b16 %v2335
          %v3083 = vunpack.c.h.b16 %v2335
          %v3084 = vunpack.c.l.b16 %v2336
          %v3085 = vunpack.c.h.b16 %v2336
          %v3086 = vunpack.c.l.b16 %v2337
          %v3087 = vunpack.c.h.b16 %v2337
          %v3088 = vunpack.c.l.b16 %v2338
          %v3089 = vunpack.c.h.b16 %v2338
          %v3090 = vunpack.c.l.b16 %v2339
          %v3091 = vunpack.c.h.b16 %v2339
          %v3092 = vunpack.c.l.b16 %v2340
          %v3093 = vunpack.c.h.b16 %v2340
          %v3094 = vunpack.c.l.b16 %v2341
          %v3095 = vunpack.c.h.b16 %v2341
          %v3096 = vunpack.c.l.b16 %v2342
          %v3097 = vunpack.c.h.b16 %v2342
          %v3098 = vunpack.c.l.b16 %v2343
          %v3099 = vunpack.c.h.b16 %v2343
          %v3100 = vunpack.c.l.b16 %v2344
          %v3101 = vunpack.c.h.b16 %v2344
          %v3102 = vunpack.c.l.b16 %v2345
          %v3103 = vunpack.c.h.b16 %v2345
          %v3104 = vunpack.c.l.b16 %v2346
          %v3105 = vunpack.c.h.b16 %v2346
          %v3106 = vunpack.c.l.b16 %v2347
          %v3107 = vunpack.c.h.b16 %v2347
          %v3108 = vunpack.c.l.b16 %v2348
          %v3109 = vunpack.c.h.b16 %v2348
          %v3110 = vunpack.c.l.b16 %v2349
          %v3111 = vunpack.c.h.b16 %v2349
          %v3112 = vunpack.c.l.b16 %v2350
          %v3113 = vunpack.c.h.b16 %v2350
          %v3114 = vunpack.c.l.b16 %v2351
          %v3115 = vunpack.c.h.b16 %v2351
          %v3116 = vunpack.c.l.b16 %v2352
          %v3117 = vunpack.c.h.b16 %v2352
          %v3118 = vunpack.c.l.b16 %v2353
          %v3119 = vunpack.c.h.b16 %v2353
          %v3120 = vunpack.c.l.b16 %v2354
          %v3121 = vunpack.c.h.b16 %v2354
          %v3122 = vunpack.c.l.b16 %v2355
          %v3123 = vunpack.c.h.b16 %v2355
          %v3124 = vunpack.c.l.b16 %v2356
          %v3125 = vunpack.c.h.b16 %v2356
          %v3126 = vunpack.c.l.b16 %v2357
          %v3127 = vunpack.c.h.b16 %v2357
          %v3128 = vunpack.c.l.b16 %v2358
          %v3129 = vunpack.c.h.b16 %v2358
          %v3130 = vunpack.c.l.b16 %v2359
          %v3131 = vunpack.c.h.b16 %v2359
          %v3132 = vunpack.c.l.b16 %v2360
          %v3133 = vunpack.c.h.b16 %v2360
          %v3134 = vunpack.c.l.b16 %v2361
          %v3135 = vunpack.c.h.b16 %v2361
          %v3136 = vunpack.c.l.b16 %v2362
          %v3137 = vunpack.c.h.b16 %v2362
          %v3138 = vunpack.c.l.b16 %v2363
          %v3139 = vunpack.c.h.b16 %v2363
          %v3140 = vunpack.c.l.b16 %v2364
          %v3141 = vunpack.c.h.b16 %v2364
          %v3142 = vunpack.c.l.b16 %v2365
          %v3143 = vunpack.c.h.b16 %v2365
          %v3144 = vunpack.c.l.b16 %v2366
          %v3145 = vunpack.c.h.b16 %v2366
          %v3146 = vunpack.c.l.b16 %v2367
          %v3147 = vunpack.c.h.b16 %v2367
          %v3148 = vunpack.c.l.b16 %v2368
          %v3149 = vunpack.c.h.b16 %v2368
          %v3150 = vunpack.c.l.b16 %v2369
          %v3151 = vunpack.c.h.b16 %v2369
          %v3152 = vunpack.c.l.b16 %v2370
          %v3153 = vunpack.c.h.b16 %v2370
          %v3154 = vunpack.c.l.b16 %v2371
          %v3155 = vunpack.c.h.b16 %v2371
          %v3156 = vunpack.c.l.b16 %v2372
          %v3157 = vunpack.c.h.b16 %v2372
          %v3158 = vunpack.c.l.b16 %v2373
          %v3159 = vunpack.c.h.b16 %v2373
          %v3160 = vunpack.c.l.b16 %v2374
          %v3161 = vunpack.c.h.b16 %v2374
          %v3162 = vunpack.c.l.b16 %v2375
          %v3163 = vunpack.c.h.b16 %v2375
          %v3164 = vunpack.c.l.b16 %v2376
          %v3165 = vunpack.c.h.b16 %v2376
          %v3166 = vunpack.c.l.b16 %v2377
          %v3167 = vunpack.c.h.b16 %v2377
          %v3168 = vunpack.c.l.b16 %v2378
          %v3169 = vunpack.c.h.b16 %v2378
          %v3170 = vunpack.c.l.b16 %v2379
          %v3171 = vunpack.c.h.b16 %v2379
          %v3172 = vunpack.c.l.b16 %v2380
          %v3173 = vunpack.c.h.b16 %v2380
          %v3174 = vunpack.c.l.b16 %v2381
          %v3175 = vunpack.c.h.b16 %v2381
          %v3176 = vunpack.c.l.b16 %v2382
          %v3177 = vunpack.c.h.b16 %v2382
          %v3178 = vunpack.c.l.b16 %v2383
          %v3179 = vunpack.c.h.b16 %v2383
          %v3180 = vunpack.c.l.b16 %v2384
          %v3181 = vunpack.c.h.b16 %v2384
          %v3182 = vunpack.c.l.b16 %v2385
          %v3183 = vunpack.c.h.b16 %v2385
          %v3184 = vunpack.c.l.b16 %v2386
          %v3185 = vunpack.c.h.b16 %v2386
          %v3186 = vunpack.c.l.b16 %v2387
          %v3187 = vunpack.c.h.b16 %v2387
          %v3188 = vunpack.c.l.b16 %v2388
          %v3189 = vunpack.c.h.b16 %v2388
          %v3190 = vunpack.c.l.b16 %v2389
          %v3191 = vunpack.c.h.b16 %v2389
          %v3192 = vunpack.c.l.b16 %v2390
          %v3193 = vunpack.c.h.b16 %v2390
          %v3194 = vunpack.c.l.b16 %v2391
          %v3195 = vunpack.c.h.b16 %v2391
          %v3196 = vunpack.c.l.b16 %v2392
          %v3197 = vunpack.c.h.b16 %v2392
          %v3198 = vunpack.c.l.b16 %v2393
          %v3199 = vunpack.c.h.b16 %v2393
          %v3200 = vunpack.c.l.b16 %v2394
          %v3201 = vunpack.c.h.b16 %v2394
          %v3202 = vunpack.c.l.b16 %v2395
          %v3203 = vunpack.c.h.b16 %v2395
          %v3204 = vunpack.c.l.b16 %v2396
          %v3205 = vunpack.c.h.b16 %v2396
          %v3206 = vunpack.c.l.b16 %v2397
          %v3207 = vunpack.c.h.b16 %v2397
          %v3208 = vpack.c.b16 %v2704, %v2696
          %v3209 = vpack.c.b16 %v2705, %v2697
          %v3210 = vpack.c.b16 %v2706, %v2698
          %v3211 = vpack.c.b16 %v2707, %v2699
          %v3212 = vpack.c.b16 %v2708, %v2700
          %v3213 = vpack.c.b16 %v2709, %v2701
          %v3214 = vpack.c.b16 %v2710, %v2702
          %v3215 = vpack.c.b16 %v2711, %v2703
          %v3216 = vpack.c.b16 %v2720, %v2712
          %v3217 = vpack.c.b16 %v2721, %v2713
          %v3218 = vpack.c.b16 %v2722, %v2714
          %v3219 = vpack.c.b16 %v2723, %v2715
          %v3220 = vpack.c.b16 %v2724, %v2716
          %v3221 = vpack.c.b16 %v2725, %v2717
          %v3222 = vpack.c.b16 %v2726, %v2718
          %v3223 = vpack.c.b16 %v2727, %v2719
          %v3224 = vpack.c.b16 %v2736, %v2728
          %v3225 = vpack.c.b16 %v2737, %v2729
          %v3226 = vpack.c.b16 %v2738, %v2730
          %v3227 = vpack.c.b16 %v2739, %v2731
          %v3228 = vpack.c.b16 %v2740, %v2732
          %v3229 = vpack.c.b16 %v2741, %v2733
          %v3230 = vpack.c.b16 %v2742, %v2734
          %v3231 = vpack.c.b16 %v2743, %v2735
          %v3232 = vpack.c.b16 %v2752, %v2744
          %v3233 = vpack.c.b16 %v2753, %v2745
          %v3234 = vpack.c.b16 %v2754, %v2746
          %v3235 = vpack.c.b16 %v2755, %v2747
          %v3236 = vpack.c.b16 %v2756, %v2748
          %v3237 = vpack.c.b16 %v2757, %v2749
          %v3238 = vpack.c.b16 %v2758, %v2750
          %v3239 = vpack.c.b16 %v2759, %v2751
          %v3240 = vpack.c.b16 %v2768, %v2760
          %v3241 = vpack.c.b16 %v2769, %v2761
          %v3242 = vpack.c.b16 %v2770, %v2762
          %v3243 = vpack.c.b16 %v2771, %v2763
          %v3244 = vpack.c.b16 %v2772, %v2764
          %v3245 = vpack.c.b16 %v2773, %v2765
          %v3246 = vpack.c.b16 %v2774, %v2766
          %v3247 = vpack.c.b16 %v2775, %v2767
          %v3248 = vpack.c.b16 %v2784, %v2776
          %v3249 = vpack.c.b16 %v2785, %v2777
          %v3250 = vpack.c.b16 %v2786, %v2778
          %v3251 = vpack.c.b16 %v2787, %v2779
          %v3252 = vpack.c.b16 %v2788, %v2780
          %v3253 = vpack.c.b16 %v2789, %v2781
          %v3254 = vpack.c.b16 %v2790, %v2782
          %v3255 = vpack.c.b16 %v2791, %v2783
          %v3256 = vpack.c.b16 %v2800, %v2792
          %v3257 = vpack.c.b16 %v2801, %v2793
          %v3258 = vpack.c.b16 %v2802, %v2794
          %v3259 = vpack.c.b16 %v2803, %v2795
          %v3260 = vpack.c.b16 %v2804, %v2796
          %v3261 = vpack.c.b16 %v2805, %v2797
          %v3262 = vpack.c.b16 %v2806, %v2798
          %v3263 = vpack.c.b16 %v2807, %v2799
          %v3264 = vpack.c.b16 %v2816, %v2808
          %v3265 = vpack.c.b16 %v2817, %v2809
          %v3266 = vpack.c.b16 %v2818, %v2810
          %v3267 = vpack.c.b16 %v2819, %v2811
          %v3268 = vpack.c.b16 %v2820, %v2812
          %v3269 = vpack.c.b16 %v2821, %v2813
          %v3270 = vpack.c.b16 %v2822, %v2814
          %v3271 = vpack.c.b16 %v2823, %v2815
          %v3272 = vpack.c.b16 %v2832, %v2824
          %v3273 = vpack.c.b16 %v2833, %v2825
          %v3274 = vpack.c.b16 %v2834, %v2826
          %v3275 = vpack.c.b16 %v2835, %v2827
          %v3276 = vpack.c.b16 %v2836, %v2828
          %v3277 = vpack.c.b16 %v2837, %v2829
          %v3278 = vpack.c.b16 %v2838, %v2830
          %v3279 = vpack.c.b16 %v2839, %v2831
          %v3280 = vpack.c.b16 %v2848, %v2840
          %v3281 = vpack.c.b16 %v2849, %v2841
          %v3282 = vpack.c.b16 %v2850, %v2842
          %v3283 = vpack.c.b16 %v2851, %v2843
          %v3284 = vpack.c.b16 %v2852, %v2844
          %v3285 = vpack.c.b16 %v2853, %v2845
          %v3286 = vpack.c.b16 %v2854, %v2846
          %v3287 = vpack.c.b16 %v2855, %v2847
          %v3288 = vpack.c.b16 %v2864, %v2856
          %v3289 = vpack.c.b16 %v2865, %v2857
          %v3290 = vpack.c.b16 %v2866, %v2858
          %v3291 = vpack.c.b16 %v2867, %v2859
          %v3292 = vpack.c.b16 %v2868, %v2860
          %v3293 = vpack.c.b16 %v2869, %v2861
          %v3294 = vpack.c.b16 %v2870, %v2862
          %v3295 = vpack.c.b16 %v2871, %v2863
          %v3296 = vpack.c.b16 %v2880, %v2872
          %v3297 = vpack.c.b16 %v2881, %v2873
          %v3298 = vpack.c.b16 %v2882, %v2874
          %v3299 = vpack.c.b16 %v2883, %v2875
          %v3300 = vpack.c.b16 %v2884, %v2876
          %v3301 = vpack.c.b16 %v2885, %v2877
          %v3302 = vpack.c.b16 %v2886, %v2878
          %v3303 = vpack.c.b16 %v2887, %v2879
          %v3304 = vpack.c.b16 %v2896, %v2888
          %v3305 = vpack.c.b16 %v2897, %v2889
          %v3306 = vpack.c.b16 %v2898, %v2890
          %v3307 = vpack.c.b16 %v2899, %v2891
          %v3308 = vpack.c.b16 %v2900, %v2892
          %v3309 = vpack.c.b16 %v2901, %v2893
          %v3310 = vpack.c.b16 %v2902, %v2894
          %v3311 = vpack.c.b16 %v2903, %v2895
          %v3312 = vpack.c.b16 %v2912, %v2904
          %v3313 = vpack.c.b16 %v2913, %v2905
          %v3314 = vpack.c.b16 %v2914, %v2906
          %v3315 = vpack.c.b16 %v2915, %v2907
          %v3316 = vpack.c.b16 %v2916, %v2908
          %v3317 = vpack.c.b16 %v2917, %v2909
          %v3318 = vpack.c.b16 %v2918, %v2910
          %v3319 = vpack.c.b16 %v2919, %v2911
          %v3320 = vpack.c.b16 %v2928, %v2920
          %v3321 = vpack.c.b16 %v2929, %v2921
          %v3322 = vpack.c.b16 %v2930, %v2922
          %v3323 = vpack.c.b16 %v2931, %v2923
          %v3324 = vpack.c.b16 %v2932, %v2924
          %v3325 = vpack.c.b16 %v2933, %v2925
          %v3326 = vpack.c.b16 %v2934, %v2926
          %v3327 = vpack.c.b16 %v2935, %v2927
          %v3328 = vpack.c.b16 %v2944, %v2936
          %v3329 = vpack.c.b16 %v2945, %v2937
          %v3330 = vpack.c.b16 %v2946, %v2938
          %v3331 = vpack.c.b16 %v2947, %v2939
          %v3332 = vpack.c.b16 %v2948, %v2940
          %v3333 = vpack.c.b16 %v2949, %v2941
          %v3334 = vpack.c.b16 %v2950, %v2942
          %v3335 = vpack.c.b16 %v2951, %v2943
          %v3336 = vpack.c.b16 %v2960, %v2952
          %v3337 = vpack.c.b16 %v2961, %v2953
          %v3338 = vpack.c.b16 %v2962, %v2954
          %v3339 = vpack.c.b16 %v2963, %v2955
          %v3340 = vpack.c.b16 %v2964, %v2956
          %v3341 = vpack.c.b16 %v2965, %v2957
          %v3342 = vpack.c.b16 %v2966, %v2958
          %v3343 = vpack.c.b16 %v2967, %v2959
          %v3344 = vpack.c.b16 %v2976, %v2968
          %v3345 = vpack.c.b16 %v2977, %v2969
          %v3346 = vpack.c.b16 %v2978, %v2970
          %v3347 = vpack.c.b16 %v2979, %v2971
          %v3348 = vpack.c.b16 %v2980, %v2972
          %v3349 = vpack.c.b16 %v2981, %v2973
          %v3350 = vpack.c.b16 %v2982, %v2974
          %v3351 = vpack.c.b16 %v2983, %v2975
          %v3352 = vpack.c.b16 %v2992, %v2984
          %v3353 = vpack.c.b16 %v2993, %v2985
          %v3354 = vpack.c.b16 %v2994, %v2986
          %v3355 = vpack.c.b16 %v2995, %v2987
          %v3356 = vpack.c.b16 %v2996, %v2988
          %v3357 = vpack.c.b16 %v2997, %v2989
          %v3358 = vpack.c.b16 %v2998, %v2990
          %v3359 = vpack.c.b16 %v2999, %v2991
          %v3360 = vpack.c.b16 %v3008, %v3000
          %v3361 = vpack.c.b16 %v3009, %v3001
          %v3362 = vpack.c.b16 %v3010, %v3002
          %v3363 = vpack.c.b16 %v3011, %v3003
          %v3364 = vpack.c.b16 %v3012, %v3004
          %v3365 = vpack.c.b16 %v3013, %v3005
          %v3366 = vpack.c.b16 %v3014, %v3006
          %v3367 = vpack.c.b16 %v3015, %v3007
          %v3368 = vpack.c.b16 %v3024, %v3016
          %v3369 = vpack.c.b16 %v3025, %v3017
          %v3370 = vpack.c.b16 %v3026, %v3018
          %v3371 = vpack.c.b16 %v3027, %v3019
          %v3372 = vpack.c.b16 %v3028, %v3020
          %v3373 = vpack.c.b16 %v3029, %v3021
          %v3374 = vpack.c.b16 %v3030, %v3022
          %v3375 = vpack.c.b16 %v3031, %v3023
          %v3376 = vpack.c.b16 %v3040, %v3032
          %v3377 = vpack.c.b16 %v3041, %v3033
          %v3378 = vpack.c.b16 %v3042, %v3034
          %v3379 = vpack.c.b16 %v3043, %v3035
          %v3380 = vpack.c.b16 %v3044, %v3036
          %v3381 = vpack.c.b16 %v3045, %v3037
          %v3382 = vpack.c.b16 %v3046, %v3038
          %v3383 = vpack.c.b16 %v3047, %v3039
          %v3384 = vpack.c.b16 %v3056, %v3048
          %v3385 = vpack.c.b16 %v3057, %v3049
          %v3386 = vpack.c.b16 %v3058, %v3050
          %v3387 = vpack.c.b16 %v3059, %v3051
          %v3388 = vpack.c.b16 %v3060, %v3052
          %v3389 = vpack.c.b16 %v3061, %v3053
          %v3390 = vpack.c.b16 %v3062, %v3054
          %v3391 = vpack.c.b16 %v3063, %v3055
          %v3392 = vpack.c.b16 %v3072, %v3064
          %v3393 = vpack.c.b16 %v3073, %v3065
          %v3394 = vpack.c.b16 %v3074, %v3066
          %v3395 = vpack.c.b16 %v3075, %v3067
          %v3396 = vpack.c.b16 %v3076, %v3068
          %v3397 = vpack.c.b16 %v3077, %v3069
          %v3398 = vpack.c.b16 %v3078, %v3070
          %v3399 = vpack.c.b16 %v3079, %v3071
          %v3400 = vpack.c.b16 %v3088, %v3080
          %v3401 = vpack.c.b16 %v3089, %v3081
          %v3402 = vpack.c.b16 %v3090, %v3082
          %v3403 = vpack.c.b16 %v3091, %v3083
          %v3404 = vpack.c.b16 %v3092, %v3084
          %v3405 = vpack.c.b16 %v3093, %v3085
          %v3406 = vpack.c.b16 %v3094, %v3086
          %v3407 = vpack.c.b16 %v3095, %v3087
          %v3408 = vpack.c.b16 %v3104, %v3096
          %v3409 = vpack.c.b16 %v3105, %v3097
          %v3410 = vpack.c.b16 %v3106, %v3098
          %v3411 = vpack.c.b16 %v3107, %v3099
          %v3412 = vpack.c.b16 %v3108, %v3100
          %v3413 = vpack.c.b16 %v3109, %v3101
          %v3414 = vpack.c.b16 %v3110, %v3102
          %v3415 = vpack.c.b16 %v3111, %v3103
          %v3416 = vpack.c.b16 %v3120, %v3112
          %v3417 = vpack.c.b16 %v3121, %v3113
          %v3418 = vpack.c.b16 %v3122, %v3114
          %v3419 = vpack.c.b16 %v3123, %v3115
          %v3420 = vpack.c.b16 %v3124, %v3116
          %v3421 = vpack.c.b16 %v3125, %v3117
          %v3422 = vpack.c.b16 %v3126, %v3118
          %v3423 = vpack.c.b16 %v3127, %v3119
          %v3424 = vpack.c.b16 %v3136, %v3128
          %v3425 = vpack.c.b16 %v3137, %v3129
          %v3426 = vpack.c.b16 %v3138, %v3130
          %v3427 = vpack.c.b16 %v3139, %v3131
          %v3428 = vpack.c.b16 %v3140, %v3132
          %v3429 = vpack.c.b16 %v3141, %v3133
          %v3430 = vpack.c.b16 %v3142, %v3134
          %v3431 = vpack.c.b16 %v3143, %v3135
          %v3432 = vpack.c.b16 %v3152, %v3144
          %v3433 = vpack.c.b16 %v3153, %v3145
          %v3434 = vpack.c.b16 %v3154, %v3146
          %v3435 = vpack.c.b16 %v3155, %v3147
          %v3436 = vpack.c.b16 %v3156, %v3148
          %v3437 = vpack.c.b16 %v3157, %v3149
          %v3438 = vpack.c.b16 %v3158, %v3150
          %v3439 = vpack.c.b16 %v3159, %v3151
          %v3440 = vpack.c.b16 %v3168, %v3160
          %v3441 = vpack.c.b16 %v3169, %v3161
          %v3442 = vpack.c.b16 %v3170, %v3162
          %v3443 = vpack.c.b16 %v3171, %v3163
          %v3444 = vpack.c.b16 %v3172, %v3164
          %v3445 = vpack.c.b16 %v3173, %v3165
          %v3446 = vpack.c.b16 %v3174, %v3166
          %v3447 = vpack.c.b16 %v3175, %v3167
          %v3448 = vpack.c.b16 %v3184, %v3176
          %v3449 = vpack.c.b16 %v3185, %v3177
          %v3450 = vpack.c.b16 %v3186, %v3178
          %v3451 = vpack.c.b16 %v3187, %v3179
          %v3452 = vpack.c.b16 %v3188, %v3180
          %v3453 = vpack.c.b16 %v3189, %v3181
          %v3454 = vpack.c.b16 %v3190, %v3182
          %v3455 = vpack.c.b16 %v3191, %v3183
          %v3456 = vpack.c.b16 %v3200, %v3192
          %v3457 = vpack.c.b16 %v3201, %v3193
          %v3458 = vpack.c.b16 %v3202, %v3194
          %v3459 = vpack.c.b16 %v3203, %v3195
          %v3460 = vpack.c.b16 %v3204, %v3196
          %v3461 = vpack.c.b16 %v3205, %v3197
          %v3462 = vpack.c.b16 %v3206, %v3198
          %v3463 = vpack.c.b16 %v3207, %v3199
          %3720 = vmatprep.subr.bf16.mxu0 %v3209
          %3721 = vmatpush1.bf16.msra.mxu0 %v3208
          %3722 = vmatprep.subr.bf16.mxu0 %v3217
          %3723 = vmatpush1.bf16.msra.mxu0 %v3216
          %3724 = vmatprep.subr.bf16.mxu0 %v3225
          %3725 = vmatpush1.bf16.msra.mxu0 %v3224
          %3726 = vmatprep.subr.bf16.mxu0 %v3233
          %3727 = vmatpush1.bf16.msra.mxu0 %v3232
          %3728 = vmatprep.subr.bf16.mxu0 %v3241
          %3729 = vmatpush1.bf16.msra.mxu0 %v3240
          %3730 = vmatprep.subr.bf16.mxu0 %v3249
          %3731 = vmatpush1.bf16.msra.mxu0 %v3248
          %3732 = vmatprep.subr.bf16.mxu0 %v3257
          %3733 = vmatpush1.bf16.msra.mxu0 %v3256
          %3734 = vmatprep.subr.bf16.mxu0 %v3265
          %3735 = vmatpush1.bf16.msra.mxu0 %v3264
          %3736 = vmatprep.subr.bf16.mxu0 %v3273
          %3737 = vmatpush1.bf16.msra.mxu0 %v3272
          %3738 = vmatprep.subr.bf16.mxu0 %v3281
          %3739 = vmatpush1.bf16.msra.mxu0 %v3280
          %3740 = vmatprep.subr.bf16.mxu0 %v3289
          %3741 = vmatpush1.bf16.msra.mxu0 %v3288
          %3742 = vmatprep.subr.bf16.mxu0 %v3297
          %3743 = vmatpush1.bf16.msra.mxu0 %v3296
          %3744 = vmatprep.subr.bf16.mxu0 %v3305
          %3745 = vmatpush1.bf16.msra.mxu0 %v3304
          %3746 = vmatprep.subr.bf16.mxu0 %v3313
          %3747 = vmatpush1.bf16.msra.mxu0 %v3312
          %3748 = vmatprep.subr.bf16.mxu0 %v3321
          %3749 = vmatpush1.bf16.msra.mxu0 %v3320
          %3750 = vmatprep.subr.bf16.mxu0 %v3329
          %3751 = vmatpush1.bf16.msra.mxu0 %v3328
          %3752 = vmatprep.mubr.bf16.mxu0 %v2139
          %3753 = vmatmul.mubr.bf16.gmra.mrb[0].mxu0 %v2138
          %v3754 = vpop.f32.mrb[0].mxu0
          %v3755 = vadd.f32 %v2403, %v3754
          %v3756 = vpop.f32.mrb[0].mxu0
          %v3757 = vadd.f32 %v2407, %v3756
          %v3758 = vpop.f32.mrb[0].mxu0
          %v3759 = vpop.f32.mrb[0].mxu0
          %3760 = vdwg.mxu0
          %3761 = vmatprep.subr.bf16.mxu0 %v3337
          %3762 = vmatpush1.bf16.msra.mxu0 %v3336
          %3763 = vmatprep.subr.bf16.mxu0 %v3345
          %3764 = vmatpush1.bf16.msra.mxu0 %v3344
          %3765 = vmatprep.subr.bf16.mxu0 %v3353
          %3766 = vmatpush1.bf16.msra.mxu0 %v3352
          %3767 = vmatprep.subr.bf16.mxu0 %v3361
          %3768 = vmatpush1.bf16.msra.mxu0 %v3360
          %3769 = vmatprep.subr.bf16.mxu0 %v3369
          %3770 = vmatpush1.bf16.msra.mxu0 %v3368
          %3771 = vmatprep.subr.bf16.mxu0 %v3377
          %3772 = vmatpush1.bf16.msra.mxu0 %v3376
          %3773 = vmatprep.subr.bf16.mxu0 %v3385
          %3774 = vmatpush1.bf16.msra.mxu0 %v3384
          %3775 = vmatprep.subr.bf16.mxu0 %v3393
          %3776 = vmatpush1.bf16.msra.mxu0 %v3392
          %3777 = vmatprep.subr.bf16.mxu0 %v3401
          %3778 = vmatpush1.bf16.msra.mxu0 %v3400
          %3779 = vmatprep.subr.bf16.mxu0 %v3409
          %3780 = vmatpush1.bf16.msra.mxu0 %v3408
          %3781 = vmatprep.subr.bf16.mxu0 %v3417
          %3782 = vmatpush1.bf16.msra.mxu0 %v3416
          %3783 = vmatprep.subr.bf16.mxu0 %v3425
          %3784 = vmatpush1.bf16.msra.mxu0 %v3424
          %3785 = vmatprep.subr.bf16.mxu0 %v3433
          %3786 = vmatpush1.bf16.msra.mxu0 %v3432
          %3787 = vmatprep.subr.bf16.mxu0 %v3441
          %3788 = vmatpush1.bf16.msra.mxu0 %v3440
          %3789 = vmatprep.subr.bf16.mxu0 %v3449
          %3790 = vmatpush1.bf16.msra.mxu0 %v3448
          %3791 = vmatprep.subr.bf16.mxu0 %v3457
          %3792 = vmatpush1.bf16.msra.mxu0 %v3456
          %3793 = vmatprep.mubr.bf16.mxu0 %v2141
          %3794 = vmatmul.mubr.bf16.gmra.mrb[0].mxu0 %v2140
          %v3795 = vpop.f32.mrb[0].mxu0
          %v3796 = vadd.f32 %v3755, %v3795
          %v3797 = vpop.f32.mrb[0].mxu0
          %v3798 = vadd.f32 %v3757, %v3797
          %v3799 = vpop.f32.mrb[0].mxu0
          %v3800 = vpop.f32.mrb[0].mxu0
          %3801 = vdwg.mxu0
          %3802 = vmatprep.subr.bf16.mxu0 %v3211
          %3803 = vmatpush1.bf16.msra.mxu0 %v3210
          %3804 = vmatprep.subr.bf16.mxu0 %v3219
          %3805 = vmatpush1.bf16.msra.mxu0 %v3218
          %3806 = vmatprep.subr.bf16.mxu0 %v3227
          %3807 = vmatpush1.bf16.msra.mxu0 %v3226
          %3808 = vmatprep.subr.bf16.mxu0 %v3235
          %3809 = vmatpush1.bf16.msra.mxu0 %v3234
          %3810 = vmatprep.subr.bf16.mxu0 %v3243
          %3811 = vmatpush1.bf16.msra.mxu0 %v3242
          %3812 = vmatprep.subr.bf16.mxu0 %v3251
          %3813 = vmatpush1.bf16.msra.mxu0 %v3250
          %3814 = vmatprep.subr.bf16.mxu0 %v3259
          %3815 = vmatpush1.bf16.msra.mxu0 %v3258
          %3816 = vmatprep.subr.bf16.mxu0 %v3267
          %3817 = vmatpush1.bf16.msra.mxu0 %v3266
          %3818 = vmatprep.subr.bf16.mxu0 %v3275
          %3819 = vmatpush1.bf16.msra.mxu0 %v3274
          %3820 = vmatprep.subr.bf16.mxu0 %v3283
          %3821 = vmatpush1.bf16.msra.mxu0 %v3282
          %3822 = vmatprep.subr.bf16.mxu0 %v3291
          %3823 = vmatpush1.bf16.msra.mxu0 %v3290
          %3824 = vmatprep.subr.bf16.mxu0 %v3299
          %3825 = vmatpush1.bf16.msra.mxu0 %v3298
          %3826 = vmatprep.subr.bf16.mxu0 %v3307
          %3827 = vmatpush1.bf16.msra.mxu0 %v3306
          %3828 = vmatprep.subr.bf16.mxu0 %v3315
          %3829 = vmatpush1.bf16.msra.mxu0 %v3314
          %3830 = vmatprep.subr.bf16.mxu0 %v3323
          %3831 = vmatpush1.bf16.msra.mxu0 %v3322
          %3832 = vmatprep.subr.bf16.mxu0 %v3331
          %3833 = vmatpush1.bf16.msra.mxu0 %v3330
          %3834 = vmatprep.mubr.bf16.mxu0 %v2139
          %3835 = vmatmul.mubr.bf16.gmra.mrb[0].mxu0 %v2138
          %v3836 = vpop.f32.mrb[0].mxu0
          %v3837 = vadd.f32 %v2411, %v3836
          %v3838 = vpop.f32.mrb[0].mxu0
          %v3839 = vadd.f32 %v2415, %v3838
          %v3840 = vpop.f32.mrb[0].mxu0
          %v3841 = vpop.f32.mrb[0].mxu0
          %3842 = vdwg.mxu0
          %3843 = vmatprep.subr.bf16.mxu0 %v3339
          %3844 = vmatpush1.bf16.msra.mxu0 %v3338
          %3845 = vmatprep.subr.bf16.mxu0 %v3347
          %3846 = vmatpush1.bf16.msra.mxu0 %v3346
          %3847 = vmatprep.subr.bf16.mxu0 %v3355
          %3848 = vmatpush1.bf16.msra.mxu0 %v3354
          %3849 = vmatprep.subr.bf16.mxu0 %v3363
          %3850 = vmatpush1.bf16.msra.mxu0 %v3362
          %3851 = vmatprep.subr.bf16.mxu0 %v3371
          %3852 = vmatpush1.bf16.msra.mxu0 %v3370
          %3853 = vmatprep.subr.bf16.mxu0 %v3379
          %3854 = vmatpush1.bf16.msra.mxu0 %v3378
          %3855 = vmatprep.subr.bf16.mxu0 %v3387
          %3856 = vmatpush1.bf16.msra.mxu0 %v3386
          %3857 = vmatprep.subr.bf16.mxu0 %v3395
          %3858 = vmatpush1.bf16.msra.mxu0 %v3394
          %3859 = vmatprep.subr.bf16.mxu0 %v3403
          %3860 = vmatpush1.bf16.msra.mxu0 %v3402
          %3861 = vmatprep.subr.bf16.mxu0 %v3411
          %3862 = vmatpush1.bf16.msra.mxu0 %v3410
          %3863 = vmatprep.subr.bf16.mxu0 %v3419
          %3864 = vmatpush1.bf16.msra.mxu0 %v3418
          %3865 = vmatprep.subr.bf16.mxu0 %v3427
          %3866 = vmatpush1.bf16.msra.mxu0 %v3426
          %3867 = vmatprep.subr.bf16.mxu0 %v3435
          %3868 = vmatpush1.bf16.msra.mxu0 %v3434
          %3869 = vmatprep.subr.bf16.mxu0 %v3443
          %3870 = vmatpush1.bf16.msra.mxu0 %v3442
          %3871 = vmatprep.subr.bf16.mxu0 %v3451
          %3872 = vmatpush1.bf16.msra.mxu0 %v3450
          %3873 = vmatprep.subr.bf16.mxu0 %v3459
          %3874 = vmatpush1.bf16.msra.mxu0 %v3458
          %3875 = vmatprep.mubr.bf16.mxu0 %v2141
          %3876 = vmatmul.mubr.bf16.gmra.mrb[0].mxu0 %v2140
          %v3877 = vpop.f32.mrb[0].mxu0
          %v3878 = vadd.f32 %v3837, %v3877
          %v3879 = vpop.f32.mrb[0].mxu0
          %v3880 = vadd.f32 %v3839, %v3879
          %v3881 = vpop.f32.mrb[0].mxu0
          %v3882 = vpop.f32.mrb[0].mxu0
          %3883 = vdwg.mxu0
          %3884 = vmatprep.subr.bf16.mxu0 %v3213
          %3885 = vmatpush1.bf16.msra.mxu0 %v3212
          %3886 = vmatprep.subr.bf16.mxu0 %v3221
          %3887 = vmatpush1.bf16.msra.mxu0 %v3220
          %3888 = vmatprep.subr.bf16.mxu0 %v3229
          %3889 = vmatpush1.bf16.msra.mxu0 %v3228
          %3890 = vmatprep.subr.bf16.mxu0 %v3237
          %3891 = vmatpush1.bf16.msra.mxu0 %v3236
          %3892 = vmatprep.subr.bf16.mxu0 %v3245
          %3893 = vmatpush1.bf16.msra.mxu0 %v3244
          %3894 = vmatprep.subr.bf16.mxu0 %v3253
          %3895 = vmatpush1.bf16.msra.mxu0 %v3252
          %3896 = vmatprep.subr.bf16.mxu0 %v3261
          %3897 = vmatpush1.bf16.msra.mxu0 %v3260
          %3898 = vmatprep.subr.bf16.mxu0 %v3269
          %3899 = vmatpush1.bf16.msra.mxu0 %v3268
          %3900 = vmatprep.subr.bf16.mxu0 %v3277
          %3901 = vmatpush1.bf16.msra.mxu0 %v3276
          %3902 = vmatprep.subr.bf16.mxu0 %v3285
          %3903 = vmatpush1.bf16.msra.mxu0 %v3284
          %3904 = vmatprep.subr.bf16.mxu0 %v3293
          %3905 = vmatpush1.bf16.msra.mxu0 %v3292
          %3906 = vmatprep.subr.bf16.mxu0 %v3301
          %3907 = vmatpush1.bf16.msra.mxu0 %v3300
          %3908 = vmatprep.subr.bf16.mxu0 %v3309
          %3909 = vmatpush1.bf16.msra.mxu0 %v3308
          %3910 = vmatprep.subr.bf16.mxu0 %v3317
          %3911 = vmatpush1.bf16.msra.mxu0 %v3316
          %3912 = vmatprep.subr.bf16.mxu0 %v3325
          %3913 = vmatpush1.bf16.msra.mxu0 %v3324
          %3914 = vmatprep.subr.bf16.mxu0 %v3333
          %3915 = vmatpush1.bf16.msra.mxu0 %v3332
          %3916 = vmatprep.mubr.bf16.mxu0 %v2139
          %3917 = vmatmul.mubr.bf16.gmra.mrb[0].mxu0 %v2138
          %v3918 = vpop.f32.mrb[0].mxu0
          %v3919 = vadd.f32 %v2419, %v3918
          %v3920 = vpop.f32.mrb[0].mxu0
          %v3921 = vadd.f32 %v2423, %v3920
          %v3922 = vpop.f32.mrb[0].mxu0
          %v3923 = vpop.f32.mrb[0].mxu0
          %3924 = vdwg.mxu0
          %3925 = vmatprep.subr.bf16.mxu0 %v3341
          %3926 = vmatpush1.bf16.msra.mxu0 %v3340
          %3927 = vmatprep.subr.bf16.mxu0 %v3349
          %3928 = vmatpush1.bf16.msra.mxu0 %v3348
          %3929 = vmatprep.subr.bf16.mxu0 %v3357
          %3930 = vmatpush1.bf16.msra.mxu0 %v3356
          %3931 = vmatprep.subr.bf16.mxu0 %v3365
          %3932 = vmatpush1.bf16.msra.mxu0 %v3364
          %3933 = vmatprep.subr.bf16.mxu0 %v3373
          %3934 = vmatpush1.bf16.msra.mxu0 %v3372
          %3935 = vmatprep.subr.bf16.mxu0 %v3381
          %3936 = vmatpush1.bf16.msra.mxu0 %v3380
          %3937 = vmatprep.subr.bf16.mxu0 %v3389
          %3938 = vmatpush1.bf16.msra.mxu0 %v3388
          %3939 = vmatprep.subr.bf16.mxu0 %v3397
          %3940 = vmatpush1.bf16.msra.mxu0 %v3396
          %3941 = vmatprep.subr.bf16.mxu0 %v3405
          %3942 = vmatpush1.bf16.msra.mxu0 %v3404
          %3943 = vmatprep.subr.bf16.mxu0 %v3413
          %3944 = vmatpush1.bf16.msra.mxu0 %v3412
          %3945 = vmatprep.subr.bf16.mxu0 %v3421
          %3946 = vmatpush1.bf16.msra.mxu0 %v3420
          %3947 = vmatprep.subr.bf16.mxu0 %v3429
          %3948 = vmatpush1.bf16.msra.mxu0 %v3428
          %3949 = vmatprep.subr.bf16.mxu0 %v3437
          %3950 = vmatpush1.bf16.msra.mxu0 %v3436
          %3951 = vmatprep.subr.bf16.mxu0 %v3445
          %3952 = vmatpush1.bf16.msra.mxu0 %v3444
          %3953 = vmatprep.subr.bf16.mxu0 %v3453
          %3954 = vmatpush1.bf16.msra.mxu0 %v3452
          %3955 = vmatprep.subr.bf16.mxu0 %v3461
          %3956 = vmatpush1.bf16.msra.mxu0 %v3460
          %3957 = vmatprep.mubr.bf16.mxu0 %v2141
          %3958 = vmatmul.mubr.bf16.gmra.mrb[0].mxu0 %v2140
          %v3959 = vpop.f32.mrb[0].mxu0
          %v3960 = vadd.f32 %v3919, %v3959
          %v3961 = vpop.f32.mrb[0].mxu0
          %v3962 = vadd.f32 %v3921, %v3961
          %v3963 = vpop.f32.mrb[0].mxu0
          %v3964 = vpop.f32.mrb[0].mxu0
          %3965 = vdwg.mxu0
          %3966 = vmatprep.subr.bf16.mxu0 %v3215
          %3967 = vmatpush1.bf16.msra.mxu0 %v3214
          %3968 = vmatprep.subr.bf16.mxu0 %v3223
          %3969 = vmatpush1.bf16.msra.mxu0 %v3222
          %3970 = vmatprep.subr.bf16.mxu0 %v3231
          %3971 = vmatpush1.bf16.msra.mxu0 %v3230
          %3972 = vmatprep.subr.bf16.mxu0 %v3239
          %3973 = vmatpush1.bf16.msra.mxu0 %v3238
          %3974 = vmatprep.subr.bf16.mxu0 %v3247
          %3975 = vmatpush1.bf16.msra.mxu0 %v3246
          %3976 = vmatprep.subr.bf16.mxu0 %v3255
          %3977 = vmatpush1.bf16.msra.mxu0 %v3254
          %3978 = vmatprep.subr.bf16.mxu0 %v3263
          %3979 = vmatpush1.bf16.msra.mxu0 %v3262
          %3980 = vmatprep.subr.bf16.mxu0 %v3271
          %3981 = vmatpush1.bf16.msra.mxu0 %v3270
          %3982 = vmatprep.subr.bf16.mxu0 %v3279
          %3983 = vmatpush1.bf16.msra.mxu0 %v3278
          %3984 = vmatprep.subr.bf16.mxu0 %v3287
          %3985 = vmatpush1.bf16.msra.mxu0 %v3286
          %3986 = vmatprep.subr.bf16.mxu0 %v3295
          %3987 = vmatpush1.bf16.msra.mxu0 %v3294
          %3988 = vmatprep.subr.bf16.mxu0 %v3303
          %3989 = vmatpush1.bf16.msra.mxu0 %v3302
          %3990 = vmatprep.subr.bf16.mxu0 %v3311
          %3991 = vmatpush1.bf16.msra.mxu0 %v3310
          %3992 = vmatprep.subr.bf16.mxu0 %v3319
          %3993 = vmatpush1.bf16.msra.mxu0 %v3318
          %3994 = vmatprep.subr.bf16.mxu0 %v3327
          %3995 = vmatpush1.bf16.msra.mxu0 %v3326
          %3996 = vmatprep.subr.bf16.mxu0 %v3335
          %3997 = vmatpush1.bf16.msra.mxu0 %v3334
          %3998 = vmatprep.mubr.bf16.mxu0 %v2139
          %3999 = vmatmul.mubr.bf16.gmra.mrb[0].mxu0 %v2138
          %v4000 = vpop.f32.mrb[0].mxu0
          %v4001 = vadd.f32 %v2427, %v4000
          %v4002 = vpop.f32.mrb[0].mxu0
          %v4003 = vadd.f32 %v2431, %v4002
          %v4004 = vpop.f32.mrb[0].mxu0
          %v4005 = vpop.f32.mrb[0].mxu0
          %4006 = vdwg.mxu0
          %4007 = vmatprep.subr.bf16.mxu0 %v3343
          %4008 = vmatpush1.bf16.msra.mxu0 %v3342
          %4009 = vmatprep.subr.bf16.mxu0 %v3351
          %4010 = vmatpush1.bf16.msra.mxu0 %v3350
          %4011 = vmatprep.subr.bf16.mxu0 %v3359
          %4012 = vmatpush1.bf16.msra.mxu0 %v3358
          %4013 = vmatprep.subr.bf16.mxu0 %v3367
          %4014 = vmatpush1.bf16.msra.mxu0 %v3366
          %4015 = vmatprep.subr.bf16.mxu0 %v3375
          %4016 = vmatpush1.bf16.msra.mxu0 %v3374
          %4017 = vmatprep.subr.bf16.mxu0 %v3383
          %4018 = vmatpush1.bf16.msra.mxu0 %v3382
          %4019 = vmatprep.subr.bf16.mxu0 %v3391
          %4020 = vmatpush1.bf16.msra.mxu0 %v3390
          %4021 = vmatprep.subr.bf16.mxu0 %v3399
          %4022 = vmatpush1.bf16.msra.mxu0 %v3398
          %4023 = vmatprep.subr.bf16.mxu0 %v3407
          %4024 = vmatpush1.bf16.msra.mxu0 %v3406
          %4025 = vmatprep.subr.bf16.mxu0 %v3415
          %4026 = vmatpush1.bf16.msra.mxu0 %v3414
          %4027 = vmatprep.subr.bf16.mxu0 %v3423
          %4028 = vmatpush1.bf16.msra.mxu0 %v3422
          %4029 = vmatprep.subr.bf16.mxu0 %v3431
          %4030 = vmatpush1.bf16.msra.mxu0 %v3430
          %4031 = vmatprep.subr.bf16.mxu0 %v3439
          %4032 = vmatpush1.bf16.msra.mxu0 %v3438
          %4033 = vmatprep.subr.bf16.mxu0 %v3447
          %4034 = vmatpush1.bf16.msra.mxu0 %v3446
          %4035 = vmatprep.subr.bf16.mxu0 %v3455
          %4036 = vmatpush1.bf16.msra.mxu0 %v3454
          %4037 = vmatprep.subr.bf16.mxu0 %v3463
          %4038 = vmatpush1.bf16.msra.mxu0 %v3462
          %4039 = vmatprep.mubr.bf16.mxu0 %v2141
          %4040 = vmatmul.mubr.bf16.gmra.mrb[0].mxu0 %v2140
          %v4041 = vpop.f32.mrb[0].mxu0
          %v4042 = vadd.f32 %v4001, %v4041
          %v4043 = vpop.f32.mrb[0].mxu0
          %v4044 = vadd.f32 %v4003, %v4043
          %v4045 = vpop.f32.mrb[0].mxu0
          %v4046 = vpop.f32.mrb[0].mxu0
          %4047 = vdwg.mxu0
          %v4048 = vmul.f32 %v3796, 0.2
          %v4049 = vmul.f32 %v3798, 0.2
          %v4050 = vmul.f32 %v3878, 0.2
          %v4051 = vmul.f32 %v3880, 0.2
          %v4052 = vmul.f32 %v3960, 0.2
          %v4053 = vmul.f32 %v3962, 0.2
          %v4054 = vmul.f32 %v4042, 0.2
          %v4055 = vmul.f32 %v4044, 0.2
          %v4056 = vmax.f32 %v3796, %v4048
          %v4057 = vmax.f32 %v3798, %v4049
          %v4058 = vmax.f32 %v3878, %v4050
          %v4059 = vmax.f32 %v3880, %v4051
          %v4060 = vmax.f32 %v3960, %v4052
          %v4061 = vmax.f32 %v3962, %v4053
          %v4062 = vmax.f32 %v4042, %v4054
          %v4063 = vmax.f32 %v4044, %v4055
          %v4064 = vpack.c.bf16 %v4056, %v4056
          %v4065 = vpack.c.bf16 %v4057, %v4057
          %v4066 = vpack.c.bf16 %v4058, %v4058
          %v4067 = vpack.c.bf16 %v4059, %v4059
          %v4068 = vpack.c.bf16 %v4060, %v4060
          %v4069 = vpack.c.bf16 %v4061, %v4061
          %v4070 = vpack.c.bf16 %v4062, %v4062
          %v4071 = vpack.c.bf16 %v4063, %v4063
          %v4080 = vcombine.low %v4064, %v4065
          %v4081 = vcombine.low %v4066, %v4067
          %v4082 = vcombine.low %v4068, %v4069
          %v4083 = vcombine.low %v4070, %v4071
          %v4085 = vunpack.c.l.s4 1966171168
          %v4086 = vunpack.c.0.s8 %v4085
          %v4087 = vlaneseq
          %v4088 = vshrl.u32 %v4087, 7
          %v4089 = vsub.s32 %v4086, %v4088
          %v4090 = vrot.slane %v4080, %v4089
          %v4092 = vunpack.c.l.s4 1966171168
          %v4093 = vunpack.c.0.s8 %v4092
          %v4094 = vlaneseq
          %v4095 = vshrl.u32 %v4094, 7
          %v4096 = vsub.s32 %v4093, %v4095
          %v4097 = vrot.slane %v4081, %v4096
          %v4099 = vunpack.c.l.s4 1966171168
          %v4100 = vunpack.c.0.s8 %v4099
          %v4101 = vlaneseq
          %v4102 = vshrl.u32 %v4101, 7
          %v4103 = vsub.s32 %v4100, %v4102
          %v4104 = vrot.slane %v4082, %v4103
          %v4106 = vunpack.c.l.s4 1966171168
          %v4107 = vunpack.c.0.s8 %v4106
          %v4108 = vlaneseq
          %v4109 = vshrl.u32 %v4108, 7
          %v4110 = vsub.s32 %v4107, %v4109
          %v4111 = vrot.slane %v4083, %v4110
          %v4112 = vcombine.low %v4090, %v4097
          %v4113 = vcombine.low %v4104, %v4111
          %v4115 = vunpack.c.l.s4 1966171168
          %v4116 = vunpack.c.0.s8 %v4115
          %v4117 = vlaneseq
          %v4118 = vshrl.u32 %v4117, 7
          %v4119 = vsub.s32 %v4116, %v4118
          %v4120 = vrot.slane %v4112, %v4119
          %v4122 = vunpack.c.l.s4 1966171168
          %v4123 = vunpack.c.0.s8 %v4122
          %v4124 = vlaneseq
          %v4125 = vshrl.u32 %v4124, 7
          %v4126 = vsub.s32 %v4123, %v4125
          %v4127 = vrot.slane %v4113, %v4126
          %v4128 = vcombine.low %v4120, %v4127
          %4130 = vst [vmem:[#allocation2] sm:$0xff] %v4128
        $region87: #{generator_forward.1} parent=78 // pred_fallthru
          _
        %v4131 = vld [vmem:[#allocation2] sm:$0xff]
        %v4132 = vld [vmem:[%s1404] sm:$0xff]
        %v4133 = vld [vmem:[%s1404 + $0x8] sm:$0xff]
        %v4134 = vld [vmem:[%s1404 + $0x10] sm:$0xff]
        %v4135 = vld [vmem:[%s1404 + $0x18] sm:$0xff]
        %v4136 = vld [vmem:[%s1404 + $0x20] sm:$0xff]
        %v4137 = vld [vmem:[%s1404 + $0x28] sm:$0xff]
        %v4138 = vld [vmem:[%s1404 + $0x30] sm:$0xff]
        %v4139 = vld [vmem:[%s1404 + $0x38] sm:$0xff]
        %v4140 = vld [vmem:[%s1404 + $0x40] sm:$0xff]
        %v4141 = vld [vmem:[%s1404 + $0x48] sm:$0xff]
        %v4142 = vld [vmem:[%s1404 + $0x50] sm:$0xff]
        %v4143 = vld [vmem:[%s1404 + $0x58] sm:$0xff]
        %v4144 = vld [vmem:[%s1404 + $0x60] sm:$0xff]
        %v4145 = vld [vmem:[%s1404 + $0x68] sm:$0xff]
        %v4146 = vld [vmem:[%s1404 + $0x70] sm:$0xff]
        %v4147 = vld [vmem:[%s1404 + $0x78] sm:$0xff]
        %v4148 = vld [vmem:[%s1404 + $0x80] sm:$0xff]
        %v4149 = vld [vmem:[%s1404 + $0x88] sm:$0xff]
        %v4150 = vld [vmem:[%s1404 + $0x90] sm:$0xff]
        %v4151 = vld [vmem:[%s1404 + $0x98] sm:$0xff]
        %v4152 = vld [vmem:[%s1404 + $0xa0] sm:$0xff]
        %v4153 = vld [vmem:[%s1404 + $0xa8] sm:$0xff]
        %v4154 = vld [vmem:[%s1404 + $0xb0] sm:$0xff]
        %v4155 = vld [vmem:[%s1404 + $0xb8] sm:$0xff]
        %v4156 = vld [vmem:[%s1404 + $0xc0] sm:$0xff]
        %v4157 = vld [vmem:[%s1404 + $0xc8] sm:$0xff]
        %v4158 = vld [vmem:[%s1404 + $0xd0] sm:$0xff]
        %v4159 = vld [vmem:[%s1404 + $0xd8] sm:$0xff]
        %v4160 = vld [vmem:[%s1404 + $0xe0] sm:$0xff]
        %v4161 = vld [vmem:[%s1404 + $0xe8] sm:$0xff]
        %v4162 = vld [vmem:[%s1404 + $0xf0] sm:$0xff]
        %v4163 = vld [vmem:[%s1404 + $0xf8] sm:$0xff]
        %v4164 = vld [vmem:[%s1404 + $0x100] sm:$0xff]
        %v4165 = vld [vmem:[%s1404 + $0x108] sm:$0xff]
        %v4166 = vld [vmem:[%s1404 + $0x110] sm:$0xff]
        %v4167 = vld [vmem:[%s1404 + $0x118] sm:$0xff]
        %v4168 = vld [vmem:[%s1404 + $0x120] sm:$0xff]
        %v4169 = vld [vmem:[%s1404 + $0x128] sm:$0xff]
        %v4170 = vld [vmem:[%s1404 + $0x130] sm:$0xff]
        %v4171 = vld [vmem:[%s1404 + $0x138] sm:$0xff]
        %v4172 = vld [vmem:[%s1404 + $0x140] sm:$0xff]
        %v4173 = vld [vmem:[%s1404 + $0x148] sm:$0xff]
        %v4174 = vld [vmem:[%s1404 + $0x150] sm:$0xff]
        %v4175 = vld [vmem:[%s1404 + $0x158] sm:$0xff]
        %v4176 = vld [vmem:[%s1404 + $0x160] sm:$0xff]
        %v4177 = vld [vmem:[%s1404 + $0x168] sm:$0xff]
        %v4178 = vld [vmem:[%s1404 + $0x170] sm:$0xff]
        %v4179 = vld [vmem:[%s1404 + $0x178] sm:$0xff]
        %v4180 = vld [vmem:[%s1404 + $0x180] sm:$0xff]
        %v4181 = vld [vmem:[%s1404 + $0x188] sm:$0xff]
        %v4182 = vld [vmem:[%s1404 + $0x190] sm:$0xff]
        %v4183 = vld [vmem:[%s1404 + $0x198] sm:$0xff]
        %v4184 = vld [vmem:[%s1404 + $0x1a0] sm:$0xff]
        %v4185 = vld [vmem:[%s1404 + $0x1a8] sm:$0xff]
        %v4186 = vld [vmem:[%s1404 + $0x1b0] sm:$0xff]
        %v4187 = vld [vmem:[%s1404 + $0x1b8] sm:$0xff]
        %v4188 = vld [vmem:[%s1404 + $0x1c0] sm:$0xff]
        %v4189 = vld [vmem:[%s1404 + $0x1c8] sm:$0xff]
        %v4190 = vld [vmem:[%s1404 + $0x1d0] sm:$0xff]
        %v4191 = vld [vmem:[%s1404 + $0x1d8] sm:$0xff]
        %v4192 = vld [vmem:[%s1404 + $0x1e0] sm:$0xff]
        %v4193 = vld [vmem:[%s1404 + $0x1e8] sm:$0xff]
        %v4194 = vld [vmem:[%s1404 + $0x1f0] sm:$0xff]
        %v4195 = vld [vmem:[%s1404 + $0x1f8] sm:$0xff]
        %v4196 = vld [vmem:[%s1404 + $0x200] sm:$0xff]
        %v4197 = vld [vmem:[%s1404 + $0x208] sm:$0xff]
        %v4198 = vld [vmem:[%s1404 + $0x210] sm:$0xff]
        %v4199 = vld [vmem:[%s1404 + $0x218] sm:$0xff]
        %v4200 = vld [vmem:[%s1404 + $0x220] sm:$0xff]
        %v4201 = vld [vmem:[%s1404 + $0x228] sm:$0xff]
        %v4202 = vld [vmem:[%s1404 + $0x230] sm:$0xff]
        %v4203 = vld [vmem:[%s1404 + $0x238] sm:$0xff]
        %v4204 = vld [vmem:[%s1404 + $0x240] sm:$0xff]
        %v4205 = vld [vmem:[%s1404 + $0x248] sm:$0xff]
        %v4206 = vld [vmem:[%s1404 + $0x250] sm:$0xff]
        %v4207 = vld [vmem:[%s1404 + $0x258] sm:$0xff]
        %v4208 = vld [vmem:[%s1404 + $0x260] sm:$0xff]
        %v4209 = vld [vmem:[%s1404 + $0x268] sm:$0xff]
        %v4210 = vld [vmem:[%s1404 + $0x270] sm:$0xff]
        %v4211 = vld [vmem:[%s1404 + $0x278] sm:$0xff]
        %v4212 = vld [vmem:[%s1404 + $0x280] sm:$0xff]
        %v4213 = vld [vmem:[%s1404 + $0x288] sm:$0xff]
        %v4214 = vld [vmem:[%s1404 + $0x290] sm:$0xff]
        %v4215 = vld [vmem:[%s1404 + $0x298] sm:$0xff]
        %v4216 = vld [vmem:[%s1404 + $0x2a0] sm:$0xff]
        %v4217 = vld [vmem:[%s1404 + $0x2a8] sm:$0xff]
        %v4218 = vld [vmem:[%s1404 + $0x2b0] sm:$0xff]
        %v4219 = vld [vmem:[%s1404 + $0x2b8] sm:$0xff]
        %v4220 = vld [vmem:[%s1404 + $0x2c0] sm:$0xff]
        %v4221 = vld [vmem:[%s1404 + $0x2c8] sm:$0xff]
        %v4222 = vld [vmem:[%s1404 + $0x2d0] sm:$0xff]
        %v4223 = vld [vmem:[%s1404 + $0x2d8] sm:$0xff]
        %v4224 = vld [vmem:[%s1404 + $0x2e0] sm:$0xff]
        %v4225 = vld [vmem:[%s1404 + $0x2e8] sm:$0xff]
        %v4226 = vld [vmem:[%s1404 + $0x2f0] sm:$0xff]
        %v4227 = vld [vmem:[%s1404 + $0x2f8] sm:$0xff]
        %v4228 = vld [vmem:[%s1404 + $0x300] sm:$0xff]
        %v4229 = vld [vmem:[%s1404 + $0x308] sm:$0xff]
        %v4230 = vld [vmem:[%s1404 + $0x310] sm:$0xff]
        %v4231 = vld [vmem:[%s1404 + $0x318] sm:$0xff]
        %v4232 = vld [vmem:[%s1404 + $0x320] sm:$0xff]
        %v4233 = vld [vmem:[%s1404 + $0x328] sm:$0xff]
        %v4234 = vld [vmem:[%s1404 + $0x330] sm:$0xff]
        %v4235 = vld [vmem:[%s1404 + $0x338] sm:$0xff]
        %v4236 = vld [vmem:[%s1404 + $0x340] sm:$0xff]
        %v4237 = vld [vmem:[%s1404 + $0x348] sm:$0xff]
        %v4238 = vld [vmem:[%s1404 + $0x350] sm:$0xff]
        %v4239 = vld [vmem:[%s1404 + $0x358] sm:$0xff]
        %v4240 = vld [vmem:[%s1404 + $0x360] sm:$0xff]
        %v4241 = vld [vmem:[%s1404 + $0x368] sm:$0xff]
        %v4242 = vld [vmem:[%s1404 + $0x370] sm:$0xff]
        %v4243 = vld [vmem:[%s1404 + $0x378] sm:$0xff]
        %v4244 = vld [vmem:[%s1404 + $0x380] sm:$0xff]
        %v4245 = vld [vmem:[%s1404 + $0x388] sm:$0xff]
        %v4246 = vld [vmem:[%s1404 + $0x390] sm:$0xff]
        %v4247 = vld [vmem:[%s1404 + $0x398] sm:$0xff]
        %v4248 = vld [vmem:[%s1404 + $0x3a0] sm:$0xff]
        %v4249 = vld [vmem:[%s1404 + $0x3a8] sm:$0xff]
        %v4250 = vld [vmem:[%s1404 + $0x3b0] sm:$0xff]
        %v4251 = vld [vmem:[%s1404 + $0x3b8] sm:$0xff]
        %v4252 = vld [vmem:[%s1404 + $0x3c0] sm:$0xff]
        %v4253 = vld [vmem:[%s1404 + $0x3c8] sm:$0xff]
        %v4254 = vld [vmem:[%s1404 + $0x3d0] sm:$0xff]
        %v4255 = vld [vmem:[%s1404 + $0x3d8] sm:$0xff]
        %v4256 = vld [vmem:[%s1404 + $0x3e0] sm:$0xff]
        %v4257 = vld [vmem:[%s1404 + $0x3e8] sm:$0xff]
        %v4258 = vld [vmem:[%s1404 + $0x3f0] sm:$0xff]
        %v4259 = vld [vmem:[%s1404 + $0x3f8] sm:$0xff]
        %v4260 = vld [vmem:[%s1404 + $0x400] sm:$0xff]
        %v4261 = vld [vmem:[%s1404 + $0x408] sm:$0xff]
        %v4262 = vld [vmem:[%s1404 + $0x410] sm:$0xff]
        %v4263 = vld [vmem:[%s1404 + $0x418] sm:$0xff]
        %v4264 = vld [vmem:[%s1404 + $0x420] sm:$0xff]
        %v4265 = vld [vmem:[%s1404 + $0x428] sm:$0xff]
        %v4266 = vld [vmem:[%s1404 + $0x430] sm:$0xff]
        %v4267 = vld [vmem:[%s1404 + $0x438] sm:$0xff]
        %v4268 = vld [vmem:[%s1404 + $0x440] sm:$0xff]
        %v4269 = vld [vmem:[%s1404 + $0x448] sm:$0xff]
        %v4270 = vld [vmem:[%s1404 + $0x450] sm:$0xff]
        %v4271 = vld [vmem:[%s1404 + $0x458] sm:$0xff]
        %v4272 = vld [vmem:[%s1404 + $0x460] sm:$0xff]
        %v4273 = vld [vmem:[%s1404 + $0x468] sm:$0xff]
        %v4274 = vld [vmem:[%s1404 + $0x470] sm:$0xff]
        %v4275 = vld [vmem:[%s1404 + $0x478] sm:$0xff]
        %v4276 = vld [vmem:[%s1404 + $0x480] sm:$0xff]
        %v4277 = vld [vmem:[%s1404 + $0x488] sm:$0xff]
        %v4278 = vld [vmem:[%s1404 + $0x490] sm:$0xff]
        %v4279 = vld [vmem:[%s1404 + $0x498] sm:$0xff]
        %v4280 = vld [vmem:[%s1404 + $0x4a0] sm:$0xff]
        %v4281 = vld [vmem:[%s1404 + $0x4a8] sm:$0xff]
        %v4282 = vld [vmem:[%s1404 + $0x4b0] sm:$0xff]
        %v4283 = vld [vmem:[%s1404 + $0x4b8] sm:$0xff]
        %v4284 = vld [vmem:[%s1404 + $0x4c0] sm:$0xff]
        %v4285 = vld [vmem:[%s1404 + $0x4c8] sm:$0xff]
        %v4286 = vld [vmem:[%s1404 + $0x4d0] sm:$0xff]
        %v4287 = vld [vmem:[%s1404 + $0x4d8] sm:$0xff]
        %v4288 = vld [vmem:[%s1404 + $0x4e0] sm:$0xff]
        %v4289 = vld [vmem:[%s1404 + $0x4e8] sm:$0xff]
        %v4290 = vld [vmem:[%s1404 + $0x4f0] sm:$0xff]
        %v4291 = vld [vmem:[%s1404 + $0x4f8] sm:$0xff]
        %v4292 = vld [vmem:[%s1404 + $0x500] sm:$0xff]
        %v4293 = vld [vmem:[%s1404 + $0x508] sm:$0xff]
        %v4294 = vld [vmem:[%s1404 + $0x510] sm:$0xff]
        %v4295 = vld [vmem:[%s1404 + $0x518] sm:$0xff]
        %v4296 = vld [vmem:[%s1404 + $0x520] sm:$0xff]
        %v4297 = vld [vmem:[%s1404 + $0x528] sm:$0xff]
        %v4298 = vld [vmem:[%s1404 + $0x530] sm:$0xff]
        %v4299 = vld [vmem:[%s1404 + $0x538] sm:$0xff]
        %v4300 = vld [vmem:[%s1404 + $0x540] sm:$0xff]
        %v4301 = vld [vmem:[%s1404 + $0x548] sm:$0xff]
        %v4302 = vld [vmem:[%s1404 + $0x550] sm:$0xff]
        %v4303 = vld [vmem:[%s1404 + $0x558] sm:$0xff]
        %v4304 = vld [vmem:[%s1404 + $0x560] sm:$0xff]
        %v4305 = vld [vmem:[%s1404 + $0x568] sm:$0xff]
        %v4306 = vld [vmem:[%s1404 + $0x570] sm:$0xff]
        %v4307 = vld [vmem:[%s1404 + $0x578] sm:$0xff]
        %v4308 = vld [vmem:[%s1404 + $0x580] sm:$0xff]
        %v4309 = vld [vmem:[%s1404 + $0x588] sm:$0xff]
        %v4310 = vld [vmem:[%s1404 + $0x590] sm:$0xff]
        %v4311 = vld [vmem:[%s1404 + $0x598] sm:$0xff]
        %v4312 = vld [vmem:[%s1404 + $0x5a0] sm:$0xff]
        %v4313 = vld [vmem:[%s1404 + $0x5a8] sm:$0xff]
        %v4314 = vld [vmem:[%s1404 + $0x5b0] sm:$0xff]
        %v4315 = vld [vmem:[%s1404 + $0x5b8] sm:$0xff]
        %v4316 = vld [vmem:[%s1404 + $0x5c0] sm:$0xff]
        %v4317 = vld [vmem:[%s1404 + $0x5c8] sm:$0xff]
        %v4318 = vld [vmem:[%s1404 + $0x5d0] sm:$0xff]
        %v4319 = vld [vmem:[%s1404 + $0x5d8] sm:$0xff]
        %v4320 = vld [vmem:[%s1404 + $0x5e0] sm:$0xff]
        %v4321 = vld [vmem:[%s1404 + $0x5e8] sm:$0xff]
        %v4322 = vld [vmem:[%s1404 + $0x5f0] sm:$0xff]
        %v4323 = vld [vmem:[%s1404 + $0x5f8] sm:$0xff]
        %v4324 = vld [vmem:[%s1404 + $0x600] sm:$0xff]
        %v4325 = vld [vmem:[%s1404 + $0x608] sm:$0xff]
        %v4326 = vld [vmem:[%s1404 + $0x610] sm:$0xff]
        %v4327 = vld [vmem:[%s1404 + $0x618] sm:$0xff]
        %v4328 = vld [vmem:[%s1404 + $0x620] sm:$0xff]
        %v4329 = vld [vmem:[%s1404 + $0x628] sm:$0xff]
        %v4330 = vld [vmem:[%s1404 + $0x630] sm:$0xff]
        %v4331 = vld [vmem:[%s1404 + $0x638] sm:$0xff]
        %v4332 = vld [vmem:[%s1404 + $0x640] sm:$0xff]
        %v4333 = vld [vmem:[%s1404 + $0x648] sm:$0xff]
        %v4334 = vld [vmem:[%s1404 + $0x650] sm:$0xff]
        %v4335 = vld [vmem:[%s1404 + $0x658] sm:$0xff]
        %v4336 = vld [vmem:[%s1404 + $0x660] sm:$0xff]
        %v4337 = vld [vmem:[%s1404 + $0x668] sm:$0xff]
        %v4338 = vld [vmem:[%s1404 + $0x670] sm:$0xff]
        %v4339 = vld [vmem:[%s1404 + $0x678] sm:$0xff]
        %v4340 = vld [vmem:[%s1404 + $0x680] sm:$0xff]
        %v4341 = vld [vmem:[%s1404 + $0x688] sm:$0xff]
        %v4342 = vld [vmem:[%s1404 + $0x690] sm:$0xff]
        %v4343 = vld [vmem:[%s1404 + $0x698] sm:$0xff]
        %v4344 = vld [vmem:[%s1404 + $0x6a0] sm:$0xff]
        %v4345 = vld [vmem:[%s1404 + $0x6a8] sm:$0xff]
        %v4346 = vld [vmem:[%s1404 + $0x6b0] sm:$0xff]
        %v4347 = vld [vmem:[%s1404 + $0x6b8] sm:$0xff]
        %v4348 = vld [vmem:[%s1404 + $0x6c0] sm:$0xff]
        %v4349 = vld [vmem:[%s1404 + $0x6c8] sm:$0xff]
        %v4350 = vld [vmem:[%s1404 + $0x6d0] sm:$0xff]
        %v4351 = vld [vmem:[%s1404 + $0x6d8] sm:$0xff]
        %v4352 = vld [vmem:[%s1404 + $0x6e0] sm:$0xff]
        %v4353 = vld [vmem:[%s1404 + $0x6e8] sm:$0xff]
        %v4354 = vld [vmem:[%s1404 + $0x6f0] sm:$0xff]
        %v4355 = vld [vmem:[%s1404 + $0x6f8] sm:$0xff]
        %v4356 = vld [vmem:[%s1404 + $0x700] sm:$0xff]
        %v4357 = vld [vmem:[%s1404 + $0x708] sm:$0xff]
        %v4358 = vld [vmem:[%s1404 + $0x710] sm:$0xff]
        %v4359 = vld [vmem:[%s1404 + $0x718] sm:$0xff]
        %v4360 = vld [vmem:[%s1404 + $0x720] sm:$0xff]
        %v4361 = vld [vmem:[%s1404 + $0x728] sm:$0xff]
        %v4362 = vld [vmem:[%s1404 + $0x730] sm:$0xff]
        %v4363 = vld [vmem:[%s1404 + $0x738] sm:$0xff]
        %v4364 = vld [vmem:[%s1404 + $0x740] sm:$0xff]
        %v4365 = vld [vmem:[%s1404 + $0x748] sm:$0xff]
        %v4366 = vld [vmem:[%s1404 + $0x750] sm:$0xff]
        %v4367 = vld [vmem:[%s1404 + $0x758] sm:$0xff]
        %v4368 = vld [vmem:[%s1404 + $0x760] sm:$0xff]
        %v4369 = vld [vmem:[%s1404 + $0x768] sm:$0xff]
        %v4370 = vld [vmem:[%s1404 + $0x770] sm:$0xff]
        %v4371 = vld [vmem:[%s1404 + $0x778] sm:$0xff]
        %v4372 = vld [vmem:[%s1404 + $0x780] sm:$0xff]
        %v4373 = vld [vmem:[%s1404 + $0x788] sm:$0xff]
        %v4374 = vld [vmem:[%s1404 + $0x790] sm:$0xff]
        %v4375 = vld [vmem:[%s1404 + $0x798] sm:$0xff]
        %v4376 = vld [vmem:[%s1404 + $0x7a0] sm:$0xff]
        %v4377 = vld [vmem:[%s1404 + $0x7a8] sm:$0xff]
        %v4378 = vld [vmem:[%s1404 + $0x7b0] sm:$0xff]
        %v4379 = vld [vmem:[%s1404 + $0x7b8] sm:$0xff]
        %v4380 = vld [vmem:[%s1404 + $0x7c0] sm:$0xff]
        %v4381 = vld [vmem:[%s1404 + $0x7c8] sm:$0xff]
        %v4382 = vld [vmem:[%s1404 + $0x7d0] sm:$0xff]
        %v4383 = vld [vmem:[%s1404 + $0x7d8] sm:$0xff]
        %v4384 = vld [vmem:[%s1404 + $0x7e0] sm:$0xff]
        %v4385 = vld [vmem:[%s1404 + $0x7e8] sm:$0xff]
        %v4386 = vld [vmem:[%s1404 + $0x7f0] sm:$0xff]
        %v4387 = vld [vmem:[%s1404 + $0x7f8] sm:$0xff]
        %v4388 = vld [vmem:[%s1404 + $0x800] sm:$0xff]
        %v4389 = vld [vmem:[%s1404 + $0x808] sm:$0xff]
        %v4390 = vld [vmem:[%s1404 + $0x810] sm:$0xff]
        %v4391 = vld [vmem:[%s1404 + $0x818] sm:$0xff]
        %v4392 = vld [vmem:[%s1404 + $0x820] sm:$0xff]
        %v4393 = vld [vmem:[%s1404 + $0x828] sm:$0xff]
        %v4394 = vld [vmem:[%s1404 + $0x830] sm:$0xff]
        %v4395 = vld [vmem:[%s1404 + $0x838] sm:$0xff]
        %v4396 = vld [vmem:[%s1404 + $0x840] sm:$0xff]
        %v4397 = vld [vmem:[%s1404 + $0x848] sm:$0xff]
        %v4398 = vld [vmem:[%s1404 + $0x850] sm:$0xff]
        %v4399 = vld [vmem:[%s1404 + $0x858] sm:$0xff]
        %v4400 = vld [vmem:[%s1404 + $0x860] sm:$0xff]
        %v4401 = vld [vmem:[%s1404 + $0x868] sm:$0xff]
        %v4402 = vld [vmem:[%s1404 + $0x870] sm:$0xff]
        %v4403 = vld [vmem:[%s1404 + $0x878] sm:$0xff]
        %v4404 = vld [vmem:[%s1404 + $0x880] sm:$0xff]
        %v4405 = vld [vmem:[%s1404 + $0x888] sm:$0xff]
        %v4406 = vld [vmem:[%s1404 + $0x890] sm:$0xff]
        %v4407 = vld [vmem:[%s1404 + $0x898] sm:$0xff]
        %v4408 = vld [vmem:[%s1404 + $0x8a0] sm:$0xff]
        %v4409 = vld [vmem:[%s1404 + $0x8a8] sm:$0xff]
        %v4410 = vld [vmem:[%s1404 + $0x8b0] sm:$0xff]
        %v4411 = vld [vmem:[%s1404 + $0x8b8] sm:$0xff]
        %v4412 = vld [vmem:[%s1404 + $0x8c0] sm:$0xff]
        %v4413 = vld [vmem:[%s1404 + $0x8c8] sm:$0xff]
        %v4414 = vld [vmem:[%s1404 + $0x8d0] sm:$0xff]
        %v4415 = vld [vmem:[%s1404 + $0x8d8] sm:$0xff]
        %v4416 = vld [vmem:[%s1404 + $0x8e0] sm:$0xff]
        %v4417 = vld [vmem:[%s1404 + $0x8e8] sm:$0xff]
        %v4418 = vld [vmem:[%s1404 + $0x8f0] sm:$0xff]
        %v4419 = vld [vmem:[%s1404 + $0x8f8] sm:$0xff]
        %v4420 = vld [vmem:[%s1404 + $0x900] sm:$0xff]
        %v4421 = vld [vmem:[%s1404 + $0x908] sm:$0xff]
        %v4422 = vld [vmem:[%s1404 + $0x910] sm:$0xff]
        %v4423 = vld [vmem:[%s1404 + $0x918] sm:$0xff]
        %v4424 = vld [vmem:[%s1404 + $0x920] sm:$0xff]
        %v4425 = vld [vmem:[%s1404 + $0x928] sm:$0xff]
        %v4426 = vld [vmem:[%s1404 + $0x930] sm:$0xff]
        %v4427 = vld [vmem:[%s1404 + $0x938] sm:$0xff]
        %v4428 = vld [vmem:[%s1404 + $0x940] sm:$0xff]
        %v4429 = vld [vmem:[%s1404 + $0x948] sm:$0xff]
        %v4430 = vld [vmem:[%s1404 + $0x950] sm:$0xff]
        %v4431 = vld [vmem:[%s1404 + $0x958] sm:$0xff]
        %v4432 = vld [vmem:[%s1404 + $0x960] sm:$0xff]
        %v4433 = vld [vmem:[%s1404 + $0x968] sm:$0xff]
        %v4434 = vld [vmem:[%s1404 + $0x970] sm:$0xff]
        %v4435 = vld [vmem:[%s1404 + $0x978] sm:$0xff]
        %v4436 = vld [vmem:[%s1404 + $0x980] sm:$0xff]
        %v4437 = vld [vmem:[%s1404 + $0x988] sm:$0xff]
        %v4438 = vld [vmem:[%s1404 + $0x990] sm:$0xff]
        %v4439 = vld [vmem:[%s1404 + $0x998] sm:$0xff]
        %v4440 = vld [vmem:[%s1404 + $0x9a0] sm:$0xff]
        %v4441 = vld [vmem:[%s1404 + $0x9a8] sm:$0xff]
        %v4442 = vld [vmem:[%s1404 + $0x9b0] sm:$0xff]
        %v4443 = vld [vmem:[%s1404 + $0x9b8] sm:$0xff]
        %v4444 = vld [vmem:[%s1404 + $0x9c0] sm:$0xff]
        %v4445 = vld [vmem:[%s1404 + $0x9c8] sm:$0xff]
        %v4446 = vld [vmem:[%s1404 + $0x9d0] sm:$0xff]
        %v4447 = vld [vmem:[%s1404 + $0x9d8] sm:$0xff]
        %v4448 = vld [vmem:[%s1404 + $0x9e0] sm:$0xff]
        %v4449 = vld [vmem:[%s1404 + $0x9e8] sm:$0xff]
        %v4450 = vld [vmem:[%s1404 + $0x9f0] sm:$0xff]
        %v4451 = vld [vmem:[%s1404 + $0x9f8] sm:$0xff]
        %v4452 = vld [vmem:[%s1404 + $0xa00] sm:$0xff]
        %v4453 = vld [vmem:[%s1404 + $0xa08] sm:$0xff]
        %v4454 = vld [vmem:[%s1404 + $0xa10] sm:$0xff]
        %v4455 = vld [vmem:[%s1404 + $0xa18] sm:$0xff]
        %v4456 = vld [vmem:[%s1404 + $0xa20] sm:$0xff]
        %v4457 = vld [vmem:[%s1404 + $0xa28] sm:$0xff]
        %v4458 = vld [vmem:[%s1404 + $0xa30] sm:$0xff]
        %v4459 = vld [vmem:[%s1404 + $0xa38] sm:$0xff]
        %v4460 = vld [vmem:[%s1404 + $0xa40] sm:$0xff]
        %v4461 = vld [vmem:[%s1404 + $0xa48] sm:$0xff]
        %v4462 = vld [vmem:[%s1404 + $0xa50] sm:$0xff]
        %v4463 = vld [vmem:[%s1404 + $0xa58] sm:$0xff]
        %v4464 = vld [vmem:[%s1404 + $0xa60] sm:$0xff]
        %v4465 = vld [vmem:[%s1404 + $0xa68] sm:$0xff]
        %v4466 = vld [vmem:[%s1404 + $0xa70] sm:$0xff]
        %v4467 = vld [vmem:[%s1404 + $0xa78] sm:$0xff]
        %v4468 = vld [vmem:[%s1404 + $0xa80] sm:$0xff]
        %v4469 = vld [vmem:[%s1404 + $0xa88] sm:$0xff]
        %v4470 = vld [vmem:[%s1404 + $0xa90] sm:$0xff]
        %v4471 = vld [vmem:[%s1404 + $0xa98] sm:$0xff]
        %v4472 = vld [vmem:[%s1404 + $0xaa0] sm:$0xff]
        %v4473 = vld [vmem:[%s1404 + $0xaa8] sm:$0xff]
        %v4474 = vld [vmem:[%s1404 + $0xab0] sm:$0xff]
        %v4475 = vld [vmem:[%s1404 + $0xab8] sm:$0xff]
        %v4476 = vld [vmem:[%s1404 + $0xac0] sm:$0xff]
        %v4477 = vld [vmem:[%s1404 + $0xac8] sm:$0xff]
        %v4478 = vld [vmem:[%s1404 + $0xad0] sm:$0xff]
        %v4479 = vld [vmem:[%s1404 + $0xad8] sm:$0xff]
        %v4480 = vld [vmem:[%s1404 + $0xae0] sm:$0xff]
        %v4481 = vld [vmem:[%s1404 + $0xae8] sm:$0xff]
        %v4482 = vld [vmem:[%s1404 + $0xaf0] sm:$0xff]
        %v4483 = vld [vmem:[%s1404 + $0xaf8] sm:$0xff]
        %v4484 = vld [vmem:[%s1404 + $0xb00] sm:$0xff]
        %v4485 = vld [vmem:[%s1404 + $0xb08] sm:$0xff]
        %v4486 = vld [vmem:[%s1404 + $0xb10] sm:$0xff]
        %v4487 = vld [vmem:[%s1404 + $0xb18] sm:$0xff]
        %v4488 = vld [vmem:[%s1404 + $0xb20] sm:$0xff]
        %v4489 = vld [vmem:[%s1404 + $0xb28] sm:$0xff]
        %v4490 = vld [vmem:[%s1404 + $0xb30] sm:$0xff]
        %v4491 = vld [vmem:[%s1404 + $0xb38] sm:$0xff]
        %v4492 = vld [vmem:[%s1404 + $0xb40] sm:$0xff]
        %v4493 = vld [vmem:[%s1404 + $0xb48] sm:$0xff]
        %v4494 = vld [vmem:[%s1404 + $0xb50] sm:$0xff]
        %v4495 = vld [vmem:[%s1404 + $0xb58] sm:$0xff]
        %v4496 = vld [vmem:[%s1404 + $0xb60] sm:$0xff]
        %v4497 = vld [vmem:[%s1404 + $0xb68] sm:$0xff]
        %v4498 = vld [vmem:[%s1404 + $0xb70] sm:$0xff]
        %v4499 = vld [vmem:[%s1404 + $0xb78] sm:$0xff]
        %v4500 = vld [vmem:[%s1404 + $0xb80] sm:$0xff]
        %v4501 = vld [vmem:[%s1404 + $0xb88] sm:$0xff]
        %v4502 = vld [vmem:[%s1404 + $0xb90] sm:$0xff]
        %v4503 = vld [vmem:[%s1404 + $0xb98] sm:$0xff]
        %v4504 = vld [vmem:[%s1404 + $0xba0] sm:$0xff]
        %v4505 = vld [vmem:[%s1404 + $0xba8] sm:$0xff]
        %v4506 = vld [vmem:[%s1404 + $0xbb0] sm:$0xff]
        %v4507 = vld [vmem:[%s1404 + $0xbb8] sm:$0xff]
        %v4508 = vld [vmem:[%s1404 + $0xbc0] sm:$0xff]
        %v4509 = vld [vmem:[%s1404 + $0xbc8] sm:$0xff]
        %v4510 = vld [vmem:[%s1404 + $0xbd0] sm:$0xff]
        %v4511 = vld [vmem:[%s1404 + $0xbd8] sm:$0xff]
        %v4512 = vld [vmem:[%s1404 + $0xbe0] sm:$0xff]
        %v4513 = vld [vmem:[%s1404 + $0xbe8] sm:$0xff]
        %v4514 = vld [vmem:[%s1404 + $0xbf0] sm:$0xff]
        %v4515 = vld [vmem:[%s1404 + $0xbf8] sm:$0xff]
        %v4516 = vld [vmem:[%s1404 + $0xc00] sm:$0xff]
        %v4517 = vld [vmem:[%s1404 + $0xc08] sm:$0xff]
        %v4518 = vld [vmem:[%s1404 + $0xc10] sm:$0xff]
        %v4519 = vld [vmem:[%s1404 + $0xc18] sm:$0xff]
        %v4520 = vld [vmem:[%s1404 + $0xc20] sm:$0xff]
        %v4521 = vld [vmem:[%s1404 + $0xc28] sm:$0xff]
        %v4522 = vld [vmem:[%s1404 + $0xc30] sm:$0xff]
        %v4523 = vld [vmem:[%s1404 + $0xc38] sm:$0xff]
        %v4524 = vld [vmem:[%s1404 + $0xc40] sm:$0xff]
        %v4525 = vld [vmem:[%s1404 + $0xc48] sm:$0xff]
        %v4526 = vld [vmem:[%s1404 + $0xc50] sm:$0xff]
        %v4527 = vld [vmem:[%s1404 + $0xc58] sm:$0xff]
        %v4528 = vld [vmem:[%s1404 + $0xc60] sm:$0xff]
        %v4529 = vld [vmem:[%s1404 + $0xc68] sm:$0xff]
        %v4530 = vld [vmem:[%s1404 + $0xc70] sm:$0xff]
        %v4531 = vld [vmem:[%s1404 + $0xc78] sm:$0xff]
        %v4532 = vld [vmem:[%s1404 + $0xc80] sm:$0xff]
        %v4533 = vld [vmem:[%s1404 + $0xc88] sm:$0xff]
        %v4534 = vld [vmem:[%s1404 + $0xc90] sm:$0xff]
        %v4535 = vld [vmem:[%s1404 + $0xc98] sm:$0xff]
        %v4536 = vld [vmem:[%s1404 + $0xca0] sm:$0xff]
        %v4537 = vld [vmem:[%s1404 + $0xca8] sm:$0xff]
        %v4538 = vld [vmem:[%s1404 + $0xcb0] sm:$0xff]
        %v4539 = vld [vmem:[%s1404 + $0xcb8] sm:$0xff]
        %v4540 = vld [vmem:[%s1404 + $0xcc0] sm:$0xff]
        %v4541 = vld [vmem:[%s1404 + $0xcc8] sm:$0xff]
        %v4542 = vld [vmem:[%s1404 + $0xcd0] sm:$0xff]
        %v4543 = vld [vmem:[%s1404 + $0xcd8] sm:$0xff]
        %v4544 = vld [vmem:[%s1404 + $0xce0] sm:$0xff]
        %v4545 = vld [vmem:[%s1404 + $0xce8] sm:$0xff]
        %v4546 = vld [vmem:[%s1404 + $0xcf0] sm:$0xff]
        %v4547 = vld [vmem:[%s1404 + $0xcf8] sm:$0xff]
        %v4548 = vld [vmem:[%s1404 + $0xd00] sm:$0xff]
        %v4549 = vld [vmem:[%s1404 + $0xd08] sm:$0xff]
        %v4550 = vld [vmem:[%s1404 + $0xd10] sm:$0xff]
        %v4551 = vld [vmem:[%s1404 + $0xd18] sm:$0xff]
        %v4552 = vld [vmem:[%s1404 + $0xd20] sm:$0xff]
        %v4553 = vld [vmem:[%s1404 + $0xd28] sm:$0xff]
        %v4554 = vld [vmem:[%s1404 + $0xd30] sm:$0xff]
        %v4555 = vld [vmem:[%s1404 + $0xd38] sm:$0xff]
        %v4556 = vld [vmem:[%s1404 + $0xd40] sm:$0xff]
        %v4557 = vld [vmem:[%s1404 + $0xd48] sm:$0xff]
        %v4558 = vld [vmem:[%s1404 + $0xd50] sm:$0xff]
        %v4559 = vld [vmem:[%s1404 + $0xd58] sm:$0xff]
        %v4560 = vld [vmem:[%s1404 + $0xd60] sm:$0xff]
        %v4561 = vld [vmem:[%s1404 + $0xd68] sm:$0xff]
        %v4562 = vld [vmem:[%s1404 + $0xd70] sm:$0xff]
        %v4563 = vld [vmem:[%s1404 + $0xd78] sm:$0xff]
        %v4564 = vld [vmem:[%s1404 + $0xd80] sm:$0xff]
        %v4565 = vld [vmem:[%s1404 + $0xd88] sm:$0xff]
        %v4566 = vld [vmem:[%s1404 + $0xd90] sm:$0xff]
        %v4567 = vld [vmem:[%s1404 + $0xd98] sm:$0xff]
        %v4568 = vld [vmem:[%s1404 + $0xda0] sm:$0xff]
        %v4569 = vld [vmem:[%s1404 + $0xda8] sm:$0xff]
        %v4570 = vld [vmem:[%s1404 + $0xdb0] sm:$0xff]
        %v4571 = vld [vmem:[%s1404 + $0xdb8] sm:$0xff]
        %v4572 = vld [vmem:[%s1404 + $0xdc0] sm:$0xff]
        %v4573 = vld [vmem:[%s1404 + $0xdc8] sm:$0xff]
        %v4574 = vld [vmem:[%s1404 + $0xdd0] sm:$0xff]
        %v4575 = vld [vmem:[%s1404 + $0xdd8] sm:$0xff]
        %v4576 = vld [vmem:[%s1404 + $0xde0] sm:$0xff]
        %v4577 = vld [vmem:[%s1404 + $0xde8] sm:$0xff]
        %v4578 = vld [vmem:[%s1404 + $0xdf0] sm:$0xff]
        %v4579 = vld [vmem:[%s1404 + $0xdf8] sm:$0xff]
        %v4580 = vld [vmem:[%s1404 + $0xe00] sm:$0xff]
        %v4581 = vld [vmem:[%s1404 + $0xe08] sm:$0xff]
        %v4582 = vld [vmem:[%s1404 + $0xe10] sm:$0xff]
        %v4583 = vld [vmem:[%s1404 + $0xe18] sm:$0xff]
        %v4584 = vld [vmem:[%s1404 + $0xe20] sm:$0xff]
        %v4585 = vld [vmem:[%s1404 + $0xe28] sm:$0xff]
        %v4586 = vld [vmem:[%s1404 + $0xe30] sm:$0xff]
        %v4587 = vld [vmem:[%s1404 + $0xe38] sm:$0xff]
        %v4588 = vld [vmem:[%s1404 + $0xe40] sm:$0xff]
        %v4589 = vld [vmem:[%s1404 + $0xe48] sm:$0xff]
        %v4590 = vld [vmem:[%s1404 + $0xe50] sm:$0xff]
        %v4591 = vld [vmem:[%s1404 + $0xe58] sm:$0xff]
        %v4592 = vld [vmem:[%s1404 + $0xe60] sm:$0xff]
        %v4593 = vld [vmem:[%s1404 + $0xe68] sm:$0xff]
        %v4594 = vld [vmem:[%s1404 + $0xe70] sm:$0xff]
        %v4595 = vld [vmem:[%s1404 + $0xe78] sm:$0xff]
        %v4596 = vld [vmem:[%s1404 + $0xe80] sm:$0xff]
        %v4597 = vld [vmem:[%s1404 + $0xe88] sm:$0xff]
        %v4598 = vld [vmem:[%s1404 + $0xe90] sm:$0xff]
        %v4599 = vld [vmem:[%s1404 + $0xe98] sm:$0xff]
        %v4600 = vld [vmem:[%s1404 + $0xea0] sm:$0xff]
        %v4601 = vld [vmem:[%s1404 + $0xea8] sm:$0xff]
        %v4602 = vld [vmem:[%s1404 + $0xeb0] sm:$0xff]
        %v4603 = vld [vmem:[%s1404 + $0xeb8] sm:$0xff]
        %v4604 = vld [vmem:[%s1404 + $0xec0] sm:$0xff]
        %v4605 = vld [vmem:[%s1404 + $0xec8] sm:$0xff]
        %v4606 = vld [vmem:[%s1404 + $0xed0] sm:$0xff]
        %v4607 = vld [vmem:[%s1404 + $0xed8] sm:$0xff]
        %v4608 = vld [vmem:[%s1404 + $0xee0] sm:$0xff]
        %v4609 = vld [vmem:[%s1404 + $0xee8] sm:$0xff]
        %v4610 = vld [vmem:[%s1404 + $0xef0] sm:$0xff]
        %v4611 = vld [vmem:[%s1404 + $0xef8] sm:$0xff]
        %v4612 = vld [vmem:[%s1404 + $0xf00] sm:$0xff]
        %v4613 = vld [vmem:[%s1404 + $0xf08] sm:$0xff]
        %v4614 = vld [vmem:[%s1404 + $0xf10] sm:$0xff]
        %v4615 = vld [vmem:[%s1404 + $0xf18] sm:$0xff]
        %v4616 = vld [vmem:[%s1404 + $0xf20] sm:$0xff]
        %v4617 = vld [vmem:[%s1404 + $0xf28] sm:$0xff]
        %v4618 = vld [vmem:[%s1404 + $0xf30] sm:$0xff]
        %v4619 = vld [vmem:[%s1404 + $0xf38] sm:$0xff]
        %v4620 = vld [vmem:[%s1404 + $0xf40] sm:$0xff]
        %v4621 = vld [vmem:[%s1404 + $0xf48] sm:$0xff]
        %v4622 = vld [vmem:[%s1404 + $0xf50] sm:$0xff]
        %v4623 = vld [vmem:[%s1404 + $0xf58] sm:$0xff]
        %v4624 = vld [vmem:[%s1404 + $0xf60] sm:$0xff]
        %v4625 = vld [vmem:[%s1404 + $0xf68] sm:$0xff]
        %v4626 = vld [vmem:[%s1404 + $0xf70] sm:$0xff]
        %v4627 = vld [vmem:[%s1404 + $0xf78] sm:$0xff]
        %v4628 = vld [vmem:[%s1404 + $0xf80] sm:$0xff]
        %v4629 = vld [vmem:[%s1404 + $0xf88] sm:$0xff]
        %v4630 = vld [vmem:[%s1404 + $0xf90] sm:$0xff]
        %v4631 = vld [vmem:[%s1404 + $0xf98] sm:$0xff]
        %v4632 = vld [vmem:[%s1404 + $0xfa0] sm:$0xff]
        %v4633 = vld [vmem:[%s1404 + $0xfa8] sm:$0xff]
        %v4634 = vld [vmem:[%s1404 + $0xfb0] sm:$0xff]
        %v4635 = vld [vmem:[%s1404 + $0xfb8] sm:$0xff]
        %v4636 = vld [vmem:[%s1404 + $0xfc0] sm:$0xff]
        %v4637 = vld [vmem:[%s1404 + $0xfc8] sm:$0xff]
        %v4638 = vld [vmem:[%s1404 + $0xfd0] sm:$0xff]
        %v4639 = vld [vmem:[%s1404 + $0xfd8] sm:$0xff]
        %v4640 = vld [vmem:[%s1404 + $0xfe0] sm:$0xff]
        %v4641 = vld [vmem:[%s1404 + $0xfe8] sm:$0xff]
        %v4642 = vld [vmem:[%s1404 + $0xff0] sm:$0xff]
        %v4643 = vld [vmem:[%s1404 + $0xff8] sm:$0xff]
        %v4644 = vld [vmem:[%s1467] sm:$0xff]
        %v4646 = vlaneseq
        %v4647 = vshrl.u32 %v4646, 7
        %v4648 = vsub.s32 0, %v4647
        %v4649 = vrot.slane %v4644, %v4648
        %v4650 = vlaneseq
        %v4651 = vshrl.u32 %v4650, 7
        %v4652 = vsub.s32 1, %v4651
        %v4653 = vrot.slane %v4644, %v4652
        %v4654 = vlaneseq
        %v4655 = vshrl.u32 %v4654, 7
        %v4656 = vsub.s32 2, %v4655
        %v4657 = vrot.slane %v4644, %v4656
        %v4658 = vlaneseq
        %v4659 = vshrl.u32 %v4658, 7
        %v4660 = vsub.s32 3, %v4659
        %v4661 = vrot.slane %v4644, %v4660
        %v4662 = vlaneseq
        %v4663 = vshrl.u32 %v4662, 7
        %v4664 = vsub.s32 4, %v4663
        %v4665 = vrot.slane %v4644, %v4664
        %v4666 = vlaneseq
        %v4667 = vshrl.u32 %v4666, 7
        %v4668 = vsub.s32 5, %v4667
        %v4669 = vrot.slane %v4644, %v4668
        %v4670 = vlaneseq
        %v4671 = vshrl.u32 %v4670, 7
        %v4672 = vsub.s32 6, %v4671
        %v4673 = vrot.slane %v4644, %v4672
        %v4674 = vlaneseq
        %v4675 = vshrl.u32 %v4674, 7
        %v4676 = vsub.s32 7, %v4675
        %v4677 = vrot.slane %v4644, %v4676
        %v4687 = vcombine.high %v4131, %v4131
        %v4689 = vunpack.c.l.s4 1966171168
        %v4690 = vunpack.c.0.s8 %v4689
        %v4691 = vlaneseq
        %v4692 = vshrl.u32 %v4691, 7
        %v4693 = vsub.s32 %v4690, %v4692
        %v4694 = vrot.slane %v4131, %v4693
        %v4696 = vunpack.c.l.s4 1966171168
        %v4697 = vunpack.c.0.s8 %v4696
        %v4698 = vlaneseq
        %v4699 = vshrl.u32 %v4698, 7
        %v4700 = vsub.s32 %v4697, %v4699
        %v4701 = vrot.slane %v4687, %v4700
        %v4702 = vcombine.high %v4694, %v4694
        %v4703 = vcombine.high %v4701, %v4701
        %v4705 = vunpack.c.l.s4 1966171168
        %v4706 = vunpack.c.0.s8 %v4705
        %v4707 = vlaneseq
        %v4708 = vshrl.u32 %v4707, 7
        %v4709 = vsub.s32 %v4706, %v4708
        %v4710 = vrot.slane %v4694, %v4709
        %v4712 = vunpack.c.l.s4 1966171168
        %v4713 = vunpack.c.0.s8 %v4712
        %v4714 = vlaneseq
        %v4715 = vshrl.u32 %v4714, 7
        %v4716 = vsub.s32 %v4713, %v4715
        %v4717 = vrot.slane %v4701, %v4716
        %v4719 = vunpack.c.l.s4 1966171168
        %v4720 = vunpack.c.0.s8 %v4719
        %v4721 = vlaneseq
        %v4722 = vshrl.u32 %v4721, 7
        %v4723 = vsub.s32 %v4720, %v4722
        %v4724 = vrot.slane %v4702, %v4723
        %v4726 = vunpack.c.l.s4 1966171168
        %v4727 = vunpack.c.0.s8 %v4726
        %v4728 = vlaneseq
        %v4729 = vshrl.u32 %v4728, 7
        %v4730 = vsub.s32 %v4727, %v4729
        %v4731 = vrot.slane %v4703, %v4730
        %v4732 = vcombine.high %v4710, %v4710
        %v4733 = vcombine.high %v4717, %v4717
        %v4734 = vcombine.high %v4724, %v4724
        %v4735 = vcombine.high %v4731, %v4731
        %v5256 = vunpack.c.l.b16 %v4132
        %v5257 = vunpack.c.h.b16 %v4132
        %v5258 = vunpack.c.l.b16 %v4133
        %v5259 = vunpack.c.h.b16 %v4133
        %v5260 = vunpack.c.l.b16 %v4134
        %v5261 = vunpack.c.h.b16 %v4134
        %v5262 = vunpack.c.l.b16 %v4135
        %v5263 = vunpack.c.h.b16 %v4135
        %v5264 = vunpack.c.l.b16 %v4136
        %v5265 = vunpack.c.h.b16 %v4136
        %v5266 = vunpack.c.l.b16 %v4137
        %v5267 = vunpack.c.h.b16 %v4137
        %v5268 = vunpack.c.l.b16 %v4138
        %v5269 = vunpack.c.h.b16 %v4138
        %v5270 = vunpack.c.l.b16 %v4139
        %v5271 = vunpack.c.h.b16 %v4139
        %v5272 = vunpack.c.l.b16 %v4140
        %v5273 = vunpack.c.h.b16 %v4140
        %v5274 = vunpack.c.l.b16 %v4141
        %v5275 = vunpack.c.h.b16 %v4141
        %v5276 = vunpack.c.l.b16 %v4142
        %v5277 = vunpack.c.h.b16 %v4142
        %v5278 = vunpack.c.l.b16 %v4143
        %v5279 = vunpack.c.h.b16 %v4143
        %v5280 = vunpack.c.l.b16 %v4144
        %v5281 = vunpack.c.h.b16 %v4144
        %v5282 = vunpack.c.l.b16 %v4145
        %v5283 = vunpack.c.h.b16 %v4145
        %v5284 = vunpack.c.l.b16 %v4146
        %v5285 = vunpack.c.h.b16 %v4146
        %v5286 = vunpack.c.l.b16 %v4147
        %v5287 = vunpack.c.h.b16 %v4147
        %v5288 = vunpack.c.l.b16 %v4148
        %v5289 = vunpack.c.h.b16 %v4148
        %v5290 = vunpack.c.l.b16 %v4149
        %v5291 = vunpack.c.h.b16 %v4149
        %v5292 = vunpack.c.l.b16 %v4150
        %v5293 = vunpack.c.h.b16 %v4150
        %v5294 = vunpack.c.l.b16 %v4151
        %v5295 = vunpack.c.h.b16 %v4151
        %v5296 = vunpack.c.l.b16 %v4152
        %v5297 = vunpack.c.h.b16 %v4152
        %v5298 = vunpack.c.l.b16 %v4153
        %v5299 = vunpack.c.h.b16 %v4153
        %v5300 = vunpack.c.l.b16 %v4154
        %v5301 = vunpack.c.h.b16 %v4154
        %v5302 = vunpack.c.l.b16 %v4155
        %v5303 = vunpack.c.h.b16 %v4155
        %v5304 = vunpack.c.l.b16 %v4156
        %v5305 = vunpack.c.h.b16 %v4156
        %v5306 = vunpack.c.l.b16 %v4157
        %v5307 = vunpack.c.h.b16 %v4157
        %v5308 = vunpack.c.l.b16 %v4158
        %v5309 = vunpack.c.h.b16 %v4158
        %v5310 = vunpack.c.l.b16 %v4159
        %v5311 = vunpack.c.h.b16 %v4159
        %v5312 = vunpack.c.l.b16 %v4160
        %v5313 = vunpack.c.h.b16 %v4160
        %v5314 = vunpack.c.l.b16 %v4161
        %v5315 = vunpack.c.h.b16 %v4161
        %v5316 = vunpack.c.l.b16 %v4162
        %v5317 = vunpack.c.h.b16 %v4162
        %v5318 = vunpack.c.l.b16 %v4163
        %v5319 = vunpack.c.h.b16 %v4163
        %v5320 = vunpack.c.l.b16 %v4164
        %v5321 = vunpack.c.h.b16 %v4164
        %v5322 = vunpack.c.l.b16 %v4165
        %v5323 = vunpack.c.h.b16 %v4165
        %v5324 = vunpack.c.l.b16 %v4166
        %v5325 = vunpack.c.h.b16 %v4166
        %v5326 = vunpack.c.l.b16 %v4167
        %v5327 = vunpack.c.h.b16 %v4167
        %v5328 = vunpack.c.l.b16 %v4168
        %v5329 = vunpack.c.h.b16 %v4168
        %v5330 = vunpack.c.l.b16 %v4169
        %v5331 = vunpack.c.h.b16 %v4169
        %v5332 = vunpack.c.l.b16 %v4170
        %v5333 = vunpack.c.h.b16 %v4170
        %v5334 = vunpack.c.l.b16 %v4171
        %v5335 = vunpack.c.h.b16 %v4171
        %v5336 = vunpack.c.l.b16 %v4172
        %v5337 = vunpack.c.h.b16 %v4172
        %v5338 = vunpack.c.l.b16 %v4173
        %v5339 = vunpack.c.h.b16 %v4173
        %v5340 = vunpack.c.l.b16 %v4174
        %v5341 = vunpack.c.h.b16 %v4174
        %v5342 = vunpack.c.l.b16 %v4175
        %v5343 = vunpack.c.h.b16 %v4175
        %v5344 = vunpack.c.l.b16 %v4176
        %v5345 = vunpack.c.h.b16 %v4176
        %v5346 = vunpack.c.l.b16 %v4177
        %v5347 = vunpack.c.h.b16 %v4177
        %v5348 = vunpack.c.l.b16 %v4178
        %v5349 = vunpack.c.h.b16 %v4178
        %v5350 = vunpack.c.l.b16 %v4179
        %v5351 = vunpack.c.h.b16 %v4179
        %v5352 = vunpack.c.l.b16 %v4180
        %v5353 = vunpack.c.h.b16 %v4180
        %v5354 = vunpack.c.l.b16 %v4181
        %v5355 = vunpack.c.h.b16 %v4181
        %v5356 = vunpack.c.l.b16 %v4182
        %v5357 = vunpack.c.h.b16 %v4182
        %v5358 = vunpack.c.l.b16 %v4183
        %v5359 = vunpack.c.h.b16 %v4183
        %v5360 = vunpack.c.l.b16 %v4184
        %v5361 = vunpack.c.h.b16 %v4184
        %v5362 = vunpack.c.l.b16 %v4185
        %v5363 = vunpack.c.h.b16 %v4185
        %v5364 = vunpack.c.l.b16 %v4186
        %v5365 = vunpack.c.h.b16 %v4186
        %v5366 = vunpack.c.l.b16 %v4187
        %v5367 = vunpack.c.h.b16 %v4187
        %v5368 = vunpack.c.l.b16 %v4188
        %v5369 = vunpack.c.h.b16 %v4188
        %v5370 = vunpack.c.l.b16 %v4189
        %v5371 = vunpack.c.h.b16 %v4189
        %v5372 = vunpack.c.l.b16 %v4190
        %v5373 = vunpack.c.h.b16 %v4190
        %v5374 = vunpack.c.l.b16 %v4191
        %v5375 = vunpack.c.h.b16 %v4191
        %v5376 = vunpack.c.l.b16 %v4192
        %v5377 = vunpack.c.h.b16 %v4192
        %v5378 = vunpack.c.l.b16 %v4193
        %v5379 = vunpack.c.h.b16 %v4193
        %v5380 = vunpack.c.l.b16 %v4194
        %v5381 = vunpack.c.h.b16 %v4194
        %v5382 = vunpack.c.l.b16 %v4195
        %v5383 = vunpack.c.h.b16 %v4195
        %v5384 = vunpack.c.l.b16 %v4196
        %v5385 = vunpack.c.h.b16 %v4196
        %v5386 = vunpack.c.l.b16 %v4197
        %v5387 = vunpack.c.h.b16 %v4197
        %v5388 = vunpack.c.l.b16 %v4198
        %v5389 = vunpack.c.h.b16 %v4198
        %v5390 = vunpack.c.l.b16 %v4199
        %v5391 = vunpack.c.h.b16 %v4199
        %v5392 = vunpack.c.l.b16 %v4200
        %v5393 = vunpack.c.h.b16 %v4200
        %v5394 = vunpack.c.l.b16 %v4201
        %v5395 = vunpack.c.h.b16 %v4201
        %v5396 = vunpack.c.l.b16 %v4202
        %v5397 = vunpack.c.h.b16 %v4202
        %v5398 = vunpack.c.l.b16 %v4203
        %v5399 = vunpack.c.h.b16 %v4203
        %v5400 = vunpack.c.l.b16 %v4204
        %v5401 = vunpack.c.h.b16 %v4204
        %v5402 = vunpack.c.l.b16 %v4205
        %v5403 = vunpack.c.h.b16 %v4205
        %v5404 = vunpack.c.l.b16 %v4206
        %v5405 = vunpack.c.h.b16 %v4206
        %v5406 = vunpack.c.l.b16 %v4207
        %v5407 = vunpack.c.h.b16 %v4207
        %v5408 = vunpack.c.l.b16 %v4208
        %v5409 = vunpack.c.h.b16 %v4208
        %v5410 = vunpack.c.l.b16 %v4209
        %v5411 = vunpack.c.h.b16 %v4209
        %v5412 = vunpack.c.l.b16 %v4210
        %v5413 = vunpack.c.h.b16 %v4210
        %v5414 = vunpack.c.l.b16 %v4211
        %v5415 = vunpack.c.h.b16 %v4211
        %v5416 = vunpack.c.l.b16 %v4212
        %v5417 = vunpack.c.h.b16 %v4212
        %v5418 = vunpack.c.l.b16 %v4213
        %v5419 = vunpack.c.h.b16 %v4213
        %v5420 = vunpack.c.l.b16 %v4214
        %v5421 = vunpack.c.h.b16 %v4214
        %v5422 = vunpack.c.l.b16 %v4215
        %v5423 = vunpack.c.h.b16 %v4215
        %v5424 = vunpack.c.l.b16 %v4216
        %v5425 = vunpack.c.h.b16 %v4216
        %v5426 = vunpack.c.l.b16 %v4217
        %v5427 = vunpack.c.h.b16 %v4217
        %v5428 = vunpack.c.l.b16 %v4218
        %v5429 = vunpack.c.h.b16 %v4218
        %v5430 = vunpack.c.l.b16 %v4219
        %v5431 = vunpack.c.h.b16 %v4219
        %v5432 = vunpack.c.l.b16 %v4220
        %v5433 = vunpack.c.h.b16 %v4220
        %v5434 = vunpack.c.l.b16 %v4221
        %v5435 = vunpack.c.h.b16 %v4221
        %v5436 = vunpack.c.l.b16 %v4222
        %v5437 = vunpack.c.h.b16 %v4222
        %v5438 = vunpack.c.l.b16 %v4223
        %v5439 = vunpack.c.h.b16 %v4223
        %v5440 = vunpack.c.l.b16 %v4224
        %v5441 = vunpack.c.h.b16 %v4224
        %v5442 = vunpack.c.l.b16 %v4225
        %v5443 = vunpack.c.h.b16 %v4225
        %v5444 = vunpack.c.l.b16 %v4226
        %v5445 = vunpack.c.h.b16 %v4226
        %v5446 = vunpack.c.l.b16 %v4227
        %v5447 = vunpack.c.h.b16 %v4227
        %v5448 = vunpack.c.l.b16 %v4228
        %v5449 = vunpack.c.h.b16 %v4228
        %v5450 = vunpack.c.l.b16 %v4229
        %v5451 = vunpack.c.h.b16 %v4229
        %v5452 = vunpack.c.l.b16 %v4230
        %v5453 = vunpack.c.h.b16 %v4230
        %v5454 = vunpack.c.l.b16 %v4231
        %v5455 = vunpack.c.h.b16 %v4231
        %v5456 = vunpack.c.l.b16 %v4232
        %v5457 = vunpack.c.h.b16 %v4232
        %v5458 = vunpack.c.l.b16 %v4233
        %v5459 = vunpack.c.h.b16 %v4233
        %v5460 = vunpack.c.l.b16 %v4234
        %v5461 = vunpack.c.h.b16 %v4234
        %v5462 = vunpack.c.l.b16 %v4235
        %v5463 = vunpack.c.h.b16 %v4235
        %v5464 = vunpack.c.l.b16 %v4236
        %v5465 = vunpack.c.h.b16 %v4236
        %v5466 = vunpack.c.l.b16 %v4237
        %v5467 = vunpack.c.h.b16 %v4237
        %v5468 = vunpack.c.l.b16 %v4238
        %v5469 = vunpack.c.h.b16 %v4238
        %v5470 = vunpack.c.l.b16 %v4239
        %v5471 = vunpack.c.h.b16 %v4239
        %v5472 = vunpack.c.l.b16 %v4240
        %v5473 = vunpack.c.h.b16 %v4240
        %v5474 = vunpack.c.l.b16 %v4241
        %v5475 = vunpack.c.h.b16 %v4241
        %v5476 = vunpack.c.l.b16 %v4242
        %v5477 = vunpack.c.h.b16 %v4242
        %v5478 = vunpack.c.l.b16 %v4243
        %v5479 = vunpack.c.h.b16 %v4243
        %v5480 = vunpack.c.l.b16 %v4244
        %v5481 = vunpack.c.h.b16 %v4244
        %v5482 = vunpack.c.l.b16 %v4245
        %v5483 = vunpack.c.h.b16 %v4245
        %v5484 = vunpack.c.l.b16 %v4246
        %v5485 = vunpack.c.h.b16 %v4246
        %v5486 = vunpack.c.l.b16 %v4247
        %v5487 = vunpack.c.h.b16 %v4247
        %v5488 = vunpack.c.l.b16 %v4248
        %v5489 = vunpack.c.h.b16 %v4248
        %v5490 = vunpack.c.l.b16 %v4249
        %v5491 = vunpack.c.h.b16 %v4249
        %v5492 = vunpack.c.l.b16 %v4250
        %v5493 = vunpack.c.h.b16 %v4250
        %v5494 = vunpack.c.l.b16 %v4251
        %v5495 = vunpack.c.h.b16 %v4251
        %v5496 = vunpack.c.l.b16 %v4252
        %v5497 = vunpack.c.h.b16 %v4252
        %v5498 = vunpack.c.l.b16 %v4253
        %v5499 = vunpack.c.h.b16 %v4253
        %v5500 = vunpack.c.l.b16 %v4254
        %v5501 = vunpack.c.h.b16 %v4254
        %v5502 = vunpack.c.l.b16 %v4255
        %v5503 = vunpack.c.h.b16 %v4255
        %v5504 = vunpack.c.l.b16 %v4256
        %v5505 = vunpack.c.h.b16 %v4256
        %v5506 = vunpack.c.l.b16 %v4257
        %v5507 = vunpack.c.h.b16 %v4257
        %v5508 = vunpack.c.l.b16 %v4258
        %v5509 = vunpack.c.h.b16 %v4258
        %v5510 = vunpack.c.l.b16 %v4259
        %v5511 = vunpack.c.h.b16 %v4259
        %v5512 = vunpack.c.l.b16 %v4260
        %v5513 = vunpack.c.h.b16 %v4260
        %v5514 = vunpack.c.l.b16 %v4261
        %v5515 = vunpack.c.h.b16 %v4261
        %v5516 = vunpack.c.l.b16 %v4262
        %v5517 = vunpack.c.h.b16 %v4262
        %v5518 = vunpack.c.l.b16 %v4263
        %v5519 = vunpack.c.h.b16 %v4263
        %v5520 = vunpack.c.l.b16 %v4264
        %v5521 = vunpack.c.h.b16 %v4264
        %v5522 = vunpack.c.l.b16 %v4265
        %v5523 = vunpack.c.h.b16 %v4265
        %v5524 = vunpack.c.l.b16 %v4266
        %v5525 = vunpack.c.h.b16 %v4266
        %v5526 = vunpack.c.l.b16 %v4267
        %v5527 = vunpack.c.h.b16 %v4267
        %v5528 = vunpack.c.l.b16 %v4268
        %v5529 = vunpack.c.h.b16 %v4268
        %v5530 = vunpack.c.l.b16 %v4269
        %v5531 = vunpack.c.h.b16 %v4269
        %v5532 = vunpack.c.l.b16 %v4270
        %v5533 = vunpack.c.h.b16 %v4270
        %v5534 = vunpack.c.l.b16 %v4271
        %v5535 = vunpack.c.h.b16 %v4271
        %v5536 = vunpack.c.l.b16 %v4272
        %v5537 = vunpack.c.h.b16 %v4272
        %v5538 = vunpack.c.l.b16 %v4273
        %v5539 = vunpack.c.h.b16 %v4273
        %v5540 = vunpack.c.l.b16 %v4274
        %v5541 = vunpack.c.h.b16 %v4274
        %v5542 = vunpack.c.l.b16 %v4275
        %v5543 = vunpack.c.h.b16 %v4275
        %v5544 = vunpack.c.l.b16 %v4276
        %v5545 = vunpack.c.h.b16 %v4276
        %v5546 = vunpack.c.l.b16 %v4277
        %v5547 = vunpack.c.h.b16 %v4277
        %v5548 = vunpack.c.l.b16 %v4278
        %v5549 = vunpack.c.h.b16 %v4278
        %v5550 = vunpack.c.l.b16 %v4279
        %v5551 = vunpack.c.h.b16 %v4279
        %v5552 = vunpack.c.l.b16 %v4280
        %v5553 = vunpack.c.h.b16 %v4280
        %v5554 = vunpack.c.l.b16 %v4281
        %v5555 = vunpack.c.h.b16 %v4281
        %v5556 = vunpack.c.l.b16 %v4282
        %v5557 = vunpack.c.h.b16 %v4282
        %v5558 = vunpack.c.l.b16 %v4283
        %v5559 = vunpack.c.h.b16 %v4283
        %v5560 = vunpack.c.l.b16 %v4284
        %v5561 = vunpack.c.h.b16 %v4284
        %v5562 = vunpack.c.l.b16 %v4285
        %v5563 = vunpack.c.h.b16 %v4285
        %v5564 = vunpack.c.l.b16 %v4286
        %v5565 = vunpack.c.h.b16 %v4286
        %v5566 = vunpack.c.l.b16 %v4287
        %v5567 = vunpack.c.h.b16 %v4287
        %v5568 = vunpack.c.l.b16 %v4288
        %v5569 = vunpack.c.h.b16 %v4288
        %v5570 = vunpack.c.l.b16 %v4289
        %v5571 = vunpack.c.h.b16 %v4289
        %v5572 = vunpack.c.l.b16 %v4290
        %v5573 = vunpack.c.h.b16 %v4290
        %v5574 = vunpack.c.l.b16 %v4291
        %v5575 = vunpack.c.h.b16 %v4291
        %v5576 = vunpack.c.l.b16 %v4292
        %v5577 = vunpack.c.h.b16 %v4292
        %v5578 = vunpack.c.l.b16 %v4293
        %v5579 = vunpack.c.h.b16 %v4293
        %v5580 = vunpack.c.l.b16 %v4294
        %v5581 = vunpack.c.h.b16 %v4294
        %v5582 = vunpack.c.l.b16 %v4295
        %v5583 = vunpack.c.h.b16 %v4295
        %v5584 = vunpack.c.l.b16 %v4296
        %v5585 = vunpack.c.h.b16 %v4296
        %v5586 = vunpack.c.l.b16 %v4297
        %v5587 = vunpack.c.h.b16 %v4297
        %v5588 = vunpack.c.l.b16 %v4298
        %v5589 = vunpack.c.h.b16 %v4298
        %v5590 = vunpack.c.l.b16 %v4299
        %v5591 = vunpack.c.h.b16 %v4299
        %v5592 = vunpack.c.l.b16 %v4300
        %v5593 = vunpack.c.h.b16 %v4300
        %v5594 = vunpack.c.l.b16 %v4301
        %v5595 = vunpack.c.h.b16 %v4301
        %v5596 = vunpack.c.l.b16 %v4302
        %v5597 = vunpack.c.h.b16 %v4302
        %v5598 = vunpack.c.l.b16 %v4303
        %v5599 = vunpack.c.h.b16 %v4303
        %v5600 = vunpack.c.l.b16 %v4304
        %v5601 = vunpack.c.h.b16 %v4304
        %v5602 = vunpack.c.l.b16 %v4305
        %v5603 = vunpack.c.h.b16 %v4305
        %v5604 = vunpack.c.l.b16 %v4306
        %v5605 = vunpack.c.h.b16 %v4306
        %v5606 = vunpack.c.l.b16 %v4307
        %v5607 = vunpack.c.h.b16 %v4307
        %v5608 = vunpack.c.l.b16 %v4308
        %v5609 = vunpack.c.h.b16 %v4308
        %v5610 = vunpack.c.l.b16 %v4309
        %v5611 = vunpack.c.h.b16 %v4309
        %v5612 = vunpack.c.l.b16 %v4310
        %v5613 = vunpack.c.h.b16 %v4310
        %v5614 = vunpack.c.l.b16 %v4311
        %v5615 = vunpack.c.h.b16 %v4311
        %v5616 = vunpack.c.l.b16 %v4312
        %v5617 = vunpack.c.h.b16 %v4312
        %v5618 = vunpack.c.l.b16 %v4313
        %v5619 = vunpack.c.h.b16 %v4313
        %v5620 = vunpack.c.l.b16 %v4314
        %v5621 = vunpack.c.h.b16 %v4314
        %v5622 = vunpack.c.l.b16 %v4315
        %v5623 = vunpack.c.h.b16 %v4315
        %v5624 = vunpack.c.l.b16 %v4316
        %v5625 = vunpack.c.h.b16 %v4316
        %v5626 = vunpack.c.l.b16 %v4317
        %v5627 = vunpack.c.h.b16 %v4317
        %v5628 = vunpack.c.l.b16 %v4318
        %v5629 = vunpack.c.h.b16 %v4318
        %v5630 = vunpack.c.l.b16 %v4319
        %v5631 = vunpack.c.h.b16 %v4319
        %v5632 = vunpack.c.l.b16 %v4320
        %v5633 = vunpack.c.h.b16 %v4320
        %v5634 = vunpack.c.l.b16 %v4321
        %v5635 = vunpack.c.h.b16 %v4321
        %v5636 = vunpack.c.l.b16 %v4322
        %v5637 = vunpack.c.h.b16 %v4322
        %v5638 = vunpack.c.l.b16 %v4323
        %v5639 = vunpack.c.h.b16 %v4323
        %v5640 = vunpack.c.l.b16 %v4324
        %v5641 = vunpack.c.h.b16 %v4324
        %v5642 = vunpack.c.l.b16 %v4325
        %v5643 = vunpack.c.h.b16 %v4325
        %v5644 = vunpack.c.l.b16 %v4326
        %v5645 = vunpack.c.h.b16 %v4326
        %v5646 = vunpack.c.l.b16 %v4327
        %v5647 = vunpack.c.h.b16 %v4327
        %v5648 = vunpack.c.l.b16 %v4328
        %v5649 = vunpack.c.h.b16 %v4328
        %v5650 = vunpack.c.l.b16 %v4329
        %v5651 = vunpack.c.h.b16 %v4329
        %v5652 = vunpack.c.l.b16 %v4330
        %v5653 = vunpack.c.h.b16 %v4330
        %v5654 = vunpack.c.l.b16 %v4331
        %v5655 = vunpack.c.h.b16 %v4331
        %v5656 = vunpack.c.l.b16 %v4332
        %v5657 = vunpack.c.h.b16 %v4332
        %v5658 = vunpack.c.l.b16 %v4333
        %v5659 = vunpack.c.h.b16 %v4333
        %v5660 = vunpack.c.l.b16 %v4334
        %v5661 = vunpack.c.h.b16 %v4334
        %v5662 = vunpack.c.l.b16 %v4335
        %v5663 = vunpack.c.h.b16 %v4335
        %v5664 = vunpack.c.l.b16 %v4336
        %v5665 = vunpack.c.h.b16 %v4336
        %v5666 = vunpack.c.l.b16 %v4337
        %v5667 = vunpack.c.h.b16 %v4337
        %v5668 = vunpack.c.l.b16 %v4338
        %v5669 = vunpack.c.h.b16 %v4338
        %v5670 = vunpack.c.l.b16 %v4339
        %v5671 = vunpack.c.h.b16 %v4339
        %v5672 = vunpack.c.l.b16 %v4340
        %v5673 = vunpack.c.h.b16 %v4340
        %v5674 = vunpack.c.l.b16 %v4341
        %v5675 = vunpack.c.h.b16 %v4341
        %v5676 = vunpack.c.l.b16 %v4342
        %v5677 = vunpack.c.h.b16 %v4342
        %v5678 = vunpack.c.l.b16 %v4343
        %v5679 = vunpack.c.h.b16 %v4343
        %v5680 = vunpack.c.l.b16 %v4344
        %v5681 = vunpack.c.h.b16 %v4344
        %v5682 = vunpack.c.l.b16 %v4345
        %v5683 = vunpack.c.h.b16 %v4345
        %v5684 = vunpack.c.l.b16 %v4346
        %v5685 = vunpack.c.h.b16 %v4346
        %v5686 = vunpack.c.l.b16 %v4347
        %v5687 = vunpack.c.h.b16 %v4347
        %v5688 = vunpack.c.l.b16 %v4348
        %v5689 = vunpack.c.h.b16 %v4348
        %v5690 = vunpack.c.l.b16 %v4349
        %v5691 = vunpack.c.h.b16 %v4349
        %v5692 = vunpack.c.l.b16 %v4350
        %v5693 = vunpack.c.h.b16 %v4350
        %v5694 = vunpack.c.l.b16 %v4351
        %v5695 = vunpack.c.h.b16 %v4351
        %v5696 = vunpack.c.l.b16 %v4352
        %v5697 = vunpack.c.h.b16 %v4352
        %v5698 = vunpack.c.l.b16 %v4353
        %v5699 = vunpack.c.h.b16 %v4353
        %v5700 = vunpack.c.l.b16 %v4354
        %v5701 = vunpack.c.h.b16 %v4354
        %v5702 = vunpack.c.l.b16 %v4355
        %v5703 = vunpack.c.h.b16 %v4355
        %v5704 = vunpack.c.l.b16 %v4356
        %v5705 = vunpack.c.h.b16 %v4356
        %v5706 = vunpack.c.l.b16 %v4357
        %v5707 = vunpack.c.h.b16 %v4357
        %v5708 = vunpack.c.l.b16 %v4358
        %v5709 = vunpack.c.h.b16 %v4358
        %v5710 = vunpack.c.l.b16 %v4359
        %v5711 = vunpack.c.h.b16 %v4359
        %v5712 = vunpack.c.l.b16 %v4360
        %v5713 = vunpack.c.h.b16 %v4360
        %v5714 = vunpack.c.l.b16 %v4361
        %v5715 = vunpack.c.h.b16 %v4361
        %v5716 = vunpack.c.l.b16 %v4362
        %v5717 = vunpack.c.h.b16 %v4362
        %v5718 = vunpack.c.l.b16 %v4363
        %v5719 = vunpack.c.h.b16 %v4363
        %v5720 = vunpack.c.l.b16 %v4364
        %v5721 = vunpack.c.h.b16 %v4364
        %v5722 = vunpack.c.l.b16 %v4365
        %v5723 = vunpack.c.h.b16 %v4365
        %v5724 = vunpack.c.l.b16 %v4366
        %v5725 = vunpack.c.h.b16 %v4366
        %v5726 = vunpack.c.l.b16 %v4367
        %v5727 = vunpack.c.h.b16 %v4367
        %v5728 = vunpack.c.l.b16 %v4368
        %v5729 = vunpack.c.h.b16 %v4368
        %v5730 = vunpack.c.l.b16 %v4369
        %v5731 = vunpack.c.h.b16 %v4369
        %v5732 = vunpack.c.l.b16 %v4370
        %v5733 = vunpack.c.h.b16 %v4370
        %v5734 = vunpack.c.l.b16 %v4371
        %v5735 = vunpack.c.h.b16 %v4371
        %v5736 = vunpack.c.l.b16 %v4372
        %v5737 = vunpack.c.h.b16 %v4372
        %v5738 = vunpack.c.l.b16 %v4373
        %v5739 = vunpack.c.h.b16 %v4373
        %v5740 = vunpack.c.l.b16 %v4374
        %v5741 = vunpack.c.h.b16 %v4374
        %v5742 = vunpack.c.l.b16 %v4375
        %v5743 = vunpack.c.h.b16 %v4375
        %v5744 = vunpack.c.l.b16 %v4376
        %v5745 = vunpack.c.h.b16 %v4376
        %v5746 = vunpack.c.l.b16 %v4377
        %v5747 = vunpack.c.h.b16 %v4377
        %v5748 = vunpack.c.l.b16 %v4378
        %v5749 = vunpack.c.h.b16 %v4378
        %v5750 = vunpack.c.l.b16 %v4379
        %v5751 = vunpack.c.h.b16 %v4379
        %v5752 = vunpack.c.l.b16 %v4380
        %v5753 = vunpack.c.h.b16 %v4380
        %v5754 = vunpack.c.l.b16 %v4381
        %v5755 = vunpack.c.h.b16 %v4381
        %v5756 = vunpack.c.l.b16 %v4382
        %v5757 = vunpack.c.h.b16 %v4382
        %v5758 = vunpack.c.l.b16 %v4383
        %v5759 = vunpack.c.h.b16 %v4383
        %v5760 = vunpack.c.l.b16 %v4384
        %v5761 = vunpack.c.h.b16 %v4384
        %v5762 = vunpack.c.l.b16 %v4385
        %v5763 = vunpack.c.h.b16 %v4385
        %v5764 = vunpack.c.l.b16 %v4386
        %v5765 = vunpack.c.h.b16 %v4386
        %v5766 = vunpack.c.l.b16 %v4387
        %v5767 = vunpack.c.h.b16 %v4387
        %v5768 = vunpack.c.l.b16 %v4388
        %v5769 = vunpack.c.h.b16 %v4388
        %v5770 = vunpack.c.l.b16 %v4389
        %v5771 = vunpack.c.h.b16 %v4389
        %v5772 = vunpack.c.l.b16 %v4390
        %v5773 = vunpack.c.h.b16 %v4390
        %v5774 = vunpack.c.l.b16 %v4391
        %v5775 = vunpack.c.h.b16 %v4391
        %v5776 = vunpack.c.l.b16 %v4392
        %v5777 = vunpack.c.h.b16 %v4392
        %v5778 = vunpack.c.l.b16 %v4393
        %v5779 = vunpack.c.h.b16 %v4393
        %v5780 = vunpack.c.l.b16 %v4394
        %v5781 = vunpack.c.h.b16 %v4394
        %v5782 = vunpack.c.l.b16 %v4395
        %v5783 = vunpack.c.h.b16 %v4395
        %v5784 = vunpack.c.l.b16 %v4396
        %v5785 = vunpack.c.h.b16 %v4396
        %v5786 = vunpack.c.l.b16 %v4397
        %v5787 = vunpack.c.h.b16 %v4397
        %v5788 = vunpack.c.l.b16 %v4398
        %v5789 = vunpack.c.h.b16 %v4398
        %v5790 = vunpack.c.l.b16 %v4399
        %v5791 = vunpack.c.h.b16 %v4399
        %v5792 = vunpack.c.l.b16 %v4400
        %v5793 = vunpack.c.h.b16 %v4400
        %v5794 = vunpack.c.l.b16 %v4401
        %v5795 = vunpack.c.h.b16 %v4401
        %v5796 = vunpack.c.l.b16 %v4402
        %v5797 = vunpack.c.h.b16 %v4402
        %v5798 = vunpack.c.l.b16 %v4403
        %v5799 = vunpack.c.h.b16 %v4403
        %v5800 = vunpack.c.l.b16 %v4404
        %v5801 = vunpack.c.h.b16 %v4404
        %v5802 = vunpack.c.l.b16 %v4405
        %v5803 = vunpack.c.h.b16 %v4405
        %v5804 = vunpack.c.l.b16 %v4406
        %v5805 = vunpack.c.h.b16 %v4406
        %v5806 = vunpack.c.l.b16 %v4407
        %v5807 = vunpack.c.h.b16 %v4407
        %v5808 = vunpack.c.l.b16 %v4408
        %v5809 = vunpack.c.h.b16 %v4408
        %v5810 = vunpack.c.l.b16 %v4409
        %v5811 = vunpack.c.h.b16 %v4409
        %v5812 = vunpack.c.l.b16 %v4410
        %v5813 = vunpack.c.h.b16 %v4410
        %v5814 = vunpack.c.l.b16 %v4411
        %v5815 = vunpack.c.h.b16 %v4411
        %v5816 = vunpack.c.l.b16 %v4412
        %v5817 = vunpack.c.h.b16 %v4412
        %v5818 = vunpack.c.l.b16 %v4413
        %v5819 = vunpack.c.h.b16 %v4413
        %v5820 = vunpack.c.l.b16 %v4414
        %v5821 = vunpack.c.h.b16 %v4414
        %v5822 = vunpack.c.l.b16 %v4415
        %v5823 = vunpack.c.h.b16 %v4415
        %v5824 = vunpack.c.l.b16 %v4416
        %v5825 = vunpack.c.h.b16 %v4416
        %v5826 = vunpack.c.l.b16 %v4417
        %v5827 = vunpack.c.h.b16 %v4417
        %v5828 = vunpack.c.l.b16 %v4418
        %v5829 = vunpack.c.h.b16 %v4418
        %v5830 = vunpack.c.l.b16 %v4419
        %v5831 = vunpack.c.h.b16 %v4419
        %v5832 = vunpack.c.l.b16 %v4420
        %v5833 = vunpack.c.h.b16 %v4420
        %v5834 = vunpack.c.l.b16 %v4421
        %v5835 = vunpack.c.h.b16 %v4421
        %v5836 = vunpack.c.l.b16 %v4422
        %v5837 = vunpack.c.h.b16 %v4422
        %v5838 = vunpack.c.l.b16 %v4423
        %v5839 = vunpack.c.h.b16 %v4423
        %v5840 = vunpack.c.l.b16 %v4424
        %v5841 = vunpack.c.h.b16 %v4424
        %v5842 = vunpack.c.l.b16 %v4425
        %v5843 = vunpack.c.h.b16 %v4425
        %v5844 = vunpack.c.l.b16 %v4426
        %v5845 = vunpack.c.h.b16 %v4426
        %v5846 = vunpack.c.l.b16 %v4427
        %v5847 = vunpack.c.h.b16 %v4427
        %v5848 = vunpack.c.l.b16 %v4428
        %v5849 = vunpack.c.h.b16 %v4428
        %v5850 = vunpack.c.l.b16 %v4429
        %v5851 = vunpack.c.h.b16 %v4429
        %v5852 = vunpack.c.l.b16 %v4430
        %v5853 = vunpack.c.h.b16 %v4430
        %v5854 = vunpack.c.l.b16 %v4431
        %v5855 = vunpack.c.h.b16 %v4431
        %v5856 = vunpack.c.l.b16 %v4432
        %v5857 = vunpack.c.h.b16 %v4432
        %v5858 = vunpack.c.l.b16 %v4433
        %v5859 = vunpack.c.h.b16 %v4433
        %v5860 = vunpack.c.l.b16 %v4434
        %v5861 = vunpack.c.h.b16 %v4434
        %v5862 = vunpack.c.l.b16 %v4435
        %v5863 = vunpack.c.h.b16 %v4435
        %v5864 = vunpack.c.l.b16 %v4436
        %v5865 = vunpack.c.h.b16 %v4436
        %v5866 = vunpack.c.l.b16 %v4437
        %v5867 = vunpack.c.h.b16 %v4437
        %v5868 = vunpack.c.l.b16 %v4438
        %v5869 = vunpack.c.h.b16 %v4438
        %v5870 = vunpack.c.l.b16 %v4439
        %v5871 = vunpack.c.h.b16 %v4439
        %v5872 = vunpack.c.l.b16 %v4440
        %v5873 = vunpack.c.h.b16 %v4440
        %v5874 = vunpack.c.l.b16 %v4441
        %v5875 = vunpack.c.h.b16 %v4441
        %v5876 = vunpack.c.l.b16 %v4442
        %v5877 = vunpack.c.h.b16 %v4442
        %v5878 = vunpack.c.l.b16 %v4443
        %v5879 = vunpack.c.h.b16 %v4443
        %v5880 = vunpack.c.l.b16 %v4444
        %v5881 = vunpack.c.h.b16 %v4444
        %v5882 = vunpack.c.l.b16 %v4445
        %v5883 = vunpack.c.h.b16 %v4445
        %v5884 = vunpack.c.l.b16 %v4446
        %v5885 = vunpack.c.h.b16 %v4446
        %v5886 = vunpack.c.l.b16 %v4447
        %v5887 = vunpack.c.h.b16 %v4447
        %v5888 = vunpack.c.l.b16 %v4448
        %v5889 = vunpack.c.h.b16 %v4448
        %v5890 = vunpack.c.l.b16 %v4449
        %v5891 = vunpack.c.h.b16 %v4449
        %v5892 = vunpack.c.l.b16 %v4450
        %v5893 = vunpack.c.h.b16 %v4450
        %v5894 = vunpack.c.l.b16 %v4451
        %v5895 = vunpack.c.h.b16 %v4451
        %v5896 = vunpack.c.l.b16 %v4452
        %v5897 = vunpack.c.h.b16 %v4452
        %v5898 = vunpack.c.l.b16 %v4453
        %v5899 = vunpack.c.h.b16 %v4453
        %v5900 = vunpack.c.l.b16 %v4454
        %v5901 = vunpack.c.h.b16 %v4454
        %v5902 = vunpack.c.l.b16 %v4455
        %v5903 = vunpack.c.h.b16 %v4455
        %v5904 = vunpack.c.l.b16 %v4456
        %v5905 = vunpack.c.h.b16 %v4456
        %v5906 = vunpack.c.l.b16 %v4457
        %v5907 = vunpack.c.h.b16 %v4457
        %v5908 = vunpack.c.l.b16 %v4458
        %v5909 = vunpack.c.h.b16 %v4458
        %v5910 = vunpack.c.l.b16 %v4459
        %v5911 = vunpack.c.h.b16 %v4459
        %v5912 = vunpack.c.l.b16 %v4460
        %v5913 = vunpack.c.h.b16 %v4460
        %v5914 = vunpack.c.l.b16 %v4461
        %v5915 = vunpack.c.h.b16 %v4461
        %v5916 = vunpack.c.l.b16 %v4462
        %v5917 = vunpack.c.h.b16 %v4462
        %v5918 = vunpack.c.l.b16 %v4463
        %v5919 = vunpack.c.h.b16 %v4463
        %v5920 = vunpack.c.l.b16 %v4464
        %v5921 = vunpack.c.h.b16 %v4464
        %v5922 = vunpack.c.l.b16 %v4465
        %v5923 = vunpack.c.h.b16 %v4465
        %v5924 = vunpack.c.l.b16 %v4466
        %v5925 = vunpack.c.h.b16 %v4466
        %v5926 = vunpack.c.l.b16 %v4467
        %v5927 = vunpack.c.h.b16 %v4467
        %v5928 = vunpack.c.l.b16 %v4468
        %v5929 = vunpack.c.h.b16 %v4468
        %v5930 = vunpack.c.l.b16 %v4469
        %v5931 = vunpack.c.h.b16 %v4469
        %v5932 = vunpack.c.l.b16 %v4470
        %v5933 = vunpack.c.h.b16 %v4470
        %v5934 = vunpack.c.l.b16 %v4471
        %v5935 = vunpack.c.h.b16 %v4471
        %v5936 = vunpack.c.l.b16 %v4472
        %v5937 = vunpack.c.h.b16 %v4472
        %v5938 = vunpack.c.l.b16 %v4473
        %v5939 = vunpack.c.h.b16 %v4473
        %v5940 = vunpack.c.l.b16 %v4474
        %v5941 = vunpack.c.h.b16 %v4474
        %v5942 = vunpack.c.l.b16 %v4475
        %v5943 = vunpack.c.h.b16 %v4475
        %v5944 = vunpack.c.l.b16 %v4476
        %v5945 = vunpack.c.h.b16 %v4476
        %v5946 = vunpack.c.l.b16 %v4477
        %v5947 = vunpack.c.h.b16 %v4477
        %v5948 = vunpack.c.l.b16 %v4478
        %v5949 = vunpack.c.h.b16 %v4478
        %v5950 = vunpack.c.l.b16 %v4479
        %v5951 = vunpack.c.h.b16 %v4479
        %v5952 = vunpack.c.l.b16 %v4480
        %v5953 = vunpack.c.h.b16 %v4480
        %v5954 = vunpack.c.l.b16 %v4481
        %v5955 = vunpack.c.h.b16 %v4481
        %v5956 = vunpack.c.l.b16 %v4482
        %v5957 = vunpack.c.h.b16 %v4482
        %v5958 = vunpack.c.l.b16 %v4483
        %v5959 = vunpack.c.h.b16 %v4483
        %v5960 = vunpack.c.l.b16 %v4484
        %v5961 = vunpack.c.h.b16 %v4484
        %v5962 = vunpack.c.l.b16 %v4485
        %v5963 = vunpack.c.h.b16 %v4485
        %v5964 = vunpack.c.l.b16 %v4486
        %v5965 = vunpack.c.h.b16 %v4486
        %v5966 = vunpack.c.l.b16 %v4487
        %v5967 = vunpack.c.h.b16 %v4487
        %v5968 = vunpack.c.l.b16 %v4488
        %v5969 = vunpack.c.h.b16 %v4488
        %v5970 = vunpack.c.l.b16 %v4489
        %v5971 = vunpack.c.h.b16 %v4489
        %v5972 = vunpack.c.l.b16 %v4490
        %v5973 = vunpack.c.h.b16 %v4490
        %v5974 = vunpack.c.l.b16 %v4491
        %v5975 = vunpack.c.h.b16 %v4491
        %v5976 = vunpack.c.l.b16 %v4492
        %v5977 = vunpack.c.h.b16 %v4492
        %v5978 = vunpack.c.l.b16 %v4493
        %v5979 = vunpack.c.h.b16 %v4493
        %v5980 = vunpack.c.l.b16 %v4494
        %v5981 = vunpack.c.h.b16 %v4494
        %v5982 = vunpack.c.l.b16 %v4495
        %v5983 = vunpack.c.h.b16 %v4495
        %v5984 = vunpack.c.l.b16 %v4496
        %v5985 = vunpack.c.h.b16 %v4496
        %v5986 = vunpack.c.l.b16 %v4497
        %v5987 = vunpack.c.h.b16 %v4497
        %v5988 = vunpack.c.l.b16 %v4498
        %v5989 = vunpack.c.h.b16 %v4498
        %v5990 = vunpack.c.l.b16 %v4499
        %v5991 = vunpack.c.h.b16 %v4499
        %v5992 = vunpack.c.l.b16 %v4500
        %v5993 = vunpack.c.h.b16 %v4500
        %v5994 = vunpack.c.l.b16 %v4501
        %v5995 = vunpack.c.h.b16 %v4501
        %v5996 = vunpack.c.l.b16 %v4502
        %v5997 = vunpack.c.h.b16 %v4502
        %v5998 = vunpack.c.l.b16 %v4503
        %v5999 = vunpack.c.h.b16 %v4503
        %v6000 = vunpack.c.l.b16 %v4504
        %v6001 = vunpack.c.h.b16 %v4504
        %v6002 = vunpack.c.l.b16 %v4505
        %v6003 = vunpack.c.h.b16 %v4505
        %v6004 = vunpack.c.l.b16 %v4506
        %v6005 = vunpack.c.h.b16 %v4506
        %v6006 = vunpack.c.l.b16 %v4507
        %v6007 = vunpack.c.h.b16 %v4507
        %v6008 = vunpack.c.l.b16 %v4508
        %v6009 = vunpack.c.h.b16 %v4508
        %v6010 = vunpack.c.l.b16 %v4509
        %v6011 = vunpack.c.h.b16 %v4509
        %v6012 = vunpack.c.l.b16 %v4510
        %v6013 = vunpack.c.h.b16 %v4510
        %v6014 = vunpack.c.l.b16 %v4511
        %v6015 = vunpack.c.h.b16 %v4511
        %v6016 = vunpack.c.l.b16 %v4512
        %v6017 = vunpack.c.h.b16 %v4512
        %v6018 = vunpack.c.l.b16 %v4513
        %v6019 = vunpack.c.h.b16 %v4513
        %v6020 = vunpack.c.l.b16 %v4514
        %v6021 = vunpack.c.h.b16 %v4514
        %v6022 = vunpack.c.l.b16 %v4515
        %v6023 = vunpack.c.h.b16 %v4515
        %v6024 = vunpack.c.l.b16 %v4516
        %v6025 = vunpack.c.h.b16 %v4516
        %v6026 = vunpack.c.l.b16 %v4517
        %v6027 = vunpack.c.h.b16 %v4517
        %v6028 = vunpack.c.l.b16 %v4518
        %v6029 = vunpack.c.h.b16 %v4518
        %v6030 = vunpack.c.l.b16 %v4519
        %v6031 = vunpack.c.h.b16 %v4519
        %v6032 = vunpack.c.l.b16 %v4520
        %v6033 = vunpack.c.h.b16 %v4520
        %v6034 = vunpack.c.l.b16 %v4521
        %v6035 = vunpack.c.h.b16 %v4521
        %v6036 = vunpack.c.l.b16 %v4522
        %v6037 = vunpack.c.h.b16 %v4522
        %v6038 = vunpack.c.l.b16 %v4523
        %v6039 = vunpack.c.h.b16 %v4523
        %v6040 = vunpack.c.l.b16 %v4524
        %v6041 = vunpack.c.h.b16 %v4524
        %v6042 = vunpack.c.l.b16 %v4525
        %v6043 = vunpack.c.h.b16 %v4525
        %v6044 = vunpack.c.l.b16 %v4526
        %v6045 = vunpack.c.h.b16 %v4526
        %v6046 = vunpack.c.l.b16 %v4527
        %v6047 = vunpack.c.h.b16 %v4527
        %v6048 = vunpack.c.l.b16 %v4528
        %v6049 = vunpack.c.h.b16 %v4528
        %v6050 = vunpack.c.l.b16 %v4529
        %v6051 = vunpack.c.h.b16 %v4529
        %v6052 = vunpack.c.l.b16 %v4530
        %v6053 = vunpack.c.h.b16 %v4530
        %v6054 = vunpack.c.l.b16 %v4531
        %v6055 = vunpack.c.h.b16 %v4531
        %v6056 = vunpack.c.l.b16 %v4532
        %v6057 = vunpack.c.h.b16 %v4532
        %v6058 = vunpack.c.l.b16 %v4533
        %v6059 = vunpack.c.h.b16 %v4533
        %v6060 = vunpack.c.l.b16 %v4534
        %v6061 = vunpack.c.h.b16 %v4534
        %v6062 = vunpack.c.l.b16 %v4535
        %v6063 = vunpack.c.h.b16 %v4535
        %v6064 = vunpack.c.l.b16 %v4536
        %v6065 = vunpack.c.h.b16 %v4536
        %v6066 = vunpack.c.l.b16 %v4537
        %v6067 = vunpack.c.h.b16 %v4537
        %v6068 = vunpack.c.l.b16 %v4538
        %v6069 = vunpack.c.h.b16 %v4538
        %v6070 = vunpack.c.l.b16 %v4539
        %v6071 = vunpack.c.h.b16 %v4539
        %v6072 = vunpack.c.l.b16 %v4540
        %v6073 = vunpack.c.h.b16 %v4540
        %v6074 = vunpack.c.l.b16 %v4541
        %v6075 = vunpack.c.h.b16 %v4541
        %v6076 = vunpack.c.l.b16 %v4542
        %v6077 = vunpack.c.h.b16 %v4542
        %v6078 = vunpack.c.l.b16 %v4543
        %v6079 = vunpack.c.h.b16 %v4543
        %v6080 = vunpack.c.l.b16 %v4544
        %v6081 = vunpack.c.h.b16 %v4544
        %v6082 = vunpack.c.l.b16 %v4545
        %v6083 = vunpack.c.h.b16 %v4545
        %v6084 = vunpack.c.l.b16 %v4546
        %v6085 = vunpack.c.h.b16 %v4546
        %v6086 = vunpack.c.l.b16 %v4547
        %v6087 = vunpack.c.h.b16 %v4547
        %v6088 = vunpack.c.l.b16 %v4548
        %v6089 = vunpack.c.h.b16 %v4548
        %v6090 = vunpack.c.l.b16 %v4549
        %v6091 = vunpack.c.h.b16 %v4549
        %v6092 = vunpack.c.l.b16 %v4550
        %v6093 = vunpack.c.h.b16 %v4550
        %v6094 = vunpack.c.l.b16 %v4551
        %v6095 = vunpack.c.h.b16 %v4551
        %v6096 = vunpack.c.l.b16 %v4552
        %v6097 = vunpack.c.h.b16 %v4552
        %v6098 = vunpack.c.l.b16 %v4553
        %v6099 = vunpack.c.h.b16 %v4553
        %v6100 = vunpack.c.l.b16 %v4554
        %v6101 = vunpack.c.h.b16 %v4554
        %v6102 = vunpack.c.l.b16 %v4555
        %v6103 = vunpack.c.h.b16 %v4555
        %v6104 = vunpack.c.l.b16 %v4556
        %v6105 = vunpack.c.h.b16 %v4556
        %v6106 = vunpack.c.l.b16 %v4557
        %v6107 = vunpack.c.h.b16 %v4557
        %v6108 = vunpack.c.l.b16 %v4558
        %v6109 = vunpack.c.h.b16 %v4558
        %v6110 = vunpack.c.l.b16 %v4559
        %v6111 = vunpack.c.h.b16 %v4559
        %v6112 = vunpack.c.l.b16 %v4560
        %v6113 = vunpack.c.h.b16 %v4560
        %v6114 = vunpack.c.l.b16 %v4561
        %v6115 = vunpack.c.h.b16 %v4561
        %v6116 = vunpack.c.l.b16 %v4562
        %v6117 = vunpack.c.h.b16 %v4562
        %v6118 = vunpack.c.l.b16 %v4563
        %v6119 = vunpack.c.h.b16 %v4563
        %v6120 = vunpack.c.l.b16 %v4564
        %v6121 = vunpack.c.h.b16 %v4564
        %v6122 = vunpack.c.l.b16 %v4565
        %v6123 = vunpack.c.h.b16 %v4565
        %v6124 = vunpack.c.l.b16 %v4566
        %v6125 = vunpack.c.h.b16 %v4566
        %v6126 = vunpack.c.l.b16 %v4567
        %v6127 = vunpack.c.h.b16 %v4567
        %v6128 = vunpack.c.l.b16 %v4568
        %v6129 = vunpack.c.h.b16 %v4568
        %v6130 = vunpack.c.l.b16 %v4569
        %v6131 = vunpack.c.h.b16 %v4569
        %v6132 = vunpack.c.l.b16 %v4570
        %v6133 = vunpack.c.h.b16 %v4570
        %v6134 = vunpack.c.l.b16 %v4571
        %v6135 = vunpack.c.h.b16 %v4571
        %v6136 = vunpack.c.l.b16 %v4572
        %v6137 = vunpack.c.h.b16 %v4572
        %v6138 = vunpack.c.l.b16 %v4573
        %v6139 = vunpack.c.h.b16 %v4573
        %v6140 = vunpack.c.l.b16 %v4574
        %v6141 = vunpack.c.h.b16 %v4574
        %v6142 = vunpack.c.l.b16 %v4575
        %v6143 = vunpack.c.h.b16 %v4575
        %v6144 = vunpack.c.l.b16 %v4576
        %v6145 = vunpack.c.h.b16 %v4576
        %v6146 = vunpack.c.l.b16 %v4577
        %v6147 = vunpack.c.h.b16 %v4577
        %v6148 = vunpack.c.l.b16 %v4578
        %v6149 = vunpack.c.h.b16 %v4578
        %v6150 = vunpack.c.l.b16 %v4579
        %v6151 = vunpack.c.h.b16 %v4579
        %v6152 = vunpack.c.l.b16 %v4580
        %v6153 = vunpack.c.h.b16 %v4580
        %v6154 = vunpack.c.l.b16 %v4581
        %v6155 = vunpack.c.h.b16 %v4581
        %v6156 = vunpack.c.l.b16 %v4582
        %v6157 = vunpack.c.h.b16 %v4582
        %v6158 = vunpack.c.l.b16 %v4583
        %v6159 = vunpack.c.h.b16 %v4583
        %v6160 = vunpack.c.l.b16 %v4584
        %v6161 = vunpack.c.h.b16 %v4584
        %v6162 = vunpack.c.l.b16 %v4585
        %v6163 = vunpack.c.h.b16 %v4585
        %v6164 = vunpack.c.l.b16 %v4586
        %v6165 = vunpack.c.h.b16 %v4586
        %v6166 = vunpack.c.l.b16 %v4587
        %v6167 = vunpack.c.h.b16 %v4587
        %v6168 = vunpack.c.l.b16 %v4588
        %v6169 = vunpack.c.h.b16 %v4588
        %v6170 = vunpack.c.l.b16 %v4589
        %v6171 = vunpack.c.h.b16 %v4589
        %v6172 = vunpack.c.l.b16 %v4590
        %v6173 = vunpack.c.h.b16 %v4590
        %v6174 = vunpack.c.l.b16 %v4591
        %v6175 = vunpack.c.h.b16 %v4591
        %v6176 = vunpack.c.l.b16 %v4592
        %v6177 = vunpack.c.h.b16 %v4592
        %v6178 = vunpack.c.l.b16 %v4593
        %v6179 = vunpack.c.h.b16 %v4593
        %v6180 = vunpack.c.l.b16 %v4594
        %v6181 = vunpack.c.h.b16 %v4594
        %v6182 = vunpack.c.l.b16 %v4595
        %v6183 = vunpack.c.h.b16 %v4595
        %v6184 = vunpack.c.l.b16 %v4596
        %v6185 = vunpack.c.h.b16 %v4596
        %v6186 = vunpack.c.l.b16 %v4597
        %v6187 = vunpack.c.h.b16 %v4597
        %v6188 = vunpack.c.l.b16 %v4598
        %v6189 = vunpack.c.h.b16 %v4598
        %v6190 = vunpack.c.l.b16 %v4599
        %v6191 = vunpack.c.h.b16 %v4599
        %v6192 = vunpack.c.l.b16 %v4600
        %v6193 = vunpack.c.h.b16 %v4600
        %v6194 = vunpack.c.l.b16 %v4601
        %v6195 = vunpack.c.h.b16 %v4601
        %v6196 = vunpack.c.l.b16 %v4602
        %v6197 = vunpack.c.h.b16 %v4602
        %v6198 = vunpack.c.l.b16 %v4603
        %v6199 = vunpack.c.h.b16 %v4603
        %v6200 = vunpack.c.l.b16 %v4604
        %v6201 = vunpack.c.h.b16 %v4604
        %v6202 = vunpack.c.l.b16 %v4605
        %v6203 = vunpack.c.h.b16 %v4605
        %v6204 = vunpack.c.l.b16 %v4606
        %v6205 = vunpack.c.h.b16 %v4606
        %v6206 = vunpack.c.l.b16 %v4607
        %v6207 = vunpack.c.h.b16 %v4607
        %v6208 = vunpack.c.l.b16 %v4608
        %v6209 = vunpack.c.h.b16 %v4608
        %v6210 = vunpack.c.l.b16 %v4609
        %v6211 = vunpack.c.h.b16 %v4609
        %v6212 = vunpack.c.l.b16 %v4610
        %v6213 = vunpack.c.h.b16 %v4610
        %v6214 = vunpack.c.l.b16 %v4611
        %v6215 = vunpack.c.h.b16 %v4611
        %v6216 = vunpack.c.l.b16 %v4612
        %v6217 = vunpack.c.h.b16 %v4612
        %v6218 = vunpack.c.l.b16 %v4613
        %v6219 = vunpack.c.h.b16 %v4613
        %v6220 = vunpack.c.l.b16 %v4614
        %v6221 = vunpack.c.h.b16 %v4614
        %v6222 = vunpack.c.l.b16 %v4615
        %v6223 = vunpack.c.h.b16 %v4615
        %v6224 = vunpack.c.l.b16 %v4616
        %v6225 = vunpack.c.h.b16 %v4616
        %v6226 = vunpack.c.l.b16 %v4617
        %v6227 = vunpack.c.h.b16 %v4617
        %v6228 = vunpack.c.l.b16 %v4618
        %v6229 = vunpack.c.h.b16 %v4618
        %v6230 = vunpack.c.l.b16 %v4619
        %v6231 = vunpack.c.h.b16 %v4619
        %v6232 = vunpack.c.l.b16 %v4620
        %v6233 = vunpack.c.h.b16 %v4620
        %v6234 = vunpack.c.l.b16 %v4621
        %v6235 = vunpack.c.h.b16 %v4621
        %v6236 = vunpack.c.l.b16 %v4622
        %v6237 = vunpack.c.h.b16 %v4622
        %v6238 = vunpack.c.l.b16 %v4623
        %v6239 = vunpack.c.h.b16 %v4623
        %v6240 = vunpack.c.l.b16 %v4624
        %v6241 = vunpack.c.h.b16 %v4624
        %v6242 = vunpack.c.l.b16 %v4625
        %v6243 = vunpack.c.h.b16 %v4625
        %v6244 = vunpack.c.l.b16 %v4626
        %v6245 = vunpack.c.h.b16 %v4626
        %v6246 = vunpack.c.l.b16 %v4627
        %v6247 = vunpack.c.h.b16 %v4627
        %v6248 = vunpack.c.l.b16 %v4628
        %v6249 = vunpack.c.h.b16 %v4628
        %v6250 = vunpack.c.l.b16 %v4629
        %v6251 = vunpack.c.h.b16 %v4629
        %v6252 = vunpack.c.l.b16 %v4630
        %v6253 = vunpack.c.h.b16 %v4630
        %v6254 = vunpack.c.l.b16 %v4631
        %v6255 = vunpack.c.h.b16 %v4631
        %v6256 = vunpack.c.l.b16 %v4632
        %v6257 = vunpack.c.h.b16 %v4632
        %v6258 = vunpack.c.l.b16 %v4633
        %v6259 = vunpack.c.h.b16 %v4633
        %v6260 = vunpack.c.l.b16 %v4634
        %v6261 = vunpack.c.h.b16 %v4634
        %v6262 = vunpack.c.l.b16 %v4635
        %v6263 = vunpack.c.h.b16 %v4635
        %v6264 = vunpack.c.l.b16 %v4636
        %v6265 = vunpack.c.h.b16 %v4636
        %v6266 = vunpack.c.l.b16 %v4637
        %v6267 = vunpack.c.h.b16 %v4637
        %v6268 = vunpack.c.l.b16 %v4638
        %v6269 = vunpack.c.h.b16 %v4638
        %v6270 = vunpack.c.l.b16 %v4639
        %v6271 = vunpack.c.h.b16 %v4639
        %v6272 = vunpack.c.l.b16 %v4640
        %v6273 = vunpack.c.h.b16 %v4640
        %v6274 = vunpack.c.l.b16 %v4641
        %v6275 = vunpack.c.h.b16 %v4641
        %v6276 = vunpack.c.l.b16 %v4642
        %v6277 = vunpack.c.h.b16 %v4642
        %v6278 = vunpack.c.l.b16 %v4643
        %v6279 = vunpack.c.h.b16 %v4643
        %v6280 = vpack.c.b16 %v5264, %v5256
        %v6281 = vpack.c.b16 %v5265, %v5257
        %v6282 = vpack.c.b16 %v5266, %v5258
        %v6283 = vpack.c.b16 %v5267, %v5259
        %v6284 = vpack.c.b16 %v5268, %v5260
        %v6285 = vpack.c.b16 %v5269, %v5261
        %v6286 = vpack.c.b16 %v5270, %v5262
        %v6287 = vpack.c.b16 %v5271, %v5263
        %v6288 = vpack.c.b16 %v5280, %v5272
        %v6289 = vpack.c.b16 %v5281, %v5273
        %v6290 = vpack.c.b16 %v5282, %v5274
        %v6291 = vpack.c.b16 %v5283, %v5275
        %v6292 = vpack.c.b16 %v5284, %v5276
        %v6293 = vpack.c.b16 %v5285, %v5277
        %v6294 = vpack.c.b16 %v5286, %v5278
        %v6295 = vpack.c.b16 %v5287, %v5279
        %v6296 = vpack.c.b16 %v5296, %v5288
        %v6297 = vpack.c.b16 %v5297, %v5289
        %v6298 = vpack.c.b16 %v5298, %v5290
        %v6299 = vpack.c.b16 %v5299, %v5291
        %v6300 = vpack.c.b16 %v5300, %v5292
        %v6301 = vpack.c.b16 %v5301, %v5293
        %v6302 = vpack.c.b16 %v5302, %v5294
        %v6303 = vpack.c.b16 %v5303, %v5295
        %v6304 = vpack.c.b16 %v5312, %v5304
        %v6305 = vpack.c.b16 %v5313, %v5305
        %v6306 = vpack.c.b16 %v5314, %v5306
        %v6307 = vpack.c.b16 %v5315, %v5307
        %v6308 = vpack.c.b16 %v5316, %v5308
        %v6309 = vpack.c.b16 %v5317, %v5309
        %v6310 = vpack.c.b16 %v5318, %v5310
        %v6311 = vpack.c.b16 %v5319, %v5311
        %v6312 = vpack.c.b16 %v5328, %v5320
        %v6313 = vpack.c.b16 %v5329, %v5321
        %v6314 = vpack.c.b16 %v5330, %v5322
        %v6315 = vpack.c.b16 %v5331, %v5323
        %v6316 = vpack.c.b16 %v5332, %v5324
        %v6317 = vpack.c.b16 %v5333, %v5325
        %v6318 = vpack.c.b16 %v5334, %v5326
        %v6319 = vpack.c.b16 %v5335, %v5327
        %v6320 = vpack.c.b16 %v5344, %v5336
        %v6321 = vpack.c.b16 %v5345, %v5337
        %v6322 = vpack.c.b16 %v5346, %v5338
        %v6323 = vpack.c.b16 %v5347, %v5339
        %v6324 = vpack.c.b16 %v5348, %v5340
        %v6325 = vpack.c.b16 %v5349, %v5341
        %v6326 = vpack.c.b16 %v5350, %v5342
        %v6327 = vpack.c.b16 %v5351, %v5343
        %v6328 = vpack.c.b16 %v5360, %v5352
        %v6329 = vpack.c.b16 %v5361, %v5353
        %v6330 = vpack.c.b16 %v5362, %v5354
        %v6331 = vpack.c.b16 %v5363, %v5355
        %v6332 = vpack.c.b16 %v5364, %v5356
        %v6333 = vpack.c.b16 %v5365, %v5357
        %v6334 = vpack.c.b16 %v5366, %v5358
        %v6335 = vpack.c.b16 %v5367, %v5359
        %v6336 = vpack.c.b16 %v5376, %v5368
        %v6337 = vpack.c.b16 %v5377, %v5369
        %v6338 = vpack.c.b16 %v5378, %v5370
        %v6339 = vpack.c.b16 %v5379, %v5371
        %v6340 = vpack.c.b16 %v5380, %v5372
        %v6341 = vpack.c.b16 %v5381, %v5373
        %v6342 = vpack.c.b16 %v5382, %v5374
        %v6343 = vpack.c.b16 %v5383, %v5375
        %v6344 = vpack.c.b16 %v5392, %v5384
        %v6345 = vpack.c.b16 %v5393, %v5385
        %v6346 = vpack.c.b16 %v5394, %v5386
        %v6347 = vpack.c.b16 %v5395, %v5387
        %v6348 = vpack.c.b16 %v5396, %v5388
        %v6349 = vpack.c.b16 %v5397, %v5389
        %v6350 = vpack.c.b16 %v5398, %v5390
        %v6351 = vpack.c.b16 %v5399, %v5391
        %v6352 = vpack.c.b16 %v5408, %v5400
        %v6353 = vpack.c.b16 %v5409, %v5401
        %v6354 = vpack.c.b16 %v5410, %v5402
        %v6355 = vpack.c.b16 %v5411, %v5403
        %v6356 = vpack.c.b16 %v5412, %v5404
        %v6357 = vpack.c.b16 %v5413, %v5405
        %v6358 = vpack.c.b16 %v5414, %v5406
        %v6359 = vpack.c.b16 %v5415, %v5407
        %v6360 = vpack.c.b16 %v5424, %v5416
        %v6361 = vpack.c.b16 %v5425, %v5417
        %v6362 = vpack.c.b16 %v5426, %v5418
        %v6363 = vpack.c.b16 %v5427, %v5419
        %v6364 = vpack.c.b16 %v5428, %v5420
        %v6365 = vpack.c.b16 %v5429, %v5421
        %v6366 = vpack.c.b16 %v5430, %v5422
        %v6367 = vpack.c.b16 %v5431, %v5423
        %v6368 = vpack.c.b16 %v5440, %v5432
        %v6369 = vpack.c.b16 %v5441, %v5433
        %v6370 = vpack.c.b16 %v5442, %v5434
        %v6371 = vpack.c.b16 %v5443, %v5435
        %v6372 = vpack.c.b16 %v5444, %v5436
        %v6373 = vpack.c.b16 %v5445, %v5437
        %v6374 = vpack.c.b16 %v5446, %v5438
        %v6375 = vpack.c.b16 %v5447, %v5439
        %v6376 = vpack.c.b16 %v5456, %v5448
        %v6377 = vpack.c.b16 %v5457, %v5449
        %v6378 = vpack.c.b16 %v5458, %v5450
        %v6379 = vpack.c.b16 %v5459, %v5451
        %v6380 = vpack.c.b16 %v5460, %v5452
        %v6381 = vpack.c.b16 %v5461, %v5453
        %v6382 = vpack.c.b16 %v5462, %v5454
        %v6383 = vpack.c.b16 %v5463, %v5455
        %v6384 = vpack.c.b16 %v5472, %v5464
        %v6385 = vpack.c.b16 %v5473, %v5465
        %v6386 = vpack.c.b16 %v5474, %v5466
        %v6387 = vpack.c.b16 %v5475, %v5467
        %v6388 = vpack.c.b16 %v5476, %v5468
        %v6389 = vpack.c.b16 %v5477, %v5469
        %v6390 = vpack.c.b16 %v5478, %v5470
        %v6391 = vpack.c.b16 %v5479, %v5471
        %v6392 = vpack.c.b16 %v5488, %v5480
        %v6393 = vpack.c.b16 %v5489, %v5481
        %v6394 = vpack.c.b16 %v5490, %v5482
        %v6395 = vpack.c.b16 %v5491, %v5483
        %v6396 = vpack.c.b16 %v5492, %v5484
        %v6397 = vpack.c.b16 %v5493, %v5485
        %v6398 = vpack.c.b16 %v5494, %v5486
        %v6399 = vpack.c.b16 %v5495, %v5487
        %v6400 = vpack.c.b16 %v5504, %v5496
        %v6401 = vpack.c.b16 %v5505, %v5497
        %v6402 = vpack.c.b16 %v5506, %v5498
        %v6403 = vpack.c.b16 %v5507, %v5499
        %v6404 = vpack.c.b16 %v5508, %v5500
        %v6405 = vpack.c.b16 %v5509, %v5501
        %v6406 = vpack.c.b16 %v5510, %v5502
        %v6407 = vpack.c.b16 %v5511, %v5503
        %v6408 = vpack.c.b16 %v5520, %v5512
        %v6409 = vpack.c.b16 %v5521, %v5513
        %v6410 = vpack.c.b16 %v5522, %v5514
        %v6411 = vpack.c.b16 %v5523, %v5515
        %v6412 = vpack.c.b16 %v5524, %v5516
        %v6413 = vpack.c.b16 %v5525, %v5517
        %v6414 = vpack.c.b16 %v5526, %v5518
        %v6415 = vpack.c.b16 %v5527, %v5519
        %v6416 = vpack.c.b16 %v5536, %v5528
        %v6417 = vpack.c.b16 %v5537, %v5529
        %v6418 = vpack.c.b16 %v5538, %v5530
        %v6419 = vpack.c.b16 %v5539, %v5531
        %v6420 = vpack.c.b16 %v5540, %v5532
        %v6421 = vpack.c.b16 %v5541, %v5533
        %v6422 = vpack.c.b16 %v5542, %v5534
        %v6423 = vpack.c.b16 %v5543, %v5535
        %v6424 = vpack.c.b16 %v5552, %v5544
        %v6425 = vpack.c.b16 %v5553, %v5545
        %v6426 = vpack.c.b16 %v5554, %v5546
        %v6427 = vpack.c.b16 %v5555, %v5547
        %v6428 = vpack.c.b16 %v5556, %v5548
        %v6429 = vpack.c.b16 %v5557, %v5549
        %v6430 = vpack.c.b16 %v5558, %v5550
        %v6431 = vpack.c.b16 %v5559, %v5551
        %v6432 = vpack.c.b16 %v5568, %v5560
        %v6433 = vpack.c.b16 %v5569, %v5561
        %v6434 = vpack.c.b16 %v5570, %v5562
        %v6435 = vpack.c.b16 %v5571, %v5563
        %v6436 = vpack.c.b16 %v5572, %v5564
        %v6437 = vpack.c.b16 %v5573, %v5565
        %v6438 = vpack.c.b16 %v5574, %v5566
        %v6439 = vpack.c.b16 %v5575, %v5567
        %v6440 = vpack.c.b16 %v5584, %v5576
        %v6441 = vpack.c.b16 %v5585, %v5577
        %v6442 = vpack.c.b16 %v5586, %v5578
        %v6443 = vpack.c.b16 %v5587, %v5579
        %v6444 = vpack.c.b16 %v5588, %v5580
        %v6445 = vpack.c.b16 %v5589, %v5581
        %v6446 = vpack.c.b16 %v5590, %v5582
        %v6447 = vpack.c.b16 %v5591, %v5583
        %v6448 = vpack.c.b16 %v5600, %v5592
        %v6449 = vpack.c.b16 %v5601, %v5593
        %v6450 = vpack.c.b16 %v5602, %v5594
        %v6451 = vpack.c.b16 %v5603, %v5595
        %v6452 = vpack.c.b16 %v5604, %v5596
        %v6453 = vpack.c.b16 %v5605, %v5597
        %v6454 = vpack.c.b16 %v5606, %v5598
        %v6455 = vpack.c.b16 %v5607, %v5599
        %v6456 = vpack.c.b16 %v5616, %v5608
        %v6457 = vpack.c.b16 %v5617, %v5609
        %v6458 = vpack.c.b16 %v5618, %v5610
        %v6459 = vpack.c.b16 %v5619, %v5611
        %v6460 = vpack.c.b16 %v5620, %v5612
        %v6461 = vpack.c.b16 %v5621, %v5613
        %v6462 = vpack.c.b16 %v5622, %v5614
        %v6463 = vpack.c.b16 %v5623, %v5615
        %v6464 = vpack.c.b16 %v5632, %v5624
        %v6465 = vpack.c.b16 %v5633, %v5625
        %v6466 = vpack.c.b16 %v5634, %v5626
        %v6467 = vpack.c.b16 %v5635, %v5627
        %v6468 = vpack.c.b16 %v5636, %v5628
        %v6469 = vpack.c.b16 %v5637, %v5629
        %v6470 = vpack.c.b16 %v5638, %v5630
        %v6471 = vpack.c.b16 %v5639, %v5631
        %v6472 = vpack.c.b16 %v5648, %v5640
        %v6473 = vpack.c.b16 %v5649, %v5641
        %v6474 = vpack.c.b16 %v5650, %v5642
        %v6475 = vpack.c.b16 %v5651, %v5643
        %v6476 = vpack.c.b16 %v5652, %v5644
        %v6477 = vpack.c.b16 %v5653, %v5645
        %v6478 = vpack.c.b16 %v5654, %v5646
        %v6479 = vpack.c.b16 %v5655, %v5647
        %v6480 = vpack.c.b16 %v5664, %v5656
        %v6481 = vpack.c.b16 %v5665, %v5657
        %v6482 = vpack.c.b16 %v5666, %v5658
        %v6483 = vpack.c.b16 %v5667, %v5659
        %v6484 = vpack.c.b16 %v5668, %v5660
        %v6485 = vpack.c.b16 %v5669, %v5661
        %v6486 = vpack.c.b16 %v5670, %v5662
        %v6487 = vpack.c.b16 %v5671, %v5663
        %v6488 = vpack.c.b16 %v5680, %v5672
        %v6489 = vpack.c.b16 %v5681, %v5673
        %v6490 = vpack.c.b16 %v5682, %v5674
        %v6491 = vpack.c.b16 %v5683, %v5675
        %v6492 = vpack.c.b16 %v5684, %v5676
        %v6493 = vpack.c.b16 %v5685, %v5677
        %v6494 = vpack.c.b16 %v5686, %v5678
        %v6495 = vpack.c.b16 %v5687, %v5679
        %v6496 = vpack.c.b16 %v5696, %v5688
        %v6497 = vpack.c.b16 %v5697, %v5689
        %v6498 = vpack.c.b16 %v5698, %v5690
        %v6499 = vpack.c.b16 %v5699, %v5691
        %v6500 = vpack.c.b16 %v5700, %v5692
        %v6501 = vpack.c.b16 %v5701, %v5693
        %v6502 = vpack.c.b16 %v5702, %v5694
        %v6503 = vpack.c.b16 %v5703, %v5695
        %v6504 = vpack.c.b16 %v5712, %v5704
        %v6505 = vpack.c.b16 %v5713, %v5705
        %v6506 = vpack.c.b16 %v5714, %v5706
        %v6507 = vpack.c.b16 %v5715, %v5707
        %v6508 = vpack.c.b16 %v5716, %v5708
        %v6509 = vpack.c.b16 %v5717, %v5709
        %v6510 = vpack.c.b16 %v5718, %v5710
        %v6511 = vpack.c.b16 %v5719, %v5711
        %v6512 = vpack.c.b16 %v5728, %v5720
        %v6513 = vpack.c.b16 %v5729, %v5721
        %v6514 = vpack.c.b16 %v5730, %v5722
        %v6515 = vpack.c.b16 %v5731, %v5723
        %v6516 = vpack.c.b16 %v5732, %v5724
        %v6517 = vpack.c.b16 %v5733, %v5725
        %v6518 = vpack.c.b16 %v5734, %v5726
        %v6519 = vpack.c.b16 %v5735, %v5727
        %v6520 = vpack.c.b16 %v5744, %v5736
        %v6521 = vpack.c.b16 %v5745, %v5737
        %v6522 = vpack.c.b16 %v5746, %v5738
        %v6523 = vpack.c.b16 %v5747, %v5739
        %v6524 = vpack.c.b16 %v5748, %v5740
        %v6525 = vpack.c.b16 %v5749, %v5741
        %v6526 = vpack.c.b16 %v5750, %v5742
        %v6527 = vpack.c.b16 %v5751, %v5743
        %v6528 = vpack.c.b16 %v5760, %v5752
        %v6529 = vpack.c.b16 %v5761, %v5753
        %v6530 = vpack.c.b16 %v5762, %v5754
        %v6531 = vpack.c.b16 %v5763, %v5755
        %v6532 = vpack.c.b16 %v5764, %v5756
        %v6533 = vpack.c.b16 %v5765, %v5757
        %v6534 = vpack.c.b16 %v5766, %v5758
        %v6535 = vpack.c.b16 %v5767, %v5759
        %v6536 = vpack.c.b16 %v5776, %v5768
        %v6537 = vpack.c.b16 %v5777, %v5769
        %v6538 = vpack.c.b16 %v5778, %v5770
        %v6539 = vpack.c.b16 %v5779, %v5771
        %v6540 = vpack.c.b16 %v5780, %v5772
        %v6541 = vpack.c.b16 %v5781, %v5773
        %v6542 = vpack.c.b16 %v5782, %v5774
        %v6543 = vpack.c.b16 %v5783, %v5775
        %v6544 = vpack.c.b16 %v5792, %v5784
        %v6545 = vpack.c.b16 %v5793, %v5785
        %v6546 = vpack.c.b16 %v5794, %v5786
        %v6547 = vpack.c.b16 %v5795, %v5787
        %v6548 = vpack.c.b16 %v5796, %v5788
        %v6549 = vpack.c.b16 %v5797, %v5789
        %v6550 = vpack.c.b16 %v5798, %v5790
        %v6551 = vpack.c.b16 %v5799, %v5791
        %v6552 = vpack.c.b16 %v5808, %v5800
        %v6553 = vpack.c.b16 %v5809, %v5801
        %v6554 = vpack.c.b16 %v5810, %v5802
        %v6555 = vpack.c.b16 %v5811, %v5803
        %v6556 = vpack.c.b16 %v5812, %v5804
        %v6557 = vpack.c.b16 %v5813, %v5805
        %v6558 = vpack.c.b16 %v5814, %v5806
        %v6559 = vpack.c.b16 %v5815, %v5807
        %v6560 = vpack.c.b16 %v5824, %v5816
        %v6561 = vpack.c.b16 %v5825, %v5817
        %v6562 = vpack.c.b16 %v5826, %v5818
        %v6563 = vpack.c.b16 %v5827, %v5819
        %v6564 = vpack.c.b16 %v5828, %v5820
        %v6565 = vpack.c.b16 %v5829, %v5821
        %v6566 = vpack.c.b16 %v5830, %v5822
        %v6567 = vpack.c.b16 %v5831, %v5823
        %v6568 = vpack.c.b16 %v5840, %v5832
        %v6569 = vpack.c.b16 %v5841, %v5833
        %v6570 = vpack.c.b16 %v5842, %v5834
        %v6571 = vpack.c.b16 %v5843, %v5835
        %v6572 = vpack.c.b16 %v5844, %v5836
        %v6573 = vpack.c.b16 %v5845, %v5837
        %v6574 = vpack.c.b16 %v5846, %v5838
        %v6575 = vpack.c.b16 %v5847, %v5839
        %v6576 = vpack.c.b16 %v5856, %v5848
        %v6577 = vpack.c.b16 %v5857, %v5849
        %v6578 = vpack.c.b16 %v5858, %v5850
        %v6579 = vpack.c.b16 %v5859, %v5851
        %v6580 = vpack.c.b16 %v5860, %v5852
        %v6581 = vpack.c.b16 %v5861, %v5853
        %v6582 = vpack.c.b16 %v5862, %v5854
        %v6583 = vpack.c.b16 %v5863, %v5855
        %v6584 = vpack.c.b16 %v5872, %v5864
        %v6585 = vpack.c.b16 %v5873, %v5865
        %v6586 = vpack.c.b16 %v5874, %v5866
        %v6587 = vpack.c.b16 %v5875, %v5867
        %v6588 = vpack.c.b16 %v5876, %v5868
        %v6589 = vpack.c.b16 %v5877, %v5869
        %v6590 = vpack.c.b16 %v5878, %v5870
        %v6591 = vpack.c.b16 %v5879, %v5871
        %v6592 = vpack.c.b16 %v5888, %v5880
        %v6593 = vpack.c.b16 %v5889, %v5881
        %v6594 = vpack.c.b16 %v5890, %v5882
        %v6595 = vpack.c.b16 %v5891, %v5883
        %v6596 = vpack.c.b16 %v5892, %v5884
        %v6597 = vpack.c.b16 %v5893, %v5885
        %v6598 = vpack.c.b16 %v5894, %v5886
        %v6599 = vpack.c.b16 %v5895, %v5887
        %v6600 = vpack.c.b16 %v5904, %v5896
        %v6601 = vpack.c.b16 %v5905, %v5897
        %v6602 = vpack.c.b16 %v5906, %v5898
        %v6603 = vpack.c.b16 %v5907, %v5899
        %v6604 = vpack.c.b16 %v5908, %v5900
        %v6605 = vpack.c.b16 %v5909, %v5901
        %v6606 = vpack.c.b16 %v5910, %v5902
        %v6607 = vpack.c.b16 %v5911, %v5903
        %v6608 = vpack.c.b16 %v5920, %v5912
        %v6609 = vpack.c.b16 %v5921, %v5913
        %v6610 = vpack.c.b16 %v5922, %v5914
        %v6611 = vpack.c.b16 %v5923, %v5915
        %v6612 = vpack.c.b16 %v5924, %v5916
        %v6613 = vpack.c.b16 %v5925, %v5917
        %v6614 = vpack.c.b16 %v5926, %v5918
        %v6615 = vpack.c.b16 %v5927, %v5919
        %v6616 = vpack.c.b16 %v5936, %v5928
        %v6617 = vpack.c.b16 %v5937, %v5929
        %v6618 = vpack.c.b16 %v5938, %v5930
        %v6619 = vpack.c.b16 %v5939, %v5931
        %v6620 = vpack.c.b16 %v5940, %v5932
        %v6621 = vpack.c.b16 %v5941, %v5933
        %v6622 = vpack.c.b16 %v5942, %v5934
        %v6623 = vpack.c.b16 %v5943, %v5935
        %v6624 = vpack.c.b16 %v5952, %v5944
        %v6625 = vpack.c.b16 %v5953, %v5945
        %v6626 = vpack.c.b16 %v5954, %v5946
        %v6627 = vpack.c.b16 %v5955, %v5947
        %v6628 = vpack.c.b16 %v5956, %v5948
        %v6629 = vpack.c.b16 %v5957, %v5949
        %v6630 = vpack.c.b16 %v5958, %v5950
        %v6631 = vpack.c.b16 %v5959, %v5951
        %v6632 = vpack.c.b16 %v5968, %v5960
        %v6633 = vpack.c.b16 %v5969, %v5961
        %v6634 = vpack.c.b16 %v5970, %v5962
        %v6635 = vpack.c.b16 %v5971, %v5963
        %v6636 = vpack.c.b16 %v5972, %v5964
        %v6637 = vpack.c.b16 %v5973, %v5965
        %v6638 = vpack.c.b16 %v5974, %v5966
        %v6639 = vpack.c.b16 %v5975, %v5967
        %v6640 = vpack.c.b16 %v5984, %v5976
        %v6641 = vpack.c.b16 %v5985, %v5977
        %v6642 = vpack.c.b16 %v5986, %v5978
        %v6643 = vpack.c.b16 %v5987, %v5979
        %v6644 = vpack.c.b16 %v5988, %v5980
        %v6645 = vpack.c.b16 %v5989, %v5981
        %v6646 = vpack.c.b16 %v5990, %v5982
        %v6647 = vpack.c.b16 %v5991, %v5983
        %v6648 = vpack.c.b16 %v6000, %v5992
        %v6649 = vpack.c.b16 %v6001, %v5993
        %v6650 = vpack.c.b16 %v6002, %v5994
        %v6651 = vpack.c.b16 %v6003, %v5995
        %v6652 = vpack.c.b16 %v6004, %v5996
        %v6653 = vpack.c.b16 %v6005, %v5997
        %v6654 = vpack.c.b16 %v6006, %v5998
        %v6655 = vpack.c.b16 %v6007, %v5999
        %v6656 = vpack.c.b16 %v6016, %v6008
        %v6657 = vpack.c.b16 %v6017, %v6009
        %v6658 = vpack.c.b16 %v6018, %v6010
        %v6659 = vpack.c.b16 %v6019, %v6011
        %v6660 = vpack.c.b16 %v6020, %v6012
        %v6661 = vpack.c.b16 %v6021, %v6013
        %v6662 = vpack.c.b16 %v6022, %v6014
        %v6663 = vpack.c.b16 %v6023, %v6015
        %v6664 = vpack.c.b16 %v6032, %v6024
        %v6665 = vpack.c.b16 %v6033, %v6025
        %v6666 = vpack.c.b16 %v6034, %v6026
        %v6667 = vpack.c.b16 %v6035, %v6027
        %v6668 = vpack.c.b16 %v6036, %v6028
        %v6669 = vpack.c.b16 %v6037, %v6029
        %v6670 = vpack.c.b16 %v6038, %v6030
        %v6671 = vpack.c.b16 %v6039, %v6031
        %v6672 = vpack.c.b16 %v6048, %v6040
        %v6673 = vpack.c.b16 %v6049, %v6041
        %v6674 = vpack.c.b16 %v6050, %v6042
        %v6675 = vpack.c.b16 %v6051, %v6043
        %v6676 = vpack.c.b16 %v6052, %v6044
        %v6677 = vpack.c.b16 %v6053, %v6045
        %v6678 = vpack.c.b16 %v6054, %v6046
        %v6679 = vpack.c.b16 %v6055, %v6047
        %v6680 = vpack.c.b16 %v6064, %v6056
        %v6681 = vpack.c.b16 %v6065, %v6057
        %v6682 = vpack.c.b16 %v6066, %v6058
        %v6683 = vpack.c.b16 %v6067, %v6059
        %v6684 = vpack.c.b16 %v6068, %v6060
        %v6685 = vpack.c.b16 %v6069, %v6061
        %v6686 = vpack.c.b16 %v6070, %v6062
        %v6687 = vpack.c.b16 %v6071, %v6063
        %v6688 = vpack.c.b16 %v6080, %v6072
        %v6689 = vpack.c.b16 %v6081, %v6073
        %v6690 = vpack.c.b16 %v6082, %v6074
        %v6691 = vpack.c.b16 %v6083, %v6075
        %v6692 = vpack.c.b16 %v6084, %v6076
        %v6693 = vpack.c.b16 %v6085, %v6077
        %v6694 = vpack.c.b16 %v6086, %v6078
        %v6695 = vpack.c.b16 %v6087, %v6079
        %v6696 = vpack.c.b16 %v6096, %v6088
        %v6697 = vpack.c.b16 %v6097, %v6089
        %v6698 = vpack.c.b16 %v6098, %v6090
        %v6699 = vpack.c.b16 %v6099, %v6091
        %v6700 = vpack.c.b16 %v6100, %v6092
        %v6701 = vpack.c.b16 %v6101, %v6093
        %v6702 = vpack.c.b16 %v6102, %v6094
        %v6703 = vpack.c.b16 %v6103, %v6095
        %v6704 = vpack.c.b16 %v6112, %v6104
        %v6705 = vpack.c.b16 %v6113, %v6105
        %v6706 = vpack.c.b16 %v6114, %v6106
        %v6707 = vpack.c.b16 %v6115, %v6107
        %v6708 = vpack.c.b16 %v6116, %v6108
        %v6709 = vpack.c.b16 %v6117, %v6109
        %v6710 = vpack.c.b16 %v6118, %v6110
        %v6711 = vpack.c.b16 %v6119, %v6111
        %v6712 = vpack.c.b16 %v6128, %v6120
        %v6713 = vpack.c.b16 %v6129, %v6121
        %v6714 = vpack.c.b16 %v6130, %v6122
        %v6715 = vpack.c.b16 %v6131, %v6123
        %v6716 = vpack.c.b16 %v6132, %v6124
        %v6717 = vpack.c.b16 %v6133, %v6125
        %v6718 = vpack.c.b16 %v6134, %v6126
        %v6719 = vpack.c.b16 %v6135, %v6127
        %v6720 = vpack.c.b16 %v6144, %v6136
        %v6721 = vpack.c.b16 %v6145, %v6137
        %v6722 = vpack.c.b16 %v6146, %v6138
        %v6723 = vpack.c.b16 %v6147, %v6139
        %v6724 = vpack.c.b16 %v6148, %v6140
        %v6725 = vpack.c.b16 %v6149, %v6141
        %v6726 = vpack.c.b16 %v6150, %v6142
        %v6727 = vpack.c.b16 %v6151, %v6143
        %v6728 = vpack.c.b16 %v6160, %v6152
        %v6729 = vpack.c.b16 %v6161, %v6153
        %v6730 = vpack.c.b16 %v6162, %v6154
        %v6731 = vpack.c.b16 %v6163, %v6155
        %v6732 = vpack.c.b16 %v6164, %v6156
        %v6733 = vpack.c.b16 %v6165, %v6157
        %v6734 = vpack.c.b16 %v6166, %v6158
        %v6735 = vpack.c.b16 %v6167, %v6159
        %v6736 = vpack.c.b16 %v6176, %v6168
        %v6737 = vpack.c.b16 %v6177, %v6169
        %v6738 = vpack.c.b16 %v6178, %v6170
        %v6739 = vpack.c.b16 %v6179, %v6171
        %v6740 = vpack.c.b16 %v6180, %v6172
        %v6741 = vpack.c.b16 %v6181, %v6173
        %v6742 = vpack.c.b16 %v6182, %v6174
        %v6743 = vpack.c.b16 %v6183, %v6175
        %v6744 = vpack.c.b16 %v6192, %v6184
        %v6745 = vpack.c.b16 %v6193, %v6185
        %v6746 = vpack.c.b16 %v6194, %v6186
        %v6747 = vpack.c.b16 %v6195, %v6187
        %v6748 = vpack.c.b16 %v6196, %v6188
        %v6749 = vpack.c.b16 %v6197, %v6189
        %v6750 = vpack.c.b16 %v6198, %v6190
        %v6751 = vpack.c.b16 %v6199, %v6191
        %v6752 = vpack.c.b16 %v6208, %v6200
        %v6753 = vpack.c.b16 %v6209, %v6201
        %v6754 = vpack.c.b16 %v6210, %v6202
        %v6755 = vpack.c.b16 %v6211, %v6203
        %v6756 = vpack.c.b16 %v6212, %v6204
        %v6757 = vpack.c.b16 %v6213, %v6205
        %v6758 = vpack.c.b16 %v6214, %v6206
        %v6759 = vpack.c.b16 %v6215, %v6207
        %v6760 = vpack.c.b16 %v6224, %v6216
        %v6761 = vpack.c.b16 %v6225, %v6217
        %v6762 = vpack.c.b16 %v6226, %v6218
        %v6763 = vpack.c.b16 %v6227, %v6219
        %v6764 = vpack.c.b16 %v6228, %v6220
        %v6765 = vpack.c.b16 %v6229, %v6221
        %v6766 = vpack.c.b16 %v6230, %v6222
        %v6767 = vpack.c.b16 %v6231, %v6223
        %v6768 = vpack.c.b16 %v6240, %v6232
        %v6769 = vpack.c.b16 %v6241, %v6233
        %v6770 = vpack.c.b16 %v6242, %v6234
        %v6771 = vpack.c.b16 %v6243, %v6235
        %v6772 = vpack.c.b16 %v6244, %v6236
        %v6773 = vpack.c.b16 %v6245, %v6237
        %v6774 = vpack.c.b16 %v6246, %v6238
        %v6775 = vpack.c.b16 %v6247, %v6239
        %v6776 = vpack.c.b16 %v6256, %v6248
        %v6777 = vpack.c.b16 %v6257, %v6249
        %v6778 = vpack.c.b16 %v6258, %v6250
        %v6779 = vpack.c.b16 %v6259, %v6251
        %v6780 = vpack.c.b16 %v6260, %v6252
        %v6781 = vpack.c.b16 %v6261, %v6253
        %v6782 = vpack.c.b16 %v6262, %v6254
        %v6783 = vpack.c.b16 %v6263, %v6255
        %v6784 = vpack.c.b16 %v6272, %v6264
        %v6785 = vpack.c.b16 %v6273, %v6265
        %v6786 = vpack.c.b16 %v6274, %v6266
        %v6787 = vpack.c.b16 %v6275, %v6267
        %v6788 = vpack.c.b16 %v6276, %v6268
        %v6789 = vpack.c.b16 %v6277, %v6269
        %v6790 = vpack.c.b16 %v6278, %v6270
        %v6791 = vpack.c.b16 %v6279, %v6271
        %7304 = vmatprep.subr.bf16.mxu0 %v6281
        %7305 = vmatpush1.bf16.msra.mxu0 %v6280
        %7306 = vmatprep.subr.bf16.mxu0 %v6289
        %7307 = vmatpush1.bf16.msra.mxu0 %v6288
        %7308 = vmatprep.subr.bf16.mxu0 %v6297
        %7309 = vmatpush1.bf16.msra.mxu0 %v6296
        %7310 = vmatprep.subr.bf16.mxu0 %v6305
        %7311 = vmatpush1.bf16.msra.mxu0 %v6304
        %7312 = vmatprep.subr.bf16.mxu0 %v6313
        %7313 = vmatpush1.bf16.msra.mxu0 %v6312
        %7314 = vmatprep.subr.bf16.mxu0 %v6321
        %7315 = vmatpush1.bf16.msra.mxu0 %v6320
        %7316 = vmatprep.subr.bf16.mxu0 %v6329
        %7317 = vmatpush1.bf16.msra.mxu0 %v6328
        %7318 = vmatprep.subr.bf16.mxu0 %v6337
        %7319 = vmatpush1.bf16.msra.mxu0 %v6336
        %7320 = vmatprep.subr.bf16.mxu0 %v6345
        %7321 = vmatpush1.bf16.msra.mxu0 %v6344
        %7322 = vmatprep.subr.bf16.mxu0 %v6353
        %7323 = vmatpush1.bf16.msra.mxu0 %v6352
        %7324 = vmatprep.subr.bf16.mxu0 %v6361
        %7325 = vmatpush1.bf16.msra.mxu0 %v6360
        %7326 = vmatprep.subr.bf16.mxu0 %v6369
        %7327 = vmatpush1.bf16.msra.mxu0 %v6368
        %7328 = vmatprep.subr.bf16.mxu0 %v6377
        %7329 = vmatpush1.bf16.msra.mxu0 %v6376
        %7330 = vmatprep.subr.bf16.mxu0 %v6385
        %7331 = vmatpush1.bf16.msra.mxu0 %v6384
        %7332 = vmatprep.subr.bf16.mxu0 %v6393
        %7333 = vmatpush1.bf16.msra.mxu0 %v6392
        %7334 = vmatprep.subr.bf16.mxu0 %v6401
        %7335 = vmatpush1.bf16.msra.mxu0 %v6400
        %7336 = vmatprep.mubr.bf16.mxu0 %v4724
        %7337 = vmatmul.mubr.bf16.gmra.mrb[0].mxu0 %v4710
        %v7338 = vpop.f32.mrb[0].mxu0
        %v7339 = vadd.f32 %v4649, %v7338
        %v7340 = vpop.f32.mrb[0].mxu0
        %v7341 = vadd.f32 %v4653, %v7340
        %v7342 = vpop.f32.mrb[0].mxu0
        %v7343 = vpop.f32.mrb[0].mxu0
        %7344 = vdwg.mxu0
        %7345 = vmatprep.subr.bf16.mxu0 %v6409
        %7346 = vmatpush1.bf16.msra.mxu0 %v6408
        %7347 = vmatprep.subr.bf16.mxu0 %v6417
        %7348 = vmatpush1.bf16.msra.mxu0 %v6416
        %7349 = vmatprep.subr.bf16.mxu0 %v6425
        %7350 = vmatpush1.bf16.msra.mxu0 %v6424
        %7351 = vmatprep.subr.bf16.mxu0 %v6433
        %7352 = vmatpush1.bf16.msra.mxu0 %v6432
        %7353 = vmatprep.subr.bf16.mxu0 %v6441
        %7354 = vmatpush1.bf16.msra.mxu0 %v6440
        %7355 = vmatprep.subr.bf16.mxu0 %v6449
        %7356 = vmatpush1.bf16.msra.mxu0 %v6448
        %7357 = vmatprep.subr.bf16.mxu0 %v6457
        %7358 = vmatpush1.bf16.msra.mxu0 %v6456
        %7359 = vmatprep.subr.bf16.mxu0 %v6465
        %7360 = vmatpush1.bf16.msra.mxu0 %v6464
        %7361 = vmatprep.subr.bf16.mxu0 %v6473
        %7362 = vmatpush1.bf16.msra.mxu0 %v6472
        %7363 = vmatprep.subr.bf16.mxu0 %v6481
        %7364 = vmatpush1.bf16.msra.mxu0 %v6480
        %7365 = vmatprep.subr.bf16.mxu0 %v6489
        %7366 = vmatpush1.bf16.msra.mxu0 %v6488
        %7367 = vmatprep.subr.bf16.mxu0 %v6497
        %7368 = vmatpush1.bf16.msra.mxu0 %v6496
        %7369 = vmatprep.subr.bf16.mxu0 %v6505
        %7370 = vmatpush1.bf16.msra.mxu0 %v6504
        %7371 = vmatprep.subr.bf16.mxu0 %v6513
        %7372 = vmatpush1.bf16.msra.mxu0 %v6512
        %7373 = vmatprep.subr.bf16.mxu0 %v6521
        %7374 = vmatpush1.bf16.msra.mxu0 %v6520
        %7375 = vmatprep.subr.bf16.mxu0 %v6529
        %7376 = vmatpush1.bf16.msra.mxu0 %v6528
        %7377 = vmatprep.mubr.bf16.mxu0 %v4734
        %7378 = vmatmul.mubr.bf16.gmra.mrb[0].mxu0 %v4732
        %v7379 = vpop.f32.mrb[0].mxu0
        %v7380 = vadd.f32 %v7339, %v7379
        %v7381 = vpop.f32.mrb[0].mxu0
        %v7382 = vadd.f32 %v7341, %v7381
        %v7383 = vpop.f32.mrb[0].mxu0
        %v7384 = vpop.f32.mrb[0].mxu0
        %7385 = vdwg.mxu0
        %7386 = vmatprep.subr.bf16.mxu0 %v6537
        %7387 = vmatpush1.bf16.msra.mxu0 %v6536
        %7388 = vmatprep.subr.bf16.mxu0 %v6545
        %7389 = vmatpush1.bf16.msra.mxu0 %v6544
        %7390 = vmatprep.subr.bf16.mxu0 %v6553
        %7391 = vmatpush1.bf16.msra.mxu0 %v6552
        %7392 = vmatprep.subr.bf16.mxu0 %v6561
        %7393 = vmatpush1.bf16.msra.mxu0 %v6560
        %7394 = vmatprep.subr.bf16.mxu0 %v6569
        %7395 = vmatpush1.bf16.msra.mxu0 %v6568
        %7396 = vmatprep.subr.bf16.mxu0 %v6577
        %7397 = vmatpush1.bf16.msra.mxu0 %v6576
        %7398 = vmatprep.subr.bf16.mxu0 %v6585
        %7399 = vmatpush1.bf16.msra.mxu0 %v6584
        %7400 = vmatprep.subr.bf16.mxu0 %v6593
        %7401 = vmatpush1.bf16.msra.mxu0 %v6592
        %7402 = vmatprep.subr.bf16.mxu0 %v6601
        %7403 = vmatpush1.bf16.msra.mxu0 %v6600
        %7404 = vmatprep.subr.bf16.mxu0 %v6609
        %7405 = vmatpush1.bf16.msra.mxu0 %v6608
        %7406 = vmatprep.subr.bf16.mxu0 %v6617
        %7407 = vmatpush1.bf16.msra.mxu0 %v6616
        %7408 = vmatprep.subr.bf16.mxu0 %v6625
        %7409 = vmatpush1.bf16.msra.mxu0 %v6624
        %7410 = vmatprep.subr.bf16.mxu0 %v6633
        %7411 = vmatpush1.bf16.msra.mxu0 %v6632
        %7412 = vmatprep.subr.bf16.mxu0 %v6641
        %7413 = vmatpush1.bf16.msra.mxu0 %v6640
        %7414 = vmatprep.subr.bf16.mxu0 %v6649
        %7415 = vmatpush1.bf16.msra.mxu0 %v6648
        %7416 = vmatprep.subr.bf16.mxu0 %v6657
        %7417 = vmatpush1.bf16.msra.mxu0 %v6656
        %7418 = vmatprep.mubr.bf16.mxu0 %v4731
        %7419 = vmatmul.mubr.bf16.gmra.mrb[0].mxu0 %v4717
        %v7420 = vpop.f32.mrb[0].mxu0
        %v7421 = vadd.f32 %v7380, %v7420
        %v7422 = vpop.f32.mrb[0].mxu0
        %v7423 = vadd.f32 %v7382, %v7422
        %v7424 = vpop.f32.mrb[0].mxu0
        %v7425 = vpop.f32.mrb[0].mxu0
        %7426 = vdwg.mxu0
        %7427 = vmatprep.subr.bf16.mxu0 %v6665
        %7428 = vmatpush1.bf16.msra.mxu0 %v6664
        %7429 = vmatprep.subr.bf16.mxu0 %v6673
        %7430 = vmatpush1.bf16.msra.mxu0 %v6672
        %7431 = vmatprep.subr.bf16.mxu0 %v6681
        %7432 = vmatpush1.bf16.msra.mxu0 %v6680
        %7433 = vmatprep.subr.bf16.mxu0 %v6689
        %7434 = vmatpush1.bf16.msra.mxu0 %v6688
        %7435 = vmatprep.subr.bf16.mxu0 %v6697
        %7436 = vmatpush1.bf16.msra.mxu0 %v6696
        %7437 = vmatprep.subr.bf16.mxu0 %v6705
        %7438 = vmatpush1.bf16.msra.mxu0 %v6704
        %7439 = vmatprep.subr.bf16.mxu0 %v6713
        %7440 = vmatpush1.bf16.msra.mxu0 %v6712
        %7441 = vmatprep.subr.bf16.mxu0 %v6721
        %7442 = vmatpush1.bf16.msra.mxu0 %v6720
        %7443 = vmatprep.subr.bf16.mxu0 %v6729
        %7444 = vmatpush1.bf16.msra.mxu0 %v6728
        %7445 = vmatprep.subr.bf16.mxu0 %v6737
        %7446 = vmatpush1.bf16.msra.mxu0 %v6736
        %7447 = vmatprep.subr.bf16.mxu0 %v6745
        %7448 = vmatpush1.bf16.msra.mxu0 %v6744
        %7449 = vmatprep.subr.bf16.mxu0 %v6753
        %7450 = vmatpush1.bf16.msra.mxu0 %v6752
        %7451 = vmatprep.subr.bf16.mxu0 %v6761
        %7452 = vmatpush1.bf16.msra.mxu0 %v6760
        %7453 = vmatprep.subr.bf16.mxu0 %v6769
        %7454 = vmatpush1.bf16.msra.mxu0 %v6768
        %7455 = vmatprep.subr.bf16.mxu0 %v6777
        %7456 = vmatpush1.bf16.msra.mxu0 %v6776
        %7457 = vmatprep.subr.bf16.mxu0 %v6785
        %7458 = vmatpush1.bf16.msra.mxu0 %v6784
        %7459 = vmatprep.mubr.bf16.mxu0 %v4735
        %7460 = vmatmul.mubr.bf16.gmra.mrb[0].mxu0 %v4733
        %v7461 = vpop.f32.mrb[0].mxu0
        %v7462 = vadd.f32 %v7421, %v7461
        %v7463 = vpop.f32.mrb[0].mxu0
        %v7464 = vadd.f32 %v7423, %v7463
        %v7465 = vpop.f32.mrb[0].mxu0
        %v7466 = vpop.f32.mrb[0].mxu0
        %7467 = vdwg.mxu0
        %7468 = vmatprep.subr.bf16.mxu0 %v6283
        %7469 = vmatpush1.bf16.msra.mxu0 %v6282
        %7470 = vmatprep.subr.bf16.mxu0 %v6291
        %7471 = vmatpush1.bf16.msra.mxu0 %v6290
        %7472 = vmatprep.subr.bf16.mxu0 %v6299
        %7473 = vmatpush1.bf16.msra.mxu0 %v6298
        %7474 = vmatprep.subr.bf16.mxu0 %v6307
        %7475 = vmatpush1.bf16.msra.mxu0 %v6306
        %7476 = vmatprep.subr.bf16.mxu0 %v6315
        %7477 = vmatpush1.bf16.msra.mxu0 %v6314
        %7478 = vmatprep.subr.bf16.mxu0 %v6323
        %7479 = vmatpush1.bf16.msra.mxu0 %v6322
        %7480 = vmatprep.subr.bf16.mxu0 %v6331
        %7481 = vmatpush1.bf16.msra.mxu0 %v6330
        %7482 = vmatprep.subr.bf16.mxu0 %v6339
        %7483 = vmatpush1.bf16.msra.mxu0 %v6338
        %7484 = vmatprep.subr.bf16.mxu0 %v6347
        %7485 = vmatpush1.bf16.msra.mxu0 %v6346
        %7486 = vmatprep.subr.bf16.mxu0 %v6355
        %7487 = vmatpush1.bf16.msra.mxu0 %v6354
        %7488 = vmatprep.subr.bf16.mxu0 %v6363
        %7489 = vmatpush1.bf16.msra.mxu0 %v6362
        %7490 = vmatprep.subr.bf16.mxu0 %v6371
        %7491 = vmatpush1.bf16.msra.mxu0 %v6370
        %7492 = vmatprep.subr.bf16.mxu0 %v6379
        %7493 = vmatpush1.bf16.msra.mxu0 %v6378
        %7494 = vmatprep.subr.bf16.mxu0 %v6387
        %7495 = vmatpush1.bf16.msra.mxu0 %v6386
        %7496 = vmatprep.subr.bf16.mxu0 %v6395
        %7497 = vmatpush1.bf16.msra.mxu0 %v6394
        %7498 = vmatprep.subr.bf16.mxu0 %v6403
        %7499 = vmatpush1.bf16.msra.mxu0 %v6402
        %7500 = vmatprep.mubr.bf16.mxu0 %v4724
        %7501 = vmatmul.mubr.bf16.gmra.mrb[0].mxu0 %v4710
        %v7502 = vpop.f32.mrb[0].mxu0
        %v7503 = vadd.f32 %v4657, %v7502
        %v7504 = vpop.f32.mrb[0].mxu0
        %v7505 = vadd.f32 %v4661, %v7504
        %v7506 = vpop.f32.mrb[0].mxu0
        %v7507 = vpop.f32.mrb[0].mxu0
        %7508 = vdwg.mxu0
        %7509 = vmatprep.subr.bf16.mxu0 %v6411
        %7510 = vmatpush1.bf16.msra.mxu0 %v6410
        %7511 = vmatprep.subr.bf16.mxu0 %v6419
        %7512 = vmatpush1.bf16.msra.mxu0 %v6418
        %7513 = vmatprep.subr.bf16.mxu0 %v6427
        %7514 = vmatpush1.bf16.msra.mxu0 %v6426
        %7515 = vmatprep.subr.bf16.mxu0 %v6435
        %7516 = vmatpush1.bf16.msra.mxu0 %v6434
        %7517 = vmatprep.subr.bf16.mxu0 %v6443
        %7518 = vmatpush1.bf16.msra.mxu0 %v6442
        %7519 = vmatprep.subr.bf16.mxu0 %v6451
        %7520 = vmatpush1.bf16.msra.mxu0 %v6450
        %7521 = vmatprep.subr.bf16.mxu0 %v6459
        %7522 = vmatpush1.bf16.msra.mxu0 %v6458
        %7523 = vmatprep.subr.bf16.mxu0 %v6467
        %7524 = vmatpush1.bf16.msra.mxu0 %v6466
        %7525 = vmatprep.subr.bf16.mxu0 %v6475
        %7526 = vmatpush1.bf16.msra.mxu0 %v6474
        %7527 = vmatprep.subr.bf16.mxu0 %v6483
        %7528 = vmatpush1.bf16.msra.mxu0 %v6482
        %7529 = vmatprep.subr.bf16.mxu0 %v6491
        %7530 = vmatpush1.bf16.msra.mxu0 %v6490
        %7531 = vmatprep.subr.bf16.mxu0 %v6499
        %7532 = vmatpush1.bf16.msra.mxu0 %v6498
        %7533 = vmatprep.subr.bf16.mxu0 %v6507
        %7534 = vmatpush1.bf16.msra.mxu0 %v6506
        %7535 = vmatprep.subr.bf16.mxu0 %v6515
        %7536 = vmatpush1.bf16.msra.mxu0 %v6514
        %7537 = vmatprep.subr.bf16.mxu0 %v6523
        %7538 = vmatpush1.bf16.msra.mxu0 %v6522
        %7539 = vmatprep.subr.bf16.mxu0 %v6531
        %7540 = vmatpush1.bf16.msra.mxu0 %v6530
        %7541 = vmatprep.mubr.bf16.mxu0 %v4734
        %7542 = vmatmul.mubr.bf16.gmra.mrb[0].mxu0 %v4732
        %v7543 = vpop.f32.mrb[0].mxu0
        %v7544 = vadd.f32 %v7503, %v7543
        %v7545 = vpop.f32.mrb[0].mxu0
        %v7546 = vadd.f32 %v7505, %v7545
        %v7547 = vpop.f32.mrb[0].mxu0
        %v7548 = vpop.f32.mrb[0].mxu0
        %7549 = vdwg.mxu0
        %7550 = vmatprep.subr.bf16.mxu0 %v6539
        %7551 = vmatpush1.bf16.msra.mxu0 %v6538
        %7552 = vmatprep.subr.bf16.mxu0 %v6547
        %7553 = vmatpush1.bf16.msra.mxu0 %v6546
        %7554 = vmatprep.subr.bf16.mxu0 %v6555
        %7555 = vmatpush1.bf16.msra.mxu0 %v6554
        %7556 = vmatprep.subr.bf16.mxu0 %v6563
        %7557 = vmatpush1.bf16.msra.mxu0 %v6562
        %7558 = vmatprep.subr.bf16.mxu0 %v6571
        %7559 = vmatpush1.bf16.msra.mxu0 %v6570
        %7560 = vmatprep.subr.bf16.mxu0 %v6579
        %7561 = vmatpush1.bf16.msra.mxu0 %v6578
        %7562 = vmatprep.subr.bf16.mxu0 %v6587
        %7563 = vmatpush1.bf16.msra.mxu0 %v6586
        %7564 = vmatprep.subr.bf16.mxu0 %v6595
        %7565 = vmatpush1.bf16.msra.mxu0 %v6594
        %7566 = vmatprep.subr.bf16.mxu0 %v6603
        %7567 = vmatpush1.bf16.msra.mxu0 %v6602
        %7568 = vmatprep.subr.bf16.mxu0 %v6611
        %7569 = vmatpush1.bf16.msra.mxu0 %v6610
        %7570 = vmatprep.subr.bf16.mxu0 %v6619
        %7571 = vmatpush1.bf16.msra.mxu0 %v6618
        %7572 = vmatprep.subr.bf16.mxu0 %v6627
        %7573 = vmatpush1.bf16.msra.mxu0 %v6626
        %7574 = vmatprep.subr.bf16.mxu0 %v6635
        %7575 = vmatpush1.bf16.msra.mxu0 %v6634
        %7576 = vmatprep.subr.bf16.mxu0 %v6643
        %7577 = vmatpush1.bf16.msra.mxu0 %v6642
        %7578 = vmatprep.subr.bf16.mxu0 %v6651
        %7579 = vmatpush1.bf16.msra.mxu0 %v6650
        %7580 = vmatprep.subr.bf16.mxu0 %v6659
        %7581 = vmatpush1.bf16.msra.mxu0 %v6658
        %7582 = vmatprep.mubr.bf16.mxu0 %v4731
        %7583 = vmatmul.mubr.bf16.gmra.mrb[0].mxu0 %v4717
        %v7584 = vpop.f32.mrb[0].mxu0
        %v7585 = vadd.f32 %v7544, %v7584
        %v7586 = vpop.f32.mrb[0].mxu0
        %v7587 = vadd.f32 %v7546, %v7586
        %v7588 = vpop.f32.mrb[0].mxu0
        %v7589 = vpop.f32.mrb[0].mxu0
        %7590 = vdwg.mxu0
        %7591 = vmatprep.subr.bf16.mxu0 %v6667
        %7592 = vmatpush1.bf16.msra.mxu0 %v6666
        %7593 = vmatprep.subr.bf16.mxu0 %v6675
        %7594 = vmatpush1.bf16.msra.mxu0 %v6674
        %7595 = vmatprep.subr.bf16.mxu0 %v6683
        %7596 = vmatpush1.bf16.msra.mxu0 %v6682
        %7597 = vmatprep.subr.bf16.mxu0 %v6691
        %7598 = vmatpush1.bf16.msra.mxu0 %v6690
        %7599 = vmatprep.subr.bf16.mxu0 %v6699
        %7600 = vmatpush1.bf16.msra.mxu0 %v6698
        %7601 = vmatprep.subr.bf16.mxu0 %v6707
        %7602 = vmatpush1.bf16.msra.mxu0 %v6706
        %7603 = vmatprep.subr.bf16.mxu0 %v6715
        %7604 = vmatpush1.bf16.msra.mxu0 %v6714
        %7605 = vmatprep.subr.bf16.mxu0 %v6723
        %7606 = vmatpush1.bf16.msra.mxu0 %v6722
        %7607 = vmatprep.subr.bf16.mxu0 %v6731
        %7608 = vmatpush1.bf16.msra.mxu0 %v6730
        %7609 = vmatprep.subr.bf16.mxu0 %v6739
        %7610 = vmatpush1.bf16.msra.mxu0 %v6738
        %7611 = vmatprep.subr.bf16.mxu0 %v6747
        %7612 = vmatpush1.bf16.msra.mxu0 %v6746
        %7613 = vmatprep.subr.bf16.mxu0 %v6755
        %7614 = vmatpush1.bf16.msra.mxu0 %v6754
        %7615 = vmatprep.subr.bf16.mxu0 %v6763
        %7616 = vmatpush1.bf16.msra.mxu0 %v6762
        %7617 = vmatprep.subr.bf16.mxu0 %v6771
        %7618 = vmatpush1.bf16.msra.mxu0 %v6770
        %7619 = vmatprep.subr.bf16.mxu0 %v6779
        %7620 = vmatpush1.bf16.msra.mxu0 %v6778
        %7621 = vmatprep.subr.bf16.mxu0 %v6787
        %7622 = vmatpush1.bf16.msra.mxu0 %v6786
        %7623 = vmatprep.mubr.bf16.mxu0 %v4735
        %7624 = vmatmul.mubr.bf16.gmra.mrb[0].mxu0 %v4733
        %v7625 = vpop.f32.mrb[0].mxu0
        %v7626 = vadd.f32 %v7585, %v7625
        %v7627 = vpop.f32.mrb[0].mxu0
        %v7628 = vadd.f32 %v7587, %v7627
        %v7629 = vpop.f32.mrb[0].mxu0
        %v7630 = vpop.f32.mrb[0].mxu0
        %7631 = vdwg.mxu0
        %7632 = vmatprep.subr.bf16.mxu0 %v6285
        %7633 = vmatpush1.bf16.msra.mxu0 %v6284
        %7634 = vmatprep.subr.bf16.mxu0 %v6293
        %7635 = vmatpush1.bf16.msra.mxu0 %v6292
        %7636 = vmatprep.subr.bf16.mxu0 %v6301
        %7637 = vmatpush1.bf16.msra.mxu0 %v6300
        %7638 = vmatprep.subr.bf16.mxu0 %v6309
        %7639 = vmatpush1.bf16.msra.mxu0 %v6308
        %7640 = vmatprep.subr.bf16.mxu0 %v6317
        %7641 = vmatpush1.bf16.msra.mxu0 %v6316
        %7642 = vmatprep.subr.bf16.mxu0 %v6325
        %7643 = vmatpush1.bf16.msra.mxu0 %v6324
        %7644 = vmatprep.subr.bf16.mxu0 %v6333
        %7645 = vmatpush1.bf16.msra.mxu0 %v6332
        %7646 = vmatprep.subr.bf16.mxu0 %v6341
        %7647 = vmatpush1.bf16.msra.mxu0 %v6340
        %7648 = vmatprep.subr.bf16.mxu0 %v6349
        %7649 = vmatpush1.bf16.msra.mxu0 %v6348
        %7650 = vmatprep.subr.bf16.mxu0 %v6357
        %7651 = vmatpush1.bf16.msra.mxu0 %v6356
        %7652 = vmatprep.subr.bf16.mxu0 %v6365
        %7653 = vmatpush1.bf16.msra.mxu0 %v6364
        %7654 = vmatprep.subr.bf16.mxu0 %v6373
        %7655 = vmatpush1.bf16.msra.mxu0 %v6372
        %7656 = vmatprep.subr.bf16.mxu0 %v6381
        %7657 = vmatpush1.bf16.msra.mxu0 %v6380
        %7658 = vmatprep.subr.bf16.mxu0 %v6389
        %7659 = vmatpush1.bf16.msra.mxu0 %v6388
        %7660 = vmatprep.subr.bf16.mxu0 %v6397
        %7661 = vmatpush1.bf16.msra.mxu0 %v6396
        %7662 = vmatprep.subr.bf16.mxu0 %v6405
        %7663 = vmatpush1.bf16.msra.mxu0 %v6404
        %7664 = vmatprep.mubr.bf16.mxu0 %v4724
        %7665 = vmatmul.mubr.bf16.gmra.mrb[0].mxu0 %v4710
        %v7666 = vpop.f32.mrb[0].mxu0
        %v7667 = vadd.f32 %v4665, %v7666
        %v7668 = vpop.f32.mrb[0].mxu0
        %v7669 = vadd.f32 %v4669, %v7668
        %v7670 = vpop.f32.mrb[0].mxu0
        %v7671 = vpop.f32.mrb[0].mxu0
        %7672 = vdwg.mxu0
        %7673 = vmatprep.subr.bf16.mxu0 %v6413
        %7674 = vmatpush1.bf16.msra.mxu0 %v6412
        %7675 = vmatprep.subr.bf16.mxu0 %v6421
        %7676 = vmatpush1.bf16.msra.mxu0 %v6420
        %7677 = vmatprep.subr.bf16.mxu0 %v6429
        %7678 = vmatpush1.bf16.msra.mxu0 %v6428
        %7679 = vmatprep.subr.bf16.mxu0 %v6437
        %7680 = vmatpush1.bf16.msra.mxu0 %v6436
        %7681 = vmatprep.subr.bf16.mxu0 %v6445
        %7682 = vmatpush1.bf16.msra.mxu0 %v6444
        %7683 = vmatprep.subr.bf16.mxu0 %v6453
        %7684 = vmatpush1.bf16.msra.mxu0 %v6452
        %7685 = vmatprep.subr.bf16.mxu0 %v6461
        %7686 = vmatpush1.bf16.msra.mxu0 %v6460
        %7687 = vmatprep.subr.bf16.mxu0 %v6469
        %7688 = vmatpush1.bf16.msra.mxu0 %v6468
        %7689 = vmatprep.subr.bf16.mxu0 %v6477
        %7690 = vmatpush1.bf16.msra.mxu0 %v6476
        %7691 = vmatprep.subr.bf16.mxu0 %v6485
        %7692 = vmatpush1.bf16.msra.mxu0 %v6484
        %7693 = vmatprep.subr.bf16.mxu0 %v6493
        %7694 = vmatpush1.bf16.msra.mxu0 %v6492
        %7695 = vmatprep.subr.bf16.mxu0 %v6501
        %7696 = vmatpush1.bf16.msra.mxu0 %v6500
        %7697 = vmatprep.subr.bf16.mxu0 %v6509
        %7698 = vmatpush1.bf16.msra.mxu0 %v6508
        %7699 = vmatprep.subr.bf16.mxu0 %v6517
        %7700 = vmatpush1.bf16.msra.mxu0 %v6516
        %7701 = vmatprep.subr.bf16.mxu0 %v6525
        %7702 = vmatpush1.bf16.msra.mxu0 %v6524
        %7703 = vmatprep.subr.bf16.mxu0 %v6533
        %7704 = vmatpush1.bf16.msra.mxu0 %v6532
        %7705 = vmatprep.mubr.bf16.mxu0 %v4734
        %7706 = vmatmul.mubr.bf16.gmra.mrb[0].mxu0 %v4732
        %v7707 = vpop.f32.mrb[0].mxu0
        %v7708 = vadd.f32 %v7667, %v7707
        %v7709 = vpop.f32.mrb[0].mxu0
        %v7710 = vadd.f32 %v7669, %v7709
        %v7711 = vpop.f32.mrb[0].mxu0
        %v7712 = vpop.f32.mrb[0].mxu0
        %7713 = vdwg.mxu0
        %7714 = vmatprep.subr.bf16.mxu0 %v6541
        %7715 = vmatpush1.bf16.msra.mxu0 %v6540
        %7716 = vmatprep.subr.bf16.mxu0 %v6549
        %7717 = vmatpush1.bf16.msra.mxu0 %v6548
        %7718 = vmatprep.subr.bf16.mxu0 %v6557
        %7719 = vmatpush1.bf16.msra.mxu0 %v6556
        %7720 = vmatprep.subr.bf16.mxu0 %v6565
        %7721 = vmatpush1.bf16.msra.mxu0 %v6564
        %7722 = vmatprep.subr.bf16.mxu0 %v6573
        %7723 = vmatpush1.bf16.msra.mxu0 %v6572
        %7724 = vmatprep.subr.bf16.mxu0 %v6581
        %7725 = vmatpush1.bf16.msra.mxu0 %v6580
        %7726 = vmatprep.subr.bf16.mxu0 %v6589
        %7727 = vmatpush1.bf16.msra.mxu0 %v6588
        %7728 = vmatprep.subr.bf16.mxu0 %v6597
        %7729 = vmatpush1.bf16.msra.mxu0 %v6596
        %7730 = vmatprep.subr.bf16.mxu0 %v6605
        %7731 = vmatpush1.bf16.msra.mxu0 %v6604
        %7732 = vmatprep.subr.bf16.mxu0 %v6613
        %7733 = vmatpush1.bf16.msra.mxu0 %v6612
        %7734 = vmatprep.subr.bf16.mxu0 %v6621
        %7735 = vmatpush1.bf16.msra.mxu0 %v6620
        %7736 = vmatprep.subr.bf16.mxu0 %v6629
        %7737 = vmatpush1.bf16.msra.mxu0 %v6628
        %7738 = vmatprep.subr.bf16.mxu0 %v6637
        %7739 = vmatpush1.bf16.msra.mxu0 %v6636
        %7740 = vmatprep.subr.bf16.mxu0 %v6645
        %7741 = vmatpush1.bf16.msra.mxu0 %v6644
        %7742 = vmatprep.subr.bf16.mxu0 %v6653
        %7743 = vmatpush1.bf16.msra.mxu0 %v6652
        %7744 = vmatprep.subr.bf16.mxu0 %v6661
        %7745 = vmatpush1.bf16.msra.mxu0 %v6660
        %7746 = vmatprep.mubr.bf16.mxu0 %v4731
        %7747 = vmatmul.mubr.bf16.gmra.mrb[0].mxu0 %v4717
        %v7748 = vpop.f32.mrb[0].mxu0
        %v7749 = vadd.f32 %v7708, %v7748
        %v7750 = vpop.f32.mrb[0].mxu0
        %v7751 = vadd.f32 %v7710, %v7750
        %v7752 = vpop.f32.mrb[0].mxu0
        %v7753 = vpop.f32.mrb[0].mxu0
        %7754 = vdwg.mxu0
        %7755 = vmatprep.subr.bf16.mxu0 %v6669
        %7756 = vmatpush1.bf16.msra.mxu0 %v6668
        %7757 = vmatprep.subr.bf16.mxu0 %v6677
        %7758 = vmatpush1.bf16.msra.mxu0 %v6676
        %7759 = vmatprep.subr.bf16.mxu0 %v6685
        %7760 = vmatpush1.bf16.msra.mxu0 %v6684
        %7761 = vmatprep.subr.bf16.mxu0 %v6693
        %7762 = vmatpush1.bf16.msra.mxu0 %v6692
        %7763 = vmatprep.subr.bf16.mxu0 %v6701
        %7764 = vmatpush1.bf16.msra.mxu0 %v6700
        %7765 = vmatprep.subr.bf16.mxu0 %v6709
        %7766 = vmatpush1.bf16.msra.mxu0 %v6708
        %7767 = vmatprep.subr.bf16.mxu0 %v6717
        %7768 = vmatpush1.bf16.msra.mxu0 %v6716
        %7769 = vmatprep.subr.bf16.mxu0 %v6725
        %7770 = vmatpush1.bf16.msra.mxu0 %v6724
        %7771 = vmatprep.subr.bf16.mxu0 %v6733
        %7772 = vmatpush1.bf16.msra.mxu0 %v6732
        %7773 = vmatprep.subr.bf16.mxu0 %v6741
        %7774 = vmatpush1.bf16.msra.mxu0 %v6740
        %7775 = vmatprep.subr.bf16.mxu0 %v6749
        %7776 = vmatpush1.bf16.msra.mxu0 %v6748
        %7777 = vmatprep.subr.bf16.mxu0 %v6757
        %7778 = vmatpush1.bf16.msra.mxu0 %v6756
        %7779 = vmatprep.subr.bf16.mxu0 %v6765
        %7780 = vmatpush1.bf16.msra.mxu0 %v6764
        %7781 = vmatprep.subr.bf16.mxu0 %v6773
        %7782 = vmatpush1.bf16.msra.mxu0 %v6772
        %7783 = vmatprep.subr.bf16.mxu0 %v6781
        %7784 = vmatpush1.bf16.msra.mxu0 %v6780
        %7785 = vmatprep.subr.bf16.mxu0 %v6789
        %7786 = vmatpush1.bf16.msra.mxu0 %v6788
        %7787 = vmatprep.mubr.bf16.mxu0 %v4735
        %7788 = vmatmul.mubr.bf16.gmra.mrb[0].mxu0 %v4733
        %v7789 = vpop.f32.mrb[0].mxu0
        %v7790 = vadd.f32 %v7749, %v7789
        %v7791 = vpop.f32.mrb[0].mxu0
        %v7792 = vadd.f32 %v7751, %v7791
        %v7793 = vpop.f32.mrb[0].mxu0
        %v7794 = vpop.f32.mrb[0].mxu0
        %7795 = vdwg.mxu0
        %7796 = vmatprep.subr.bf16.mxu0 %v6287
        %7797 = vmatpush1.bf16.msra.mxu0 %v6286
        %7798 = vmatprep.subr.bf16.mxu0 %v6295
        %7799 = vmatpush1.bf16.msra.mxu0 %v6294
        %7800 = vmatprep.subr.bf16.mxu0 %v6303
        %7801 = vmatpush1.bf16.msra.mxu0 %v6302
        %7802 = vmatprep.subr.bf16.mxu0 %v6311
        %7803 = vmatpush1.bf16.msra.mxu0 %v6310
        %7804 = vmatprep.subr.bf16.mxu0 %v6319
        %7805 = vmatpush1.bf16.msra.mxu0 %v6318
        %7806 = vmatprep.subr.bf16.mxu0 %v6327
        %7807 = vmatpush1.bf16.msra.mxu0 %v6326
        %7808 = vmatprep.subr.bf16.mxu0 %v6335
        %7809 = vmatpush1.bf16.msra.mxu0 %v6334
        %7810 = vmatprep.subr.bf16.mxu0 %v6343
        %7811 = vmatpush1.bf16.msra.mxu0 %v6342
        %7812 = vmatprep.subr.bf16.mxu0 %v6351
        %7813 = vmatpush1.bf16.msra.mxu0 %v6350
        %7814 = vmatprep.subr.bf16.mxu0 %v6359
        %7815 = vmatpush1.bf16.msra.mxu0 %v6358
        %7816 = vmatprep.subr.bf16.mxu0 %v6367
        %7817 = vmatpush1.bf16.msra.mxu0 %v6366
        %7818 = vmatprep.subr.bf16.mxu0 %v6375
        %7819 = vmatpush1.bf16.msra.mxu0 %v6374
        %7820 = vmatprep.subr.bf16.mxu0 %v6383
        %7821 = vmatpush1.bf16.msra.mxu0 %v6382
        %7822 = vmatprep.subr.bf16.mxu0 %v6391
        %7823 = vmatpush1.bf16.msra.mxu0 %v6390
        %7824 = vmatprep.subr.bf16.mxu0 %v6399
        %7825 = vmatpush1.bf16.msra.mxu0 %v6398
        %7826 = vmatprep.subr.bf16.mxu0 %v6407
        %7827 = vmatpush1.bf16.msra.mxu0 %v6406
        %7828 = vmatprep.mubr.bf16.mxu0 %v4724
        %7829 = vmatmul.mubr.bf16.gmra.mrb[0].mxu0 %v4710
        %v7830 = vpop.f32.mrb[0].mxu0
        %v7831 = vadd.f32 %v4673, %v7830
        %v7832 = vpop.f32.mrb[0].mxu0
        %v7833 = vadd.f32 %v4677, %v7832
        %v7834 = vpop.f32.mrb[0].mxu0
        %v7835 = vpop.f32.mrb[0].mxu0
        %7836 = vdwg.mxu0
        %7837 = vmatprep.subr.bf16.mxu0 %v6415
        %7838 = vmatpush1.bf16.msra.mxu0 %v6414
        %7839 = vmatprep.subr.bf16.mxu0 %v6423
        %7840 = vmatpush1.bf16.msra.mxu0 %v6422
        %7841 = vmatprep.subr.bf16.mxu0 %v6431
        %7842 = vmatpush1.bf16.msra.mxu0 %v6430
        %7843 = vmatprep.subr.bf16.mxu0 %v6439
        %7844 = vmatpush1.bf16.msra.mxu0 %v6438
        %7845 = vmatprep.subr.bf16.mxu0 %v6447
        %7846 = vmatpush1.bf16.msra.mxu0 %v6446
        %7847 = vmatprep.subr.bf16.mxu0 %v6455
        %7848 = vmatpush1.bf16.msra.mxu0 %v6454
        %7849 = vmatprep.subr.bf16.mxu0 %v6463
        %7850 = vmatpush1.bf16.msra.mxu0 %v6462
        %7851 = vmatprep.subr.bf16.mxu0 %v6471
        %7852 = vmatpush1.bf16.msra.mxu0 %v6470
        %7853 = vmatprep.subr.bf16.mxu0 %v6479
        %7854 = vmatpush1.bf16.msra.mxu0 %v6478
        %7855 = vmatprep.subr.bf16.mxu0 %v6487
        %7856 = vmatpush1.bf16.msra.mxu0 %v6486
        %7857 = vmatprep.subr.bf16.mxu0 %v6495
        %7858 = vmatpush1.bf16.msra.mxu0 %v6494
        %7859 = vmatprep.subr.bf16.mxu0 %v6503
        %7860 = vmatpush1.bf16.msra.mxu0 %v6502
        %7861 = vmatprep.subr.bf16.mxu0 %v6511
        %7862 = vmatpush1.bf16.msra.mxu0 %v6510
        %7863 = vmatprep.subr.bf16.mxu0 %v6519
        %7864 = vmatpush1.bf16.msra.mxu0 %v6518
        %7865 = vmatprep.subr.bf16.mxu0 %v6527
        %7866 = vmatpush1.bf16.msra.mxu0 %v6526
        %7867 = vmatprep.subr.bf16.mxu0 %v6535
        %7868 = vmatpush1.bf16.msra.mxu0 %v6534
        %7869 = vmatprep.mubr.bf16.mxu0 %v4734
        %7870 = vmatmul.mubr.bf16.gmra.mrb[0].mxu0 %v4732
        %v7871 = vpop.f32.mrb[0].mxu0
        %v7872 = vadd.f32 %v7831, %v7871
        %v7873 = vpop.f32.mrb[0].mxu0
        %v7874 = vadd.f32 %v7833, %v7873
        %v7875 = vpop.f32.mrb[0].mxu0
        %v7876 = vpop.f32.mrb[0].mxu0
        %7877 = vdwg.mxu0
        %7878 = vmatprep.subr.bf16.mxu0 %v6543
        %7879 = vmatpush1.bf16.msra.mxu0 %v6542
        %7880 = vmatprep.subr.bf16.mxu0 %v6551
        %7881 = vmatpush1.bf16.msra.mxu0 %v6550
        %7882 = vmatprep.subr.bf16.mxu0 %v6559
        %7883 = vmatpush1.bf16.msra.mxu0 %v6558
        %7884 = vmatprep.subr.bf16.mxu0 %v6567
        %7885 = vmatpush1.bf16.msra.mxu0 %v6566
        %7886 = vmatprep.subr.bf16.mxu0 %v6575
        %7887 = vmatpush1.bf16.msra.mxu0 %v6574
        %7888 = vmatprep.subr.bf16.mxu0 %v6583
        %7889 = vmatpush1.bf16.msra.mxu0 %v6582
        %7890 = vmatprep.subr.bf16.mxu0 %v6591
        %7891 = vmatpush1.bf16.msra.mxu0 %v6590
        %7892 = vmatprep.subr.bf16.mxu0 %v6599
        %7893 = vmatpush1.bf16.msra.mxu0 %v6598
        %7894 = vmatprep.subr.bf16.mxu0 %v6607
        %7895 = vmatpush1.bf16.msra.mxu0 %v6606
        %7896 = vmatprep.subr.bf16.mxu0 %v6615
        %7897 = vmatpush1.bf16.msra.mxu0 %v6614
        %7898 = vmatprep.subr.bf16.mxu0 %v6623
        %7899 = vmatpush1.bf16.msra.mxu0 %v6622
        %7900 = vmatprep.subr.bf16.mxu0 %v6631
        %7901 = vmatpush1.bf16.msra.mxu0 %v6630
        %7902 = vmatprep.subr.bf16.mxu0 %v6639
        %7903 = vmatpush1.bf16.msra.mxu0 %v6638
        %7904 = vmatprep.subr.bf16.mxu0 %v6647
        %7905 = vmatpush1.bf16.msra.mxu0 %v6646
        %7906 = vmatprep.subr.bf16.mxu0 %v6655
        %7907 = vmatpush1.bf16.msra.mxu0 %v6654
        %7908 = vmatprep.subr.bf16.mxu0 %v6663
        %7909 = vmatpush1.bf16.msra.mxu0 %v6662
        %7910 = vmatprep.mubr.bf16.mxu0 %v4731
        %7911 = vmatmul.mubr.bf16.gmra.mrb[0].mxu0 %v4717
        %v7912 = vpop.f32.mrb[0].mxu0
        %v7913 = vadd.f32 %v7872, %v7912
        %v7914 = vpop.f32.mrb[0].mxu0
        %v7915 = vadd.f32 %v7874, %v7914
        %v7916 = vpop.f32.mrb[0].mxu0
        %v7917 = vpop.f32.mrb[0].mxu0
        %7918 = vdwg.mxu0
        %7919 = vmatprep.subr.bf16.mxu0 %v6671
        %7920 = vmatpush1.bf16.msra.mxu0 %v6670
        %7921 = vmatprep.subr.bf16.mxu0 %v6679
        %7922 = vmatpush1.bf16.msra.mxu0 %v6678
        %7923 = vmatprep.subr.bf16.mxu0 %v6687
        %7924 = vmatpush1.bf16.msra.mxu0 %v6686
        %7925 = vmatprep.subr.bf16.mxu0 %v6695
        %7926 = vmatpush1.bf16.msra.mxu0 %v6694
        %7927 = vmatprep.subr.bf16.mxu0 %v6703
        %7928 = vmatpush1.bf16.msra.mxu0 %v6702
        %7929 = vmatprep.subr.bf16.mxu0 %v6711
        %7930 = vmatpush1.bf16.msra.mxu0 %v6710
        %7931 = vmatprep.subr.bf16.mxu0 %v6719
        %7932 = vmatpush1.bf16.msra.mxu0 %v6718
        %7933 = vmatprep.subr.bf16.mxu0 %v6727
        %7934 = vmatpush1.bf16.msra.mxu0 %v6726
        %7935 = vmatprep.subr.bf16.mxu0 %v6735
        %7936 = vmatpush1.bf16.msra.mxu0 %v6734
        %7937 = vmatprep.subr.bf16.mxu0 %v6743
        %7938 = vmatpush1.bf16.msra.mxu0 %v6742
        %7939 = vmatprep.subr.bf16.mxu0 %v6751
        %7940 = vmatpush1.bf16.msra.mxu0 %v6750
        %7941 = vmatprep.subr.bf16.mxu0 %v6759
        %7942 = vmatpush1.bf16.msra.mxu0 %v6758
        %7943 = vmatprep.subr.bf16.mxu0 %v6767
        %7944 = vmatpush1.bf16.msra.mxu0 %v6766
        %7945 = vmatprep.subr.bf16.mxu0 %v6775
        %7946 = vmatpush1.bf16.msra.mxu0 %v6774
        %7947 = vmatprep.subr.bf16.mxu0 %v6783
        %7948 = vmatpush1.bf16.msra.mxu0 %v6782
        %7949 = vmatprep.subr.bf16.mxu0 %v6791
        %7950 = vmatpush1.bf16.msra.mxu0 %v6790
        %7951 = vmatprep.mubr.bf16.mxu0 %v4735
        %7952 = vmatmul.mubr.bf16.gmra.mrb[0].mxu0 %v4733
        %v7953 = vpop.f32.mrb[0].mxu0
        %v7954 = vadd.f32 %v7913, %v7953
        %v7955 = vpop.f32.mrb[0].mxu0
        %v7956 = vadd.f32 %v7915, %v7955
        %v7957 = vpop.f32.mrb[0].mxu0
        %v7958 = vpop.f32.mrb[0].mxu0
        %7959 = vdwg.mxu0
        %v7968 = vcombine.low %v7462, %v7464
        %v7969 = vcombine.low %v7626, %v7628
        %v7971 = vunpack.c.l.s4 1983009808
        %v7972 = vunpack.c.0.s8 %v7971
        %v7973 = vlaneseq
        %v7974 = vshrl.u32 %v7973, 7
        %v7975 = vsub.s32 %v7972, %v7974
        %v7976 = vrot.slane %v7968, %v7975
        %v7978 = vunpack.c.l.s4 1983009808
        %v7979 = vunpack.c.0.s8 %v7978
        %v7980 = vlaneseq
        %v7981 = vshrl.u32 %v7980, 7
        %v7982 = vsub.s32 %v7979, %v7981
        %v7983 = vrot.slane %v7969, %v7982
        %v7984 = vcombine.low %v7976, %v7983
        %v7985 = vcombine.low %v7790, %v7792
        %v7986 = vcombine.low %v7954, %v7956
        %v7988 = vunpack.c.l.s4 1983009808
        %v7989 = vunpack.c.0.s8 %v7988
        %v7990 = vlaneseq
        %v7991 = vshrl.u32 %v7990, 7
        %v7992 = vsub.s32 %v7989, %v7991
        %v7993 = vrot.slane %v7985, %v7992
        %v7995 = vunpack.c.l.s4 1983009808
        %v7996 = vunpack.c.0.s8 %v7995
        %v7997 = vlaneseq
        %v7998 = vshrl.u32 %v7997, 7
        %v7999 = vsub.s32 %v7996, %v7998
        %v8000 = vrot.slane %v7986, %v7999
        %v8001 = vcombine.low %v7993, %v8000
        %8004 = vst [vmem:[%s1477] sm:$0xff] %v7984
        %8005 = vst [vmem:[%s1477 + $0x8] sm:$0xff] %v8001
        %s8006 = smul.u32 8, %s26
        %p8007 = scmp.lt.s32.totalorder %s25, 0
        %s8008 = scalar_select %p8007, %s25, 0
        %p8009 = scmp.lt.s32.totalorder %s8006, 23
        %s8010 = scalar_select %p8009, %s8006, 23
        %s8011 = smul.addr %s8008, 24
        %s8012 = sadd.s32 %s8010, %s8011
        %s8013 = smul.addr %s8012, 2
        %s8014 = scalar_lea.vmem %s10, %s8013
        // Predicated region
        $region88: #{generator_forward.1} parent=78 // pred_check
          %p8015 = pneg %p283
        $region89: #{generator_forward.1} parent=78 // pred_check_branch
          %8017 = sbr.rel (%p8015) target = $region91
        $region90: #{generator_forward.1} parent=78 // pred_region
          %s8018 = smul.u32 8, %s26
        $region91: #{generator_forward.1} parent=78 // pred_fallthru
          _
      $region79: #{generator_forward.1} parent=5 // pred_fallthru
        _
      %p8019 = scmp.le.s32.totalorder 2, %s16
      // Predicated region
      $region92: #{generator_forward.1} parent=5 // pred_check
        %p8020 = pneg %p8019
      $region93: #{generator_forward.1} parent=5 // pred_check_branch
        %8022 = sbr.rel (%p8020) target = $region95
      $region94: #{generator_forward.1} parent=5 // pred_region
        %s8023 = ssub.s32 %s16, 2
        // Predicated region
        $region96: #{generator_forward.1} parent=94 // pred_check
          %p8024 = pneg %p289
        $region97: #{generator_forward.1} parent=94 // pred_check_branch
          %8026 = sbr.rel (%p8024) target = $region99
        $region98: #{generator_forward.1} parent=94 // pred_region
          %s8027 = smul.u32 8, %s28
          %p8028 = scmp.lt.s32.totalorder %s27, 0
          %s8029 = scalar_select %p8028, %s27, 0
          %p8030 = scmp.lt.s32.totalorder %s8027, 23
          %s8031 = scalar_select %p8030, %s8027, 23
          %s8032 = smul.addr %s8029, 24
          %s8033 = sadd.s32 %s8031, %s8032
          %s8034 = smul.addr %s8033, 2
          %s8035 = scalar_lea.vmem %s10, %s8034
        $region99: #{generator_forward.1} parent=94 // pred_fallthru
          _
      $region95: #{generator_forward.1} parent=5 // pred_fallthru
        _
    $region6: #{generator_forward.1} parent=1 // loop_footer
      %s20 = sadd.s32 1, %s16
    $region7: #{generator_forward.1} parent=1 // loop_footer_branch
      %15 = sbr.rel target = $region3
    $region8: #{generator_forward.1} parent=1 // loop_exit
      _

</llo_original>
